<compile_context>
chip_gen: v7x
topology: tpu7x:2x2x1
jax: 0.10.0
libtpu: 0.0.40
codegen_flags: <defaults>
</compile_context>

<pallas_src>
import functools

import jax
import jax.numpy as jnp
from jax.experimental import pallas as pl
from jax.experimental.pallas import tpu as pltpu

BN_EPS = 1e-5
LANE = 128       # TPU lane width: conv output channels / classes padded to this.
MAX_TM = 1024    # max rows of the im2col matrix per grid step.


def _round_up(v, m):
    return (v + m - 1) // m * m


# ----------------------------------------------------------------------------
# One-time parameter prep (6-bit STE fake quant + matmul layout + padding)
# ----------------------------------------------------------------------------
def apply_ste(w, bits=6):
    abs_w = jnp.abs(w)
    sign = jnp.sign(w)
    max_q = 2 ** (bits - 1) - 1
    scale = jnp.maximum(jnp.max(abs_w) / max_q, 1e-12)   # guard all-zero tensors
    q = jnp.clip(jnp.round(abs_w / scale), 0, max_q)
    return sign * q * scale


def _prep_conv(w_oihw, gamma, beta):
    cout, cin, k, _ = w_oihw.shape
    wq = apply_ste(w_oihw, 6)
    kk = k * k * cin
    kk_pad = _round_up(kk, LANE)                 # lane/MXU-friendly K
    wmat = jnp.transpose(wq, (2, 3, 1, 0)).reshape(kk, cout)
    wmat = jnp.pad(wmat, ((0, kk_pad - kk), (0, LANE - cout))).astype(jnp.bfloat16)
    g = jnp.pad(gamma.astype(jnp.float32), (0, LANE - cout)).reshape(1, LANE)
    b = jnp.pad(beta.astype(jnp.float32), (0, LANE - cout)).reshape(1, LANE)
    return {"wmat": wmat, "gamma": g, "beta": b, "k": k, "cout": cout,
            "kk": kk, "kk_pad": kk_pad}


# ----------------------------------------------------------------------------
# Pallas kernels
# ----------------------------------------------------------------------------
def _matmul_stats_kernel(x_ref, w_ref, y_ref, stats_ref):
    # x: (TM, Kpad) bf16 im2col tile, w: (Kpad, 128) bf16.
    # Writes the bf16 conv tile plus f32 per-tile per-channel sum / sum-of-squares.
    y = jnp.dot(x_ref[...], w_ref[...], preferred_element_type=jnp.float32)
    y_ref[...] = y.astype(y_ref.dtype)
    s = jnp.sum(y, axis=0, keepdims=True)
    ss = jnp.sum(y * y, axis=0, keepdims=True)
    stats_ref[0] = jnp.concatenate([s, ss], axis=0)        # (2, 128)


def _scale_shift_act_kernel(y_ref, a_ref, b_ref, out_ref, *, relu):
    # BN folded to a single per-channel affine (scale/shift precomputed in glue).
    y = y_ref[...].astype(jnp.float32) * a_ref[...] + b_ref[...]
    if relu:
        y = jnp.maximum(y, 0.0)
    out_ref[...] = y.astype(out_ref.dtype)


def _scale_shift_res_act_kernel(y_ref, a_ref, b_ref, res_ref, out_ref):
    y = y_ref[...].astype(jnp.float32) * a_ref[...] + b_ref[...]
    y = y + res_ref[...].astype(jnp.float32)
    out_ref[...] = jnp.maximum(y, 0.0).astype(out_ref.dtype)


def _head_kernel(x_ref, w_ref, b_ref, out_ref):
    # Global average pool over the spatial axis of one batch element, then FC.
    pooled = jnp.mean(x_ref[...].astype(jnp.float32), axis=1)       # (1, 128)
    out = jnp.dot(pooled, w_ref[...], preferred_element_type=jnp.float32)
    out_ref[...] = (out + b_ref[...])[None]                          # (1, 1, 128)


# ----------------------------------------------------------------------------
# Wrappers (im2col glue + tiled pallas_call plumbing)
# ----------------------------------------------------------------------------
def _im2col(x, k, stride, padding):
    n, h, w, c = x.shape
    xp = jnp.pad(x, ((0, 0), (padding, padding), (padding, padding), (0, 0)))
    ho = (h + 2 * padding - k) // stride + 1
    wo = (w + 2 * padding - k) // stride + 1
    cols = []
    for i in range(k):
        for j in range(k):
            cols.append(xp[:, i:i + stride * ho:stride, j:j + stride * wo:stride, :])
    patches = jnp.stack(cols, axis=-2)            # (N, Ho, Wo, k*k, C)
    return patches.reshape(n * ho * wo, k * k * c), n, ho, wo


def _choose_tm(m):
    # >= 2 grid steps (even count) so the two v7x TensorCores both get work;
    # multiple of 16 for clean bf16 (16, 128) packed tiles.
    steps = 2 * max(1, -(-m // (2 * MAX_TM)))
    tm = -(-m // steps)
    return _round_up(max(tm, 16), 16)


def conv_bn(x_nhwc, pack, *, stride, padding, relu, residual=None):
    """One quantized conv + (training-mode) BatchNorm [+ residual] + ReLU.

    Returns the activation as a lane-padded (m_pad, 128) bf16 buffer plus
    spatial metadata, so downstream layers / the residual path stay lane-dense.
    """
    k, cout, kk, kk_pad = pack["k"], pack["cout"], pack["kk"], pack["kk_pad"]
    patches, n, ho, wo = _im2col(x_nhwc, k, stride, padding)
    m = patches.shape[0]

    tm = _choose_tm(m)
    m_pad = pl.cdiv(m, tm) * tm
    num_tiles = m_pad // tm

    patches = jnp.pad(patches.astype(jnp.bfloat16),
                      ((0, m_pad - m), (0, kk_pad - kk)))

    tile_spec = pl.BlockSpec((tm, LANE), lambda i: (i, 0))
    bcast_spec = pl.BlockSpec((1, LANE), lambda i: (0, 0))

    # Pass 1: M-tiled MXU matmul + per-tile channel statistics (y stored bf16).
    y, stats = pl.pallas_call(
        _matmul_stats_kernel,
        grid=(num_tiles,),
        in_specs=[pl.BlockSpec((tm, kk_pad), lambda i: (i, 0)),
                  pl.BlockSpec((kk_pad, LANE), lambda i: (0, 0))],
        out_specs=[tile_spec,
                   pl.BlockSpec((1, 2, LANE), lambda i: (i, 0, 0))],
        out_shape=[jax.ShapeDtypeStruct((m_pad, LANE), jnp.bfloat16),
                   jax.ShapeDtypeStruct((num_tiles, 2, LANE), jnp.float32)],
        compiler_params=pltpu.CompilerParams(dimension_semantics=("parallel",)),
    )(patches, pack["wmat"])

    # Tiny cross-tile reduction + BN folding (padded rows/lanes contribute zeros).
    ch_sum = jnp.sum(stats[:, 0, :], axis=0)                  # (128,)
    ch_ssq = jnp.sum(stats[:, 1, :], axis=0)                  # (128,)
    mean = ch_sum / m
    var = jnp.maximum(ch_ssq / m - mean * mean, 0.0)
    scale = pack["gamma"] * jax.lax.rsqrt(var + BN_EPS)       # (1, 128), 0 on pad lanes
    shift = pack["beta"] - mean * scale                       # (1, 128), 0 on pad lanes

    # Pass 2: fused affine (+ residual) + ReLU epilogue, bf16 out.
    if residual is None:
        kern = functools.partial(_scale_shift_act_kernel, relu=relu)
        inputs = (y, scale, shift)
        in_specs = [tile_spec, bcast_spec, bcast_spec]
    else:
        rbuf = residual["buf"]                                 # (m_pad_res, 128) bf16
        if rbuf.shape[0] != m_pad:
            rbuf = jnp.pad(rbuf[:m], ((0, m_pad - m), (0, 0)))
        kern = _scale_shift_res_act_kernel
        inputs = (y, scale, shift, rbuf)
        in_specs = [tile_spec, bcast_spec, bcast_spec, tile_spec]

    out = pl.pallas_call(
        kern,
        grid=(num_tiles,),
        in_specs=in_specs,
        out_specs=tile_spec,
        out_shape=jax.ShapeDtypeStruct((m_pad, LANE), jnp.bfloat16),
        compiler_params=pltpu.CompilerParams(dimension_semantics=("parallel",)),
    )(*inputs)

    return {"buf": out, "n": n, "h": ho, "w": wo, "c": cout, "m": m}


def _to_nhwc(state):
    # Reshape of leading dims + channel slice for the next conv's im2col.
    return (state["buf"][:state["m"]]
            .reshape(state["n"], state["h"], state["w"], LANE)[..., :state["c"]])


def head(state, fc_wmat, fc_bias, num_classes):
    # Tiled over the batch; consumes the padded 128-lane bf16 feature buffer directly
    # (padded lanes are exactly zero, and the FC weight has zero rows there).
    n, h, w, m = state["n"], state["h"], state["w"], state["m"]
    hw = h * w
    x = state["buf"][:m].reshape(n, hw, LANE)
    out = pl.pallas_call(
        _head_kernel,
        grid=(n,),
        in_specs=[pl.BlockSpec((1, hw, LANE), lambda i: (i, 0, 0)),
                  pl.BlockSpec((LANE, LANE), lambda i: (0, 0)),
                  pl.BlockSpec((1, LANE), lambda i: (0, 0))],
        out_specs=pl.BlockSpec((1, 1, LANE), lambda i: (i, 0, 0)),
        out_shape=jax.ShapeDtypeStruct((n, 1, LANE), jnp.float32),
        compiler_params=pltpu.CompilerParams(dimension_semantics=("parallel",)),
    )(x, fc_wmat, fc_bias)
    return out.reshape(n, LANE)[:, :num_classes]


# ----------------------------------------------------------------------------
# ResNet forward
# ----------------------------------------------------------------------------
def prepare_params(params):
    prepped = {
        "conv1": _prep_conv(params["conv1_w"], params["bn1_g"], params["bn1_b"]),
        "layers": [],
    }
    for layer in ("layer1", "layer2", "layer3"):
        blocks = []
        for blk in params[layer]:
            entry = {
                "stride": blk["stride"],
                "conv1": _prep_conv(blk["conv1_w"], blk["bn1_g"], blk["bn1_b"]),
                "conv2": _prep_conv(blk["conv2_w"], blk["bn2_g"], blk["bn2_b"]),
            }
            if "sc_w" in blk:
                entry["shortcut"] = _prep_conv(blk["sc_w"], blk["sc_bn_g"],
                                               blk["sc_bn_b"])
            blocks.append(entry)
        prepped["layers"].append(blocks)

    num_classes, feat = params["fc_w"].shape
    fc_wmat = jnp.pad(params["fc_w"].T.astype(jnp.float32),
                      ((0, LANE - feat), (0, LANE - num_classes)))
    prepped["fc_wmat"] = fc_wmat                              # (128, 128)
    prepped["fc_bias"] = jnp.pad(params["fc_b"].astype(jnp.float32),
                                 (0, LANE - num_classes)).reshape(1, LANE)
    prepped["num_classes"] = num_classes
    return prepped


def basic_block(state, blk):
    x_nhwc = _to_nhwc(state)
    mid = conv_bn(x_nhwc, blk["conv1"], stride=blk["stride"], padding=1, relu=True)
    if "shortcut" in blk:
        short = conv_bn(x_nhwc, blk["shortcut"], stride=blk["stride"], padding=0,
                        relu=False)
    else:
        short = state
    return conv_bn(_to_nhwc(mid), blk["conv2"], stride=1, padding=1, relu=True,
                   residual=short)


def make_forward(params):
    prepped = prepare_params(params)     # one-time quant / pack / pad (tiny model)
    num_classes = prepped["num_classes"]

    @jax.jit
    def forward(x_nchw):
        x = jnp.transpose(x_nchw, (0, 2, 3, 1))          # NCHW -> NHWC
        state = conv_bn(x, prepped["conv1"], stride=1, padding=1, relu=True)
        for blocks in prepped["layers"]:
            for blk in blocks:
                state = basic_block(state, blk)
        return head(state, prepped["fc_wmat"], prepped["fc_bias"], num_classes)

    return forward


# ----------------------------------------------------------------------------
# Deterministic parameter init (mirrors the PyTorch module's structure)
# ----------------------------------------------------------------------------
def init_params(key, num_blocks=(1, 1, 1), num_classes=10):
    keys = iter(jax.random.split(key, 64))

    def conv_w(cout, cin, k):
        fan_in = cin * k * k
        return (jax.random.normal(next(keys), (cout, cin, k, k), jnp.float32)
                * (2.0 / fan_in) ** 0.5)

    params = {
        "conv1_w": conv_w(16, 3, 3),
        "bn1_g": jnp.ones((16,), jnp.float32),
        "bn1_b": jnp.zeros((16,), jnp.float32),
    }
    in_planes = 16
    layer_cfg = (("layer1", 16, 1, num_blocks[0]),
                 ("layer2", 32, 2, num_blocks[1]),
                 ("layer3", 64, 2, num_blocks[2]))
    for name, planes, stride0, nb in layer_cfg:
        blocks = []
        for s in [stride0] + [1] * (nb - 1):
            blk = {
                "stride": s,
                "conv1_w": conv_w(planes, in_planes, 3),
                "bn1_g": jnp.ones((planes,), jnp.float32),
                "bn1_b": jnp.zeros((planes,), jnp.float32),
                "conv2_w": conv_w(planes, planes, 3),
                "bn2_g": jnp.ones((planes,), jnp.float32),
                "bn2_b": jnp.zeros((planes,), jnp.float32),
            }
            if s != 1 or in_planes != planes:
                blk["sc_w"] = conv_w(planes, in_planes, 1)
                blk["sc_bn_g"] = jnp.ones((planes,), jnp.float32)
                blk["sc_bn_b"] = jnp.zeros((planes,), jnp.float32)
            blocks.append(blk)
            in_planes = planes
        params[name] = blocks

    bound = 1.0 / (64 ** 0.5)
    params["fc_w"] = jax.random.uniform(next(keys), (num_classes, 64), jnp.float32,
                                        -bound, bound)
    params["fc_b"] = jax.random.uniform(next(keys), (num_classes,), jnp.float32,
                                        -bound, bound)
    return params


if __name__ == "__main__":
    root = jax.random.PRNGKey(0)
    k_x, k_p = jax.random.split(root)
    x = jax.random.normal(k_x, (2, 3, 16, 16), jnp.float32)   # NCHW like PyTorch
    params = init_params(k_p, num_blocks=(1, 1, 1), num_classes=10)

    fwd = make_forward(params)
    out = jax.block_until_ready(fwd(x))
    assert out.shape == (2, 10), out.shape
    assert bool(jnp.all(jnp.isfinite(out)))
    print("KERNEL_OK")
</pallas_src>

<mosaic_0001>
module attributes {stable_mosaic.version = 11 : i64} {
  func.func @_matmul_stats_kernel(%arg0: i32, %arg1: memref<256x128xbf16, #tpu.memory_space<vmem>>, %arg2: memref<128x128xbf16, #tpu.memory_space<vmem>>, %arg3: memref<256x128xbf16, #tpu.memory_space<vmem>>, %arg4: memref<1x2x128xf32, #tpu.memory_space<vmem>>) attributes {dimension_semantics = [#tpu.dimension_semantics<parallel>], iteration_bounds = array<i64: 2>, scalar_prefetch = 0 : i64, scratch_operands = 0 : i64, tpu.core_type = #tpu.core_type<tc>, window_params = [{transform_indices = @transform_0, window_bounds = array<i64: 256, 128>}, {pipeline_mode = #tpu.pipeline_mode<synchronous>, transform_indices = @transform_1, window_bounds = array<i64: 128, 128>}, {transform_indices = @transform_2, window_bounds = array<i64: 256, 128>}, {transform_indices = @transform_3, window_bounds = array<i64: 1, 2, 128>}]} {
    %c0 = arith.constant 0 : index
    %c0_0 = arith.constant 0 : index
    %0 = vector.load %arg1[%c0, %c0_0] : memref<256x128xbf16, #tpu.memory_space<vmem>>, vector<256x128xbf16>
    %c0_1 = arith.constant 0 : index
    %c0_2 = arith.constant 0 : index
    %1 = vector.load %arg2[%c0_1, %c0_2] : memref<128x128xbf16, #tpu.memory_space<vmem>>, vector<128x128xbf16>
    %cst = arith.constant dense<0.000000e+00> : vector<256x128xf32>
    %2 = tpu.matmul %0, %1, %cst {dimension_numbers = #tpu.dot_dimension_numbers<[1], [0], [0], [1], [0, 0, 1, 1], [], []>} : vector<256x128xbf16>, vector<128x128xbf16>, vector<256x128xf32> -> vector<256x128xf32>
    %3 = arith.truncf %2 : vector<256x128xf32> to vector<256x128xbf16>
    %c0_3 = arith.constant 0 : index
    %c0_4 = arith.constant 0 : index
    %4 = vector.load %arg3[%c0_3, %c0_4] : memref<256x128xbf16, #tpu.memory_space<vmem>>, vector<256x128xbf16>
    tpu.vector_store %arg3[%c0_3, %c0_4], %3 {strides = array<i32>} : memref<256x128xbf16, #tpu.memory_space<vmem>>, vector<256x128xbf16>,
    %cst_5 = arith.constant dense<0.000000e+00> : vector<128xf32>
    %5 = vector.multi_reduction <add>, %2, %cst_5 [0] : vector<256x128xf32> to vector<128xf32>
    %6 = vector.shape_cast %5 : vector<128xf32> to vector<1x128xf32>
    %7 = arith.mulf %2, %2 : vector<256x128xf32>
    %cst_6 = arith.constant dense<0.000000e+00> : vector<128xf32>
    %8 = vector.multi_reduction <add>, %7, %cst_6 [0] : vector<256x128xf32> to vector<128xf32>
    %9 = vector.shape_cast %8 : vector<128xf32> to vector<1x128xf32>
    %10 = tpu.concatenate %6, %9 in 0 : vector<1x128xf32>, vector<1x128xf32> -> vector<2x128xf32>
    %c0_7 = arith.constant 0 : index
    %c0_8 = arith.constant 0 : index
    %c0_9 = arith.constant 0 : index
    %11 = vector.load %arg4[%c0_7, %c0_8, %c0_9] : memref<1x2x128xf32, #tpu.memory_space<vmem>>, vector<1x2x128xf32>
    %12 = vector.shape_cast %11 : vector<1x2x128xf32> to vector<2x128xf32>
    %13 = vector.shape_cast %10 : vector<2x128xf32> to vector<1x2x128xf32>
    tpu.vector_store %arg4[%c0_7, %c0_8, %c0_9], %13 {strides = array<i32>} : memref<1x2x128xf32, #tpu.memory_space<vmem>>, vector<1x2x128xf32>,
    return
  }
  func.func @transform_0(%arg0: i32) -> (i32, i32) {
    %c0_i32 = arith.constant 0 : i32
    %c0_i32_0 = arith.constant 0 : i32
    return %arg0, %c0_i32 : i32, i32
  }
  func.func @transform_1(%arg0: i32) -> (i32, i32) {
    %c0_i32 = arith.constant 0 : i32
    %c0_i32_0 = arith.constant 0 : i32
    %c0_i32_1 = arith.constant 0 : i32
    return %c0_i32, %c0_i32_0 : i32, i32
  }
  func.func @transform_2(%arg0: i32) -> (i32, i32) {
    %c0_i32 = arith.constant 0 : i32
    %c0_i32_0 = arith.constant 0 : i32
    return %arg0, %c0_i32 : i32, i32
  }
  func.func @transform_3(%arg0: i32) -> (i32, i32, i32) {
    %c0_i32 = arith.constant 0 : i32
    %c0_i32_0 = arith.constant 0 : i32
    %c0_i32_1 = arith.constant 0 : i32
    return %arg0, %c0_i32, %c0_i32_0 : i32, i32, i32
  }
}

module attributes {stable_mosaic.version = 11 : i64} {
  func.func @_scale_shift_act_kernel(%arg0: i32, %arg1: memref<256x128xbf16, #tpu.memory_space<vmem>>, %arg2: memref<1x128xf32, #tpu.memory_space<vmem>>, %arg3: memref<1x128xf32, #tpu.memory_space<vmem>>, %arg4: memref<256x128xbf16, #tpu.memory_space<vmem>>) attributes {dimension_semantics = [#tpu.dimension_semantics<parallel>], iteration_bounds = array<i64: 2>, scalar_prefetch = 0 : i64, scratch_operands = 0 : i64, tpu.core_type = #tpu.core_type<tc>, window_params = [{transform_indices = @transform_0, window_bounds = array<i64: 256, 128>}, {pipeline_mode = #tpu.pipeline_mode<synchronous>, transform_indices = @transform_1, window_bounds = array<i64: 1, 128>}, {pipeline_mode = #tpu.pipeline_mode<synchronous>, transform_indices = @transform_2, window_bounds = array<i64: 1, 128>}, {transform_indices = @transform_3, window_bounds = array<i64: 256, 128>}]} {
    %c0 = arith.constant 0 : index
    %c0_0 = arith.constant 0 : index
    %0 = vector.load %arg1[%c0, %c0_0] : memref<256x128xbf16, #tpu.memory_space<vmem>>, vector<256x128xbf16>
    %1 = arith.extf %0 : vector<256x128xbf16> to vector<256x128xf32>
    %c0_1 = arith.constant 0 : index
    %c0_2 = arith.constant 0 : index
    %2 = vector.load %arg2[%c0_1, %c0_2] : memref<1x128xf32, #tpu.memory_space<vmem>>, vector<1x128xf32>
    %3 = vector.broadcast %2 : vector<1x128xf32> to vector<256x128xf32>
    %4 = arith.mulf %1, %3 : vector<256x128xf32>
    %c0_3 = arith.constant 0 : index
    %c0_4 = arith.constant 0 : index
    %5 = vector.load %arg3[%c0_3, %c0_4] : memref<1x128xf32, #tpu.memory_space<vmem>>, vector<1x128xf32>
    %6 = vector.broadcast %5 : vector<1x128xf32> to vector<256x128xf32>
    %7 = arith.addf %4, %6 : vector<256x128xf32>
    %cst = arith.constant 0.000000e+00 : f32
    %8 = vector.broadcast %cst : f32 to vector<256x128xf32>
    %9 = arith.maximumf %7, %8 : vector<256x128xf32>
    %10 = arith.truncf %9 : vector<256x128xf32> to vector<256x128xbf16>
    %c0_5 = arith.constant 0 : index
    %c0_6 = arith.constant 0 : index
    %11 = vector.load %arg4[%c0_5, %c0_6] : memref<256x128xbf16, #tpu.memory_space<vmem>>, vector<256x128xbf16>
    tpu.vector_store %arg4[%c0_5, %c0_6], %10 {strides = array<i32>} : memref<256x128xbf16, #tpu.memory_space<vmem>>, vector<256x128xbf16>,
    return
  }
  func.func @transform_0(%arg0: i32) -> (i32, i32) {
    %c0_i32 = arith.constant 0 : i32
    %c0_i32_0 = arith.constant 0 : i32
    return %arg0, %c0_i32 : i32, i32
  }
  func.func @transform_1(%arg0: i32) -> (i32, i32) {
    %c0_i32 = arith.constant 0 : i32
    %c0_i32_0 = arith.constant 0 : i32
    %c0_i32_1 = arith.constant 0 : i32
    return %c0_i32, %c0_i32_0 : i32, i32
  }
  func.func @transform_2(%arg0: i32) -> (i32, i32) {
    %c0_i32 = arith.constant 0 : i32
    %c0_i32_0 = arith.constant 0 : i32
    %c0_i32_1 = arith.constant 0 : i32
    return %c0_i32, %c0_i32_0 : i32, i32
  }
  func.func @transform_3(%arg0: i32) -> (i32, i32) {
    %c0_i32 = arith.constant 0 : i32
    %c0_i32_0 = arith.constant 0 : i32
    return %arg0, %c0_i32 : i32, i32
  }
}

module attributes {stable_mosaic.version = 11 : i64} {
  func.func @_matmul_stats_kernel(%arg0: i32, %arg1: memref<256x256xbf16, #tpu.memory_space<vmem>>, %arg2: memref<256x128xbf16, #tpu.memory_space<vmem>>, %arg3: memref<256x128xbf16, #tpu.memory_space<vmem>>, %arg4: memref<1x2x128xf32, #tpu.memory_space<vmem>>) attributes {dimension_semantics = [#tpu.dimension_semantics<parallel>], iteration_bounds = array<i64: 2>, scalar_prefetch = 0 : i64, scratch_operands = 0 : i64, tpu.core_type = #tpu.core_type<tc>, window_params = [{transform_indices = @transform_0, window_bounds = array<i64: 256, 256>}, {pipeline_mode = #tpu.pipeline_mode<synchronous>, transform_indices = @transform_1, window_bounds = array<i64: 256, 128>}, {transform_indices = @transform_2, window_bounds = array<i64: 256, 128>}, {transform_indices = @transform_3, window_bounds = array<i64: 1, 2, 128>}]} {
    %c0 = arith.constant 0 : index
    %c0_0 = arith.constant 0 : index
    %0 = vector.load %arg1[%c0, %c0_0] : memref<256x256xbf16, #tpu.memory_space<vmem>>, vector<256x256xbf16>
    %c0_1 = arith.constant 0 : index
    %c0_2 = arith.constant 0 : index
    %1 = vector.load %arg2[%c0_1, %c0_2] : memref<256x128xbf16, #tpu.memory_space<vmem>>, vector<256x128xbf16>
    %cst = arith.constant dense<0.000000e+00> : vector<256x128xf32>
    %2 = tpu.matmul %0, %1, %cst {dimension_numbers = #tpu.dot_dimension_numbers<[1], [0], [0], [1], [0, 0, 1, 1], [], []>} : vector<256x256xbf16>, vector<256x128xbf16>, vector<256x128xf32> -> vector<256x128xf32>
    %3 = arith.truncf %2 : vector<256x128xf32> to vector<256x128xbf16>
    %c0_3 = arith.constant 0 : index
    %c0_4 = arith.constant 0 : index
    %4 = vector.load %arg3[%c0_3, %c0_4] : memref<256x128xbf16, #tpu.memory_space<vmem>>, vector<256x128xbf16>
    tpu.vector_store %arg3[%c0_3, %c0_4], %3 {strides = array<i32>} : memref<256x128xbf16, #tpu.memory_space<vmem>>, vector<256x128xbf16>,
    %cst_5 = arith.constant dense<0.000000e+00> : vector<128xf32>
    %5 = vector.multi_reduction <add>, %2, %cst_5 [0] : vector<256x128xf32> to vector<128xf32>
    %6 = vector.shape_cast %5 : vector<128xf32> to vector<1x128xf32>
    %7 = arith.mulf %2, %2 : vector<256x128xf32>
    %cst_6 = arith.constant dense<0.000000e+00> : vector<128xf32>
    %8 = vector.multi_reduction <add>, %7, %cst_6 [0] : vector<256x128xf32> to vector<128xf32>
    %9 = vector.shape_cast %8 : vector<128xf32> to vector<1x128xf32>
    %10 = tpu.concatenate %6, %9 in 0 : vector<1x128xf32>, vector<1x128xf32> -> vector<2x128xf32>
    %c0_7 = arith.constant 0 : index
    %c0_8 = arith.constant 0 : index
    %c0_9 = arith.constant 0 : index
    %11 = vector.load %arg4[%c0_7, %c0_8, %c0_9] : memref<1x2x128xf32, #tpu.memory_space<vmem>>, vector<1x2x128xf32>
    %12 = vector.shape_cast %11 : vector<1x2x128xf32> to vector<2x128xf32>
    %13 = vector.shape_cast %10 : vector<2x128xf32> to vector<1x2x128xf32>
    tpu.vector_store %arg4[%c0_7, %c0_8, %c0_9], %13 {strides = array<i32>} : memref<1x2x128xf32, #tpu.memory_space<vmem>>, vector<1x2x128xf32>,
    return
  }
  func.func @transform_0(%arg0: i32) -> (i32, i32) {
    %c0_i32 = arith.constant 0 : i32
    %c0_i32_0 = arith.constant 0 : i32
    return %arg0, %c0_i32 : i32, i32
  }
  func.func @transform_1(%arg0: i32) -> (i32, i32) {
    %c0_i32 = arith.constant 0 : i32
    %c0_i32_0 = arith.constant 0 : i32
    %c0_i32_1 = arith.constant 0 : i32
    return %c0_i32, %c0_i32_0 : i32, i32
  }
  func.func @transform_2(%arg0: i32) -> (i32, i32) {
    %c0_i32 = arith.constant 0 : i32
    %c0_i32_0 = arith.constant 0 : i32
    return %arg0, %c0_i32 : i32, i32
  }
  func.func @transform_3(%arg0: i32) -> (i32, i32, i32) {
    %c0_i32 = arith.constant 0 : i32
    %c0_i32_0 = arith.constant 0 : i32
    %c0_i32_1 = arith.constant 0 : i32
    return %arg0, %c0_i32, %c0_i32_0 : i32, i32, i32
  }
}

module attributes {stable_mosaic.version = 11 : i64} {
  func.func @_scale_shift_res_act_kernel(%arg0: i32, %arg1: memref<256x128xbf16, #tpu.memory_space<vmem>>, %arg2: memref<1x128xf32, #tpu.memory_space<vmem>>, %arg3: memref<1x128xf32, #tpu.memory_space<vmem>>, %arg4: memref<256x128xbf16, #tpu.memory_space<vmem>>, %arg5: memref<256x128xbf16, #tpu.memory_space<vmem>>) attributes {dimension_semantics = [#tpu.dimension_semantics<parallel>], iteration_bounds = array<i64: 2>, scalar_prefetch = 0 : i64, scratch_operands = 0 : i64, tpu.core_type = #tpu.core_type<tc>, window_params = [{transform_indices = @transform_0, window_bounds = array<i64: 256, 128>}, {pipeline_mode = #tpu.pipeline_mode<synchronous>, transform_indices = @transform_1, window_bounds = array<i64: 1, 128>}, {pipeline_mode = #tpu.pipeline_mode<synchronous>, transform_indices = @transform_2, window_bounds = array<i64: 1, 128>}, {transform_indices = @transform_3, window_bounds = array<i64: 256, 128>}, {transform_indices = @transform_4, window_bounds = array<i64: 256, 128>}]} {
    %c0 = arith.constant 0 : index
    %c0_0 = arith.constant 0 : index
    %0 = vector.load %arg1[%c0, %c0_0] : memref<256x128xbf16, #tpu.memory_space<vmem>>, vector<256x128xbf16>
    %1 = arith.extf %0 : vector<256x128xbf16> to vector<256x128xf32>
    %c0_1 = arith.constant 0 : index
    %c0_2 = arith.constant 0 : index
    %2 = vector.load %arg2[%c0_1, %c0_2] : memref<1x128xf32, #tpu.memory_space<vmem>>, vector<1x128xf32>
    %3 = vector.broadcast %2 : vector<1x128xf32> to vector<256x128xf32>
    %4 = arith.mulf %1, %3 : vector<256x128xf32>
    %c0_3 = arith.constant 0 : index
    %c0_4 = arith.constant 0 : index
    %5 = vector.load %arg3[%c0_3, %c0_4] : memref<1x128xf32, #tpu.memory_space<vmem>>, vector<1x128xf32>
    %6 = vector.broadcast %5 : vector<1x128xf32> to vector<256x128xf32>
    %7 = arith.addf %4, %6 : vector<256x128xf32>
    %c0_5 = arith.constant 0 : index
    %c0_6 = arith.constant 0 : index
    %8 = vector.load %arg4[%c0_5, %c0_6] : memref<256x128xbf16, #tpu.memory_space<vmem>>, vector<256x128xbf16>
    %9 = arith.extf %8 : vector<256x128xbf16> to vector<256x128xf32>
    %10 = arith.addf %7, %9 : vector<256x128xf32>
    %cst = arith.constant 0.000000e+00 : f32
    %11 = vector.broadcast %cst : f32 to vector<256x128xf32>
    %12 = arith.maximumf %10, %11 : vector<256x128xf32>
    %13 = arith.truncf %12 : vector<256x128xf32> to vector<256x128xbf16>
    %c0_7 = arith.constant 0 : index
    %c0_8 = arith.constant 0 : index
    %14 = vector.load %arg5[%c0_7, %c0_8] : memref<256x128xbf16, #tpu.memory_space<vmem>>, vector<256x128xbf16>
    tpu.vector_store %arg5[%c0_7, %c0_8], %13 {strides = array<i32>} : memref<256x128xbf16, #tpu.memory_space<vmem>>, vector<256x128xbf16>,
    return
  }
  func.func @transform_0(%arg0: i32) -> (i32, i32) {
    %c0_i32 = arith.constant 0 : i32
    %c0_i32_0 = arith.constant 0 : i32
    return %arg0, %c0_i32 : i32, i32
  }
  func.func @transform_1(%arg0: i32) -> (i32, i32) {
    %c0_i32 = arith.constant 0 : i32
    %c0_i32_0 = arith.constant 0 : i32
    %c0_i32_1 = arith.constant 0 : i32
    return %c0_i32, %c0_i32_0 : i32, i32
  }
  func.func @transform_2(%arg0: i32) -> (i32, i32) {
    %c0_i32 = arith.constant 0 : i32
    %c0_i32_0 = arith.constant 0 : i32
    %c0_i32_1 = arith.constant 0 : i32
    return %c0_i32, %c0_i32_0 : i32, i32
  }
  func.func @transform_3(%arg0: i32) -> (i32, i32) {
    %c0_i32 = arith.constant 0 : i32
    %c0_i32_0 = arith.constant 0 : i32
    return %arg0, %c0_i32 : i32, i32
  }
  func.func @transform_4(%arg0: i32) -> (i32, i32) {
    %c0_i32 = arith.constant 0 : i32
    %c0_i32_0 = arith.constant 0 : i32
    return %arg0, %c0_i32 : i32, i32
  }
}

module attributes {stable_mosaic.version = 11 : i64} {
  func.func @_matmul_stats_kernel(%arg0: i32, %arg1: memref<64x128xbf16, #tpu.memory_space<vmem>>, %arg2: memref<128x128xbf16, #tpu.memory_space<vmem>>, %arg3: memref<64x128xbf16, #tpu.memory_space<vmem>>, %arg4: memref<1x2x128xf32, #tpu.memory_space<vmem>>) attributes {dimension_semantics = [#tpu.dimension_semantics<parallel>], iteration_bounds = array<i64: 2>, scalar_prefetch = 0 : i64, scratch_operands = 0 : i64, tpu.core_type = #tpu.core_type<tc>, window_params = [{transform_indices = @transform_0, window_bounds = array<i64: 64, 128>}, {pipeline_mode = #tpu.pipeline_mode<synchronous>, transform_indices = @transform_1, window_bounds = array<i64: 128, 128>}, {transform_indices = @transform_2, window_bounds = array<i64: 64, 128>}, {transform_indices = @transform_3, window_bounds = array<i64: 1, 2, 128>}]} {
    %c0 = arith.constant 0 : index
    %c0_0 = arith.constant 0 : index
    %0 = vector.load %arg1[%c0, %c0_0] : memref<64x128xbf16, #tpu.memory_space<vmem>>, vector<64x128xbf16>
    %c0_1 = arith.constant 0 : index
    %c0_2 = arith.constant 0 : index
    %1 = vector.load %arg2[%c0_1, %c0_2] : memref<128x128xbf16, #tpu.memory_space<vmem>>, vector<128x128xbf16>
    %cst = arith.constant dense<0.000000e+00> : vector<64x128xf32>
    %2 = tpu.matmul %0, %1, %cst {dimension_numbers = #tpu.dot_dimension_numbers<[1], [0], [0], [1], [0, 0, 1, 1], [], []>} : vector<64x128xbf16>, vector<128x128xbf16>, vector<64x128xf32> -> vector<64x128xf32>
    %3 = arith.truncf %2 : vector<64x128xf32> to vector<64x128xbf16>
    %c0_3 = arith.constant 0 : index
    %c0_4 = arith.constant 0 : index
    %4 = vector.load %arg3[%c0_3, %c0_4] : memref<64x128xbf16, #tpu.memory_space<vmem>>, vector<64x128xbf16>
    tpu.vector_store %arg3[%c0_3, %c0_4], %3 {strides = array<i32>} : memref<64x128xbf16, #tpu.memory_space<vmem>>, vector<64x128xbf16>,
    %cst_5 = arith.constant dense<0.000000e+00> : vector<128xf32>
    %5 = vector.multi_reduction <add>, %2, %cst_5 [0] : vector<64x128xf32> to vector<128xf32>
    %6 = vector.shape_cast %5 : vector<128xf32> to vector<1x128xf32>
    %7 = arith.mulf %2, %2 : vector<64x128xf32>
    %cst_6 = arith.constant dense<0.000000e+00> : vector<128xf32>
    %8 = vector.multi_reduction <add>, %7, %cst_6 [0] : vector<64x128xf32> to vector<128xf32>
    %9 = vector.shape_cast %8 : vector<128xf32> to vector<1x128xf32>
    %10 = tpu.concatenate %6, %9 in 0 : vector<1x128xf32>, vector<1x128xf32> -> vector<2x128xf32>
    %c0_7 = arith.constant 0 : index
    %c0_8 = arith.constant 0 : index
    %c0_9 = arith.constant 0 : index
    %11 = vector.load %arg4[%c0_7, %c0_8, %c0_9] : memref<1x2x128xf32, #tpu.memory_space<vmem>>, vector<1x2x128xf32>
    %12 = vector.shape_cast %11 : vector<1x2x128xf32> to vector<2x128xf32>
    %13 = vector.shape_cast %10 : vector<2x128xf32> to vector<1x2x128xf32>
    tpu.vector_store %arg4[%c0_7, %c0_8, %c0_9], %13 {strides = array<i32>} : memref<1x2x128xf32, #tpu.memory_space<vmem>>, vector<1x2x128xf32>,
    return
  }
  func.func @transform_0(%arg0: i32) -> (i32, i32) {
    %c0_i32 = arith.constant 0 : i32
    %c0_i32_0 = arith.constant 0 : i32
    return %arg0, %c0_i32 : i32, i32
  }
  func.func @transform_1(%arg0: i32) -> (i32, i32) {
    %c0_i32 = arith.constant 0 : i32
    %c0_i32_0 = arith.constant 0 : i32
    %c0_i32_1 = arith.constant 0 : i32
    return %c0_i32, %c0_i32_0 : i32, i32
  }
  func.func @transform_2(%arg0: i32) -> (i32, i32) {
    %c0_i32 = arith.constant 0 : i32
    %c0_i32_0 = arith.constant 0 : i32
    return %arg0, %c0_i32 : i32, i32
  }
  func.func @transform_3(%arg0: i32) -> (i32, i32, i32) {
    %c0_i32 = arith.constant 0 : i32
    %c0_i32_0 = arith.constant 0 : i32
    %c0_i32_1 = arith.constant 0 : i32
    return %arg0, %c0_i32, %c0_i32_0 : i32, i32, i32
  }
}

module attributes {stable_mosaic.version = 11 : i64} {
  func.func @_matmul_stats_kernel(%arg0: i32, %arg1: memref<64x256xbf16, #tpu.memory_space<vmem>>, %arg2: memref<256x128xbf16, #tpu.memory_space<vmem>>, %arg3: memref<64x128xbf16, #tpu.memory_space<vmem>>, %arg4: memref<1x2x128xf32, #tpu.memory_space<vmem>>) attributes {dimension_semantics = [#tpu.dimension_semantics<parallel>], iteration_bounds = array<i64: 2>, scalar_prefetch = 0 : i64, scratch_operands = 0 : i64, tpu.core_type = #tpu.core_type<tc>, window_params = [{transform_indices = @transform_0, window_bounds = array<i64: 64, 256>}, {pipeline_mode = #tpu.pipeline_mode<synchronous>, transform_indices = @transform_1, window_bounds = array<i64: 256, 128>}, {transform_indices = @transform_2, window_bounds = array<i64: 64, 128>}, {transform_indices = @transform_3, window_bounds = array<i64: 1, 2, 128>}]} {
    %c0 = arith.constant 0 : index
    %c0_0 = arith.constant 0 : index
    %0 = vector.load %arg1[%c0, %c0_0] : memref<64x256xbf16, #tpu.memory_space<vmem>>, vector<64x256xbf16>
    %c0_1 = arith.constant 0 : index
    %c0_2 = arith.constant 0 : index
    %1 = vector.load %arg2[%c0_1, %c0_2] : memref<256x128xbf16, #tpu.memory_space<vmem>>, vector<256x128xbf16>
    %cst = arith.constant dense<0.000000e+00> : vector<64x128xf32>
    %2 = tpu.matmul %0, %1, %cst {dimension_numbers = #tpu.dot_dimension_numbers<[1], [0], [0], [1], [0, 0, 1, 1], [], []>} : vector<64x256xbf16>, vector<256x128xbf16>, vector<64x128xf32> -> vector<64x128xf32>
    %3 = arith.truncf %2 : vector<64x128xf32> to vector<64x128xbf16>
    %c0_3 = arith.constant 0 : index
    %c0_4 = arith.constant 0 : index
    %4 = vector.load %arg3[%c0_3, %c0_4] : memref<64x128xbf16, #tpu.memory_space<vmem>>, vector<64x128xbf16>
    tpu.vector_store %arg3[%c0_3, %c0_4], %3 {strides = array<i32>} : memref<64x128xbf16, #tpu.memory_space<vmem>>, vector<64x128xbf16>,
    %cst_5 = arith.constant dense<0.000000e+00> : vector<128xf32>
    %5 = vector.multi_reduction <add>, %2, %cst_5 [0] : vector<64x128xf32> to vector<128xf32>
    %6 = vector.shape_cast %5 : vector<128xf32> to vector<1x128xf32>
    %7 = arith.mulf %2, %2 : vector<64x128xf32>
    %cst_6 = arith.constant dense<0.000000e+00> : vector<128xf32>
    %8 = vector.multi_reduction <add>, %7, %cst_6 [0] : vector<64x128xf32> to vector<128xf32>
    %9 = vector.shape_cast %8 : vector<128xf32> to vector<1x128xf32>
    %10 = tpu.concatenate %6, %9 in 0 : vector<1x128xf32>, vector<1x128xf32> -> vector<2x128xf32>
    %c0_7 = arith.constant 0 : index
    %c0_8 = arith.constant 0 : index
    %c0_9 = arith.constant 0 : index
    %11 = vector.load %arg4[%c0_7, %c0_8, %c0_9] : memref<1x2x128xf32, #tpu.memory_space<vmem>>, vector<1x2x128xf32>
    %12 = vector.shape_cast %11 : vector<1x2x128xf32> to vector<2x128xf32>
    %13 = vector.shape_cast %10 : vector<2x128xf32> to vector<1x2x128xf32>
    tpu.vector_store %arg4[%c0_7, %c0_8, %c0_9], %13 {strides = array<i32>} : memref<1x2x128xf32, #tpu.memory_space<vmem>>, vector<1x2x128xf32>,
    return
  }
  func.func @transform_0(%arg0: i32) -> (i32, i32) {
    %c0_i32 = arith.constant 0 : i32
    %c0_i32_0 = arith.constant 0 : i32
    return %arg0, %c0_i32 : i32, i32
  }
  func.func @transform_1(%arg0: i32) -> (i32, i32) {
    %c0_i32 = arith.constant 0 : i32
    %c0_i32_0 = arith.constant 0 : i32
    %c0_i32_1 = arith.constant 0 : i32
    return %c0_i32, %c0_i32_0 : i32, i32
  }
  func.func @transform_2(%arg0: i32) -> (i32, i32) {
    %c0_i32 = arith.constant 0 : i32
    %c0_i32_0 = arith.constant 0 : i32
    return %arg0, %c0_i32 : i32, i32
  }
  func.func @transform_3(%arg0: i32) -> (i32, i32, i32) {
    %c0_i32 = arith.constant 0 : i32
    %c0_i32_0 = arith.constant 0 : i32
    %c0_i32_1 = arith.constant 0 : i32
    return %arg0, %c0_i32, %c0_i32_0 : i32, i32, i32
  }
}

module attributes {stable_mosaic.version = 11 : i64} {
  func.func @_scale_shift_act_kernel(%arg0: i32, %arg1: memref<64x128xbf16, #tpu.memory_space<vmem>>, %arg2: memref<1x128xf32, #tpu.memory_space<vmem>>, %arg3: memref<1x128xf32, #tpu.memory_space<vmem>>, %arg4: memref<64x128xbf16, #tpu.memory_space<vmem>>) attributes {dimension_semantics = [#tpu.dimension_semantics<parallel>], iteration_bounds = array<i64: 2>, scalar_prefetch = 0 : i64, scratch_operands = 0 : i64, tpu.core_type = #tpu.core_type<tc>, window_params = [{transform_indices = @transform_0, window_bounds = array<i64: 64, 128>}, {pipeline_mode = #tpu.pipeline_mode<synchronous>, transform_indices = @transform_1, window_bounds = array<i64: 1, 128>}, {pipeline_mode = #tpu.pipeline_mode<synchronous>, transform_indices = @transform_2, window_bounds = array<i64: 1, 128>}, {transform_indices = @transform_3, window_bounds = array<i64: 64, 128>}]} {
    %c0 = arith.constant 0 : index
    %c0_0 = arith.constant 0 : index
    %0 = vector.load %arg1[%c0, %c0_0] : memref<64x128xbf16, #tpu.memory_space<vmem>>, vector<64x128xbf16>
    %1 = arith.extf %0 : vector<64x128xbf16> to vector<64x128xf32>
    %c0_1 = arith.constant 0 : index
    %c0_2 = arith.constant 0 : index
    %2 = vector.load %arg2[%c0_1, %c0_2] : memref<1x128xf32, #tpu.memory_space<vmem>>, vector<1x128xf32>
    %3 = vector.broadcast %2 : vector<1x128xf32> to vector<64x128xf32>
    %4 = arith.mulf %1, %3 : vector<64x128xf32>
    %c0_3 = arith.constant 0 : index
    %c0_4 = arith.constant 0 : index
    %5 = vector.load %arg3[%c0_3, %c0_4] : memref<1x128xf32, #tpu.memory_space<vmem>>, vector<1x128xf32>
    %6 = vector.broadcast %5 : vector<1x128xf32> to vector<64x128xf32>
    %7 = arith.addf %4, %6 : vector<64x128xf32>
    %cst = arith.constant 0.000000e+00 : f32
    %8 = vector.broadcast %cst : f32 to vector<64x128xf32>
    %9 = arith.maximumf %7, %8 : vector<64x128xf32>
    %10 = arith.truncf %9 : vector<64x128xf32> to vector<64x128xbf16>
    %c0_5 = arith.constant 0 : index
    %c0_6 = arith.constant 0 : index
    %11 = vector.load %arg4[%c0_5, %c0_6] : memref<64x128xbf16, #tpu.memory_space<vmem>>, vector<64x128xbf16>
    tpu.vector_store %arg4[%c0_5, %c0_6], %10 {strides = array<i32>} : memref<64x128xbf16, #tpu.memory_space<vmem>>, vector<64x128xbf16>,
    return
  }
  func.func @transform_0(%arg0: i32) -> (i32, i32) {
    %c0_i32 = arith.constant 0 : i32
    %c0_i32_0 = arith.constant 0 : i32
    return %arg0, %c0_i32 : i32, i32
  }
  func.func @transform_1(%arg0: i32) -> (i32, i32) {
    %c0_i32 = arith.constant 0 : i32
    %c0_i32_0 = arith.constant 0 : i32
    %c0_i32_1 = arith.constant 0 : i32
    return %c0_i32, %c0_i32_0 : i32, i32
  }
  func.func @transform_2(%arg0: i32) -> (i32, i32) {
    %c0_i32 = arith.constant 0 : i32
    %c0_i32_0 = arith.constant 0 : i32
    %c0_i32_1 = arith.constant 0 : i32
    return %c0_i32, %c0_i32_0 : i32, i32
  }
  func.func @transform_3(%arg0: i32) -> (i32, i32) {
    %c0_i32 = arith.constant 0 : i32
    %c0_i32_0 = arith.constant 0 : i32
    return %arg0, %c0_i32 : i32, i32
  }
}

module attributes {stable_mosaic.version = 11 : i64} {
  func.func @_matmul_stats_kernel(%arg0: i32, %arg1: memref<64x384xbf16, #tpu.memory_space<vmem>>, %arg2: memref<384x128xbf16, #tpu.memory_space<vmem>>, %arg3: memref<64x128xbf16, #tpu.memory_space<vmem>>, %arg4: memref<1x2x128xf32, #tpu.memory_space<vmem>>) attributes {dimension_semantics = [#tpu.dimension_semantics<parallel>], iteration_bounds = array<i64: 2>, scalar_prefetch = 0 : i64, scratch_operands = 0 : i64, tpu.core_type = #tpu.core_type<tc>, window_params = [{transform_indices = @transform_0, window_bounds = array<i64: 64, 384>}, {pipeline_mode = #tpu.pipeline_mode<synchronous>, transform_indices = @transform_1, window_bounds = array<i64: 384, 128>}, {transform_indices = @transform_2, window_bounds = array<i64: 64, 128>}, {transform_indices = @transform_3, window_bounds = array<i64: 1, 2, 128>}]} {
    %c0 = arith.constant 0 : index
    %c0_0 = arith.constant 0 : index
    %0 = vector.load %arg1[%c0, %c0_0] : memref<64x384xbf16, #tpu.memory_space<vmem>>, vector<64x384xbf16>
    %c0_1 = arith.constant 0 : index
    %c0_2 = arith.constant 0 : index
    %1 = vector.load %arg2[%c0_1, %c0_2] : memref<384x128xbf16, #tpu.memory_space<vmem>>, vector<384x128xbf16>
    %cst = arith.constant dense<0.000000e+00> : vector<64x128xf32>
    %2 = tpu.matmul %0, %1, %cst {dimension_numbers = #tpu.dot_dimension_numbers<[1], [0], [0], [1], [0, 0, 1, 1], [], []>} : vector<64x384xbf16>, vector<384x128xbf16>, vector<64x128xf32> -> vector<64x128xf32>
    %3 = arith.truncf %2 : vector<64x128xf32> to vector<64x128xbf16>
    %c0_3 = arith.constant 0 : index
    %c0_4 = arith.constant 0 : index
    %4 = vector.load %arg3[%c0_3, %c0_4] : memref<64x128xbf16, #tpu.memory_space<vmem>>, vector<64x128xbf16>
    tpu.vector_store %arg3[%c0_3, %c0_4], %3 {strides = array<i32>} : memref<64x128xbf16, #tpu.memory_space<vmem>>, vector<64x128xbf16>,
    %cst_5 = arith.constant dense<0.000000e+00> : vector<128xf32>
    %5 = vector.multi_reduction <add>, %2, %cst_5 [0] : vector<64x128xf32> to vector<128xf32>
    %6 = vector.shape_cast %5 : vector<128xf32> to vector<1x128xf32>
    %7 = arith.mulf %2, %2 : vector<64x128xf32>
    %cst_6 = arith.constant dense<0.000000e+00> : vector<128xf32>
    %8 = vector.multi_reduction <add>, %7, %cst_6 [0] : vector<64x128xf32> to vector<128xf32>
    %9 = vector.shape_cast %8 : vector<128xf32> to vector<1x128xf32>
    %10 = tpu.concatenate %6, %9 in 0 : vector<1x128xf32>, vector<1x128xf32> -> vector<2x128xf32>
    %c0_7 = arith.constant 0 : index
    %c0_8 = arith.constant 0 : index
    %c0_9 = arith.constant 0 : index
    %11 = vector.load %arg4[%c0_7, %c0_8, %c0_9] : memref<1x2x128xf32, #tpu.memory_space<vmem>>, vector<1x2x128xf32>
    %12 = vector.shape_cast %11 : vector<1x2x128xf32> to vector<2x128xf32>
    %13 = vector.shape_cast %10 : vector<2x128xf32> to vector<1x2x128xf32>
    tpu.vector_store %arg4[%c0_7, %c0_8, %c0_9], %13 {strides = array<i32>} : memref<1x2x128xf32, #tpu.memory_space<vmem>>, vector<1x2x128xf32>,
    return
  }
  func.func @transform_0(%arg0: i32) -> (i32, i32) {
    %c0_i32 = arith.constant 0 : i32
    %c0_i32_0 = arith.constant 0 : i32
    return %arg0, %c0_i32 : i32, i32
  }
  func.func @transform_1(%arg0: i32) -> (i32, i32) {
    %c0_i32 = arith.constant 0 : i32
    %c0_i32_0 = arith.constant 0 : i32
    %c0_i32_1 = arith.constant 0 : i32
    return %c0_i32, %c0_i32_0 : i32, i32
  }
  func.func @transform_2(%arg0: i32) -> (i32, i32) {
    %c0_i32 = arith.constant 0 : i32
    %c0_i32_0 = arith.constant 0 : i32
    return %arg0, %c0_i32 : i32, i32
  }
  func.func @transform_3(%arg0: i32) -> (i32, i32, i32) {
    %c0_i32 = arith.constant 0 : i32
    %c0_i32_0 = arith.constant 0 : i32
    %c0_i32_1 = arith.constant 0 : i32
    return %arg0, %c0_i32, %c0_i32_0 : i32, i32, i32
  }
}

module attributes {stable_mosaic.version = 11 : i64} {
  func.func @_scale_shift_res_act_kernel(%arg0: i32, %arg1: memref<64x128xbf16, #tpu.memory_space<vmem>>, %arg2: memref<1x128xf32, #tpu.memory_space<vmem>>, %arg3: memref<1x128xf32, #tpu.memory_space<vmem>>, %arg4: memref<64x128xbf16, #tpu.memory_space<vmem>>, %arg5: memref<64x128xbf16, #tpu.memory_space<vmem>>) attributes {dimension_semantics = [#tpu.dimension_semantics<parallel>], iteration_bounds = array<i64: 2>, scalar_prefetch = 0 : i64, scratch_operands = 0 : i64, tpu.core_type = #tpu.core_type<tc>, window_params = [{transform_indices = @transform_0, window_bounds = array<i64: 64, 128>}, {pipeline_mode = #tpu.pipeline_mode<synchronous>, transform_indices = @transform_1, window_bounds = array<i64: 1, 128>}, {pipeline_mode = #tpu.pipeline_mode<synchronous>, transform_indices = @transform_2, window_bounds = array<i64: 1, 128>}, {transform_indices = @transform_3, window_bounds = array<i64: 64, 128>}, {transform_indices = @transform_4, window_bounds = array<i64: 64, 128>}]} {
    %c0 = arith.constant 0 : index
    %c0_0 = arith.constant 0 : index
    %0 = vector.load %arg1[%c0, %c0_0] : memref<64x128xbf16, #tpu.memory_space<vmem>>, vector<64x128xbf16>
    %1 = arith.extf %0 : vector<64x128xbf16> to vector<64x128xf32>
    %c0_1 = arith.constant 0 : index
    %c0_2 = arith.constant 0 : index
    %2 = vector.load %arg2[%c0_1, %c0_2] : memref<1x128xf32, #tpu.memory_space<vmem>>, vector<1x128xf32>
    %3 = vector.broadcast %2 : vector<1x128xf32> to vector<64x128xf32>
    %4 = arith.mulf %1, %3 : vector<64x128xf32>
    %c0_3 = arith.constant 0 : index
    %c0_4 = arith.constant 0 : index
    %5 = vector.load %arg3[%c0_3, %c0_4] : memref<1x128xf32, #tpu.memory_space<vmem>>, vector<1x128xf32>
    %6 = vector.broadcast %5 : vector<1x128xf32> to vector<64x128xf32>
    %7 = arith.addf %4, %6 : vector<64x128xf32>
    %c0_5 = arith.constant 0 : index
    %c0_6 = arith.constant 0 : index
    %8 = vector.load %arg4[%c0_5, %c0_6] : memref<64x128xbf16, #tpu.memory_space<vmem>>, vector<64x128xbf16>
    %9 = arith.extf %8 : vector<64x128xbf16> to vector<64x128xf32>
    %10 = arith.addf %7, %9 : vector<64x128xf32>
    %cst = arith.constant 0.000000e+00 : f32
    %11 = vector.broadcast %cst : f32 to vector<64x128xf32>
    %12 = arith.maximumf %10, %11 : vector<64x128xf32>
    %13 = arith.truncf %12 : vector<64x128xf32> to vector<64x128xbf16>
    %c0_7 = arith.constant 0 : index
    %c0_8 = arith.constant 0 : index
    %14 = vector.load %arg5[%c0_7, %c0_8] : memref<64x128xbf16, #tpu.memory_space<vmem>>, vector<64x128xbf16>
    tpu.vector_store %arg5[%c0_7, %c0_8], %13 {strides = array<i32>} : memref<64x128xbf16, #tpu.memory_space<vmem>>, vector<64x128xbf16>,
    return
  }
  func.func @transform_0(%arg0: i32) -> (i32, i32) {
    %c0_i32 = arith.constant 0 : i32
    %c0_i32_0 = arith.constant 0 : i32
    return %arg0, %c0_i32 : i32, i32
  }
  func.func @transform_1(%arg0: i32) -> (i32, i32) {
    %c0_i32 = arith.constant 0 : i32
    %c0_i32_0 = arith.constant 0 : i32
    %c0_i32_1 = arith.constant 0 : i32
    return %c0_i32, %c0_i32_0 : i32, i32
  }
  func.func @transform_2(%arg0: i32) -> (i32, i32) {
    %c0_i32 = arith.constant 0 : i32
    %c0_i32_0 = arith.constant 0 : i32
    %c0_i32_1 = arith.constant 0 : i32
    return %c0_i32, %c0_i32_0 : i32, i32
  }
  func.func @transform_3(%arg0: i32) -> (i32, i32) {
    %c0_i32 = arith.constant 0 : i32
    %c0_i32_0 = arith.constant 0 : i32
    return %arg0, %c0_i32 : i32, i32
  }
  func.func @transform_4(%arg0: i32) -> (i32, i32) {
    %c0_i32 = arith.constant 0 : i32
    %c0_i32_0 = arith.constant 0 : i32
    return %arg0, %c0_i32 : i32, i32
  }
}

module attributes {stable_mosaic.version = 11 : i64} {
  func.func @_scale_shift_act_kernel(%arg0: i32, %arg1: memref<64x128xbf16, #tpu.memory_space<vmem>>, %arg2: memref<1x128xf32, #tpu.memory_space<vmem>>, %arg3: memref<1x128xf32, #tpu.memory_space<vmem>>, %arg4: memref<64x128xbf16, #tpu.memory_space<vmem>>) attributes {dimension_semantics = [#tpu.dimension_semantics<parallel>], iteration_bounds = array<i64: 2>, scalar_prefetch = 0 : i64, scratch_operands = 0 : i64, tpu.core_type = #tpu.core_type<tc>, window_params = [{transform_indices = @transform_0, window_bounds = array<i64: 64, 128>}, {pipeline_mode = #tpu.pipeline_mode<synchronous>, transform_indices = @transform_1, window_bounds = array<i64: 1, 128>}, {pipeline_mode = #tpu.pipeline_mode<synchronous>, transform_indices = @transform_2, window_bounds = array<i64: 1, 128>}, {transform_indices = @transform_3, window_bounds = array<i64: 64, 128>}]} {
    %c0 = arith.constant 0 : index
    %c0_0 = arith.constant 0 : index
    %0 = vector.load %arg1[%c0, %c0_0] : memref<64x128xbf16, #tpu.memory_space<vmem>>, vector<64x128xbf16>
    %1 = arith.extf %0 : vector<64x128xbf16> to vector<64x128xf32>
    %c0_1 = arith.constant 0 : index
    %c0_2 = arith.constant 0 : index
    %2 = vector.load %arg2[%c0_1, %c0_2] : memref<1x128xf32, #tpu.memory_space<vmem>>, vector<1x128xf32>
    %3 = vector.broadcast %2 : vector<1x128xf32> to vector<64x128xf32>
    %4 = arith.mulf %1, %3 : vector<64x128xf32>
    %c0_3 = arith.constant 0 : index
    %c0_4 = arith.constant 0 : index
    %5 = vector.load %arg3[%c0_3, %c0_4] : memref<1x128xf32, #tpu.memory_space<vmem>>, vector<1x128xf32>
    %6 = vector.broadcast %5 : vector<1x128xf32> to vector<64x128xf32>
    %7 = arith.addf %4, %6 : vector<64x128xf32>
    %8 = arith.truncf %7 : vector<64x128xf32> to vector<64x128xbf16>
    %c0_5 = arith.constant 0 : index
    %c0_6 = arith.constant 0 : index
    %9 = vector.load %arg4[%c0_5, %c0_6] : memref<64x128xbf16, #tpu.memory_space<vmem>>, vector<64x128xbf16>
    tpu.vector_store %arg4[%c0_5, %c0_6], %8 {strides = array<i32>} : memref<64x128xbf16, #tpu.memory_space<vmem>>, vector<64x128xbf16>,
    return
  }
  func.func @transform_0(%arg0: i32) -> (i32, i32) {
    %c0_i32 = arith.constant 0 : i32
    %c0_i32_0 = arith.constant 0 : i32
    return %arg0, %c0_i32 : i32, i32
  }
  func.func @transform_1(%arg0: i32) -> (i32, i32) {
    %c0_i32 = arith.constant 0 : i32
    %c0_i32_0 = arith.constant 0 : i32
    %c0_i32_1 = arith.constant 0 : i32
    return %c0_i32, %c0_i32_0 : i32, i32
  }
  func.func @transform_2(%arg0: i32) -> (i32, i32) {
    %c0_i32 = arith.constant 0 : i32
    %c0_i32_0 = arith.constant 0 : i32
    %c0_i32_1 = arith.constant 0 : i32
    return %c0_i32, %c0_i32_0 : i32, i32
  }
  func.func @transform_3(%arg0: i32) -> (i32, i32) {
    %c0_i32 = arith.constant 0 : i32
    %c0_i32_0 = arith.constant 0 : i32
    return %arg0, %c0_i32 : i32, i32
  }
}

module attributes {stable_mosaic.version = 11 : i64} {
  func.func @_matmul_stats_kernel(%arg0: i32, %arg1: memref<16x128xbf16, #tpu.memory_space<vmem>>, %arg2: memref<128x128xbf16, #tpu.memory_space<vmem>>, %arg3: memref<16x128xbf16, #tpu.memory_space<vmem>>, %arg4: memref<1x2x128xf32, #tpu.memory_space<vmem>>) attributes {dimension_semantics = [#tpu.dimension_semantics<parallel>], iteration_bounds = array<i64: 2>, scalar_prefetch = 0 : i64, scratch_operands = 0 : i64, tpu.core_type = #tpu.core_type<tc>, window_params = [{transform_indices = @transform_0, window_bounds = array<i64: 16, 128>}, {pipeline_mode = #tpu.pipeline_mode<synchronous>, transform_indices = @transform_1, window_bounds = array<i64: 128, 128>}, {transform_indices = @transform_2, window_bounds = array<i64: 16, 128>}, {transform_indices = @transform_3, window_bounds = array<i64: 1, 2, 128>}]} {
    %c0 = arith.constant 0 : index
    %c0_0 = arith.constant 0 : index
    %0 = vector.load %arg1[%c0, %c0_0] : memref<16x128xbf16, #tpu.memory_space<vmem>>, vector<16x128xbf16>
    %c0_1 = arith.constant 0 : index
    %c0_2 = arith.constant 0 : index
    %1 = vector.load %arg2[%c0_1, %c0_2] : memref<128x128xbf16, #tpu.memory_space<vmem>>, vector<128x128xbf16>
    %cst = arith.constant dense<0.000000e+00> : vector<16x128xf32>
    %2 = tpu.matmul %0, %1, %cst {dimension_numbers = #tpu.dot_dimension_numbers<[1], [0], [0], [1], [0, 0, 1, 1], [], []>} : vector<16x128xbf16>, vector<128x128xbf16>, vector<16x128xf32> -> vector<16x128xf32>
    %3 = arith.truncf %2 : vector<16x128xf32> to vector<16x128xbf16>
    %c0_3 = arith.constant 0 : index
    %c0_4 = arith.constant 0 : index
    %4 = vector.load %arg3[%c0_3, %c0_4] : memref<16x128xbf16, #tpu.memory_space<vmem>>, vector<16x128xbf16>
    tpu.vector_store %arg3[%c0_3, %c0_4], %3 {strides = array<i32>} : memref<16x128xbf16, #tpu.memory_space<vmem>>, vector<16x128xbf16>,
    %cst_5 = arith.constant dense<0.000000e+00> : vector<128xf32>
    %5 = vector.multi_reduction <add>, %2, %cst_5 [0] : vector<16x128xf32> to vector<128xf32>
    %6 = vector.shape_cast %5 : vector<128xf32> to vector<1x128xf32>
    %7 = arith.mulf %2, %2 : vector<16x128xf32>
    %cst_6 = arith.constant dense<0.000000e+00> : vector<128xf32>
    %8 = vector.multi_reduction <add>, %7, %cst_6 [0] : vector<16x128xf32> to vector<128xf32>
    %9 = vector.shape_cast %8 : vector<128xf32> to vector<1x128xf32>
    %10 = tpu.concatenate %6, %9 in 0 : vector<1x128xf32>, vector<1x128xf32> -> vector<2x128xf32>
    %c0_7 = arith.constant 0 : index
    %c0_8 = arith.constant 0 : index
    %c0_9 = arith.constant 0 : index
    %11 = vector.load %arg4[%c0_7, %c0_8, %c0_9] : memref<1x2x128xf32, #tpu.memory_space<vmem>>, vector<1x2x128xf32>
    %12 = vector.shape_cast %11 : vector<1x2x128xf32> to vector<2x128xf32>
    %13 = vector.shape_cast %10 : vector<2x128xf32> to vector<1x2x128xf32>
    tpu.vector_store %arg4[%c0_7, %c0_8, %c0_9], %13 {strides = array<i32>} : memref<1x2x128xf32, #tpu.memory_space<vmem>>, vector<1x2x128xf32>,
    return
  }
  func.func @transform_0(%arg0: i32) -> (i32, i32) {
    %c0_i32 = arith.constant 0 : i32
    %c0_i32_0 = arith.constant 0 : i32
    return %arg0, %c0_i32 : i32, i32
  }
  func.func @transform_1(%arg0: i32) -> (i32, i32) {
    %c0_i32 = arith.constant 0 : i32
    %c0_i32_0 = arith.constant 0 : i32
    %c0_i32_1 = arith.constant 0 : i32
    return %c0_i32, %c0_i32_0 : i32, i32
  }
  func.func @transform_2(%arg0: i32) -> (i32, i32) {
    %c0_i32 = arith.constant 0 : i32
    %c0_i32_0 = arith.constant 0 : i32
    return %arg0, %c0_i32 : i32, i32
  }
  func.func @transform_3(%arg0: i32) -> (i32, i32, i32) {
    %c0_i32 = arith.constant 0 : i32
    %c0_i32_0 = arith.constant 0 : i32
    %c0_i32_1 = arith.constant 0 : i32
    return %arg0, %c0_i32, %c0_i32_0 : i32, i32, i32
  }
}

module attributes {stable_mosaic.version = 11 : i64} {
  func.func @_matmul_stats_kernel(%arg0: i32, %arg1: memref<16x384xbf16, #tpu.memory_space<vmem>>, %arg2: memref<384x128xbf16, #tpu.memory_space<vmem>>, %arg3: memref<16x128xbf16, #tpu.memory_space<vmem>>, %arg4: memref<1x2x128xf32, #tpu.memory_space<vmem>>) attributes {dimension_semantics = [#tpu.dimension_semantics<parallel>], iteration_bounds = array<i64: 2>, scalar_prefetch = 0 : i64, scratch_operands = 0 : i64, tpu.core_type = #tpu.core_type<tc>, window_params = [{transform_indices = @transform_0, window_bounds = array<i64: 16, 384>}, {pipeline_mode = #tpu.pipeline_mode<synchronous>, transform_indices = @transform_1, window_bounds = array<i64: 384, 128>}, {transform_indices = @transform_2, window_bounds = array<i64: 16, 128>}, {transform_indices = @transform_3, window_bounds = array<i64: 1, 2, 128>}]} {
    %c0 = arith.constant 0 : index
    %c0_0 = arith.constant 0 : index
    %0 = vector.load %arg1[%c0, %c0_0] : memref<16x384xbf16, #tpu.memory_space<vmem>>, vector<16x384xbf16>
    %c0_1 = arith.constant 0 : index
    %c0_2 = arith.constant 0 : index
    %1 = vector.load %arg2[%c0_1, %c0_2] : memref<384x128xbf16, #tpu.memory_space<vmem>>, vector<384x128xbf16>
    %cst = arith.constant dense<0.000000e+00> : vector<16x128xf32>
    %2 = tpu.matmul %0, %1, %cst {dimension_numbers = #tpu.dot_dimension_numbers<[1], [0], [0], [1], [0, 0, 1, 1], [], []>} : vector<16x384xbf16>, vector<384x128xbf16>, vector<16x128xf32> -> vector<16x128xf32>
    %3 = arith.truncf %2 : vector<16x128xf32> to vector<16x128xbf16>
    %c0_3 = arith.constant 0 : index
    %c0_4 = arith.constant 0 : index
    %4 = vector.load %arg3[%c0_3, %c0_4] : memref<16x128xbf16, #tpu.memory_space<vmem>>, vector<16x128xbf16>
    tpu.vector_store %arg3[%c0_3, %c0_4], %3 {strides = array<i32>} : memref<16x128xbf16, #tpu.memory_space<vmem>>, vector<16x128xbf16>,
    %cst_5 = arith.constant dense<0.000000e+00> : vector<128xf32>
    %5 = vector.multi_reduction <add>, %2, %cst_5 [0] : vector<16x128xf32> to vector<128xf32>
    %6 = vector.shape_cast %5 : vector<128xf32> to vector<1x128xf32>
    %7 = arith.mulf %2, %2 : vector<16x128xf32>
    %cst_6 = arith.constant dense<0.000000e+00> : vector<128xf32>
    %8 = vector.multi_reduction <add>, %7, %cst_6 [0] : vector<16x128xf32> to vector<128xf32>
    %9 = vector.shape_cast %8 : vector<128xf32> to vector<1x128xf32>
    %10 = tpu.concatenate %6, %9 in 0 : vector<1x128xf32>, vector<1x128xf32> -> vector<2x128xf32>
    %c0_7 = arith.constant 0 : index
    %c0_8 = arith.constant 0 : index
    %c0_9 = arith.constant 0 : index
    %11 = vector.load %arg4[%c0_7, %c0_8, %c0_9] : memref<1x2x128xf32, #tpu.memory_space<vmem>>, vector<1x2x128xf32>
    %12 = vector.shape_cast %11 : vector<1x2x128xf32> to vector<2x128xf32>
    %13 = vector.shape_cast %10 : vector<2x128xf32> to vector<1x2x128xf32>
    tpu.vector_store %arg4[%c0_7, %c0_8, %c0_9], %13 {strides = array<i32>} : memref<1x2x128xf32, #tpu.memory_space<vmem>>, vector<1x2x128xf32>,
    return
  }
  func.func @transform_0(%arg0: i32) -> (i32, i32) {
    %c0_i32 = arith.constant 0 : i32
    %c0_i32_0 = arith.constant 0 : i32
    return %arg0, %c0_i32 : i32, i32
  }
  func.func @transform_1(%arg0: i32) -> (i32, i32) {
    %c0_i32 = arith.constant 0 : i32
    %c0_i32_0 = arith.constant 0 : i32
    %c0_i32_1 = arith.constant 0 : i32
    return %c0_i32, %c0_i32_0 : i32, i32
  }
  func.func @transform_2(%arg0: i32) -> (i32, i32) {
    %c0_i32 = arith.constant 0 : i32
    %c0_i32_0 = arith.constant 0 : i32
    return %arg0, %c0_i32 : i32, i32
  }
  func.func @transform_3(%arg0: i32) -> (i32, i32, i32) {
    %c0_i32 = arith.constant 0 : i32
    %c0_i32_0 = arith.constant 0 : i32
    %c0_i32_1 = arith.constant 0 : i32
    return %arg0, %c0_i32, %c0_i32_0 : i32, i32, i32
  }
}

module attributes {stable_mosaic.version = 11 : i64} {
  func.func @_scale_shift_act_kernel(%arg0: i32, %arg1: memref<16x128xbf16, #tpu.memory_space<vmem>>, %arg2: memref<1x128xf32, #tpu.memory_space<vmem>>, %arg3: memref<1x128xf32, #tpu.memory_space<vmem>>, %arg4: memref<16x128xbf16, #tpu.memory_space<vmem>>) attributes {dimension_semantics = [#tpu.dimension_semantics<parallel>], iteration_bounds = array<i64: 2>, scalar_prefetch = 0 : i64, scratch_operands = 0 : i64, tpu.core_type = #tpu.core_type<tc>, window_params = [{transform_indices = @transform_0, window_bounds = array<i64: 16, 128>}, {pipeline_mode = #tpu.pipeline_mode<synchronous>, transform_indices = @transform_1, window_bounds = array<i64: 1, 128>}, {pipeline_mode = #tpu.pipeline_mode<synchronous>, transform_indices = @transform_2, window_bounds = array<i64: 1, 128>}, {transform_indices = @transform_3, window_bounds = array<i64: 16, 128>}]} {
    %c0 = arith.constant 0 : index
    %c0_0 = arith.constant 0 : index
    %0 = vector.load %arg1[%c0, %c0_0] : memref<16x128xbf16, #tpu.memory_space<vmem>>, vector<16x128xbf16>
    %1 = arith.extf %0 : vector<16x128xbf16> to vector<16x128xf32>
    %c0_1 = arith.constant 0 : index
    %c0_2 = arith.constant 0 : index
    %2 = vector.load %arg2[%c0_1, %c0_2] : memref<1x128xf32, #tpu.memory_space<vmem>>, vector<1x128xf32>
    %3 = vector.broadcast %2 : vector<1x128xf32> to vector<16x128xf32>
    %4 = arith.mulf %1, %3 : vector<16x128xf32>
    %c0_3 = arith.constant 0 : index
    %c0_4 = arith.constant 0 : index
    %5 = vector.load %arg3[%c0_3, %c0_4] : memref<1x128xf32, #tpu.memory_space<vmem>>, vector<1x128xf32>
    %6 = vector.broadcast %5 : vector<1x128xf32> to vector<16x128xf32>
    %7 = arith.addf %4, %6 : vector<16x128xf32>
    %cst = arith.constant 0.000000e+00 : f32
    %8 = vector.broadcast %cst : f32 to vector<16x128xf32>
    %9 = arith.maximumf %7, %8 : vector<16x128xf32>
    %10 = arith.truncf %9 : vector<16x128xf32> to vector<16x128xbf16>
    %c0_5 = arith.constant 0 : index
    %c0_6 = arith.constant 0 : index
    %11 = vector.load %arg4[%c0_5, %c0_6] : memref<16x128xbf16, #tpu.memory_space<vmem>>, vector<16x128xbf16>
    tpu.vector_store %arg4[%c0_5, %c0_6], %10 {strides = array<i32>} : memref<16x128xbf16, #tpu.memory_space<vmem>>, vector<16x128xbf16>,
    return
  }
  func.func @transform_0(%arg0: i32) -> (i32, i32) {
    %c0_i32 = arith.constant 0 : i32
    %c0_i32_0 = arith.constant 0 : i32
    return %arg0, %c0_i32 : i32, i32
  }
  func.func @transform_1(%arg0: i32) -> (i32, i32) {
    %c0_i32 = arith.constant 0 : i32
    %c0_i32_0 = arith.constant 0 : i32
    %c0_i32_1 = arith.constant 0 : i32
    return %c0_i32, %c0_i32_0 : i32, i32
  }
  func.func @transform_2(%arg0: i32) -> (i32, i32) {
    %c0_i32 = arith.constant 0 : i32
    %c0_i32_0 = arith.constant 0 : i32
    %c0_i32_1 = arith.constant 0 : i32
    return %c0_i32, %c0_i32_0 : i32, i32
  }
  func.func @transform_3(%arg0: i32) -> (i32, i32) {
    %c0_i32 = arith.constant 0 : i32
    %c0_i32_0 = arith.constant 0 : i32
    return %arg0, %c0_i32 : i32, i32
  }
}

module attributes {stable_mosaic.version = 11 : i64} {
  func.func @_matmul_stats_kernel(%arg0: i32, %arg1: memref<16x640xbf16, #tpu.memory_space<vmem>>, %arg2: memref<640x128xbf16, #tpu.memory_space<vmem>>, %arg3: memref<16x128xbf16, #tpu.memory_space<vmem>>, %arg4: memref<1x2x128xf32, #tpu.memory_space<vmem>>) attributes {dimension_semantics = [#tpu.dimension_semantics<parallel>], iteration_bounds = array<i64: 2>, scalar_prefetch = 0 : i64, scratch_operands = 0 : i64, tpu.core_type = #tpu.core_type<tc>, window_params = [{transform_indices = @transform_0, window_bounds = array<i64: 16, 640>}, {pipeline_mode = #tpu.pipeline_mode<synchronous>, transform_indices = @transform_1, window_bounds = array<i64: 640, 128>}, {transform_indices = @transform_2, window_bounds = array<i64: 16, 128>}, {transform_indices = @transform_3, window_bounds = array<i64: 1, 2, 128>}]} {
    %c0 = arith.constant 0 : index
    %c0_0 = arith.constant 0 : index
    %0 = vector.load %arg1[%c0, %c0_0] : memref<16x640xbf16, #tpu.memory_space<vmem>>, vector<16x640xbf16>
    %c0_1 = arith.constant 0 : index
    %c0_2 = arith.constant 0 : index
    %1 = vector.load %arg2[%c0_1, %c0_2] : memref<640x128xbf16, #tpu.memory_space<vmem>>, vector<640x128xbf16>
    %cst = arith.constant dense<0.000000e+00> : vector<16x128xf32>
    %2 = tpu.matmul %0, %1, %cst {dimension_numbers = #tpu.dot_dimension_numbers<[1], [0], [0], [1], [0, 0, 1, 1], [], []>} : vector<16x640xbf16>, vector<640x128xbf16>, vector<16x128xf32> -> vector<16x128xf32>
    %3 = arith.truncf %2 : vector<16x128xf32> to vector<16x128xbf16>
    %c0_3 = arith.constant 0 : index
    %c0_4 = arith.constant 0 : index
    %4 = vector.load %arg3[%c0_3, %c0_4] : memref<16x128xbf16, #tpu.memory_space<vmem>>, vector<16x128xbf16>
    tpu.vector_store %arg3[%c0_3, %c0_4], %3 {strides = array<i32>} : memref<16x128xbf16, #tpu.memory_space<vmem>>, vector<16x128xbf16>,
    %cst_5 = arith.constant dense<0.000000e+00> : vector<128xf32>
    %5 = vector.multi_reduction <add>, %2, %cst_5 [0] : vector<16x128xf32> to vector<128xf32>
    %6 = vector.shape_cast %5 : vector<128xf32> to vector<1x128xf32>
    %7 = arith.mulf %2, %2 : vector<16x128xf32>
    %cst_6 = arith.constant dense<0.000000e+00> : vector<128xf32>
    %8 = vector.multi_reduction <add>, %7, %cst_6 [0] : vector<16x128xf32> to vector<128xf32>
    %9 = vector.shape_cast %8 : vector<128xf32> to vector<1x128xf32>
    %10 = tpu.concatenate %6, %9 in 0 : vector<1x128xf32>, vector<1x128xf32> -> vector<2x128xf32>
    %c0_7 = arith.constant 0 : index
    %c0_8 = arith.constant 0 : index
    %c0_9 = arith.constant 0 : index
    %11 = vector.load %arg4[%c0_7, %c0_8, %c0_9] : memref<1x2x128xf32, #tpu.memory_space<vmem>>, vector<1x2x128xf32>
    %12 = vector.shape_cast %11 : vector<1x2x128xf32> to vector<2x128xf32>
    %13 = vector.shape_cast %10 : vector<2x128xf32> to vector<1x2x128xf32>
    tpu.vector_store %arg4[%c0_7, %c0_8, %c0_9], %13 {strides = array<i32>} : memref<1x2x128xf32, #tpu.memory_space<vmem>>, vector<1x2x128xf32>,
    return
  }
  func.func @transform_0(%arg0: i32) -> (i32, i32) {
    %c0_i32 = arith.constant 0 : i32
    %c0_i32_0 = arith.constant 0 : i32
    return %arg0, %c0_i32 : i32, i32
  }
  func.func @transform_1(%arg0: i32) -> (i32, i32) {
    %c0_i32 = arith.constant 0 : i32
    %c0_i32_0 = arith.constant 0 : i32
    %c0_i32_1 = arith.constant 0 : i32
    return %c0_i32, %c0_i32_0 : i32, i32
  }
  func.func @transform_2(%arg0: i32) -> (i32, i32) {
    %c0_i32 = arith.constant 0 : i32
    %c0_i32_0 = arith.constant 0 : i32
    return %arg0, %c0_i32 : i32, i32
  }
  func.func @transform_3(%arg0: i32) -> (i32, i32, i32) {
    %c0_i32 = arith.constant 0 : i32
    %c0_i32_0 = arith.constant 0 : i32
    %c0_i32_1 = arith.constant 0 : i32
    return %arg0, %c0_i32, %c0_i32_0 : i32, i32, i32
  }
}

module attributes {stable_mosaic.version = 11 : i64} {
  func.func @_scale_shift_act_kernel(%arg0: i32, %arg1: memref<16x128xbf16, #tpu.memory_space<vmem>>, %arg2: memref<1x128xf32, #tpu.memory_space<vmem>>, %arg3: memref<1x128xf32, #tpu.memory_space<vmem>>, %arg4: memref<16x128xbf16, #tpu.memory_space<vmem>>) attributes {dimension_semantics = [#tpu.dimension_semantics<parallel>], iteration_bounds = array<i64: 2>, scalar_prefetch = 0 : i64, scratch_operands = 0 : i64, tpu.core_type = #tpu.core_type<tc>, window_params = [{transform_indices = @transform_0, window_bounds = array<i64: 16, 128>}, {pipeline_mode = #tpu.pipeline_mode<synchronous>, transform_indices = @transform_1, window_bounds = array<i64: 1, 128>}, {pipeline_mode = #tpu.pipeline_mode<synchronous>, transform_indices = @transform_2, window_bounds = array<i64: 1, 128>}, {transform_indices = @transform_3, window_bounds = array<i64: 16, 128>}]} {
    %c0 = arith.constant 0 : index
    %c0_0 = arith.constant 0 : index
    %0 = vector.load %arg1[%c0, %c0_0] : memref<16x128xbf16, #tpu.memory_space<vmem>>, vector<16x128xbf16>
    %1 = arith.extf %0 : vector<16x128xbf16> to vector<16x128xf32>
    %c0_1 = arith.constant 0 : index
    %c0_2 = arith.constant 0 : index
    %2 = vector.load %arg2[%c0_1, %c0_2] : memref<1x128xf32, #tpu.memory_space<vmem>>, vector<1x128xf32>
    %3 = vector.broadcast %2 : vector<1x128xf32> to vector<16x128xf32>
    %4 = arith.mulf %1, %3 : vector<16x128xf32>
    %c0_3 = arith.constant 0 : index
    %c0_4 = arith.constant 0 : index
    %5 = vector.load %arg3[%c0_3, %c0_4] : memref<1x128xf32, #tpu.memory_space<vmem>>, vector<1x128xf32>
    %6 = vector.broadcast %5 : vector<1x128xf32> to vector<16x128xf32>
    %7 = arith.addf %4, %6 : vector<16x128xf32>
    %8 = arith.truncf %7 : vector<16x128xf32> to vector<16x128xbf16>
    %c0_5 = arith.constant 0 : index
    %c0_6 = arith.constant 0 : index
    %9 = vector.load %arg4[%c0_5, %c0_6] : memref<16x128xbf16, #tpu.memory_space<vmem>>, vector<16x128xbf16>
    tpu.vector_store %arg4[%c0_5, %c0_6], %8 {strides = array<i32>} : memref<16x128xbf16, #tpu.memory_space<vmem>>, vector<16x128xbf16>,
    return
  }
  func.func @transform_0(%arg0: i32) -> (i32, i32) {
    %c0_i32 = arith.constant 0 : i32
    %c0_i32_0 = arith.constant 0 : i32
    return %arg0, %c0_i32 : i32, i32
  }
  func.func @transform_1(%arg0: i32) -> (i32, i32) {
    %c0_i32 = arith.constant 0 : i32
    %c0_i32_0 = arith.constant 0 : i32
    %c0_i32_1 = arith.constant 0 : i32
    return %c0_i32, %c0_i32_0 : i32, i32
  }
  func.func @transform_2(%arg0: i32) -> (i32, i32) {
    %c0_i32 = arith.constant 0 : i32
    %c0_i32_0 = arith.constant 0 : i32
    %c0_i32_1 = arith.constant 0 : i32
    return %c0_i32, %c0_i32_0 : i32, i32
  }
  func.func @transform_3(%arg0: i32) -> (i32, i32) {
    %c0_i32 = arith.constant 0 : i32
    %c0_i32_0 = arith.constant 0 : i32
    return %arg0, %c0_i32 : i32, i32
  }
}

module attributes {stable_mosaic.version = 11 : i64} {
  func.func @_scale_shift_res_act_kernel(%arg0: i32, %arg1: memref<16x128xbf16, #tpu.memory_space<vmem>>, %arg2: memref<1x128xf32, #tpu.memory_space<vmem>>, %arg3: memref<1x128xf32, #tpu.memory_space<vmem>>, %arg4: memref<16x128xbf16, #tpu.memory_space<vmem>>, %arg5: memref<16x128xbf16, #tpu.memory_space<vmem>>) attributes {dimension_semantics = [#tpu.dimension_semantics<parallel>], iteration_bounds = array<i64: 2>, scalar_prefetch = 0 : i64, scratch_operands = 0 : i64, tpu.core_type = #tpu.core_type<tc>, window_params = [{transform_indices = @transform_0, window_bounds = array<i64: 16, 128>}, {pipeline_mode = #tpu.pipeline_mode<synchronous>, transform_indices = @transform_1, window_bounds = array<i64: 1, 128>}, {pipeline_mode = #tpu.pipeline_mode<synchronous>, transform_indices = @transform_2, window_bounds = array<i64: 1, 128>}, {transform_indices = @transform_3, window_bounds = array<i64: 16, 128>}, {transform_indices = @transform_4, window_bounds = array<i64: 16, 128>}]} {
    %c0 = arith.constant 0 : index
    %c0_0 = arith.constant 0 : index
    %0 = vector.load %arg1[%c0, %c0_0] : memref<16x128xbf16, #tpu.memory_space<vmem>>, vector<16x128xbf16>
    %1 = arith.extf %0 : vector<16x128xbf16> to vector<16x128xf32>
    %c0_1 = arith.constant 0 : index
    %c0_2 = arith.constant 0 : index
    %2 = vector.load %arg2[%c0_1, %c0_2] : memref<1x128xf32, #tpu.memory_space<vmem>>, vector<1x128xf32>
    %3 = vector.broadcast %2 : vector<1x128xf32> to vector<16x128xf32>
    %4 = arith.mulf %1, %3 : vector<16x128xf32>
    %c0_3 = arith.constant 0 : index
    %c0_4 = arith.constant 0 : index
    %5 = vector.load %arg3[%c0_3, %c0_4] : memref<1x128xf32, #tpu.memory_space<vmem>>, vector<1x128xf32>
    %6 = vector.broadcast %5 : vector<1x128xf32> to vector<16x128xf32>
    %7 = arith.addf %4, %6 : vector<16x128xf32>
    %c0_5 = arith.constant 0 : index
    %c0_6 = arith.constant 0 : index
    %8 = vector.load %arg4[%c0_5, %c0_6] : memref<16x128xbf16, #tpu.memory_space<vmem>>, vector<16x128xbf16>
    %9 = arith.extf %8 : vector<16x128xbf16> to vector<16x128xf32>
    %10 = arith.addf %7, %9 : vector<16x128xf32>
    %cst = arith.constant 0.000000e+00 : f32
    %11 = vector.broadcast %cst : f32 to vector<16x128xf32>
    %12 = arith.maximumf %10, %11 : vector<16x128xf32>
    %13 = arith.truncf %12 : vector<16x128xf32> to vector<16x128xbf16>
    %c0_7 = arith.constant 0 : index
    %c0_8 = arith.constant 0 : index
    %14 = vector.load %arg5[%c0_7, %c0_8] : memref<16x128xbf16, #tpu.memory_space<vmem>>, vector<16x128xbf16>
    tpu.vector_store %arg5[%c0_7, %c0_8], %13 {strides = array<i32>} : memref<16x128xbf16, #tpu.memory_space<vmem>>, vector<16x128xbf16>,
    return
  }
  func.func @transform_0(%arg0: i32) -> (i32, i32) {
    %c0_i32 = arith.constant 0 : i32
    %c0_i32_0 = arith.constant 0 : i32
    return %arg0, %c0_i32 : i32, i32
  }
  func.func @transform_1(%arg0: i32) -> (i32, i32) {
    %c0_i32 = arith.constant 0 : i32
    %c0_i32_0 = arith.constant 0 : i32
    %c0_i32_1 = arith.constant 0 : i32
    return %c0_i32, %c0_i32_0 : i32, i32
  }
  func.func @transform_2(%arg0: i32) -> (i32, i32) {
    %c0_i32 = arith.constant 0 : i32
    %c0_i32_0 = arith.constant 0 : i32
    %c0_i32_1 = arith.constant 0 : i32
    return %c0_i32, %c0_i32_0 : i32, i32
  }
  func.func @transform_3(%arg0: i32) -> (i32, i32) {
    %c0_i32 = arith.constant 0 : i32
    %c0_i32_0 = arith.constant 0 : i32
    return %arg0, %c0_i32 : i32, i32
  }
  func.func @transform_4(%arg0: i32) -> (i32, i32) {
    %c0_i32 = arith.constant 0 : i32
    %c0_i32_0 = arith.constant 0 : i32
    return %arg0, %c0_i32 : i32, i32
  }
}

module attributes {stable_mosaic.version = 11 : i64} {
  func.func @_head_kernel(%arg0: i32, %arg1: memref<1x16x128xbf16, #tpu.memory_space<vmem>>, %arg2: memref<128x128xf32, #tpu.memory_space<vmem>>, %arg3: memref<1x128xf32, #tpu.memory_space<vmem>>, %arg4: memref<1x1x128xf32, #tpu.memory_space<vmem>>) attributes {dimension_semantics = [#tpu.dimension_semantics<parallel>], iteration_bounds = array<i64: 2>, scalar_prefetch = 0 : i64, scratch_operands = 0 : i64, tpu.core_type = #tpu.core_type<tc>, window_params = [{transform_indices = @transform_0, window_bounds = array<i64: 1, 16, 128>}, {pipeline_mode = #tpu.pipeline_mode<synchronous>, transform_indices = @transform_1, window_bounds = array<i64: 128, 128>}, {pipeline_mode = #tpu.pipeline_mode<synchronous>, transform_indices = @transform_2, window_bounds = array<i64: 1, 128>}, {transform_indices = @transform_3, window_bounds = array<i64: 1, 1, 128>}]} {
    %c0 = arith.constant 0 : index
    %c0_0 = arith.constant 0 : index
    %c0_1 = arith.constant 0 : index
    %0 = vector.load %arg1[%c0, %c0_0, %c0_1] : memref<1x16x128xbf16, #tpu.memory_space<vmem>>, vector<1x16x128xbf16>
    %1 = arith.extf %0 : vector<1x16x128xbf16> to vector<1x16x128xf32>
    %cst = arith.constant dense<0.000000e+00> : vector<1x128xf32>
    %2 = vector.multi_reduction <add>, %1, %cst [1] : vector<1x16x128xf32> to vector<1x128xf32>
    %cst_2 = arith.constant 1.600000e+01 : f32
    %3 = vector.broadcast %cst_2 : f32 to vector<1x128xf32>
    %4 = arith.divf %2, %3 : vector<1x128xf32>
    %c0_3 = arith.constant 0 : index
    %c0_4 = arith.constant 0 : index
    %5 = vector.load %arg2[%c0_3, %c0_4] : memref<128x128xf32, #tpu.memory_space<vmem>>, vector<128x128xf32>
    %cst_5 = arith.constant dense<0.000000e+00> : vector<1x128xf32>
    %6 = tpu.matmul %4, %5, %cst_5 {dimension_numbers = #tpu.dot_dimension_numbers<[1], [0], [0], [1], [0, 0, 1, 1], [], []>} : vector<1x128xf32>, vector<128x128xf32>, vector<1x128xf32> -> vector<1x128xf32>
    %c0_6 = arith.constant 0 : index
    %c0_7 = arith.constant 0 : index
    %7 = vector.load %arg3[%c0_6, %c0_7] : memref<1x128xf32, #tpu.memory_space<vmem>>, vector<1x128xf32>
    %8 = arith.addf %6, %7 : vector<1x128xf32>
    %9 = vector.shape_cast %8 : vector<1x128xf32> to vector<1x1x128xf32>
    %c0_8 = arith.constant 0 : index
    %c0_9 = arith.constant 0 : index
    %c0_10 = arith.constant 0 : index
    %10 = vector.load %arg4[%c0_8, %c0_9, %c0_10] : memref<1x1x128xf32, #tpu.memory_space<vmem>>, vector<1x1x128xf32>
    tpu.vector_store %arg4[%c0_8, %c0_9, %c0_10], %9 {strides = array<i32>} : memref<1x1x128xf32, #tpu.memory_space<vmem>>, vector<1x1x128xf32>,
    return
  }
  func.func @transform_0(%arg0: i32) -> (i32, i32, i32) {
    %c0_i32 = arith.constant 0 : i32
    %c0_i32_0 = arith.constant 0 : i32
    %c0_i32_1 = arith.constant 0 : i32
    return %arg0, %c0_i32, %c0_i32_0 : i32, i32, i32
  }
  func.func @transform_1(%arg0: i32) -> (i32, i32) {
    %c0_i32 = arith.constant 0 : i32
    %c0_i32_0 = arith.constant 0 : i32
    %c0_i32_1 = arith.constant 0 : i32
    return %c0_i32, %c0_i32_0 : i32, i32
  }
  func.func @transform_2(%arg0: i32) -> (i32, i32) {
    %c0_i32 = arith.constant 0 : i32
    %c0_i32_0 = arith.constant 0 : i32
    %c0_i32_1 = arith.constant 0 : i32
    return %c0_i32, %c0_i32_0 : i32, i32
  }
  func.func @transform_3(%arg0: i32) -> (i32, i32, i32) {
    %c0_i32 = arith.constant 0 : i32
    %c0_i32_0 = arith.constant 0 : i32
    %c0_i32_1 = arith.constant 0 : i32
    return %arg0, %c0_i32, %c0_i32_0 : i32, i32, i32
  }
}

</mosaic_0001>

<llo_original>
// kernel: forward.20
$region0: #{forward.20}
  #allocation0 [shape = 'u32[]', space=smem, size = 0x4, offset = 0x4, fixed_abs, tag = 'smem constant byte address 0x4 - core index']
  #allocation1 [shape = 'u32[144,128]{1,0:T(1,128)}', space=vmem, size = 0x12000, scoped, tag = 'internal scratch']
  %s0 = inlined_call_operand.vmem [shape: bf16[512,128], index: 0, kind: input, shape index: {}]
  %s1 = inlined_call_operand.vmem [shape: f32[1,128], index: 1, kind: input, shape index: {}]
  %s2 = inlined_call_operand.vmem [shape: f32[1,128], index: 2, kind: input, shape index: {}]
  %s3 = inlined_call_operand.vmem [shape: bf16[512,128], index: 3, kind: output, shape index: {}]
  %s4 = sld [smem:[#allocation0]]
  $region45: #{forward.20} parent=0
    _
  %s6 = ssub.s32 1, %s4
  %s7 = scalar_select 0, %s6, %s4
  loop: start=0, step=1, limit=4
  $region2: #{forward.20} parent=0 // loop_pre_header
    _
  $region3: #{forward.20} parent=0 // loop_header
    %s9 = sphi 0, %s13
    %p10 = scmp.ge.s32.totalorder %s9, 4
    %s19 = sphi 0, %s21
    %s22 = sphi 0, %s19
    %s23 = sphi 0, %s22
    %s39 = sphi 0, %s23
    %s43 = sphi 0, %s43
    %s45 = sphi 0, %s43
    %s46 = sphi 0, %s45
    %s60 = sphi 0, %s46
    %s64 = sphi 0, %s64
    %s66 = sphi 0, %s64
    %s67 = sphi 0, %s66
    %s81 = sphi 0, %s67
    %s87 = sphi 0, %s89
    %s90 = sphi 0, %s87
    %s91 = sphi 0, %s90
    %s107 = sphi 0, %s91
  $region4: #{forward.20} parent=0 // loop_header_branch
    %12 = sbr.rel (%p10) target = $region8
  $region5: #{forward.20} parent=0 // loop_body
    %s14 = ssub.s32 %s9, 1
    %s15 = ssub.s32 %s9, 2
    %s16 = sadd.s32 %s9, 1
    %s17 = ssub.s32 %s9, %s16
    %p18 = scmp.eq.s32.totalorder %s17, 0
    %s20 = sadd.s32 %s19, 1
    %s21 = scalar_select %p18, %s19, %s20
    %p24 = pneg %p18
    %p25 = scmp.eq.s32.totalorder %s9, 1
    %p26 = por %p24, %p25
    %p27 = scmp.ne.s32.totalorder %s19, %s22
    %p28 = scmp.eq.s32.totalorder %s9, 0
    %p29 = por %p27, %p28
    %p30 = scmp.ne.s32.totalorder %s19, %s22
    %p31 = scmp.eq.s32.totalorder %s14, 1
    %p32 = por %p30, %p31
    %p33 = scmp.ne.s32.totalorder %s22, %s23
    %p34 = scmp.eq.s32.totalorder %s14, 0
    %p35 = por %p33, %p34
    %p36 = scmp.ne.s32.totalorder %s22, %s23
    %p37 = scmp.eq.s32.totalorder %s15, 1
    %p38 = por %p36, %p37
    %p40 = scmp.ne.s32.totalorder %s23, %s39
    %p41 = scmp.eq.s32.totalorder %s15, 0
    %p42 = por %p40, %p41
    %s44 = sadd.s32 %s43, 1
    %p47 = scmp.eq.s32.totalorder %s9, 1
    %p48 = scmp.ne.s32.totalorder %s43, %s45
    %p49 = scmp.eq.s32.totalorder %s9, 0
    %p50 = por %p48, %p49
    %p51 = scmp.ne.s32.totalorder %s43, %s45
    %p52 = scmp.eq.s32.totalorder %s14, 1
    %p53 = por %p51, %p52
    %p54 = scmp.ne.s32.totalorder %s45, %s46
    %p55 = scmp.eq.s32.totalorder %s14, 0
    %p56 = por %p54, %p55
    %p57 = scmp.ne.s32.totalorder %s45, %s46
    %p58 = scmp.eq.s32.totalorder %s15, 1
    %p59 = por %p57, %p58
    %p61 = scmp.ne.s32.totalorder %s46, %s60
    %p62 = scmp.eq.s32.totalorder %s15, 0
    %p63 = por %p61, %p62
    %s65 = sadd.s32 %s64, 1
    %p68 = scmp.eq.s32.totalorder %s9, 1
    %p69 = scmp.ne.s32.totalorder %s64, %s66
    %p70 = scmp.eq.s32.totalorder %s9, 0
    %p71 = por %p69, %p70
    %p72 = scmp.ne.s32.totalorder %s64, %s66
    %p73 = scmp.eq.s32.totalorder %s14, 1
    %p74 = por %p72, %p73
    %p75 = scmp.ne.s32.totalorder %s66, %s67
    %p76 = scmp.eq.s32.totalorder %s14, 0
    %p77 = por %p75, %p76
    %p78 = scmp.ne.s32.totalorder %s66, %s67
    %p79 = scmp.eq.s32.totalorder %s15, 1
    %p80 = por %p78, %p79
    %p82 = scmp.ne.s32.totalorder %s67, %s81
    %p83 = scmp.eq.s32.totalorder %s15, 0
    %p84 = por %p82, %p83
    %s85 = ssub.s32 %s9, %s16
    %p86 = scmp.eq.s32.totalorder %s85, 0
    %s88 = sadd.s32 %s87, 1
    %s89 = scalar_select %p86, %s87, %s88
    %p92 = pneg %p86
    %p93 = scmp.eq.s32.totalorder %s9, 1
    %p94 = por %p92, %p93
    %p95 = scmp.ne.s32.totalorder %s87, %s90
    %p96 = scmp.eq.s32.totalorder %s9, 0
    %p97 = por %p95, %p96
    %p98 = scmp.ne.s32.totalorder %s87, %s90
    %p99 = scmp.eq.s32.totalorder %s14, 1
    %p100 = por %p98, %p99
    %p101 = scmp.ne.s32.totalorder %s90, %s91
    %p102 = scmp.eq.s32.totalorder %s14, 0
    %p103 = por %p101, %p102
    %p104 = scmp.ne.s32.totalorder %s90, %s91
    %p105 = scmp.eq.s32.totalorder %s15, 1
    %p106 = por %p104, %p105
    %p108 = scmp.ne.s32.totalorder %s91, %s107
    %p109 = scmp.eq.s32.totalorder %s15, 0
    %p110 = por %p108, %p109
    %p111 = scmp.le.s32.totalorder 1, %s9
    %p112 = scmp.lt.s32.totalorder %s9, 3
    %p113 = pnand %p111, %p112
    %p114 = pneg %p113
    // Predicated region
    $region9: #{forward.20} parent=5 // pred_check
      _
    $region10: #{forward.20} parent=5 // pred_check_branch
      %116 = sbr.rel (%p113) target = $region12
    $region11: #{forward.20} parent=5 // pred_region
      %s117 = ssub.s32 %s9, 1
      // Predicated region
      $region13: #{forward.20} parent=11 // pred_check
        %p118 = pneg %p56
      $region14: #{forward.20} parent=11 // pred_check_branch
        %120 = sbr.rel (%p118) target = $region16
      $region15: #{forward.20} parent=11 // pred_region
        _
      $region16: #{forward.20} parent=11 // pred_fallthru
        _
      // Predicated region
      $region17: #{forward.20} parent=11 // pred_check
        %p121 = pneg %p77
      $region18: #{forward.20} parent=11 // pred_check_branch
        %123 = sbr.rel (%p121) target = $region20
      $region19: #{forward.20} parent=11 // pred_region
        _
      $region20: #{forward.20} parent=11 // pred_fallthru
        _
    $region12: #{forward.20} parent=5 // pred_fallthru
      _
    %p124 = scmp.lt.s32.totalorder %s9, 2
    // Predicated region
    $region21: #{forward.20} parent=5 // pred_check
      %p125 = pneg %p124
    $region22: #{forward.20} parent=5 // pred_check_branch
      %127 = sbr.rel (%p125) target = $region24
    $region23: #{forward.20} parent=5 // pred_region
      // Predicated region
      $region25: #{forward.20} parent=23 // pred_check
        %p128 = pneg %p29
      $region26: #{forward.20} parent=23 // pred_check_branch
        %130 = sbr.rel (%p128) target = $region28
      $region27: #{forward.20} parent=23 // pred_region
        %s131 = smul.u32 32, %s9
        %p132 = scmp.lt.s32.totalorder %s131, 63
        %s133 = scalar_select %p132, %s131, 63
        %s134 = smul.addr %s133, 4
        %s135 = scalar_lea.vmem %s0, %s134
        %s136 = smul.u32 32, %s9
      $region28: #{forward.20} parent=23 // pred_fallthru
        _
    $region24: #{forward.20} parent=5 // pred_fallthru
      _
    %p137 = scmp.le.s32.totalorder 1, %s9
    %p138 = scmp.lt.s32.totalorder %s9, 3
    %p139 = pnand %p137, %p138
    %p140 = pneg %p139
    // Predicated region
    $region29: #{forward.20} parent=5 // pred_check
      _
    $region30: #{forward.20} parent=5 // pred_check_branch
      %142 = sbr.rel (%p139) target = $region32
    $region31: #{forward.20} parent=5 // pred_region
      %s143 = ssub.s32 %s9, 1
      %s144 = smul.u32 32, %s14
      %p145 = scmp.lt.s32.totalorder %s144, 63
      %s146 = scalar_select %p145, %s144, 63
      %s147 = smul.addr %s146, 4
      %s148 = scalar_lea.vmem %s0, %s147
      %p149 = pneg %p35
      %p150 = pneg %p32
      %p151 = pneg %p56
      %p152 = pneg %p53
      %p153 = pneg %p77
      %p154 = pneg %p74
      %p155 = pneg %p103
      %p156 = pneg %p100
      %s157 = smul.u32 32, %s14
      %p158 = scmp.lt.s32.totalorder %s157, 63
      %s159 = scalar_select %p158, %s157, 63
      %s160 = smul.addr %s159, 4
      %s161 = scalar_lea.vmem %s3, %s160
      %s162 = smul.u32 32, %s14
      %p163 = scmp.lt.s32.totalorder %s162, 63
      %s164 = scalar_select %p163, %s162, 63
      %s165 = smul.addr %s164, 4
      %s166 = scalar_lea.vmem %s0, %s165
      %s167 = smul.u32 32, %s14
      %s168 = smul.u32 32, %s14
      %p169 = scmp.lt.s32.totalorder %s168, 63
      %s170 = scalar_select %p169, %s168, 63
      %s171 = smul.addr %s170, 4
      %s172 = scalar_lea.vmem %s3, %s171
      %s173 = smul.u32 32, %s14
      %v174 = vld [vmem:[%s166] sm:$0xf]
      %v175 = vld [vmem:[%s166 + $0x4] sm:$0xf]
      %v176 = vld [vmem:[%s166 + $0x8] sm:$0xf]
      %v177 = vld [vmem:[%s166 + $0xc] sm:$0xf]
      %v178 = vld [vmem:[%s166 + $0x10] sm:$0xf]
      %v179 = vld [vmem:[%s166 + $0x14] sm:$0xf]
      %v180 = vld [vmem:[%s166 + $0x18] sm:$0xf]
      %v181 = vld [vmem:[%s166 + $0x1c] sm:$0xf]
      %v182 = vld [vmem:[%s166 + $0x20] sm:$0xf]
      %v183 = vld [vmem:[%s166 + $0x24] sm:$0xf]
      %v184 = vld [vmem:[%s166 + $0x28] sm:$0xf]
      %v185 = vld [vmem:[%s166 + $0x2c] sm:$0xf]
      %v186 = vld [vmem:[%s166 + $0x30] sm:$0xf]
      %v187 = vld [vmem:[%s166 + $0x34] sm:$0xf]
      %v188 = vld [vmem:[%s166 + $0x38] sm:$0xf]
      %v189 = vld [vmem:[%s166 + $0x3c] sm:$0xf]
      %v190 = vld [vmem:[%s166 + $0x40] sm:$0xf]
      %v191 = vld [vmem:[%s166 + $0x44] sm:$0xf]
      %v192 = vld [vmem:[%s166 + $0x48] sm:$0xf]
      %v193 = vld [vmem:[%s166 + $0x4c] sm:$0xf]
      %v194 = vld [vmem:[%s166 + $0x50] sm:$0xf]
      %v195 = vld [vmem:[%s166 + $0x54] sm:$0xf]
      %v196 = vld [vmem:[%s166 + $0x58] sm:$0xf]
      %v197 = vld [vmem:[%s166 + $0x5c] sm:$0xf]
      %v198 = vld [vmem:[%s166 + $0x60] sm:$0xf]
      %v199 = vld [vmem:[%s166 + $0x64] sm:$0xf]
      %v200 = vld [vmem:[%s166 + $0x68] sm:$0xf]
      %v201 = vld [vmem:[%s166 + $0x6c] sm:$0xf]
      %v202 = vld [vmem:[%s166 + $0x70] sm:$0xf]
      %v203 = vld [vmem:[%s166 + $0x74] sm:$0xf]
      %v204 = vld [vmem:[%s166 + $0x78] sm:$0xf]
      %v205 = vld [vmem:[%s166 + $0x7c] sm:$0xf]
      %v206 = vunpack.c.l.bf16 %v174
      %v207 = vunpack.c.l.bf16 %v175
      %v208 = vunpack.c.l.bf16 %v176
      %v209 = vunpack.c.l.bf16 %v177
      %v210 = vunpack.c.l.bf16 %v178
      %v211 = vunpack.c.l.bf16 %v179
      %v212 = vunpack.c.l.bf16 %v180
      %v213 = vunpack.c.l.bf16 %v181
      %v214 = vunpack.c.l.bf16 %v182
      %v215 = vunpack.c.l.bf16 %v183
      %v216 = vunpack.c.l.bf16 %v184
      %v217 = vunpack.c.l.bf16 %v185
      %v218 = vunpack.c.l.bf16 %v186
      %v219 = vunpack.c.l.bf16 %v187
      %v220 = vunpack.c.l.bf16 %v188
      %v221 = vunpack.c.l.bf16 %v189
      %v222 = vunpack.c.l.bf16 %v190
      %v223 = vunpack.c.l.bf16 %v191
      %v224 = vunpack.c.l.bf16 %v192
      %v225 = vunpack.c.l.bf16 %v193
      %v226 = vunpack.c.l.bf16 %v194
      %v227 = vunpack.c.l.bf16 %v195
      %v228 = vunpack.c.l.bf16 %v196
      %v229 = vunpack.c.l.bf16 %v197
      %v230 = vunpack.c.l.bf16 %v198
      %v231 = vunpack.c.l.bf16 %v199
      %v232 = vunpack.c.l.bf16 %v200
      %v233 = vunpack.c.l.bf16 %v201
      %v234 = vunpack.c.l.bf16 %v202
      %v235 = vunpack.c.l.bf16 %v203
      %v236 = vunpack.c.l.bf16 %v204
      %v237 = vunpack.c.l.bf16 %v205
      %v238 = vld [vmem:[%s1] sm:$0x1]
      %v240 = vlaneseq
      %v241 = vshrl.u32 %v240, 7
      %v242 = vsub.s32 0, %v241
      %v243 = vrot.slane %v238, %v242
      %v245 = vmul.f32 %v206, %v243
      %v246 = vmul.f32 %v207, %v243
      %v247 = vmul.f32 %v208, %v243
      %v248 = vmul.f32 %v209, %v243
      %v249 = vmul.f32 %v210, %v243
      %v250 = vmul.f32 %v211, %v243
      %v251 = vmul.f32 %v212, %v243
      %v252 = vmul.f32 %v213, %v243
      %v253 = vmul.f32 %v214, %v243
      %v254 = vmul.f32 %v215, %v243
      %v255 = vmul.f32 %v216, %v243
      %v256 = vmul.f32 %v217, %v243
      %v257 = vmul.f32 %v218, %v243
      %v258 = vmul.f32 %v219, %v243
      %v259 = vmul.f32 %v220, %v243
      %v260 = vmul.f32 %v221, %v243
      %v261 = vmul.f32 %v222, %v243
      %v262 = vmul.f32 %v223, %v243
      %v263 = vmul.f32 %v224, %v243
      %v264 = vmul.f32 %v225, %v243
      %v265 = vmul.f32 %v226, %v243
      %v266 = vmul.f32 %v227, %v243
      %v267 = vmul.f32 %v228, %v243
      %v268 = vmul.f32 %v229, %v243
      %v269 = vmul.f32 %v230, %v243
      %v270 = vmul.f32 %v231, %v243
      %v271 = vmul.f32 %v232, %v243
      %v272 = vmul.f32 %v233, %v243
      %v273 = vmul.f32 %v234, %v243
      %v274 = vmul.f32 %v235, %v243
      %v275 = vmul.f32 %v236, %v243
      %v276 = vmul.f32 %v237, %v243
      %v277 = vld [vmem:[%s2] sm:$0x1]
      %v279 = vlaneseq
      %v280 = vshrl.u32 %v279, 7
      %v281 = vsub.s32 0, %v280
      %v282 = vrot.slane %v277, %v281
      %v284 = vadd.f32 %v245, %v282
      %v285 = vadd.f32 %v246, %v282
      %v286 = vadd.f32 %v247, %v282
      %v287 = vadd.f32 %v248, %v282
      %v288 = vadd.f32 %v249, %v282
      %v289 = vadd.f32 %v250, %v282
      %v290 = vadd.f32 %v251, %v282
      %v291 = vadd.f32 %v252, %v282
      %v292 = vadd.f32 %v253, %v282
      %v293 = vadd.f32 %v254, %v282
      %v294 = vadd.f32 %v255, %v282
      %v295 = vadd.f32 %v256, %v282
      %v296 = vadd.f32 %v257, %v282
      %v297 = vadd.f32 %v258, %v282
      %v298 = vadd.f32 %v259, %v282
      %v299 = vadd.f32 %v260, %v282
      %v300 = vadd.f32 %v261, %v282
      %v301 = vadd.f32 %v262, %v282
      %v302 = vadd.f32 %v263, %v282
      %v303 = vadd.f32 %v264, %v282
      %v304 = vadd.f32 %v265, %v282
      %v305 = vadd.f32 %v266, %v282
      %v306 = vadd.f32 %v267, %v282
      %v307 = vadd.f32 %v268, %v282
      %v308 = vadd.f32 %v269, %v282
      %v309 = vadd.f32 %v270, %v282
      %v310 = vadd.f32 %v271, %v282
      %v311 = vadd.f32 %v272, %v282
      %v312 = vadd.f32 %v273, %v282
      %v313 = vadd.f32 %v274, %v282
      %v314 = vadd.f32 %v275, %v282
      %v315 = vadd.f32 %v276, %v282
      %v316 = vmax.f32 %v284, 0.0
      %v317 = vmax.f32 %v285, 0.0
      %v318 = vmax.f32 %v286, 0.0
      %v319 = vmax.f32 %v287, 0.0
      %v320 = vmax.f32 %v288, 0.0
      %v321 = vmax.f32 %v289, 0.0
      %v322 = vmax.f32 %v290, 0.0
      %v323 = vmax.f32 %v291, 0.0
      %v324 = vmax.f32 %v292, 0.0
      %v325 = vmax.f32 %v293, 0.0
      %v326 = vmax.f32 %v294, 0.0
      %v327 = vmax.f32 %v295, 0.0
      %v328 = vmax.f32 %v296, 0.0
      %v329 = vmax.f32 %v297, 0.0
      %v330 = vmax.f32 %v298, 0.0
      %v331 = vmax.f32 %v299, 0.0
      %v332 = vmax.f32 %v300, 0.0
      %v333 = vmax.f32 %v301, 0.0
      %v334 = vmax.f32 %v302, 0.0
      %v335 = vmax.f32 %v303, 0.0
      %v336 = vmax.f32 %v304, 0.0
      %v337 = vmax.f32 %v305, 0.0
      %v338 = vmax.f32 %v306, 0.0
      %v339 = vmax.f32 %v307, 0.0
      %v340 = vmax.f32 %v308, 0.0
      %v341 = vmax.f32 %v309, 0.0
      %v342 = vmax.f32 %v310, 0.0
      %v343 = vmax.f32 %v311, 0.0
      %v344 = vmax.f32 %v312, 0.0
      %v345 = vmax.f32 %v313, 0.0
      %v346 = vmax.f32 %v314, 0.0
      %v347 = vmax.f32 %v315, 0.0
      %v348 = vpack.c.bf16 %v317, %v316
      %v349 = vpack.c.bf16 %v319, %v318
      %v350 = vpack.c.bf16 %v321, %v320
      %v351 = vpack.c.bf16 %v323, %v322
      %v352 = vpack.c.bf16 %v325, %v324
      %v353 = vpack.c.bf16 %v327, %v326
      %v354 = vpack.c.bf16 %v329, %v328
      %v355 = vpack.c.bf16 %v331, %v330
      %v356 = vpack.c.bf16 %v333, %v332
      %v357 = vpack.c.bf16 %v335, %v334
      %v358 = vpack.c.bf16 %v337, %v336
      %v359 = vpack.c.bf16 %v339, %v338
      %v360 = vpack.c.bf16 %v341, %v340
      %v361 = vpack.c.bf16 %v343, %v342
      %v362 = vpack.c.bf16 %v345, %v344
      %v363 = vpack.c.bf16 %v347, %v346
      %v380 = vunpack.c.l.b16 %v348
      %v381 = vunpack.c.h.b16 %v348
      %v382 = vunpack.c.l.b16 %v349
      %v383 = vunpack.c.h.b16 %v349
      %v384 = vunpack.c.l.b16 %v350
      %v385 = vunpack.c.h.b16 %v350
      %v386 = vunpack.c.l.b16 %v351
      %v387 = vunpack.c.h.b16 %v351
      %v388 = vunpack.c.l.b16 %v352
      %v389 = vunpack.c.h.b16 %v352
      %v390 = vunpack.c.l.b16 %v353
      %v391 = vunpack.c.h.b16 %v353
      %v392 = vunpack.c.l.b16 %v354
      %v393 = vunpack.c.h.b16 %v354
      %v394 = vunpack.c.l.b16 %v355
      %v395 = vunpack.c.h.b16 %v355
      %v396 = vunpack.c.l.b16 %v356
      %v397 = vunpack.c.h.b16 %v356
      %v398 = vunpack.c.l.b16 %v357
      %v399 = vunpack.c.h.b16 %v357
      %v400 = vunpack.c.l.b16 %v358
      %v401 = vunpack.c.h.b16 %v358
      %v402 = vunpack.c.l.b16 %v359
      %v403 = vunpack.c.h.b16 %v359
      %v404 = vunpack.c.l.b16 %v360
      %v405 = vunpack.c.h.b16 %v360
      %v406 = vunpack.c.l.b16 %v361
      %v407 = vunpack.c.h.b16 %v361
      %v408 = vunpack.c.l.b16 %v362
      %v409 = vunpack.c.h.b16 %v362
      %v410 = vunpack.c.l.b16 %v363
      %v411 = vunpack.c.h.b16 %v363
      %v412 = vpack.c.b16 %v380, %v380
      %v413 = vpack.c.b16 %v381, %v381
      %v414 = vpack.c.b16 %v382, %v382
      %v415 = vpack.c.b16 %v383, %v383
      %v416 = vpack.c.b16 %v384, %v384
      %v417 = vpack.c.b16 %v385, %v385
      %v418 = vpack.c.b16 %v386, %v386
      %v419 = vpack.c.b16 %v387, %v387
      %v420 = vpack.c.b16 %v388, %v388
      %v421 = vpack.c.b16 %v389, %v389
      %v422 = vpack.c.b16 %v390, %v390
      %v423 = vpack.c.b16 %v391, %v391
      %v424 = vpack.c.b16 %v392, %v392
      %v425 = vpack.c.b16 %v393, %v393
      %v426 = vpack.c.b16 %v394, %v394
      %v427 = vpack.c.b16 %v395, %v395
      %v428 = vpack.c.b16 %v396, %v396
      %v429 = vpack.c.b16 %v397, %v397
      %v430 = vpack.c.b16 %v398, %v398
      %v431 = vpack.c.b16 %v399, %v399
      %v432 = vpack.c.b16 %v400, %v400
      %v433 = vpack.c.b16 %v401, %v401
      %v434 = vpack.c.b16 %v402, %v402
      %v435 = vpack.c.b16 %v403, %v403
      %v436 = vpack.c.b16 %v404, %v404
      %v437 = vpack.c.b16 %v405, %v405
      %v438 = vpack.c.b16 %v406, %v406
      %v439 = vpack.c.b16 %v407, %v407
      %v440 = vpack.c.b16 %v408, %v408
      %v441 = vpack.c.b16 %v409, %v409
      %v442 = vpack.c.b16 %v410, %v410
      %v443 = vpack.c.b16 %v411, %v411
      %476 = vst [vmem:[%s172] sm:$0xf] %v412
      %477 = vst [vmem:[%s172 + $0x4] sm:$0xf] %v413
      %478 = vst [vmem:[%s172 + $0x8] sm:$0xf] %v414
      %479 = vst [vmem:[%s172 + $0xc] sm:$0xf] %v415
      %480 = vst [vmem:[%s172 + $0x10] sm:$0xf] %v416
      %481 = vst [vmem:[%s172 + $0x14] sm:$0xf] %v417
      %482 = vst [vmem:[%s172 + $0x18] sm:$0xf] %v418
      %483 = vst [vmem:[%s172 + $0x1c] sm:$0xf] %v419
      %484 = vst [vmem:[%s172 + $0x20] sm:$0xf] %v420
      %485 = vst [vmem:[%s172 + $0x24] sm:$0xf] %v421
      %486 = vst [vmem:[%s172 + $0x28] sm:$0xf] %v422
      %487 = vst [vmem:[%s172 + $0x2c] sm:$0xf] %v423
      %488 = vst [vmem:[%s172 + $0x30] sm:$0xf] %v424
      %489 = vst [vmem:[%s172 + $0x34] sm:$0xf] %v425
      %490 = vst [vmem:[%s172 + $0x38] sm:$0xf] %v426
      %491 = vst [vmem:[%s172 + $0x3c] sm:$0xf] %v427
      %492 = vst [vmem:[%s172 + $0x40] sm:$0xf] %v428
      %493 = vst [vmem:[%s172 + $0x44] sm:$0xf] %v429
      %494 = vst [vmem:[%s172 + $0x48] sm:$0xf] %v430
      %495 = vst [vmem:[%s172 + $0x4c] sm:$0xf] %v431
      %496 = vst [vmem:[%s172 + $0x50] sm:$0xf] %v432
      %497 = vst [vmem:[%s172 + $0x54] sm:$0xf] %v433
      %498 = vst [vmem:[%s172 + $0x58] sm:$0xf] %v434
      %499 = vst [vmem:[%s172 + $0x5c] sm:$0xf] %v435
      %500 = vst [vmem:[%s172 + $0x60] sm:$0xf] %v436
      %501 = vst [vmem:[%s172 + $0x64] sm:$0xf] %v437
      %502 = vst [vmem:[%s172 + $0x68] sm:$0xf] %v438
      %503 = vst [vmem:[%s172 + $0x6c] sm:$0xf] %v439
      %504 = vst [vmem:[%s172 + $0x70] sm:$0xf] %v440
      %505 = vst [vmem:[%s172 + $0x74] sm:$0xf] %v441
      %506 = vst [vmem:[%s172 + $0x78] sm:$0xf] %v442
      %507 = vst [vmem:[%s172 + $0x7c] sm:$0xf] %v443
      %s508 = smul.u32 32, %s14
      %p509 = scmp.lt.s32.totalorder %s508, 63
      %s510 = scalar_select %p509, %s508, 63
      %s511 = smul.addr %s510, 4
      %s512 = scalar_lea.vmem %s3, %s511
      // Predicated region
      $region33: #{forward.20} parent=31 // pred_check
        %p513 = pneg %p100
      $region34: #{forward.20} parent=31 // pred_check_branch
        %515 = sbr.rel (%p513) target = $region36
      $region35: #{forward.20} parent=31 // pred_region
        %s516 = smul.u32 32, %s14
      $region36: #{forward.20} parent=31 // pred_fallthru
        _
    $region32: #{forward.20} parent=5 // pred_fallthru
      _
    %p517 = scmp.le.s32.totalorder 2, %s9
    // Predicated region
    $region37: #{forward.20} parent=5 // pred_check
      %p518 = pneg %p517
    $region38: #{forward.20} parent=5 // pred_check_branch
      %520 = sbr.rel (%p518) target = $region40
    $region39: #{forward.20} parent=5 // pred_region
      %s521 = ssub.s32 %s9, 2
      // Predicated region
      $region41: #{forward.20} parent=39 // pred_check
        %p522 = pneg %p106
      $region42: #{forward.20} parent=39 // pred_check_branch
        %524 = sbr.rel (%p522) target = $region44
      $region43: #{forward.20} parent=39 // pred_region
        %s525 = smul.u32 32, %s15
        %p526 = scmp.lt.s32.totalorder %s525, 63
        %s527 = scalar_select %p526, %s525, 63
        %s528 = smul.addr %s527, 4
        %s529 = scalar_lea.vmem %s3, %s528
      $region44: #{forward.20} parent=39 // pred_fallthru
        _
    $region40: #{forward.20} parent=5 // pred_fallthru
      _
  $region6: #{forward.20} parent=0 // loop_footer
    %s13 = sadd.s32 1, %s9
  $region7: #{forward.20} parent=0 // loop_footer_branch
    %8 = sbr.rel target = $region3
  $region8: #{forward.20} parent=0 // loop_exit
    _

// kernel: forward.19
$region0: #{forward.19}
  #allocation0 [shape = 'u32[]', space=smem, size = 0x4, offset = 0x4, fixed_abs, tag = 'smem constant byte address 0x4 - core index']
  #allocation1 [shape = 'u32[144,128]{1,0:T(1,128)}', space=vmem, size = 0x12000, scoped, tag = 'internal scratch']
  %s0 = inlined_call_operand.vmem [shape: bf16[512,128], index: 0, kind: input, shape index: {}]
  %s1 = inlined_call_operand.vmem [shape: bf16[128,128], index: 1, kind: input, shape index: {}]
  %s2 = inlined_call_operand.vmem [shape: bf16[512,128], index: 2, kind: output, shape index: {0}]
  %s3 = inlined_call_operand.vmem [shape: f32[2,2,128], index: 3, kind: output, shape index: {1}]
  %4 = xla_tuple %s2, %s3
  %s5 = sld [smem:[#allocation0]]
  $region49: #{forward.19} parent=0
    _
  %s7 = ssub.s32 1, %s5
  %s8 = scalar_select 0, %s7, %s5
  loop: start=0, step=1, limit=4
  $region2: #{forward.19} parent=0 // loop_pre_header
    _
  $region3: #{forward.19} parent=0 // loop_header
    %s10 = sphi 0, %s14
    %p11 = scmp.ge.s32.totalorder %s10, 4
    %s20 = sphi 0, %s22
    %s23 = sphi 0, %s20
    %s24 = sphi 0, %s23
    %s40 = sphi 0, %s24
    %s44 = sphi 0, %s44
    %s46 = sphi 0, %s44
    %s47 = sphi 0, %s46
    %s61 = sphi 0, %s47
    %s67 = sphi 0, %s69
    %s70 = sphi 0, %s67
    %s71 = sphi 0, %s70
    %s87 = sphi 0, %s71
    %s93 = sphi 0, %s95
    %s96 = sphi 0, %s93
    %s97 = sphi 0, %s96
    %s113 = sphi 0, %s97
  $region4: #{forward.19} parent=0 // loop_header_branch
    %13 = sbr.rel (%p11) target = $region8
  $region5: #{forward.19} parent=0 // loop_body
    %s15 = ssub.s32 %s10, 1
    %s16 = ssub.s32 %s10, 2
    %s17 = sadd.s32 %s10, 1
    %s18 = ssub.s32 %s10, %s17
    %p19 = scmp.eq.s32.totalorder %s18, 0
    %s21 = sadd.s32 %s20, 1
    %s22 = scalar_select %p19, %s20, %s21
    %p25 = pneg %p19
    %p26 = scmp.eq.s32.totalorder %s10, 1
    %p27 = por %p25, %p26
    %p28 = scmp.ne.s32.totalorder %s20, %s23
    %p29 = scmp.eq.s32.totalorder %s10, 0
    %p30 = por %p28, %p29
    %p31 = scmp.ne.s32.totalorder %s20, %s23
    %p32 = scmp.eq.s32.totalorder %s15, 1
    %p33 = por %p31, %p32
    %p34 = scmp.ne.s32.totalorder %s23, %s24
    %p35 = scmp.eq.s32.totalorder %s15, 0
    %p36 = por %p34, %p35
    %p37 = scmp.ne.s32.totalorder %s23, %s24
    %p38 = scmp.eq.s32.totalorder %s16, 1
    %p39 = por %p37, %p38
    %p41 = scmp.ne.s32.totalorder %s24, %s40
    %p42 = scmp.eq.s32.totalorder %s16, 0
    %p43 = por %p41, %p42
    %s45 = sadd.s32 %s44, 1
    %p48 = scmp.eq.s32.totalorder %s10, 1
    %p49 = scmp.ne.s32.totalorder %s44, %s46
    %p50 = scmp.eq.s32.totalorder %s10, 0
    %p51 = por %p49, %p50
    %p52 = scmp.ne.s32.totalorder %s44, %s46
    %p53 = scmp.eq.s32.totalorder %s15, 1
    %p54 = por %p52, %p53
    %p55 = scmp.ne.s32.totalorder %s46, %s47
    %p56 = scmp.eq.s32.totalorder %s15, 0
    %p57 = por %p55, %p56
    %p58 = scmp.ne.s32.totalorder %s46, %s47
    %p59 = scmp.eq.s32.totalorder %s16, 1
    %p60 = por %p58, %p59
    %p62 = scmp.ne.s32.totalorder %s47, %s61
    %p63 = scmp.eq.s32.totalorder %s16, 0
    %p64 = por %p62, %p63
    %s65 = ssub.s32 %s10, %s17
    %p66 = scmp.eq.s32.totalorder %s65, 0
    %s68 = sadd.s32 %s67, 1
    %s69 = scalar_select %p66, %s67, %s68
    %p72 = pneg %p66
    %p73 = scmp.eq.s32.totalorder %s10, 1
    %p74 = por %p72, %p73
    %p75 = scmp.ne.s32.totalorder %s67, %s70
    %p76 = scmp.eq.s32.totalorder %s10, 0
    %p77 = por %p75, %p76
    %p78 = scmp.ne.s32.totalorder %s67, %s70
    %p79 = scmp.eq.s32.totalorder %s15, 1
    %p80 = por %p78, %p79
    %p81 = scmp.ne.s32.totalorder %s70, %s71
    %p82 = scmp.eq.s32.totalorder %s15, 0
    %p83 = por %p81, %p82
    %p84 = scmp.ne.s32.totalorder %s70, %s71
    %p85 = scmp.eq.s32.totalorder %s16, 1
    %p86 = por %p84, %p85
    %p88 = scmp.ne.s32.totalorder %s71, %s87
    %p89 = scmp.eq.s32.totalorder %s16, 0
    %p90 = por %p88, %p89
    %s91 = ssub.s32 %s10, %s17
    %p92 = scmp.eq.s32.totalorder %s91, 0
    %s94 = sadd.s32 %s93, 1
    %s95 = scalar_select %p92, %s93, %s94
    %p98 = pneg %p92
    %p99 = scmp.eq.s32.totalorder %s10, 1
    %p100 = por %p98, %p99
    %p101 = scmp.ne.s32.totalorder %s93, %s96
    %p102 = scmp.eq.s32.totalorder %s10, 0
    %p103 = por %p101, %p102
    %p104 = scmp.ne.s32.totalorder %s93, %s96
    %p105 = scmp.eq.s32.totalorder %s15, 1
    %p106 = por %p104, %p105
    %p107 = scmp.ne.s32.totalorder %s96, %s97
    %p108 = scmp.eq.s32.totalorder %s15, 0
    %p109 = por %p107, %p108
    %p110 = scmp.ne.s32.totalorder %s96, %s97
    %p111 = scmp.eq.s32.totalorder %s16, 1
    %p112 = por %p110, %p111
    %p114 = scmp.ne.s32.totalorder %s97, %s113
    %p115 = scmp.eq.s32.totalorder %s16, 0
    %p116 = por %p114, %p115
    %p117 = scmp.le.s32.totalorder 1, %s10
    %p118 = scmp.lt.s32.totalorder %s10, 3
    %p119 = pnand %p117, %p118
    %p120 = pneg %p119
    // Predicated region
    $region9: #{forward.19} parent=5 // pred_check
      _
    $region10: #{forward.19} parent=5 // pred_check_branch
      %122 = sbr.rel (%p119) target = $region12
    $region11: #{forward.19} parent=5 // pred_region
      %s123 = ssub.s32 %s10, 1
      // Predicated region
      $region13: #{forward.19} parent=11 // pred_check
        %p124 = pneg %p57
      $region14: #{forward.19} parent=11 // pred_check_branch
        %126 = sbr.rel (%p124) target = $region16
      $region15: #{forward.19} parent=11 // pred_region
        _
      $region16: #{forward.19} parent=11 // pred_fallthru
        _
    $region12: #{forward.19} parent=5 // pred_fallthru
      _
    %p127 = scmp.lt.s32.totalorder %s10, 2
    // Predicated region
    $region17: #{forward.19} parent=5 // pred_check
      %p128 = pneg %p127
    $region18: #{forward.19} parent=5 // pred_check_branch
      %130 = sbr.rel (%p128) target = $region20
    $region19: #{forward.19} parent=5 // pred_region
      // Predicated region
      $region21: #{forward.19} parent=19 // pred_check
        %p131 = pneg %p30
      $region22: #{forward.19} parent=19 // pred_check_branch
        %133 = sbr.rel (%p131) target = $region24
      $region23: #{forward.19} parent=19 // pred_region
        %s134 = smul.u32 32, %s10
        %p135 = scmp.lt.s32.totalorder %s134, 63
        %s136 = scalar_select %p135, %s134, 63
        %s137 = smul.addr %s136, 4
        %s138 = scalar_lea.vmem %s0, %s137
        %s139 = smul.u32 32, %s10
      $region24: #{forward.19} parent=19 // pred_fallthru
        _
    $region20: #{forward.19} parent=5 // pred_fallthru
      _
    %p140 = scmp.le.s32.totalorder 1, %s10
    %p141 = scmp.lt.s32.totalorder %s10, 3
    %p142 = pnand %p140, %p141
    %p143 = pneg %p142
    // Predicated region
    $region25: #{forward.19} parent=5 // pred_check
      _
    $region26: #{forward.19} parent=5 // pred_check_branch
      %145 = sbr.rel (%p142) target = $region28
    $region27: #{forward.19} parent=5 // pred_region
      %s146 = ssub.s32 %s10, 1
      %s147 = smul.u32 32, %s15
      %p148 = scmp.lt.s32.totalorder %s147, 63
      %s149 = scalar_select %p148, %s147, 63
      %s150 = smul.addr %s149, 4
      %s151 = scalar_lea.vmem %s0, %s150
      %p152 = pneg %p36
      %p153 = pneg %p33
      %p154 = pneg %p57
      %p155 = pneg %p54
      %p156 = pneg %p83
      %p157 = pneg %p80
      %s158 = smul.u32 32, %s15
      %p159 = scmp.lt.s32.totalorder %s158, 63
      %s160 = scalar_select %p159, %s158, 63
      %s161 = smul.addr %s160, 4
      %s162 = scalar_lea.vmem %s2, %s161
      %p163 = pneg %p109
      %p164 = pneg %p106
      %p165 = scmp.lt.s32.totalorder %s15, 1
      %s166 = scalar_select %p165, %s15, 1
      %s167 = smul.addr %s166, 2
      %s168 = scalar_lea.vmem %s3, %s167
      %s169 = smul.u32 32, %s15
      %p170 = scmp.lt.s32.totalorder %s169, 63
      %s171 = scalar_select %p170, %s169, 63
      %s172 = smul.addr %s171, 4
      %s173 = scalar_lea.vmem %s0, %s172
      %s174 = smul.u32 32, %s15
      %s175 = smul.u32 32, %s15
      %p176 = scmp.lt.s32.totalorder %s175, 63
      %s177 = scalar_select %p176, %s175, 63
      %s178 = smul.addr %s177, 4
      %s179 = scalar_lea.vmem %s2, %s178
      %s180 = smul.u32 32, %s15
      %p181 = scmp.lt.s32.totalorder %s15, 1
      %s182 = scalar_select %p181, %s15, 1
      %s183 = smul.addr %s182, 2
      %s184 = scalar_lea.vmem %s3, %s183
      %v186 = vld [vmem:[%s173] sm:$0xf]
      %v187 = vld [vmem:[%s173 + $0x4] sm:$0xf]
      %v188 = vld [vmem:[%s173 + $0x8] sm:$0xf]
      %v189 = vld [vmem:[%s173 + $0xc] sm:$0xf]
      %v190 = vld [vmem:[%s173 + $0x10] sm:$0xf]
      %v191 = vld [vmem:[%s173 + $0x14] sm:$0xf]
      %v192 = vld [vmem:[%s173 + $0x18] sm:$0xf]
      %v193 = vld [vmem:[%s173 + $0x1c] sm:$0xf]
      %v194 = vld [vmem:[%s173 + $0x20] sm:$0xf]
      %v195 = vld [vmem:[%s173 + $0x24] sm:$0xf]
      %v196 = vld [vmem:[%s173 + $0x28] sm:$0xf]
      %v197 = vld [vmem:[%s173 + $0x2c] sm:$0xf]
      %v198 = vld [vmem:[%s173 + $0x30] sm:$0xf]
      %v199 = vld [vmem:[%s173 + $0x34] sm:$0xf]
      %v200 = vld [vmem:[%s173 + $0x38] sm:$0xf]
      %v201 = vld [vmem:[%s173 + $0x3c] sm:$0xf]
      %v202 = vld [vmem:[%s173 + $0x40] sm:$0xf]
      %v203 = vld [vmem:[%s173 + $0x44] sm:$0xf]
      %v204 = vld [vmem:[%s173 + $0x48] sm:$0xf]
      %v205 = vld [vmem:[%s173 + $0x4c] sm:$0xf]
      %v206 = vld [vmem:[%s173 + $0x50] sm:$0xf]
      %v207 = vld [vmem:[%s173 + $0x54] sm:$0xf]
      %v208 = vld [vmem:[%s173 + $0x58] sm:$0xf]
      %v209 = vld [vmem:[%s173 + $0x5c] sm:$0xf]
      %v210 = vld [vmem:[%s173 + $0x60] sm:$0xf]
      %v211 = vld [vmem:[%s173 + $0x64] sm:$0xf]
      %v212 = vld [vmem:[%s173 + $0x68] sm:$0xf]
      %v213 = vld [vmem:[%s173 + $0x6c] sm:$0xf]
      %v214 = vld [vmem:[%s173 + $0x70] sm:$0xf]
      %v215 = vld [vmem:[%s173 + $0x74] sm:$0xf]
      %v216 = vld [vmem:[%s173 + $0x78] sm:$0xf]
      %v217 = vld [vmem:[%s173 + $0x7c] sm:$0xf]
      %v218 = vld [vmem:[%s1] sm:$0xf]
      %v219 = vld [vmem:[%s1 + $0x4] sm:$0xf]
      %v220 = vld [vmem:[%s1 + $0x8] sm:$0xf]
      %v221 = vld [vmem:[%s1 + $0xc] sm:$0xf]
      %v222 = vld [vmem:[%s1 + $0x10] sm:$0xf]
      %v223 = vld [vmem:[%s1 + $0x14] sm:$0xf]
      %v224 = vld [vmem:[%s1 + $0x18] sm:$0xf]
      %v225 = vld [vmem:[%s1 + $0x1c] sm:$0xf]
      %v226 = vld [vmem:[%s1 + $0x20] sm:$0xf]
      %v227 = vld [vmem:[%s1 + $0x24] sm:$0xf]
      %v228 = vld [vmem:[%s1 + $0x28] sm:$0xf]
      %v229 = vld [vmem:[%s1 + $0x2c] sm:$0xf]
      %v230 = vld [vmem:[%s1 + $0x30] sm:$0xf]
      %v231 = vld [vmem:[%s1 + $0x34] sm:$0xf]
      %v232 = vld [vmem:[%s1 + $0x38] sm:$0xf]
      %v233 = vld [vmem:[%s1 + $0x3c] sm:$0xf]
      %v266 = vunpack.c.l.b16 %v186
      %v267 = vunpack.c.l.b16 %v187
      %v268 = vunpack.c.l.b16 %v188
      %v269 = vunpack.c.l.b16 %v189
      %v270 = vunpack.c.l.b16 %v190
      %v271 = vunpack.c.l.b16 %v191
      %v272 = vunpack.c.l.b16 %v192
      %v273 = vunpack.c.l.b16 %v193
      %v274 = vunpack.c.l.b16 %v194
      %v275 = vunpack.c.l.b16 %v195
      %v276 = vunpack.c.l.b16 %v196
      %v277 = vunpack.c.l.b16 %v197
      %v278 = vunpack.c.l.b16 %v198
      %v279 = vunpack.c.l.b16 %v199
      %v280 = vunpack.c.l.b16 %v200
      %v281 = vunpack.c.l.b16 %v201
      %v282 = vunpack.c.l.b16 %v202
      %v283 = vunpack.c.l.b16 %v203
      %v284 = vunpack.c.l.b16 %v204
      %v285 = vunpack.c.l.b16 %v205
      %v286 = vunpack.c.l.b16 %v206
      %v287 = vunpack.c.l.b16 %v207
      %v288 = vunpack.c.l.b16 %v208
      %v289 = vunpack.c.l.b16 %v209
      %v290 = vunpack.c.l.b16 %v210
      %v291 = vunpack.c.l.b16 %v211
      %v292 = vunpack.c.l.b16 %v212
      %v293 = vunpack.c.l.b16 %v213
      %v294 = vunpack.c.l.b16 %v214
      %v295 = vunpack.c.l.b16 %v215
      %v296 = vunpack.c.l.b16 %v216
      %v297 = vunpack.c.l.b16 %v217
      %v298 = vpack.c.b16 %v267, %v266
      %v299 = vpack.c.b16 %v269, %v268
      %v300 = vpack.c.b16 %v271, %v270
      %v301 = vpack.c.b16 %v273, %v272
      %v302 = vpack.c.b16 %v275, %v274
      %v303 = vpack.c.b16 %v277, %v276
      %v304 = vpack.c.b16 %v279, %v278
      %v305 = vpack.c.b16 %v281, %v280
      %v306 = vpack.c.b16 %v283, %v282
      %v307 = vpack.c.b16 %v285, %v284
      %v308 = vpack.c.b16 %v287, %v286
      %v309 = vpack.c.b16 %v289, %v288
      %v310 = vpack.c.b16 %v291, %v290
      %v311 = vpack.c.b16 %v293, %v292
      %v312 = vpack.c.b16 %v295, %v294
      %v313 = vpack.c.b16 %v297, %v296
      %v346 = vunpack.c.l.b16 %v218
      %v347 = vunpack.c.l.b16 %v219
      %v348 = vunpack.c.l.b16 %v220
      %v349 = vunpack.c.l.b16 %v221
      %v350 = vunpack.c.l.b16 %v222
      %v351 = vunpack.c.l.b16 %v223
      %v352 = vunpack.c.l.b16 %v224
      %v353 = vunpack.c.l.b16 %v225
      %v354 = vunpack.c.l.b16 %v226
      %v355 = vunpack.c.l.b16 %v227
      %v356 = vunpack.c.l.b16 %v228
      %v357 = vunpack.c.l.b16 %v229
      %v358 = vunpack.c.l.b16 %v230
      %v359 = vunpack.c.l.b16 %v231
      %v360 = vunpack.c.l.b16 %v232
      %v361 = vunpack.c.l.b16 %v233
      %v362 = vpack.c.b16 %v347, %v346
      %v363 = vpack.c.b16 %v349, %v348
      %v364 = vpack.c.b16 %v351, %v350
      %v365 = vpack.c.b16 %v353, %v352
      %v366 = vpack.c.b16 %v355, %v354
      %v367 = vpack.c.b16 %v357, %v356
      %v368 = vpack.c.b16 %v359, %v358
      %v369 = vpack.c.b16 %v361, %v360
      %378 = vmatprep.subr.bf16.mxu0 0
      %379 = vmatpush1.bf16.msra.mxu0 %v362
      %380 = vmatprep.subr.bf16.mxu0 0
      %381 = vmatpush1.bf16.msra.mxu0 %v363
      %382 = vmatprep.subr.bf16.mxu0 0
      %383 = vmatpush1.bf16.msra.mxu0 %v364
      %384 = vmatprep.subr.bf16.mxu0 0
      %385 = vmatpush1.bf16.msra.mxu0 %v365
      %386 = vmatprep.subr.bf16.mxu0 0
      %387 = vmatpush1.bf16.msra.mxu0 %v366
      %388 = vmatprep.subr.bf16.mxu0 0
      %389 = vmatpush1.bf16.msra.mxu0 %v367
      %390 = vmatprep.subr.bf16.mxu0 0
      %391 = vmatpush1.bf16.msra.mxu0 %v368
      %392 = vmatprep.subr.bf16.mxu0 0
      %393 = vmatpush1.bf16.msra.mxu0 %v369
      %394 = vmatprep.subr.bf16.mxu0 0
      %395 = vmatpush1.bf16.msra.mxu0 0
      %396 = vmatprep.subr.bf16.mxu0 0
      %397 = vmatpush1.bf16.msra.mxu0 0
      %398 = vmatprep.subr.bf16.mxu0 0
      %399 = vmatpush1.bf16.msra.mxu0 0
      %400 = vmatprep.subr.bf16.mxu0 0
      %401 = vmatpush1.bf16.msra.mxu0 0
      %402 = vmatprep.subr.bf16.mxu0 0
      %403 = vmatpush1.bf16.msra.mxu0 0
      %404 = vmatprep.subr.bf16.mxu0 0
      %405 = vmatpush1.bf16.msra.mxu0 0
      %406 = vmatprep.subr.bf16.mxu0 0
      %407 = vmatpush1.bf16.msra.mxu0 0
      %408 = vmatprep.subr.bf16.mxu0 0
      %409 = vmatpush1.bf16.msra.mxu0 0
      %410 = vmatprep.mubr.bf16.mxu0 0
      %411 = vmatmul.mubr.bf16.gmra.mrb[0].mxu0 %v298
      %v412 = vpop.f32.mrb[0].mxu0
      %v413 = vadd.f32 0.0, %v412
      %v414 = vpop.f32.mrb[0].mxu0
      %v415 = vpop.f32.mrb[0].mxu0
      %v416 = vadd.f32 0.0, %v415
      %v417 = vpop.f32.mrb[0].mxu0
      %418 = vmatprep.mubr.bf16.mxu0 0
      %419 = vmatmul.mubr.bf16.gmra.mrb[0].mxu0 %v299
      %v420 = vpop.f32.mrb[0].mxu0
      %v421 = vadd.f32 0.0, %v420
      %v422 = vpop.f32.mrb[0].mxu0
      %v423 = vpop.f32.mrb[0].mxu0
      %v424 = vadd.f32 0.0, %v423
      %v425 = vpop.f32.mrb[0].mxu0
      %426 = vmatprep.mubr.bf16.mxu0 0
      %427 = vmatmul.mubr.bf16.gmra.mrb[0].mxu0 %v300
      %v428 = vpop.f32.mrb[0].mxu0
      %v429 = vadd.f32 0.0, %v428
      %v430 = vpop.f32.mrb[0].mxu0
      %v431 = vpop.f32.mrb[0].mxu0
      %v432 = vadd.f32 0.0, %v431
      %v433 = vpop.f32.mrb[0].mxu0
      %434 = vmatprep.mubr.bf16.mxu0 0
      %435 = vmatmul.mubr.bf16.gmra.mrb[0].mxu0 %v301
      %v436 = vpop.f32.mrb[0].mxu0
      %v437 = vadd.f32 0.0, %v436
      %v438 = vpop.f32.mrb[0].mxu0
      %v439 = vpop.f32.mrb[0].mxu0
      %v440 = vadd.f32 0.0, %v439
      %v441 = vpop.f32.mrb[0].mxu0
      %442 = vmatprep.mubr.bf16.mxu0 0
      %443 = vmatmul.mubr.bf16.gmra.mrb[0].mxu0 %v302
      %v444 = vpop.f32.mrb[0].mxu0
      %v445 = vadd.f32 0.0, %v444
      %v446 = vpop.f32.mrb[0].mxu0
      %v447 = vpop.f32.mrb[0].mxu0
      %v448 = vadd.f32 0.0, %v447
      %v449 = vpop.f32.mrb[0].mxu0
      %450 = vmatprep.mubr.bf16.mxu0 0
      %451 = vmatmul.mubr.bf16.gmra.mrb[0].mxu0 %v303
      %v452 = vpop.f32.mrb[0].mxu0
      %v453 = vadd.f32 0.0, %v452
      %v454 = vpop.f32.mrb[0].mxu0
      %v455 = vpop.f32.mrb[0].mxu0
      %v456 = vadd.f32 0.0, %v455
      %v457 = vpop.f32.mrb[0].mxu0
      %458 = vmatprep.mubr.bf16.mxu0 0
      %459 = vmatmul.mubr.bf16.gmra.mrb[0].mxu0 %v304
      %v460 = vpop.f32.mrb[0].mxu0
      %v461 = vadd.f32 0.0, %v460
      %v462 = vpop.f32.mrb[0].mxu0
      %v463 = vpop.f32.mrb[0].mxu0
      %v464 = vadd.f32 0.0, %v463
      %v465 = vpop.f32.mrb[0].mxu0
      %466 = vmatprep.mubr.bf16.mxu0 0
      %467 = vmatmul.mubr.bf16.gmra.mrb[0].mxu0 %v305
      %v468 = vpop.f32.mrb[0].mxu0
      %v469 = vadd.f32 0.0, %v468
      %v470 = vpop.f32.mrb[0].mxu0
      %v471 = vpop.f32.mrb[0].mxu0
      %v472 = vadd.f32 0.0, %v471
      %v473 = vpop.f32.mrb[0].mxu0
      %474 = vmatprep.mubr.bf16.mxu0 0
      %475 = vmatmul.mubr.bf16.gmra.mrb[0].mxu0 %v306
      %v476 = vpop.f32.mrb[0].mxu0
      %v477 = vadd.f32 0.0, %v476
      %v478 = vpop.f32.mrb[0].mxu0
      %v479 = vpop.f32.mrb[0].mxu0
      %v480 = vadd.f32 0.0, %v479
      %v481 = vpop.f32.mrb[0].mxu0
      %482 = vmatprep.mubr.bf16.mxu0 0
      %483 = vmatmul.mubr.bf16.gmra.mrb[0].mxu0 %v307
      %v484 = vpop.f32.mrb[0].mxu0
      %v485 = vadd.f32 0.0, %v484
      %v486 = vpop.f32.mrb[0].mxu0
      %v487 = vpop.f32.mrb[0].mxu0
      %v488 = vadd.f32 0.0, %v487
      %v489 = vpop.f32.mrb[0].mxu0
      %490 = vmatprep.mubr.bf16.mxu0 0
      %491 = vmatmul.mubr.bf16.gmra.mrb[0].mxu0 %v308
      %v492 = vpop.f32.mrb[0].mxu0
      %v493 = vadd.f32 0.0, %v492
      %v494 = vpop.f32.mrb[0].mxu0
      %v495 = vpop.f32.mrb[0].mxu0
      %v496 = vadd.f32 0.0, %v495
      %v497 = vpop.f32.mrb[0].mxu0
      %498 = vmatprep.mubr.bf16.mxu0 0
      %499 = vmatmul.mubr.bf16.gmra.mrb[0].mxu0 %v309
      %v500 = vpop.f32.mrb[0].mxu0
      %v501 = vadd.f32 0.0, %v500
      %v502 = vpop.f32.mrb[0].mxu0
      %v503 = vpop.f32.mrb[0].mxu0
      %v504 = vadd.f32 0.0, %v503
      %v505 = vpop.f32.mrb[0].mxu0
      %506 = vmatprep.mubr.bf16.mxu0 0
      %507 = vmatmul.mubr.bf16.gmra.mrb[0].mxu0 %v310
      %v508 = vpop.f32.mrb[0].mxu0
      %v509 = vadd.f32 0.0, %v508
      %v510 = vpop.f32.mrb[0].mxu0
      %v511 = vpop.f32.mrb[0].mxu0
      %v512 = vadd.f32 0.0, %v511
      %v513 = vpop.f32.mrb[0].mxu0
      %514 = vmatprep.mubr.bf16.mxu0 0
      %515 = vmatmul.mubr.bf16.gmra.mrb[0].mxu0 %v311
      %v516 = vpop.f32.mrb[0].mxu0
      %v517 = vadd.f32 0.0, %v516
      %v518 = vpop.f32.mrb[0].mxu0
      %v519 = vpop.f32.mrb[0].mxu0
      %v520 = vadd.f32 0.0, %v519
      %v521 = vpop.f32.mrb[0].mxu0
      %522 = vmatprep.mubr.bf16.mxu0 0
      %523 = vmatmul.mubr.bf16.gmra.mrb[0].mxu0 %v312
      %v524 = vpop.f32.mrb[0].mxu0
      %v525 = vadd.f32 0.0, %v524
      %v526 = vpop.f32.mrb[0].mxu0
      %v527 = vpop.f32.mrb[0].mxu0
      %v528 = vadd.f32 0.0, %v527
      %v529 = vpop.f32.mrb[0].mxu0
      %530 = vmatprep.mubr.bf16.mxu0 0
      %531 = vmatmul.mubr.bf16.gmra.mrb[0].mxu0 %v313
      %v532 = vpop.f32.mrb[0].mxu0
      %v533 = vadd.f32 0.0, %v532
      %v534 = vpop.f32.mrb[0].mxu0
      %v535 = vpop.f32.mrb[0].mxu0
      %v536 = vadd.f32 0.0, %v535
      %v537 = vpop.f32.mrb[0].mxu0
      %538 = vdwg.mxu0
      %v539 = vpack.c.bf16 %v416, %v413
      %v540 = vpack.c.bf16 %v424, %v421
      %v541 = vpack.c.bf16 %v432, %v429
      %v542 = vpack.c.bf16 %v440, %v437
      %v543 = vpack.c.bf16 %v448, %v445
      %v544 = vpack.c.bf16 %v456, %v453
      %v545 = vpack.c.bf16 %v464, %v461
      %v546 = vpack.c.bf16 %v472, %v469
      %v547 = vpack.c.bf16 %v480, %v477
      %v548 = vpack.c.bf16 %v488, %v485
      %v549 = vpack.c.bf16 %v496, %v493
      %v550 = vpack.c.bf16 %v504, %v501
      %v551 = vpack.c.bf16 %v512, %v509
      %v552 = vpack.c.bf16 %v520, %v517
      %v553 = vpack.c.bf16 %v528, %v525
      %v554 = vpack.c.bf16 %v536, %v533
      %v571 = vunpack.c.l.b16 %v539
      %v572 = vunpack.c.h.b16 %v539
      %v573 = vunpack.c.l.b16 %v540
      %v574 = vunpack.c.h.b16 %v540
      %v575 = vunpack.c.l.b16 %v541
      %v576 = vunpack.c.h.b16 %v541
      %v577 = vunpack.c.l.b16 %v542
      %v578 = vunpack.c.h.b16 %v542
      %v579 = vunpack.c.l.b16 %v543
      %v580 = vunpack.c.h.b16 %v543
      %v581 = vunpack.c.l.b16 %v544
      %v582 = vunpack.c.h.b16 %v544
      %v583 = vunpack.c.l.b16 %v545
      %v584 = vunpack.c.h.b16 %v545
      %v585 = vunpack.c.l.b16 %v546
      %v586 = vunpack.c.h.b16 %v546
      %v587 = vunpack.c.l.b16 %v547
      %v588 = vunpack.c.h.b16 %v547
      %v589 = vunpack.c.l.b16 %v548
      %v590 = vunpack.c.h.b16 %v548
      %v591 = vunpack.c.l.b16 %v549
      %v592 = vunpack.c.h.b16 %v549
      %v593 = vunpack.c.l.b16 %v550
      %v594 = vunpack.c.h.b16 %v550
      %v595 = vunpack.c.l.b16 %v551
      %v596 = vunpack.c.h.b16 %v551
      %v597 = vunpack.c.l.b16 %v552
      %v598 = vunpack.c.h.b16 %v552
      %v599 = vunpack.c.l.b16 %v553
      %v600 = vunpack.c.h.b16 %v553
      %v601 = vunpack.c.l.b16 %v554
      %v602 = vunpack.c.h.b16 %v554
      %v603 = vpack.c.b16 %v571, %v571
      %v604 = vpack.c.b16 %v572, %v572
      %v605 = vpack.c.b16 %v573, %v573
      %v606 = vpack.c.b16 %v574, %v574
      %v607 = vpack.c.b16 %v575, %v575
      %v608 = vpack.c.b16 %v576, %v576
      %v609 = vpack.c.b16 %v577, %v577
      %v610 = vpack.c.b16 %v578, %v578
      %v611 = vpack.c.b16 %v579, %v579
      %v612 = vpack.c.b16 %v580, %v580
      %v613 = vpack.c.b16 %v581, %v581
      %v614 = vpack.c.b16 %v582, %v582
      %v615 = vpack.c.b16 %v583, %v583
      %v616 = vpack.c.b16 %v584, %v584
      %v617 = vpack.c.b16 %v585, %v585
      %v618 = vpack.c.b16 %v586, %v586
      %v619 = vpack.c.b16 %v587, %v587
      %v620 = vpack.c.b16 %v588, %v588
      %v621 = vpack.c.b16 %v589, %v589
      %v622 = vpack.c.b16 %v590, %v590
      %v623 = vpack.c.b16 %v591, %v591
      %v624 = vpack.c.b16 %v592, %v592
      %v625 = vpack.c.b16 %v593, %v593
      %v626 = vpack.c.b16 %v594, %v594
      %v627 = vpack.c.b16 %v595, %v595
      %v628 = vpack.c.b16 %v596, %v596
      %v629 = vpack.c.b16 %v597, %v597
      %v630 = vpack.c.b16 %v598, %v598
      %v631 = vpack.c.b16 %v599, %v599
      %v632 = vpack.c.b16 %v600, %v600
      %v633 = vpack.c.b16 %v601, %v601
      %v634 = vpack.c.b16 %v602, %v602
      %667 = vst [vmem:[%s179] sm:$0xf] %v603
      %668 = vst [vmem:[%s179 + $0x4] sm:$0xf] %v604
      %669 = vst [vmem:[%s179 + $0x8] sm:$0xf] %v605
      %670 = vst [vmem:[%s179 + $0xc] sm:$0xf] %v606
      %671 = vst [vmem:[%s179 + $0x10] sm:$0xf] %v607
      %672 = vst [vmem:[%s179 + $0x14] sm:$0xf] %v608
      %673 = vst [vmem:[%s179 + $0x18] sm:$0xf] %v609
      %674 = vst [vmem:[%s179 + $0x1c] sm:$0xf] %v610
      %675 = vst [vmem:[%s179 + $0x20] sm:$0xf] %v611
      %676 = vst [vmem:[%s179 + $0x24] sm:$0xf] %v612
      %677 = vst [vmem:[%s179 + $0x28] sm:$0xf] %v613
      %678 = vst [vmem:[%s179 + $0x2c] sm:$0xf] %v614
      %679 = vst [vmem:[%s179 + $0x30] sm:$0xf] %v615
      %680 = vst [vmem:[%s179 + $0x34] sm:$0xf] %v616
      %681 = vst [vmem:[%s179 + $0x38] sm:$0xf] %v617
      %682 = vst [vmem:[%s179 + $0x3c] sm:$0xf] %v618
      %683 = vst [vmem:[%s179 + $0x40] sm:$0xf] %v619
      %684 = vst [vmem:[%s179 + $0x44] sm:$0xf] %v620
      %685 = vst [vmem:[%s179 + $0x48] sm:$0xf] %v621
      %686 = vst [vmem:[%s179 + $0x4c] sm:$0xf] %v622
      %687 = vst [vmem:[%s179 + $0x50] sm:$0xf] %v623
      %688 = vst [vmem:[%s179 + $0x54] sm:$0xf] %v624
      %689 = vst [vmem:[%s179 + $0x58] sm:$0xf] %v625
      %690 = vst [vmem:[%s179 + $0x5c] sm:$0xf] %v626
      %691 = vst [vmem:[%s179 + $0x60] sm:$0xf] %v627
      %692 = vst [vmem:[%s179 + $0x64] sm:$0xf] %v628
      %693 = vst [vmem:[%s179 + $0x68] sm:$0xf] %v629
      %694 = vst [vmem:[%s179 + $0x6c] sm:$0xf] %v630
      %695 = vst [vmem:[%s179 + $0x70] sm:$0xf] %v631
      %696 = vst [vmem:[%s179 + $0x74] sm:$0xf] %v632
      %697 = vst [vmem:[%s179 + $0x78] sm:$0xf] %v633
      %698 = vst [vmem:[%s179 + $0x7c] sm:$0xf] %v634
      %v699 = vadd.f32 %v413, %v416
      %v700 = vadd.f32 %v699, %v421
      %v701 = vadd.f32 %v700, %v424
      %v702 = vadd.f32 %v701, %v429
      %v703 = vadd.f32 %v702, %v432
      %v704 = vadd.f32 %v703, %v437
      %v705 = vadd.f32 %v704, %v440
      %v706 = vadd.f32 %v705, %v445
      %v707 = vadd.f32 %v706, %v448
      %v708 = vadd.f32 %v707, %v453
      %v709 = vadd.f32 %v708, %v456
      %v710 = vadd.f32 %v709, %v461
      %v711 = vadd.f32 %v710, %v464
      %v712 = vadd.f32 %v711, %v469
      %v713 = vadd.f32 %v712, %v472
      %v714 = vadd.f32 %v713, %v477
      %v715 = vadd.f32 %v714, %v480
      %v716 = vadd.f32 %v715, %v485
      %v717 = vadd.f32 %v716, %v488
      %v718 = vadd.f32 %v717, %v493
      %v719 = vadd.f32 %v718, %v496
      %v720 = vadd.f32 %v719, %v501
      %v721 = vadd.f32 %v720, %v504
      %v722 = vadd.f32 %v721, %v509
      %v723 = vadd.f32 %v722, %v512
      %v724 = vadd.f32 %v723, %v517
      %v725 = vadd.f32 %v724, %v520
      %v726 = vadd.f32 %v725, %v525
      %v727 = vadd.f32 %v726, %v528
      %v728 = vadd.f32 %v727, %v533
      %v729 = vadd.f32 %v728, %v536
      %v730 = vrot.slane %v729, 4
      %v731 = vadd.f32 %v729, %v730
      %v732 = vrot.slane %v731, 2
      %v733 = vadd.f32 %v731, %v732
      %v734 = vrot.slane %v733, 1
      %v735 = vadd.f32 %v733, %v734
      %v736 = vmul.f32 %v413, %v413
      %v737 = vmul.f32 %v416, %v416
      %v738 = vmul.f32 %v421, %v421
      %v739 = vmul.f32 %v424, %v424
      %v740 = vmul.f32 %v429, %v429
      %v741 = vmul.f32 %v432, %v432
      %v742 = vmul.f32 %v437, %v437
      %v743 = vmul.f32 %v440, %v440
      %v744 = vmul.f32 %v445, %v445
      %v745 = vmul.f32 %v448, %v448
      %v746 = vmul.f32 %v453, %v453
      %v747 = vmul.f32 %v456, %v456
      %v748 = vmul.f32 %v461, %v461
      %v749 = vmul.f32 %v464, %v464
      %v750 = vmul.f32 %v469, %v469
      %v751 = vmul.f32 %v472, %v472
      %v752 = vmul.f32 %v477, %v477
      %v753 = vmul.f32 %v480, %v480
      %v754 = vmul.f32 %v485, %v485
      %v755 = vmul.f32 %v488, %v488
      %v756 = vmul.f32 %v493, %v493
      %v757 = vmul.f32 %v496, %v496
      %v758 = vmul.f32 %v501, %v501
      %v759 = vmul.f32 %v504, %v504
      %v760 = vmul.f32 %v509, %v509
      %v761 = vmul.f32 %v512, %v512
      %v762 = vmul.f32 %v517, %v517
      %v763 = vmul.f32 %v520, %v520
      %v764 = vmul.f32 %v525, %v525
      %v765 = vmul.f32 %v528, %v528
      %v766 = vmul.f32 %v533, %v533
      %v767 = vmul.f32 %v536, %v536
      %v768 = vadd.f32 %v736, %v737
      %v769 = vadd.f32 %v768, %v738
      %v770 = vadd.f32 %v769, %v739
      %v771 = vadd.f32 %v770, %v740
      %v772 = vadd.f32 %v771, %v741
      %v773 = vadd.f32 %v772, %v742
      %v774 = vadd.f32 %v773, %v743
      %v775 = vadd.f32 %v774, %v744
      %v776 = vadd.f32 %v775, %v745
      %v777 = vadd.f32 %v776, %v746
      %v778 = vadd.f32 %v777, %v747
      %v779 = vadd.f32 %v778, %v748
      %v780 = vadd.f32 %v779, %v749
      %v781 = vadd.f32 %v780, %v750
      %v782 = vadd.f32 %v781, %v751
      %v783 = vadd.f32 %v782, %v752
      %v784 = vadd.f32 %v783, %v753
      %v785 = vadd.f32 %v784, %v754
      %v786 = vadd.f32 %v785, %v755
      %v787 = vadd.f32 %v786, %v756
      %v788 = vadd.f32 %v787, %v757
      %v789 = vadd.f32 %v788, %v758
      %v790 = vadd.f32 %v789, %v759
      %v791 = vadd.f32 %v790, %v760
      %v792 = vadd.f32 %v791, %v761
      %v793 = vadd.f32 %v792, %v762
      %v794 = vadd.f32 %v793, %v763
      %v795 = vadd.f32 %v794, %v764
      %v796 = vadd.f32 %v795, %v765
      %v797 = vadd.f32 %v796, %v766
      %v798 = vadd.f32 %v797, %v767
      %v799 = vrot.slane %v798, 4
      %v800 = vadd.f32 %v798, %v799
      %v801 = vrot.slane %v800, 2
      %v802 = vadd.f32 %v800, %v801
      %v803 = vrot.slane %v802, 1
      %v804 = vadd.f32 %v802, %v803
      %vm805 = vcmask 1040384
      %v806 = vsel %vm805, %v735, %v804
      %807 = vst [vmem:[%s184] sm:$0x3] %v806
      %s808 = smul.u32 32, %s15
      %p809 = scmp.lt.s32.totalorder %s808, 63
      %s810 = scalar_select %p809, %s808, 63
      %s811 = smul.addr %s810, 4
      %s812 = scalar_lea.vmem %s2, %s811
      %p813 = scmp.lt.s32.totalorder %s15, 1
      %s814 = scalar_select %p813, %s15, 1
      %s815 = smul.addr %s814, 2
      %s816 = scalar_lea.vmem %s3, %s815
      // Predicated region
      $region29: #{forward.19} parent=27 // pred_check
        %p817 = pneg %p80
      $region30: #{forward.19} parent=27 // pred_check_branch
        %819 = sbr.rel (%p817) target = $region32
      $region31: #{forward.19} parent=27 // pred_region
        %s820 = smul.u32 32, %s15
      $region32: #{forward.19} parent=27 // pred_fallthru
        _
      // Predicated region
      $region33: #{forward.19} parent=27 // pred_check
        %p821 = pneg %p106
      $region34: #{forward.19} parent=27 // pred_check_branch
        %823 = sbr.rel (%p821) target = $region36
      $region35: #{forward.19} parent=27 // pred_region
        _
      $region36: #{forward.19} parent=27 // pred_fallthru
        _
    $region28: #{forward.19} parent=5 // pred_fallthru
      _
    %p824 = scmp.le.s32.totalorder 2, %s10
    // Predicated region
    $region37: #{forward.19} parent=5 // pred_check
      %p825 = pneg %p824
    $region38: #{forward.19} parent=5 // pred_check_branch
      %827 = sbr.rel (%p825) target = $region40
    $region39: #{forward.19} parent=5 // pred_region
      %s828 = ssub.s32 %s10, 2
      // Predicated region
      $region41: #{forward.19} parent=39 // pred_check
        %p829 = pneg %p86
      $region42: #{forward.19} parent=39 // pred_check_branch
        %831 = sbr.rel (%p829) target = $region44
      $region43: #{forward.19} parent=39 // pred_region
        %s832 = smul.u32 32, %s16
        %p833 = scmp.lt.s32.totalorder %s832, 63
        %s834 = scalar_select %p833, %s832, 63
        %s835 = smul.addr %s834, 4
        %s836 = scalar_lea.vmem %s2, %s835
      $region44: #{forward.19} parent=39 // pred_fallthru
        _
      // Predicated region
      $region45: #{forward.19} parent=39 // pred_check
        %p837 = pneg %p112
      $region46: #{forward.19} parent=39 // pred_check_branch
        %839 = sbr.rel (%p837) target = $region48
      $region47: #{forward.19} parent=39 // pred_region
        %p840 = scmp.lt.s32.totalorder %s16, 1
        %s841 = scalar_select %p840, %s16, 1
        %s842 = smul.addr %s841, 2
        %s843 = scalar_lea.vmem %s3, %s842
      $region48: #{forward.19} parent=39 // pred_fallthru
        _
    $region40: #{forward.19} parent=5 // pred_fallthru
      _
  $region6: #{forward.19} parent=0 // loop_footer
    %s14 = sadd.s32 1, %s10
  $region7: #{forward.19} parent=0 // loop_footer_branch
    %9 = sbr.rel target = $region3
  $region8: #{forward.19} parent=0 // loop_exit
    _

// kernel: forward.21
$region0: #{forward.21}
  #allocation0 [shape = 'u32[]', space=smem, size = 0x4, offset = 0x4, fixed_abs, tag = 'smem constant byte address 0x4 - core index']
  #allocation1 [shape = 'u32[144,128]{1,0:T(1,128)}', space=vmem, size = 0x12000, scoped, tag = 'internal scratch']
  %s0 = inlined_call_operand.vmem [shape: bf16[512,256], index: 0, kind: input, shape index: {}]
  %s1 = inlined_call_operand.vmem [shape: bf16[256,128], index: 1, kind: input, shape index: {}]
  %s2 = inlined_call_operand.vmem [shape: bf16[512,128], index: 2, kind: output, shape index: {0}]
  %s3 = inlined_call_operand.vmem [shape: f32[2,2,128], index: 3, kind: output, shape index: {1}]
  %4 = xla_tuple %s2, %s3
  %s5 = sld [smem:[#allocation0]]
  $region49: #{forward.21} parent=0
    _
  %s7 = ssub.s32 1, %s5
  %s8 = scalar_select 0, %s7, %s5
  loop: start=0, step=1, limit=4
  $region2: #{forward.21} parent=0 // loop_pre_header
    _
  $region3: #{forward.21} parent=0 // loop_header
    %s10 = sphi 0, %s14
    %p11 = scmp.ge.s32.totalorder %s10, 4
    %s20 = sphi 0, %s22
    %s23 = sphi 0, %s20
    %s24 = sphi 0, %s23
    %s40 = sphi 0, %s24
    %s44 = sphi 0, %s44
    %s46 = sphi 0, %s44
    %s47 = sphi 0, %s46
    %s61 = sphi 0, %s47
    %s67 = sphi 0, %s69
    %s70 = sphi 0, %s67
    %s71 = sphi 0, %s70
    %s87 = sphi 0, %s71
    %s93 = sphi 0, %s95
    %s96 = sphi 0, %s93
    %s97 = sphi 0, %s96
    %s113 = sphi 0, %s97
  $region4: #{forward.21} parent=0 // loop_header_branch
    %13 = sbr.rel (%p11) target = $region8
  $region5: #{forward.21} parent=0 // loop_body
    %s15 = ssub.s32 %s10, 1
    %s16 = ssub.s32 %s10, 2
    %s17 = sadd.s32 %s10, 1
    %s18 = ssub.s32 %s10, %s17
    %p19 = scmp.eq.s32.totalorder %s18, 0
    %s21 = sadd.s32 %s20, 1
    %s22 = scalar_select %p19, %s20, %s21
    %p25 = pneg %p19
    %p26 = scmp.eq.s32.totalorder %s10, 1
    %p27 = por %p25, %p26
    %p28 = scmp.ne.s32.totalorder %s20, %s23
    %p29 = scmp.eq.s32.totalorder %s10, 0
    %p30 = por %p28, %p29
    %p31 = scmp.ne.s32.totalorder %s20, %s23
    %p32 = scmp.eq.s32.totalorder %s15, 1
    %p33 = por %p31, %p32
    %p34 = scmp.ne.s32.totalorder %s23, %s24
    %p35 = scmp.eq.s32.totalorder %s15, 0
    %p36 = por %p34, %p35
    %p37 = scmp.ne.s32.totalorder %s23, %s24
    %p38 = scmp.eq.s32.totalorder %s16, 1
    %p39 = por %p37, %p38
    %p41 = scmp.ne.s32.totalorder %s24, %s40
    %p42 = scmp.eq.s32.totalorder %s16, 0
    %p43 = por %p41, %p42
    %s45 = sadd.s32 %s44, 1
    %p48 = scmp.eq.s32.totalorder %s10, 1
    %p49 = scmp.ne.s32.totalorder %s44, %s46
    %p50 = scmp.eq.s32.totalorder %s10, 0
    %p51 = por %p49, %p50
    %p52 = scmp.ne.s32.totalorder %s44, %s46
    %p53 = scmp.eq.s32.totalorder %s15, 1
    %p54 = por %p52, %p53
    %p55 = scmp.ne.s32.totalorder %s46, %s47
    %p56 = scmp.eq.s32.totalorder %s15, 0
    %p57 = por %p55, %p56
    %p58 = scmp.ne.s32.totalorder %s46, %s47
    %p59 = scmp.eq.s32.totalorder %s16, 1
    %p60 = por %p58, %p59
    %p62 = scmp.ne.s32.totalorder %s47, %s61
    %p63 = scmp.eq.s32.totalorder %s16, 0
    %p64 = por %p62, %p63
    %s65 = ssub.s32 %s10, %s17
    %p66 = scmp.eq.s32.totalorder %s65, 0
    %s68 = sadd.s32 %s67, 1
    %s69 = scalar_select %p66, %s67, %s68
    %p72 = pneg %p66
    %p73 = scmp.eq.s32.totalorder %s10, 1
    %p74 = por %p72, %p73
    %p75 = scmp.ne.s32.totalorder %s67, %s70
    %p76 = scmp.eq.s32.totalorder %s10, 0
    %p77 = por %p75, %p76
    %p78 = scmp.ne.s32.totalorder %s67, %s70
    %p79 = scmp.eq.s32.totalorder %s15, 1
    %p80 = por %p78, %p79
    %p81 = scmp.ne.s32.totalorder %s70, %s71
    %p82 = scmp.eq.s32.totalorder %s15, 0
    %p83 = por %p81, %p82
    %p84 = scmp.ne.s32.totalorder %s70, %s71
    %p85 = scmp.eq.s32.totalorder %s16, 1
    %p86 = por %p84, %p85
    %p88 = scmp.ne.s32.totalorder %s71, %s87
    %p89 = scmp.eq.s32.totalorder %s16, 0
    %p90 = por %p88, %p89
    %s91 = ssub.s32 %s10, %s17
    %p92 = scmp.eq.s32.totalorder %s91, 0
    %s94 = sadd.s32 %s93, 1
    %s95 = scalar_select %p92, %s93, %s94
    %p98 = pneg %p92
    %p99 = scmp.eq.s32.totalorder %s10, 1
    %p100 = por %p98, %p99
    %p101 = scmp.ne.s32.totalorder %s93, %s96
    %p102 = scmp.eq.s32.totalorder %s10, 0
    %p103 = por %p101, %p102
    %p104 = scmp.ne.s32.totalorder %s93, %s96
    %p105 = scmp.eq.s32.totalorder %s15, 1
    %p106 = por %p104, %p105
    %p107 = scmp.ne.s32.totalorder %s96, %s97
    %p108 = scmp.eq.s32.totalorder %s15, 0
    %p109 = por %p107, %p108
    %p110 = scmp.ne.s32.totalorder %s96, %s97
    %p111 = scmp.eq.s32.totalorder %s16, 1
    %p112 = por %p110, %p111
    %p114 = scmp.ne.s32.totalorder %s97, %s113
    %p115 = scmp.eq.s32.totalorder %s16, 0
    %p116 = por %p114, %p115
    %p117 = scmp.le.s32.totalorder 1, %s10
    %p118 = scmp.lt.s32.totalorder %s10, 3
    %p119 = pnand %p117, %p118
    %p120 = pneg %p119
    // Predicated region
    $region9: #{forward.21} parent=5 // pred_check
      _
    $region10: #{forward.21} parent=5 // pred_check_branch
      %122 = sbr.rel (%p119) target = $region12
    $region11: #{forward.21} parent=5 // pred_region
      %s123 = ssub.s32 %s10, 1
      // Predicated region
      $region13: #{forward.21} parent=11 // pred_check
        %p124 = pneg %p57
      $region14: #{forward.21} parent=11 // pred_check_branch
        %126 = sbr.rel (%p124) target = $region16
      $region15: #{forward.21} parent=11 // pred_region
        _
      $region16: #{forward.21} parent=11 // pred_fallthru
        _
    $region12: #{forward.21} parent=5 // pred_fallthru
      _
    %p127 = scmp.lt.s32.totalorder %s10, 2
    // Predicated region
    $region17: #{forward.21} parent=5 // pred_check
      %p128 = pneg %p127
    $region18: #{forward.21} parent=5 // pred_check_branch
      %130 = sbr.rel (%p128) target = $region20
    $region19: #{forward.21} parent=5 // pred_region
      // Predicated region
      $region21: #{forward.21} parent=19 // pred_check
        %p131 = pneg %p30
      $region22: #{forward.21} parent=19 // pred_check_branch
        %133 = sbr.rel (%p131) target = $region24
      $region23: #{forward.21} parent=19 // pred_region
        %s134 = smul.u32 32, %s10
        %p135 = scmp.lt.s32.totalorder %s134, 63
        %s136 = scalar_select %p135, %s134, 63
        %s137 = smul.addr %s136, 2
        %s138 = smul.addr %s137, 4
        %s139 = scalar_lea.vmem %s0, %s138
        %s140 = smul.u32 32, %s10
      $region24: #{forward.21} parent=19 // pred_fallthru
        _
    $region20: #{forward.21} parent=5 // pred_fallthru
      _
    %p141 = scmp.le.s32.totalorder 1, %s10
    %p142 = scmp.lt.s32.totalorder %s10, 3
    %p143 = pnand %p141, %p142
    %p144 = pneg %p143
    // Predicated region
    $region25: #{forward.21} parent=5 // pred_check
      _
    $region26: #{forward.21} parent=5 // pred_check_branch
      %146 = sbr.rel (%p143) target = $region28
    $region27: #{forward.21} parent=5 // pred_region
      %s147 = ssub.s32 %s10, 1
      %s148 = smul.u32 32, %s15
      %p149 = scmp.lt.s32.totalorder %s148, 63
      %s150 = scalar_select %p149, %s148, 63
      %s151 = smul.addr %s150, 2
      %s152 = smul.addr %s151, 4
      %s153 = scalar_lea.vmem %s0, %s152
      %p154 = pneg %p36
      %p155 = pneg %p33
      %p156 = pneg %p57
      %p157 = pneg %p54
      %p158 = pneg %p83
      %p159 = pneg %p80
      %s160 = smul.u32 32, %s15
      %p161 = scmp.lt.s32.totalorder %s160, 63
      %s162 = scalar_select %p161, %s160, 63
      %s163 = smul.addr %s162, 4
      %s164 = scalar_lea.vmem %s2, %s163
      %p165 = pneg %p109
      %p166 = pneg %p106
      %p167 = scmp.lt.s32.totalorder %s15, 1
      %s168 = scalar_select %p167, %s15, 1
      %s169 = smul.addr %s168, 2
      %s170 = scalar_lea.vmem %s3, %s169
      %s171 = smul.u32 32, %s15
      %p172 = scmp.lt.s32.totalorder %s171, 63
      %s173 = scalar_select %p172, %s171, 63
      %s174 = smul.addr %s173, 2
      %s175 = smul.addr %s174, 4
      %s176 = scalar_lea.vmem %s0, %s175
      %s177 = smul.u32 32, %s15
      %s178 = smul.u32 32, %s15
      %p179 = scmp.lt.s32.totalorder %s178, 63
      %s180 = scalar_select %p179, %s178, 63
      %s181 = smul.addr %s180, 4
      %s182 = scalar_lea.vmem %s2, %s181
      %s183 = smul.u32 32, %s15
      %p184 = scmp.lt.s32.totalorder %s15, 1
      %s185 = scalar_select %p184, %s15, 1
      %s186 = smul.addr %s185, 2
      %s187 = scalar_lea.vmem %s3, %s186
      %v189 = vld [vmem:[%s176] sm:$0xff]
      %v190 = vld [vmem:[%s176 + $0x8] sm:$0xff]
      %v191 = vld [vmem:[%s176 + $0x10] sm:$0xff]
      %v192 = vld [vmem:[%s176 + $0x18] sm:$0xff]
      %v193 = vld [vmem:[%s176 + $0x20] sm:$0xff]
      %v194 = vld [vmem:[%s176 + $0x28] sm:$0xff]
      %v195 = vld [vmem:[%s176 + $0x30] sm:$0xff]
      %v196 = vld [vmem:[%s176 + $0x38] sm:$0xff]
      %v197 = vld [vmem:[%s176 + $0x40] sm:$0xff]
      %v198 = vld [vmem:[%s176 + $0x48] sm:$0xff]
      %v199 = vld [vmem:[%s176 + $0x50] sm:$0xff]
      %v200 = vld [vmem:[%s176 + $0x58] sm:$0xff]
      %v201 = vld [vmem:[%s176 + $0x60] sm:$0xff]
      %v202 = vld [vmem:[%s176 + $0x68] sm:$0xff]
      %v203 = vld [vmem:[%s176 + $0x70] sm:$0xff]
      %v204 = vld [vmem:[%s176 + $0x78] sm:$0xff]
      %v205 = vld [vmem:[%s176 + $0x80] sm:$0xff]
      %v206 = vld [vmem:[%s176 + $0x88] sm:$0xff]
      %v207 = vld [vmem:[%s176 + $0x90] sm:$0xff]
      %v208 = vld [vmem:[%s176 + $0x98] sm:$0xff]
      %v209 = vld [vmem:[%s176 + $0xa0] sm:$0xff]
      %v210 = vld [vmem:[%s176 + $0xa8] sm:$0xff]
      %v211 = vld [vmem:[%s176 + $0xb0] sm:$0xff]
      %v212 = vld [vmem:[%s176 + $0xb8] sm:$0xff]
      %v213 = vld [vmem:[%s176 + $0xc0] sm:$0xff]
      %v214 = vld [vmem:[%s176 + $0xc8] sm:$0xff]
      %v215 = vld [vmem:[%s176 + $0xd0] sm:$0xff]
      %v216 = vld [vmem:[%s176 + $0xd8] sm:$0xff]
      %v217 = vld [vmem:[%s176 + $0xe0] sm:$0xff]
      %v218 = vld [vmem:[%s176 + $0xe8] sm:$0xff]
      %v219 = vld [vmem:[%s176 + $0xf0] sm:$0xff]
      %v220 = vld [vmem:[%s176 + $0xf8] sm:$0xff]
      %v221 = vld [vmem:[%s1] sm:$0xf]
      %v222 = vld [vmem:[%s1 + $0x4] sm:$0xf]
      %v223 = vld [vmem:[%s1 + $0x8] sm:$0xf]
      %v224 = vld [vmem:[%s1 + $0xc] sm:$0xf]
      %v225 = vld [vmem:[%s1 + $0x10] sm:$0xf]
      %v226 = vld [vmem:[%s1 + $0x14] sm:$0xf]
      %v227 = vld [vmem:[%s1 + $0x18] sm:$0xf]
      %v228 = vld [vmem:[%s1 + $0x1c] sm:$0xf]
      %v229 = vld [vmem:[%s1 + $0x20] sm:$0xf]
      %v230 = vld [vmem:[%s1 + $0x24] sm:$0xf]
      %v231 = vld [vmem:[%s1 + $0x28] sm:$0xf]
      %v232 = vld [vmem:[%s1 + $0x2c] sm:$0xf]
      %v233 = vld [vmem:[%s1 + $0x30] sm:$0xf]
      %v234 = vld [vmem:[%s1 + $0x34] sm:$0xf]
      %v235 = vld [vmem:[%s1 + $0x38] sm:$0xf]
      %v236 = vld [vmem:[%s1 + $0x3c] sm:$0xf]
      %v237 = vld [vmem:[%s1 + $0x40] sm:$0xf]
      %v238 = vld [vmem:[%s1 + $0x44] sm:$0xf]
      %v239 = vld [vmem:[%s1 + $0x48] sm:$0xf]
      %v240 = vld [vmem:[%s1 + $0x4c] sm:$0xf]
      %v241 = vld [vmem:[%s1 + $0x50] sm:$0xf]
      %v242 = vld [vmem:[%s1 + $0x54] sm:$0xf]
      %v243 = vld [vmem:[%s1 + $0x58] sm:$0xf]
      %v244 = vld [vmem:[%s1 + $0x5c] sm:$0xf]
      %v245 = vld [vmem:[%s1 + $0x60] sm:$0xf]
      %v246 = vld [vmem:[%s1 + $0x64] sm:$0xf]
      %v247 = vld [vmem:[%s1 + $0x68] sm:$0xf]
      %v248 = vld [vmem:[%s1 + $0x6c] sm:$0xf]
      %v249 = vld [vmem:[%s1 + $0x70] sm:$0xf]
      %v250 = vld [vmem:[%s1 + $0x74] sm:$0xf]
      %v251 = vld [vmem:[%s1 + $0x78] sm:$0xf]
      %v252 = vld [vmem:[%s1 + $0x7c] sm:$0xf]
      %v285 = vunpack.c.l.b16 %v189
      %v286 = vunpack.c.h.b16 %v189
      %v287 = vunpack.c.l.b16 %v190
      %v288 = vunpack.c.h.b16 %v190
      %v289 = vunpack.c.l.b16 %v191
      %v290 = vunpack.c.h.b16 %v191
      %v291 = vunpack.c.l.b16 %v192
      %v292 = vunpack.c.h.b16 %v192
      %v293 = vunpack.c.l.b16 %v193
      %v294 = vunpack.c.h.b16 %v193
      %v295 = vunpack.c.l.b16 %v194
      %v296 = vunpack.c.h.b16 %v194
      %v297 = vunpack.c.l.b16 %v195
      %v298 = vunpack.c.h.b16 %v195
      %v299 = vunpack.c.l.b16 %v196
      %v300 = vunpack.c.h.b16 %v196
      %v301 = vunpack.c.l.b16 %v197
      %v302 = vunpack.c.h.b16 %v197
      %v303 = vunpack.c.l.b16 %v198
      %v304 = vunpack.c.h.b16 %v198
      %v305 = vunpack.c.l.b16 %v199
      %v306 = vunpack.c.h.b16 %v199
      %v307 = vunpack.c.l.b16 %v200
      %v308 = vunpack.c.h.b16 %v200
      %v309 = vunpack.c.l.b16 %v201
      %v310 = vunpack.c.h.b16 %v201
      %v311 = vunpack.c.l.b16 %v202
      %v312 = vunpack.c.h.b16 %v202
      %v313 = vunpack.c.l.b16 %v203
      %v314 = vunpack.c.h.b16 %v203
      %v315 = vunpack.c.l.b16 %v204
      %v316 = vunpack.c.h.b16 %v204
      %v317 = vunpack.c.l.b16 %v205
      %v318 = vunpack.c.h.b16 %v205
      %v319 = vunpack.c.l.b16 %v206
      %v320 = vunpack.c.h.b16 %v206
      %v321 = vunpack.c.l.b16 %v207
      %v322 = vunpack.c.h.b16 %v207
      %v323 = vunpack.c.l.b16 %v208
      %v324 = vunpack.c.h.b16 %v208
      %v325 = vunpack.c.l.b16 %v209
      %v326 = vunpack.c.h.b16 %v209
      %v327 = vunpack.c.l.b16 %v210
      %v328 = vunpack.c.h.b16 %v210
      %v329 = vunpack.c.l.b16 %v211
      %v330 = vunpack.c.h.b16 %v211
      %v331 = vunpack.c.l.b16 %v212
      %v332 = vunpack.c.h.b16 %v212
      %v333 = vunpack.c.l.b16 %v213
      %v334 = vunpack.c.h.b16 %v213
      %v335 = vunpack.c.l.b16 %v214
      %v336 = vunpack.c.h.b16 %v214
      %v337 = vunpack.c.l.b16 %v215
      %v338 = vunpack.c.h.b16 %v215
      %v339 = vunpack.c.l.b16 %v216
      %v340 = vunpack.c.h.b16 %v216
      %v341 = vunpack.c.l.b16 %v217
      %v342 = vunpack.c.h.b16 %v217
      %v343 = vunpack.c.l.b16 %v218
      %v344 = vunpack.c.h.b16 %v218
      %v345 = vunpack.c.l.b16 %v219
      %v346 = vunpack.c.h.b16 %v219
      %v347 = vunpack.c.l.b16 %v220
      %v348 = vunpack.c.h.b16 %v220
      %v349 = vpack.c.b16 %v287, %v285
      %v350 = vpack.c.b16 %v288, %v286
      %v351 = vpack.c.b16 %v291, %v289
      %v352 = vpack.c.b16 %v292, %v290
      %v353 = vpack.c.b16 %v295, %v293
      %v354 = vpack.c.b16 %v296, %v294
      %v355 = vpack.c.b16 %v299, %v297
      %v356 = vpack.c.b16 %v300, %v298
      %v357 = vpack.c.b16 %v303, %v301
      %v358 = vpack.c.b16 %v304, %v302
      %v359 = vpack.c.b16 %v307, %v305
      %v360 = vpack.c.b16 %v308, %v306
      %v361 = vpack.c.b16 %v311, %v309
      %v362 = vpack.c.b16 %v312, %v310
      %v363 = vpack.c.b16 %v315, %v313
      %v364 = vpack.c.b16 %v316, %v314
      %v365 = vpack.c.b16 %v319, %v317
      %v366 = vpack.c.b16 %v320, %v318
      %v367 = vpack.c.b16 %v323, %v321
      %v368 = vpack.c.b16 %v324, %v322
      %v369 = vpack.c.b16 %v327, %v325
      %v370 = vpack.c.b16 %v328, %v326
      %v371 = vpack.c.b16 %v331, %v329
      %v372 = vpack.c.b16 %v332, %v330
      %v373 = vpack.c.b16 %v335, %v333
      %v374 = vpack.c.b16 %v336, %v334
      %v375 = vpack.c.b16 %v339, %v337
      %v376 = vpack.c.b16 %v340, %v338
      %v377 = vpack.c.b16 %v343, %v341
      %v378 = vpack.c.b16 %v344, %v342
      %v379 = vpack.c.b16 %v347, %v345
      %v380 = vpack.c.b16 %v348, %v346
      %v445 = vunpack.c.l.b16 %v221
      %v446 = vunpack.c.l.b16 %v222
      %v447 = vunpack.c.l.b16 %v223
      %v448 = vunpack.c.l.b16 %v224
      %v449 = vunpack.c.l.b16 %v225
      %v450 = vunpack.c.l.b16 %v226
      %v451 = vunpack.c.l.b16 %v227
      %v452 = vunpack.c.l.b16 %v228
      %v453 = vunpack.c.l.b16 %v229
      %v454 = vunpack.c.l.b16 %v230
      %v455 = vunpack.c.l.b16 %v231
      %v456 = vunpack.c.l.b16 %v232
      %v457 = vunpack.c.l.b16 %v233
      %v458 = vunpack.c.l.b16 %v234
      %v459 = vunpack.c.l.b16 %v235
      %v460 = vunpack.c.l.b16 %v236
      %v461 = vunpack.c.l.b16 %v237
      %v462 = vunpack.c.l.b16 %v238
      %v463 = vunpack.c.l.b16 %v239
      %v464 = vunpack.c.l.b16 %v240
      %v465 = vunpack.c.l.b16 %v241
      %v466 = vunpack.c.l.b16 %v242
      %v467 = vunpack.c.l.b16 %v243
      %v468 = vunpack.c.l.b16 %v244
      %v469 = vunpack.c.l.b16 %v245
      %v470 = vunpack.c.l.b16 %v246
      %v471 = vunpack.c.l.b16 %v247
      %v472 = vunpack.c.l.b16 %v248
      %v473 = vunpack.c.l.b16 %v249
      %v474 = vunpack.c.l.b16 %v250
      %v475 = vunpack.c.l.b16 %v251
      %v476 = vunpack.c.l.b16 %v252
      %v477 = vpack.c.b16 %v446, %v445
      %v478 = vpack.c.b16 %v448, %v447
      %v479 = vpack.c.b16 %v450, %v449
      %v480 = vpack.c.b16 %v452, %v451
      %v481 = vpack.c.b16 %v454, %v453
      %v482 = vpack.c.b16 %v456, %v455
      %v483 = vpack.c.b16 %v458, %v457
      %v484 = vpack.c.b16 %v460, %v459
      %v485 = vpack.c.b16 %v462, %v461
      %v486 = vpack.c.b16 %v464, %v463
      %v487 = vpack.c.b16 %v466, %v465
      %v488 = vpack.c.b16 %v468, %v467
      %v489 = vpack.c.b16 %v470, %v469
      %v490 = vpack.c.b16 %v472, %v471
      %v491 = vpack.c.b16 %v474, %v473
      %v492 = vpack.c.b16 %v476, %v475
      %509 = vmatprep.subr.bf16.mxu0 0
      %510 = vmatpush1.bf16.msra.mxu0 %v477
      %511 = vmatprep.subr.bf16.mxu0 0
      %512 = vmatpush1.bf16.msra.mxu0 %v478
      %513 = vmatprep.subr.bf16.mxu0 0
      %514 = vmatpush1.bf16.msra.mxu0 %v479
      %515 = vmatprep.subr.bf16.mxu0 0
      %516 = vmatpush1.bf16.msra.mxu0 %v480
      %517 = vmatprep.subr.bf16.mxu0 0
      %518 = vmatpush1.bf16.msra.mxu0 %v481
      %519 = vmatprep.subr.bf16.mxu0 0
      %520 = vmatpush1.bf16.msra.mxu0 %v482
      %521 = vmatprep.subr.bf16.mxu0 0
      %522 = vmatpush1.bf16.msra.mxu0 %v483
      %523 = vmatprep.subr.bf16.mxu0 0
      %524 = vmatpush1.bf16.msra.mxu0 %v484
      %525 = vmatprep.subr.bf16.mxu0 0
      %526 = vmatpush1.bf16.msra.mxu0 %v485
      %527 = vmatprep.subr.bf16.mxu0 0
      %528 = vmatpush1.bf16.msra.mxu0 %v486
      %529 = vmatprep.subr.bf16.mxu0 0
      %530 = vmatpush1.bf16.msra.mxu0 %v487
      %531 = vmatprep.subr.bf16.mxu0 0
      %532 = vmatpush1.bf16.msra.mxu0 %v488
      %533 = vmatprep.subr.bf16.mxu0 0
      %534 = vmatpush1.bf16.msra.mxu0 %v489
      %535 = vmatprep.subr.bf16.mxu0 0
      %536 = vmatpush1.bf16.msra.mxu0 %v490
      %537 = vmatprep.subr.bf16.mxu0 0
      %538 = vmatpush1.bf16.msra.mxu0 %v491
      %539 = vmatprep.subr.bf16.mxu0 0
      %540 = vmatpush1.bf16.msra.mxu0 %v492
      %541 = vmatprep.mubr.bf16.mxu0 %v350
      %542 = vmatmul.mubr.bf16.gmra.mrb[0].mxu0 %v349
      %v543 = vpop.f32.mrb[0].mxu0
      %v544 = vadd.f32 0.0, %v543
      %v545 = vpop.f32.mrb[0].mxu0
      %v546 = vpop.f32.mrb[0].mxu0
      %v547 = vadd.f32 0.0, %v546
      %v548 = vpop.f32.mrb[0].mxu0
      %549 = vmatprep.mubr.bf16.mxu0 %v352
      %550 = vmatmul.mubr.bf16.gmra.mrb[0].mxu0 %v351
      %v551 = vpop.f32.mrb[0].mxu0
      %v552 = vadd.f32 0.0, %v551
      %v553 = vpop.f32.mrb[0].mxu0
      %v554 = vpop.f32.mrb[0].mxu0
      %v555 = vadd.f32 0.0, %v554
      %v556 = vpop.f32.mrb[0].mxu0
      %557 = vmatprep.mubr.bf16.mxu0 %v354
      %558 = vmatmul.mubr.bf16.gmra.mrb[0].mxu0 %v353
      %v559 = vpop.f32.mrb[0].mxu0
      %v560 = vadd.f32 0.0, %v559
      %v561 = vpop.f32.mrb[0].mxu0
      %v562 = vpop.f32.mrb[0].mxu0
      %v563 = vadd.f32 0.0, %v562
      %v564 = vpop.f32.mrb[0].mxu0
      %565 = vmatprep.mubr.bf16.mxu0 %v356
      %566 = vmatmul.mubr.bf16.gmra.mrb[0].mxu0 %v355
      %v567 = vpop.f32.mrb[0].mxu0
      %v568 = vadd.f32 0.0, %v567
      %v569 = vpop.f32.mrb[0].mxu0
      %v570 = vpop.f32.mrb[0].mxu0
      %v571 = vadd.f32 0.0, %v570
      %v572 = vpop.f32.mrb[0].mxu0
      %573 = vmatprep.mubr.bf16.mxu0 %v358
      %574 = vmatmul.mubr.bf16.gmra.mrb[0].mxu0 %v357
      %v575 = vpop.f32.mrb[0].mxu0
      %v576 = vadd.f32 0.0, %v575
      %v577 = vpop.f32.mrb[0].mxu0
      %v578 = vpop.f32.mrb[0].mxu0
      %v579 = vadd.f32 0.0, %v578
      %v580 = vpop.f32.mrb[0].mxu0
      %581 = vmatprep.mubr.bf16.mxu0 %v360
      %582 = vmatmul.mubr.bf16.gmra.mrb[0].mxu0 %v359
      %v583 = vpop.f32.mrb[0].mxu0
      %v584 = vadd.f32 0.0, %v583
      %v585 = vpop.f32.mrb[0].mxu0
      %v586 = vpop.f32.mrb[0].mxu0
      %v587 = vadd.f32 0.0, %v586
      %v588 = vpop.f32.mrb[0].mxu0
      %589 = vmatprep.mubr.bf16.mxu0 %v362
      %590 = vmatmul.mubr.bf16.gmra.mrb[0].mxu0 %v361
      %v591 = vpop.f32.mrb[0].mxu0
      %v592 = vadd.f32 0.0, %v591
      %v593 = vpop.f32.mrb[0].mxu0
      %v594 = vpop.f32.mrb[0].mxu0
      %v595 = vadd.f32 0.0, %v594
      %v596 = vpop.f32.mrb[0].mxu0
      %597 = vmatprep.mubr.bf16.mxu0 %v364
      %598 = vmatmul.mubr.bf16.gmra.mrb[0].mxu0 %v363
      %v599 = vpop.f32.mrb[0].mxu0
      %v600 = vadd.f32 0.0, %v599
      %v601 = vpop.f32.mrb[0].mxu0
      %v602 = vpop.f32.mrb[0].mxu0
      %v603 = vadd.f32 0.0, %v602
      %v604 = vpop.f32.mrb[0].mxu0
      %605 = vmatprep.mubr.bf16.mxu0 %v366
      %606 = vmatmul.mubr.bf16.gmra.mrb[0].mxu0 %v365
      %v607 = vpop.f32.mrb[0].mxu0
      %v608 = vadd.f32 0.0, %v607
      %v609 = vpop.f32.mrb[0].mxu0
      %v610 = vpop.f32.mrb[0].mxu0
      %v611 = vadd.f32 0.0, %v610
      %v612 = vpop.f32.mrb[0].mxu0
      %613 = vmatprep.mubr.bf16.mxu0 %v368
      %614 = vmatmul.mubr.bf16.gmra.mrb[0].mxu0 %v367
      %v615 = vpop.f32.mrb[0].mxu0
      %v616 = vadd.f32 0.0, %v615
      %v617 = vpop.f32.mrb[0].mxu0
      %v618 = vpop.f32.mrb[0].mxu0
      %v619 = vadd.f32 0.0, %v618
      %v620 = vpop.f32.mrb[0].mxu0
      %621 = vmatprep.mubr.bf16.mxu0 %v370
      %622 = vmatmul.mubr.bf16.gmra.mrb[0].mxu0 %v369
      %v623 = vpop.f32.mrb[0].mxu0
      %v624 = vadd.f32 0.0, %v623
      %v625 = vpop.f32.mrb[0].mxu0
      %v626 = vpop.f32.mrb[0].mxu0
      %v627 = vadd.f32 0.0, %v626
      %v628 = vpop.f32.mrb[0].mxu0
      %629 = vmatprep.mubr.bf16.mxu0 %v372
      %630 = vmatmul.mubr.bf16.gmra.mrb[0].mxu0 %v371
      %v631 = vpop.f32.mrb[0].mxu0
      %v632 = vadd.f32 0.0, %v631
      %v633 = vpop.f32.mrb[0].mxu0
      %v634 = vpop.f32.mrb[0].mxu0
      %v635 = vadd.f32 0.0, %v634
      %v636 = vpop.f32.mrb[0].mxu0
      %637 = vmatprep.mubr.bf16.mxu0 %v374
      %638 = vmatmul.mubr.bf16.gmra.mrb[0].mxu0 %v373
      %v639 = vpop.f32.mrb[0].mxu0
      %v640 = vadd.f32 0.0, %v639
      %v641 = vpop.f32.mrb[0].mxu0
      %v642 = vpop.f32.mrb[0].mxu0
      %v643 = vadd.f32 0.0, %v642
      %v644 = vpop.f32.mrb[0].mxu0
      %645 = vmatprep.mubr.bf16.mxu0 %v376
      %646 = vmatmul.mubr.bf16.gmra.mrb[0].mxu0 %v375
      %v647 = vpop.f32.mrb[0].mxu0
      %v648 = vadd.f32 0.0, %v647
      %v649 = vpop.f32.mrb[0].mxu0
      %v650 = vpop.f32.mrb[0].mxu0
      %v651 = vadd.f32 0.0, %v650
      %v652 = vpop.f32.mrb[0].mxu0
      %653 = vmatprep.mubr.bf16.mxu0 %v378
      %654 = vmatmul.mubr.bf16.gmra.mrb[0].mxu0 %v377
      %v655 = vpop.f32.mrb[0].mxu0
      %v656 = vadd.f32 0.0, %v655
      %v657 = vpop.f32.mrb[0].mxu0
      %v658 = vpop.f32.mrb[0].mxu0
      %v659 = vadd.f32 0.0, %v658
      %v660 = vpop.f32.mrb[0].mxu0
      %661 = vmatprep.mubr.bf16.mxu0 %v380
      %662 = vmatmul.mubr.bf16.gmra.mrb[0].mxu0 %v379
      %v663 = vpop.f32.mrb[0].mxu0
      %v664 = vadd.f32 0.0, %v663
      %v665 = vpop.f32.mrb[0].mxu0
      %v666 = vpop.f32.mrb[0].mxu0
      %v667 = vadd.f32 0.0, %v666
      %v668 = vpop.f32.mrb[0].mxu0
      %669 = vdwg.mxu0
      %v670 = vpack.c.bf16 %v547, %v544
      %v671 = vpack.c.bf16 %v555, %v552
      %v672 = vpack.c.bf16 %v563, %v560
      %v673 = vpack.c.bf16 %v571, %v568
      %v674 = vpack.c.bf16 %v579, %v576
      %v675 = vpack.c.bf16 %v587, %v584
      %v676 = vpack.c.bf16 %v595, %v592
      %v677 = vpack.c.bf16 %v603, %v600
      %v678 = vpack.c.bf16 %v611, %v608
      %v679 = vpack.c.bf16 %v619, %v616
      %v680 = vpack.c.bf16 %v627, %v624
      %v681 = vpack.c.bf16 %v635, %v632
      %v682 = vpack.c.bf16 %v643, %v640
      %v683 = vpack.c.bf16 %v651, %v648
      %v684 = vpack.c.bf16 %v659, %v656
      %v685 = vpack.c.bf16 %v667, %v664
      %v702 = vunpack.c.l.b16 %v670
      %v703 = vunpack.c.h.b16 %v670
      %v704 = vunpack.c.l.b16 %v671
      %v705 = vunpack.c.h.b16 %v671
      %v706 = vunpack.c.l.b16 %v672
      %v707 = vunpack.c.h.b16 %v672
      %v708 = vunpack.c.l.b16 %v673
      %v709 = vunpack.c.h.b16 %v673
      %v710 = vunpack.c.l.b16 %v674
      %v711 = vunpack.c.h.b16 %v674
      %v712 = vunpack.c.l.b16 %v675
      %v713 = vunpack.c.h.b16 %v675
      %v714 = vunpack.c.l.b16 %v676
      %v715 = vunpack.c.h.b16 %v676
      %v716 = vunpack.c.l.b16 %v677
      %v717 = vunpack.c.h.b16 %v677
      %v718 = vunpack.c.l.b16 %v678
      %v719 = vunpack.c.h.b16 %v678
      %v720 = vunpack.c.l.b16 %v679
      %v721 = vunpack.c.h.b16 %v679
      %v722 = vunpack.c.l.b16 %v680
      %v723 = vunpack.c.h.b16 %v680
      %v724 = vunpack.c.l.b16 %v681
      %v725 = vunpack.c.h.b16 %v681
      %v726 = vunpack.c.l.b16 %v682
      %v727 = vunpack.c.h.b16 %v682
      %v728 = vunpack.c.l.b16 %v683
      %v729 = vunpack.c.h.b16 %v683
      %v730 = vunpack.c.l.b16 %v684
      %v731 = vunpack.c.h.b16 %v684
      %v732 = vunpack.c.l.b16 %v685
      %v733 = vunpack.c.h.b16 %v685
      %v734 = vpack.c.b16 %v702, %v702
      %v735 = vpack.c.b16 %v703, %v703
      %v736 = vpack.c.b16 %v704, %v704
      %v737 = vpack.c.b16 %v705, %v705
      %v738 = vpack.c.b16 %v706, %v706
      %v739 = vpack.c.b16 %v707, %v707
      %v740 = vpack.c.b16 %v708, %v708
      %v741 = vpack.c.b16 %v709, %v709
      %v742 = vpack.c.b16 %v710, %v710
      %v743 = vpack.c.b16 %v711, %v711
      %v744 = vpack.c.b16 %v712, %v712
      %v745 = vpack.c.b16 %v713, %v713
      %v746 = vpack.c.b16 %v714, %v714
      %v747 = vpack.c.b16 %v715, %v715
      %v748 = vpack.c.b16 %v716, %v716
      %v749 = vpack.c.b16 %v717, %v717
      %v750 = vpack.c.b16 %v718, %v718
      %v751 = vpack.c.b16 %v719, %v719
      %v752 = vpack.c.b16 %v720, %v720
      %v753 = vpack.c.b16 %v721, %v721
      %v754 = vpack.c.b16 %v722, %v722
      %v755 = vpack.c.b16 %v723, %v723
      %v756 = vpack.c.b16 %v724, %v724
      %v757 = vpack.c.b16 %v725, %v725
      %v758 = vpack.c.b16 %v726, %v726
      %v759 = vpack.c.b16 %v727, %v727
      %v760 = vpack.c.b16 %v728, %v728
      %v761 = vpack.c.b16 %v729, %v729
      %v762 = vpack.c.b16 %v730, %v730
      %v763 = vpack.c.b16 %v731, %v731
      %v764 = vpack.c.b16 %v732, %v732
      %v765 = vpack.c.b16 %v733, %v733
      %798 = vst [vmem:[%s182] sm:$0xf] %v734
      %799 = vst [vmem:[%s182 + $0x4] sm:$0xf] %v735
      %800 = vst [vmem:[%s182 + $0x8] sm:$0xf] %v736
      %801 = vst [vmem:[%s182 + $0xc] sm:$0xf] %v737
      %802 = vst [vmem:[%s182 + $0x10] sm:$0xf] %v738
      %803 = vst [vmem:[%s182 + $0x14] sm:$0xf] %v739
      %804 = vst [vmem:[%s182 + $0x18] sm:$0xf] %v740
      %805 = vst [vmem:[%s182 + $0x1c] sm:$0xf] %v741
      %806 = vst [vmem:[%s182 + $0x20] sm:$0xf] %v742
      %807 = vst [vmem:[%s182 + $0x24] sm:$0xf] %v743
      %808 = vst [vmem:[%s182 + $0x28] sm:$0xf] %v744
      %809 = vst [vmem:[%s182 + $0x2c] sm:$0xf] %v745
      %810 = vst [vmem:[%s182 + $0x30] sm:$0xf] %v746
      %811 = vst [vmem:[%s182 + $0x34] sm:$0xf] %v747
      %812 = vst [vmem:[%s182 + $0x38] sm:$0xf] %v748
      %813 = vst [vmem:[%s182 + $0x3c] sm:$0xf] %v749
      %814 = vst [vmem:[%s182 + $0x40] sm:$0xf] %v750
      %815 = vst [vmem:[%s182 + $0x44] sm:$0xf] %v751
      %816 = vst [vmem:[%s182 + $0x48] sm:$0xf] %v752
      %817 = vst [vmem:[%s182 + $0x4c] sm:$0xf] %v753
      %818 = vst [vmem:[%s182 + $0x50] sm:$0xf] %v754
      %819 = vst [vmem:[%s182 + $0x54] sm:$0xf] %v755
      %820 = vst [vmem:[%s182 + $0x58] sm:$0xf] %v756
      %821 = vst [vmem:[%s182 + $0x5c] sm:$0xf] %v757
      %822 = vst [vmem:[%s182 + $0x60] sm:$0xf] %v758
      %823 = vst [vmem:[%s182 + $0x64] sm:$0xf] %v759
      %824 = vst [vmem:[%s182 + $0x68] sm:$0xf] %v760
      %825 = vst [vmem:[%s182 + $0x6c] sm:$0xf] %v761
      %826 = vst [vmem:[%s182 + $0x70] sm:$0xf] %v762
      %827 = vst [vmem:[%s182 + $0x74] sm:$0xf] %v763
      %828 = vst [vmem:[%s182 + $0x78] sm:$0xf] %v764
      %829 = vst [vmem:[%s182 + $0x7c] sm:$0xf] %v765
      %v830 = vadd.f32 %v544, %v547
      %v831 = vadd.f32 %v830, %v552
      %v832 = vadd.f32 %v831, %v555
      %v833 = vadd.f32 %v832, %v560
      %v834 = vadd.f32 %v833, %v563
      %v835 = vadd.f32 %v834, %v568
      %v836 = vadd.f32 %v835, %v571
      %v837 = vadd.f32 %v836, %v576
      %v838 = vadd.f32 %v837, %v579
      %v839 = vadd.f32 %v838, %v584
      %v840 = vadd.f32 %v839, %v587
      %v841 = vadd.f32 %v840, %v592
      %v842 = vadd.f32 %v841, %v595
      %v843 = vadd.f32 %v842, %v600
      %v844 = vadd.f32 %v843, %v603
      %v845 = vadd.f32 %v844, %v608
      %v846 = vadd.f32 %v845, %v611
      %v847 = vadd.f32 %v846, %v616
      %v848 = vadd.f32 %v847, %v619
      %v849 = vadd.f32 %v848, %v624
      %v850 = vadd.f32 %v849, %v627
      %v851 = vadd.f32 %v850, %v632
      %v852 = vadd.f32 %v851, %v635
      %v853 = vadd.f32 %v852, %v640
      %v854 = vadd.f32 %v853, %v643
      %v855 = vadd.f32 %v854, %v648
      %v856 = vadd.f32 %v855, %v651
      %v857 = vadd.f32 %v856, %v656
      %v858 = vadd.f32 %v857, %v659
      %v859 = vadd.f32 %v858, %v664
      %v860 = vadd.f32 %v859, %v667
      %v861 = vrot.slane %v860, 4
      %v862 = vadd.f32 %v860, %v861
      %v863 = vrot.slane %v862, 2
      %v864 = vadd.f32 %v862, %v863
      %v865 = vrot.slane %v864, 1
      %v866 = vadd.f32 %v864, %v865
      %v867 = vmul.f32 %v544, %v544
      %v868 = vmul.f32 %v547, %v547
      %v869 = vmul.f32 %v552, %v552
      %v870 = vmul.f32 %v555, %v555
      %v871 = vmul.f32 %v560, %v560
      %v872 = vmul.f32 %v563, %v563
      %v873 = vmul.f32 %v568, %v568
      %v874 = vmul.f32 %v571, %v571
      %v875 = vmul.f32 %v576, %v576
      %v876 = vmul.f32 %v579, %v579
      %v877 = vmul.f32 %v584, %v584
      %v878 = vmul.f32 %v587, %v587
      %v879 = vmul.f32 %v592, %v592
      %v880 = vmul.f32 %v595, %v595
      %v881 = vmul.f32 %v600, %v600
      %v882 = vmul.f32 %v603, %v603
      %v883 = vmul.f32 %v608, %v608
      %v884 = vmul.f32 %v611, %v611
      %v885 = vmul.f32 %v616, %v616
      %v886 = vmul.f32 %v619, %v619
      %v887 = vmul.f32 %v624, %v624
      %v888 = vmul.f32 %v627, %v627
      %v889 = vmul.f32 %v632, %v632
      %v890 = vmul.f32 %v635, %v635
      %v891 = vmul.f32 %v640, %v640
      %v892 = vmul.f32 %v643, %v643
      %v893 = vmul.f32 %v648, %v648
      %v894 = vmul.f32 %v651, %v651
      %v895 = vmul.f32 %v656, %v656
      %v896 = vmul.f32 %v659, %v659
      %v897 = vmul.f32 %v664, %v664
      %v898 = vmul.f32 %v667, %v667
      %v899 = vadd.f32 %v867, %v868
      %v900 = vadd.f32 %v899, %v869
      %v901 = vadd.f32 %v900, %v870
      %v902 = vadd.f32 %v901, %v871
      %v903 = vadd.f32 %v902, %v872
      %v904 = vadd.f32 %v903, %v873
      %v905 = vadd.f32 %v904, %v874
      %v906 = vadd.f32 %v905, %v875
      %v907 = vadd.f32 %v906, %v876
      %v908 = vadd.f32 %v907, %v877
      %v909 = vadd.f32 %v908, %v878
      %v910 = vadd.f32 %v909, %v879
      %v911 = vadd.f32 %v910, %v880
      %v912 = vadd.f32 %v911, %v881
      %v913 = vadd.f32 %v912, %v882
      %v914 = vadd.f32 %v913, %v883
      %v915 = vadd.f32 %v914, %v884
      %v916 = vadd.f32 %v915, %v885
      %v917 = vadd.f32 %v916, %v886
      %v918 = vadd.f32 %v917, %v887
      %v919 = vadd.f32 %v918, %v888
      %v920 = vadd.f32 %v919, %v889
      %v921 = vadd.f32 %v920, %v890
      %v922 = vadd.f32 %v921, %v891
      %v923 = vadd.f32 %v922, %v892
      %v924 = vadd.f32 %v923, %v893
      %v925 = vadd.f32 %v924, %v894
      %v926 = vadd.f32 %v925, %v895
      %v927 = vadd.f32 %v926, %v896
      %v928 = vadd.f32 %v927, %v897
      %v929 = vadd.f32 %v928, %v898
      %v930 = vrot.slane %v929, 4
      %v931 = vadd.f32 %v929, %v930
      %v932 = vrot.slane %v931, 2
      %v933 = vadd.f32 %v931, %v932
      %v934 = vrot.slane %v933, 1
      %v935 = vadd.f32 %v933, %v934
      %vm936 = vcmask 1040384
      %v937 = vsel %vm936, %v866, %v935
      %938 = vst [vmem:[%s187] sm:$0x3] %v937
      %s939 = smul.u32 32, %s15
      %p940 = scmp.lt.s32.totalorder %s939, 63
      %s941 = scalar_select %p940, %s939, 63
      %s942 = smul.addr %s941, 4
      %s943 = scalar_lea.vmem %s2, %s942
      %p944 = scmp.lt.s32.totalorder %s15, 1
      %s945 = scalar_select %p944, %s15, 1
      %s946 = smul.addr %s945, 2
      %s947 = scalar_lea.vmem %s3, %s946
      // Predicated region
      $region29: #{forward.21} parent=27 // pred_check
        %p948 = pneg %p80
      $region30: #{forward.21} parent=27 // pred_check_branch
        %950 = sbr.rel (%p948) target = $region32
      $region31: #{forward.21} parent=27 // pred_region
        %s951 = smul.u32 32, %s15
      $region32: #{forward.21} parent=27 // pred_fallthru
        _
      // Predicated region
      $region33: #{forward.21} parent=27 // pred_check
        %p952 = pneg %p106
      $region34: #{forward.21} parent=27 // pred_check_branch
        %954 = sbr.rel (%p952) target = $region36
      $region35: #{forward.21} parent=27 // pred_region
        _
      $region36: #{forward.21} parent=27 // pred_fallthru
        _
    $region28: #{forward.21} parent=5 // pred_fallthru
      _
    %p955 = scmp.le.s32.totalorder 2, %s10
    // Predicated region
    $region37: #{forward.21} parent=5 // pred_check
      %p956 = pneg %p955
    $region38: #{forward.21} parent=5 // pred_check_branch
      %958 = sbr.rel (%p956) target = $region40
    $region39: #{forward.21} parent=5 // pred_region
      %s959 = ssub.s32 %s10, 2
      // Predicated region
      $region41: #{forward.21} parent=39 // pred_check
        %p960 = pneg %p86
      $region42: #{forward.21} parent=39 // pred_check_branch
        %962 = sbr.rel (%p960) target = $region44
      $region43: #{forward.21} parent=39 // pred_region
        %s963 = smul.u32 32, %s16
        %p964 = scmp.lt.s32.totalorder %s963, 63
        %s965 = scalar_select %p964, %s963, 63
        %s966 = smul.addr %s965, 4
        %s967 = scalar_lea.vmem %s2, %s966
      $region44: #{forward.21} parent=39 // pred_fallthru
        _
      // Predicated region
      $region45: #{forward.21} parent=39 // pred_check
        %p968 = pneg %p112
      $region46: #{forward.21} parent=39 // pred_check_branch
        %970 = sbr.rel (%p968) target = $region48
      $region47: #{forward.21} parent=39 // pred_region
        %p971 = scmp.lt.s32.totalorder %s16, 1
        %s972 = scalar_select %p971, %s16, 1
        %s973 = smul.addr %s972, 2
        %s974 = scalar_lea.vmem %s3, %s973
      $region48: #{forward.21} parent=39 // pred_fallthru
        _
    $region40: #{forward.21} parent=5 // pred_fallthru
      _
  $region6: #{forward.21} parent=0 // loop_footer
    %s14 = sadd.s32 1, %s10
  $region7: #{forward.21} parent=0 // loop_footer_branch
    %9 = sbr.rel target = $region3
  $region8: #{forward.21} parent=0 // loop_exit
    _

// kernel: forward.24
$region0: #{forward.24}
  #allocation0 [shape = 'u32[]', space=smem, size = 0x4, offset = 0x4, fixed_abs, tag = 'smem constant byte address 0x4 - core index']
  #allocation1 [shape = 'u32[144,128]{1,0:T(1,128)}', space=vmem, size = 0x12000, scoped, tag = 'internal scratch']
  %s0 = inlined_call_operand.vmem [shape: bf16[512,128], index: 0, kind: input, shape index: {}]
  %s1 = inlined_call_operand.vmem [shape: f32[1,128], index: 1, kind: input, shape index: {}]
  %s2 = inlined_call_operand.vmem [shape: f32[1,128], index: 2, kind: input, shape index: {}]
  %s3 = inlined_call_operand.vmem [shape: bf16[512,128], index: 3, kind: input, shape index: {}]
  %s4 = inlined_call_operand.vmem [shape: bf16[512,128], index: 4, kind: output, shape index: {}]
  %s5 = sld [smem:[#allocation0]]
  $region49: #{forward.24} parent=0
    _
  %s7 = ssub.s32 1, %s5
  %s8 = scalar_select 0, %s7, %s5
  loop: start=0, step=1, limit=4
  $region2: #{forward.24} parent=0 // loop_pre_header
    _
  $region3: #{forward.24} parent=0 // loop_header
    %s10 = sphi 0, %s14
    %p11 = scmp.ge.s32.totalorder %s10, 4
    %s20 = sphi 0, %s22
    %s23 = sphi 0, %s20
    %s24 = sphi 0, %s23
    %s40 = sphi 0, %s24
    %s44 = sphi 0, %s44
    %s46 = sphi 0, %s44
    %s47 = sphi 0, %s46
    %s61 = sphi 0, %s47
    %s65 = sphi 0, %s65
    %s67 = sphi 0, %s65
    %s68 = sphi 0, %s67
    %s82 = sphi 0, %s68
    %s88 = sphi 0, %s90
    %s91 = sphi 0, %s88
    %s92 = sphi 0, %s91
    %s108 = sphi 0, %s92
    %s114 = sphi 0, %s116
    %s117 = sphi 0, %s114
    %s118 = sphi 0, %s117
    %s134 = sphi 0, %s118
  $region4: #{forward.24} parent=0 // loop_header_branch
    %13 = sbr.rel (%p11) target = $region8
  $region5: #{forward.24} parent=0 // loop_body
    %s15 = ssub.s32 %s10, 1
    %s16 = ssub.s32 %s10, 2
    %s17 = sadd.s32 %s10, 1
    %s18 = ssub.s32 %s10, %s17
    %p19 = scmp.eq.s32.totalorder %s18, 0
    %s21 = sadd.s32 %s20, 1
    %s22 = scalar_select %p19, %s20, %s21
    %p25 = pneg %p19
    %p26 = scmp.eq.s32.totalorder %s10, 1
    %p27 = por %p25, %p26
    %p28 = scmp.ne.s32.totalorder %s20, %s23
    %p29 = scmp.eq.s32.totalorder %s10, 0
    %p30 = por %p28, %p29
    %p31 = scmp.ne.s32.totalorder %s20, %s23
    %p32 = scmp.eq.s32.totalorder %s15, 1
    %p33 = por %p31, %p32
    %p34 = scmp.ne.s32.totalorder %s23, %s24
    %p35 = scmp.eq.s32.totalorder %s15, 0
    %p36 = por %p34, %p35
    %p37 = scmp.ne.s32.totalorder %s23, %s24
    %p38 = scmp.eq.s32.totalorder %s16, 1
    %p39 = por %p37, %p38
    %p41 = scmp.ne.s32.totalorder %s24, %s40
    %p42 = scmp.eq.s32.totalorder %s16, 0
    %p43 = por %p41, %p42
    %s45 = sadd.s32 %s44, 1
    %p48 = scmp.eq.s32.totalorder %s10, 1
    %p49 = scmp.ne.s32.totalorder %s44, %s46
    %p50 = scmp.eq.s32.totalorder %s10, 0
    %p51 = por %p49, %p50
    %p52 = scmp.ne.s32.totalorder %s44, %s46
    %p53 = scmp.eq.s32.totalorder %s15, 1
    %p54 = por %p52, %p53
    %p55 = scmp.ne.s32.totalorder %s46, %s47
    %p56 = scmp.eq.s32.totalorder %s15, 0
    %p57 = por %p55, %p56
    %p58 = scmp.ne.s32.totalorder %s46, %s47
    %p59 = scmp.eq.s32.totalorder %s16, 1
    %p60 = por %p58, %p59
    %p62 = scmp.ne.s32.totalorder %s47, %s61
    %p63 = scmp.eq.s32.totalorder %s16, 0
    %p64 = por %p62, %p63
    %s66 = sadd.s32 %s65, 1
    %p69 = scmp.eq.s32.totalorder %s10, 1
    %p70 = scmp.ne.s32.totalorder %s65, %s67
    %p71 = scmp.eq.s32.totalorder %s10, 0
    %p72 = por %p70, %p71
    %p73 = scmp.ne.s32.totalorder %s65, %s67
    %p74 = scmp.eq.s32.totalorder %s15, 1
    %p75 = por %p73, %p74
    %p76 = scmp.ne.s32.totalorder %s67, %s68
    %p77 = scmp.eq.s32.totalorder %s15, 0
    %p78 = por %p76, %p77
    %p79 = scmp.ne.s32.totalorder %s67, %s68
    %p80 = scmp.eq.s32.totalorder %s16, 1
    %p81 = por %p79, %p80
    %p83 = scmp.ne.s32.totalorder %s68, %s82
    %p84 = scmp.eq.s32.totalorder %s16, 0
    %p85 = por %p83, %p84
    %s86 = ssub.s32 %s10, %s17
    %p87 = scmp.eq.s32.totalorder %s86, 0
    %s89 = sadd.s32 %s88, 1
    %s90 = scalar_select %p87, %s88, %s89
    %p93 = pneg %p87
    %p94 = scmp.eq.s32.totalorder %s10, 1
    %p95 = por %p93, %p94
    %p96 = scmp.ne.s32.totalorder %s88, %s91
    %p97 = scmp.eq.s32.totalorder %s10, 0
    %p98 = por %p96, %p97
    %p99 = scmp.ne.s32.totalorder %s88, %s91
    %p100 = scmp.eq.s32.totalorder %s15, 1
    %p101 = por %p99, %p100
    %p102 = scmp.ne.s32.totalorder %s91, %s92
    %p103 = scmp.eq.s32.totalorder %s15, 0
    %p104 = por %p102, %p103
    %p105 = scmp.ne.s32.totalorder %s91, %s92
    %p106 = scmp.eq.s32.totalorder %s16, 1
    %p107 = por %p105, %p106
    %p109 = scmp.ne.s32.totalorder %s92, %s108
    %p110 = scmp.eq.s32.totalorder %s16, 0
    %p111 = por %p109, %p110
    %s112 = ssub.s32 %s10, %s17
    %p113 = scmp.eq.s32.totalorder %s112, 0
    %s115 = sadd.s32 %s114, 1
    %s116 = scalar_select %p113, %s114, %s115
    %p119 = pneg %p113
    %p120 = scmp.eq.s32.totalorder %s10, 1
    %p121 = por %p119, %p120
    %p122 = scmp.ne.s32.totalorder %s114, %s117
    %p123 = scmp.eq.s32.totalorder %s10, 0
    %p124 = por %p122, %p123
    %p125 = scmp.ne.s32.totalorder %s114, %s117
    %p126 = scmp.eq.s32.totalorder %s15, 1
    %p127 = por %p125, %p126
    %p128 = scmp.ne.s32.totalorder %s117, %s118
    %p129 = scmp.eq.s32.totalorder %s15, 0
    %p130 = por %p128, %p129
    %p131 = scmp.ne.s32.totalorder %s117, %s118
    %p132 = scmp.eq.s32.totalorder %s16, 1
    %p133 = por %p131, %p132
    %p135 = scmp.ne.s32.totalorder %s118, %s134
    %p136 = scmp.eq.s32.totalorder %s16, 0
    %p137 = por %p135, %p136
    %p138 = scmp.le.s32.totalorder 1, %s10
    %p139 = scmp.lt.s32.totalorder %s10, 3
    %p140 = pnand %p138, %p139
    %p141 = pneg %p140
    // Predicated region
    $region9: #{forward.24} parent=5 // pred_check
      _
    $region10: #{forward.24} parent=5 // pred_check_branch
      %143 = sbr.rel (%p140) target = $region12
    $region11: #{forward.24} parent=5 // pred_region
      %s144 = ssub.s32 %s10, 1
      // Predicated region
      $region13: #{forward.24} parent=11 // pred_check
        %p145 = pneg %p57
      $region14: #{forward.24} parent=11 // pred_check_branch
        %147 = sbr.rel (%p145) target = $region16
      $region15: #{forward.24} parent=11 // pred_region
        _
      $region16: #{forward.24} parent=11 // pred_fallthru
        _
      // Predicated region
      $region17: #{forward.24} parent=11 // pred_check
        %p148 = pneg %p78
      $region18: #{forward.24} parent=11 // pred_check_branch
        %150 = sbr.rel (%p148) target = $region20
      $region19: #{forward.24} parent=11 // pred_region
        _
      $region20: #{forward.24} parent=11 // pred_fallthru
        _
    $region12: #{forward.24} parent=5 // pred_fallthru
      _
    %p151 = scmp.lt.s32.totalorder %s10, 2
    // Predicated region
    $region21: #{forward.24} parent=5 // pred_check
      %p152 = pneg %p151
    $region22: #{forward.24} parent=5 // pred_check_branch
      %154 = sbr.rel (%p152) target = $region24
    $region23: #{forward.24} parent=5 // pred_region
      // Predicated region
      $region25: #{forward.24} parent=23 // pred_check
        %p155 = pneg %p30
      $region26: #{forward.24} parent=23 // pred_check_branch
        %157 = sbr.rel (%p155) target = $region28
      $region27: #{forward.24} parent=23 // pred_region
        %s158 = smul.u32 32, %s10
        %p159 = scmp.lt.s32.totalorder %s158, 63
        %s160 = scalar_select %p159, %s158, 63
        %s161 = smul.addr %s160, 4
        %s162 = scalar_lea.vmem %s0, %s161
        %s163 = smul.u32 32, %s10
      $region28: #{forward.24} parent=23 // pred_fallthru
        _
      // Predicated region
      $region29: #{forward.24} parent=23 // pred_check
        %p164 = pneg %p98
      $region30: #{forward.24} parent=23 // pred_check_branch
        %166 = sbr.rel (%p164) target = $region32
      $region31: #{forward.24} parent=23 // pred_region
        %s167 = smul.u32 32, %s10
        %p168 = scmp.lt.s32.totalorder %s167, 63
        %s169 = scalar_select %p168, %s167, 63
        %s170 = smul.addr %s169, 4
        %s171 = scalar_lea.vmem %s3, %s170
        %s172 = smul.u32 32, %s10
      $region32: #{forward.24} parent=23 // pred_fallthru
        _
    $region24: #{forward.24} parent=5 // pred_fallthru
      _
    %p173 = scmp.le.s32.totalorder 1, %s10
    %p174 = scmp.lt.s32.totalorder %s10, 3
    %p175 = pnand %p173, %p174
    %p176 = pneg %p175
    // Predicated region
    $region33: #{forward.24} parent=5 // pred_check
      _
    $region34: #{forward.24} parent=5 // pred_check_branch
      %178 = sbr.rel (%p175) target = $region36
    $region35: #{forward.24} parent=5 // pred_region
      %s179 = ssub.s32 %s10, 1
      %s180 = smul.u32 32, %s15
      %p181 = scmp.lt.s32.totalorder %s180, 63
      %s182 = scalar_select %p181, %s180, 63
      %s183 = smul.addr %s182, 4
      %s184 = scalar_lea.vmem %s0, %s183
      %p185 = pneg %p36
      %p186 = pneg %p33
      %p187 = pneg %p57
      %p188 = pneg %p54
      %p189 = pneg %p78
      %p190 = pneg %p75
      %s191 = smul.u32 32, %s15
      %p192 = scmp.lt.s32.totalorder %s191, 63
      %s193 = scalar_select %p192, %s191, 63
      %s194 = smul.addr %s193, 4
      %s195 = scalar_lea.vmem %s3, %s194
      %p196 = pneg %p104
      %p197 = pneg %p101
      %p198 = pneg %p130
      %p199 = pneg %p127
      %s200 = smul.u32 32, %s15
      %p201 = scmp.lt.s32.totalorder %s200, 63
      %s202 = scalar_select %p201, %s200, 63
      %s203 = smul.addr %s202, 4
      %s204 = scalar_lea.vmem %s4, %s203
      %s205 = smul.u32 32, %s15
      %p206 = scmp.lt.s32.totalorder %s205, 63
      %s207 = scalar_select %p206, %s205, 63
      %s208 = smul.addr %s207, 4
      %s209 = scalar_lea.vmem %s0, %s208
      %s210 = smul.u32 32, %s15
      %s211 = smul.u32 32, %s15
      %p212 = scmp.lt.s32.totalorder %s211, 63
      %s213 = scalar_select %p212, %s211, 63
      %s214 = smul.addr %s213, 4
      %s215 = scalar_lea.vmem %s3, %s214
      %s216 = smul.u32 32, %s15
      %s217 = smul.u32 32, %s15
      %p218 = scmp.lt.s32.totalorder %s217, 63
      %s219 = scalar_select %p218, %s217, 63
      %s220 = smul.addr %s219, 4
      %s221 = scalar_lea.vmem %s4, %s220
      %s222 = smul.u32 32, %s15
      %v223 = vld [vmem:[%s209] sm:$0xf]
      %v224 = vld [vmem:[%s209 + $0x4] sm:$0xf]
      %v225 = vld [vmem:[%s209 + $0x8] sm:$0xf]
      %v226 = vld [vmem:[%s209 + $0xc] sm:$0xf]
      %v227 = vld [vmem:[%s209 + $0x10] sm:$0xf]
      %v228 = vld [vmem:[%s209 + $0x14] sm:$0xf]
      %v229 = vld [vmem:[%s209 + $0x18] sm:$0xf]
      %v230 = vld [vmem:[%s209 + $0x1c] sm:$0xf]
      %v231 = vld [vmem:[%s209 + $0x20] sm:$0xf]
      %v232 = vld [vmem:[%s209 + $0x24] sm:$0xf]
      %v233 = vld [vmem:[%s209 + $0x28] sm:$0xf]
      %v234 = vld [vmem:[%s209 + $0x2c] sm:$0xf]
      %v235 = vld [vmem:[%s209 + $0x30] sm:$0xf]
      %v236 = vld [vmem:[%s209 + $0x34] sm:$0xf]
      %v237 = vld [vmem:[%s209 + $0x38] sm:$0xf]
      %v238 = vld [vmem:[%s209 + $0x3c] sm:$0xf]
      %v239 = vld [vmem:[%s209 + $0x40] sm:$0xf]
      %v240 = vld [vmem:[%s209 + $0x44] sm:$0xf]
      %v241 = vld [vmem:[%s209 + $0x48] sm:$0xf]
      %v242 = vld [vmem:[%s209 + $0x4c] sm:$0xf]
      %v243 = vld [vmem:[%s209 + $0x50] sm:$0xf]
      %v244 = vld [vmem:[%s209 + $0x54] sm:$0xf]
      %v245 = vld [vmem:[%s209 + $0x58] sm:$0xf]
      %v246 = vld [vmem:[%s209 + $0x5c] sm:$0xf]
      %v247 = vld [vmem:[%s209 + $0x60] sm:$0xf]
      %v248 = vld [vmem:[%s209 + $0x64] sm:$0xf]
      %v249 = vld [vmem:[%s209 + $0x68] sm:$0xf]
      %v250 = vld [vmem:[%s209 + $0x6c] sm:$0xf]
      %v251 = vld [vmem:[%s209 + $0x70] sm:$0xf]
      %v252 = vld [vmem:[%s209 + $0x74] sm:$0xf]
      %v253 = vld [vmem:[%s209 + $0x78] sm:$0xf]
      %v254 = vld [vmem:[%s209 + $0x7c] sm:$0xf]
      %v255 = vunpack.c.l.bf16 %v223
      %v256 = vunpack.c.l.bf16 %v224
      %v257 = vunpack.c.l.bf16 %v225
      %v258 = vunpack.c.l.bf16 %v226
      %v259 = vunpack.c.l.bf16 %v227
      %v260 = vunpack.c.l.bf16 %v228
      %v261 = vunpack.c.l.bf16 %v229
      %v262 = vunpack.c.l.bf16 %v230
      %v263 = vunpack.c.l.bf16 %v231
      %v264 = vunpack.c.l.bf16 %v232
      %v265 = vunpack.c.l.bf16 %v233
      %v266 = vunpack.c.l.bf16 %v234
      %v267 = vunpack.c.l.bf16 %v235
      %v268 = vunpack.c.l.bf16 %v236
      %v269 = vunpack.c.l.bf16 %v237
      %v270 = vunpack.c.l.bf16 %v238
      %v271 = vunpack.c.l.bf16 %v239
      %v272 = vunpack.c.l.bf16 %v240
      %v273 = vunpack.c.l.bf16 %v241
      %v274 = vunpack.c.l.bf16 %v242
      %v275 = vunpack.c.l.bf16 %v243
      %v276 = vunpack.c.l.bf16 %v244
      %v277 = vunpack.c.l.bf16 %v245
      %v278 = vunpack.c.l.bf16 %v246
      %v279 = vunpack.c.l.bf16 %v247
      %v280 = vunpack.c.l.bf16 %v248
      %v281 = vunpack.c.l.bf16 %v249
      %v282 = vunpack.c.l.bf16 %v250
      %v283 = vunpack.c.l.bf16 %v251
      %v284 = vunpack.c.l.bf16 %v252
      %v285 = vunpack.c.l.bf16 %v253
      %v286 = vunpack.c.l.bf16 %v254
      %v287 = vld [vmem:[%s1] sm:$0x1]
      %v289 = vlaneseq
      %v290 = vshrl.u32 %v289, 7
      %v291 = vsub.s32 0, %v290
      %v292 = vrot.slane %v287, %v291
      %v294 = vmul.f32 %v255, %v292
      %v295 = vmul.f32 %v256, %v292
      %v296 = vmul.f32 %v257, %v292
      %v297 = vmul.f32 %v258, %v292
      %v298 = vmul.f32 %v259, %v292
      %v299 = vmul.f32 %v260, %v292
      %v300 = vmul.f32 %v261, %v292
      %v301 = vmul.f32 %v262, %v292
      %v302 = vmul.f32 %v263, %v292
      %v303 = vmul.f32 %v264, %v292
      %v304 = vmul.f32 %v265, %v292
      %v305 = vmul.f32 %v266, %v292
      %v306 = vmul.f32 %v267, %v292
      %v307 = vmul.f32 %v268, %v292
      %v308 = vmul.f32 %v269, %v292
      %v309 = vmul.f32 %v270, %v292
      %v310 = vmul.f32 %v271, %v292
      %v311 = vmul.f32 %v272, %v292
      %v312 = vmul.f32 %v273, %v292
      %v313 = vmul.f32 %v274, %v292
      %v314 = vmul.f32 %v275, %v292
      %v315 = vmul.f32 %v276, %v292
      %v316 = vmul.f32 %v277, %v292
      %v317 = vmul.f32 %v278, %v292
      %v318 = vmul.f32 %v279, %v292
      %v319 = vmul.f32 %v280, %v292
      %v320 = vmul.f32 %v281, %v292
      %v321 = vmul.f32 %v282, %v292
      %v322 = vmul.f32 %v283, %v292
      %v323 = vmul.f32 %v284, %v292
      %v324 = vmul.f32 %v285, %v292
      %v325 = vmul.f32 %v286, %v292
      %v326 = vld [vmem:[%s2] sm:$0x1]
      %v328 = vlaneseq
      %v329 = vshrl.u32 %v328, 7
      %v330 = vsub.s32 0, %v329
      %v331 = vrot.slane %v326, %v330
      %v333 = vadd.f32 %v294, %v331
      %v334 = vadd.f32 %v295, %v331
      %v335 = vadd.f32 %v296, %v331
      %v336 = vadd.f32 %v297, %v331
      %v337 = vadd.f32 %v298, %v331
      %v338 = vadd.f32 %v299, %v331
      %v339 = vadd.f32 %v300, %v331
      %v340 = vadd.f32 %v301, %v331
      %v341 = vadd.f32 %v302, %v331
      %v342 = vadd.f32 %v303, %v331
      %v343 = vadd.f32 %v304, %v331
      %v344 = vadd.f32 %v305, %v331
      %v345 = vadd.f32 %v306, %v331
      %v346 = vadd.f32 %v307, %v331
      %v347 = vadd.f32 %v308, %v331
      %v348 = vadd.f32 %v309, %v331
      %v349 = vadd.f32 %v310, %v331
      %v350 = vadd.f32 %v311, %v331
      %v351 = vadd.f32 %v312, %v331
      %v352 = vadd.f32 %v313, %v331
      %v353 = vadd.f32 %v314, %v331
      %v354 = vadd.f32 %v315, %v331
      %v355 = vadd.f32 %v316, %v331
      %v356 = vadd.f32 %v317, %v331
      %v357 = vadd.f32 %v318, %v331
      %v358 = vadd.f32 %v319, %v331
      %v359 = vadd.f32 %v320, %v331
      %v360 = vadd.f32 %v321, %v331
      %v361 = vadd.f32 %v322, %v331
      %v362 = vadd.f32 %v323, %v331
      %v363 = vadd.f32 %v324, %v331
      %v364 = vadd.f32 %v325, %v331
      %v365 = vld [vmem:[%s215] sm:$0xf]
      %v366 = vld [vmem:[%s215 + $0x4] sm:$0xf]
      %v367 = vld [vmem:[%s215 + $0x8] sm:$0xf]
      %v368 = vld [vmem:[%s215 + $0xc] sm:$0xf]
      %v369 = vld [vmem:[%s215 + $0x10] sm:$0xf]
      %v370 = vld [vmem:[%s215 + $0x14] sm:$0xf]
      %v371 = vld [vmem:[%s215 + $0x18] sm:$0xf]
      %v372 = vld [vmem:[%s215 + $0x1c] sm:$0xf]
      %v373 = vld [vmem:[%s215 + $0x20] sm:$0xf]
      %v374 = vld [vmem:[%s215 + $0x24] sm:$0xf]
      %v375 = vld [vmem:[%s215 + $0x28] sm:$0xf]
      %v376 = vld [vmem:[%s215 + $0x2c] sm:$0xf]
      %v377 = vld [vmem:[%s215 + $0x30] sm:$0xf]
      %v378 = vld [vmem:[%s215 + $0x34] sm:$0xf]
      %v379 = vld [vmem:[%s215 + $0x38] sm:$0xf]
      %v380 = vld [vmem:[%s215 + $0x3c] sm:$0xf]
      %v381 = vld [vmem:[%s215 + $0x40] sm:$0xf]
      %v382 = vld [vmem:[%s215 + $0x44] sm:$0xf]
      %v383 = vld [vmem:[%s215 + $0x48] sm:$0xf]
      %v384 = vld [vmem:[%s215 + $0x4c] sm:$0xf]
      %v385 = vld [vmem:[%s215 + $0x50] sm:$0xf]
      %v386 = vld [vmem:[%s215 + $0x54] sm:$0xf]
      %v387 = vld [vmem:[%s215 + $0x58] sm:$0xf]
      %v388 = vld [vmem:[%s215 + $0x5c] sm:$0xf]
      %v389 = vld [vmem:[%s215 + $0x60] sm:$0xf]
      %v390 = vld [vmem:[%s215 + $0x64] sm:$0xf]
      %v391 = vld [vmem:[%s215 + $0x68] sm:$0xf]
      %v392 = vld [vmem:[%s215 + $0x6c] sm:$0xf]
      %v393 = vld [vmem:[%s215 + $0x70] sm:$0xf]
      %v394 = vld [vmem:[%s215 + $0x74] sm:$0xf]
      %v395 = vld [vmem:[%s215 + $0x78] sm:$0xf]
      %v396 = vld [vmem:[%s215 + $0x7c] sm:$0xf]
      %v397 = vunpack.c.l.bf16 %v365
      %v398 = vunpack.c.l.bf16 %v366
      %v399 = vunpack.c.l.bf16 %v367
      %v400 = vunpack.c.l.bf16 %v368
      %v401 = vunpack.c.l.bf16 %v369
      %v402 = vunpack.c.l.bf16 %v370
      %v403 = vunpack.c.l.bf16 %v371
      %v404 = vunpack.c.l.bf16 %v372
      %v405 = vunpack.c.l.bf16 %v373
      %v406 = vunpack.c.l.bf16 %v374
      %v407 = vunpack.c.l.bf16 %v375
      %v408 = vunpack.c.l.bf16 %v376
      %v409 = vunpack.c.l.bf16 %v377
      %v410 = vunpack.c.l.bf16 %v378
      %v411 = vunpack.c.l.bf16 %v379
      %v412 = vunpack.c.l.bf16 %v380
      %v413 = vunpack.c.l.bf16 %v381
      %v414 = vunpack.c.l.bf16 %v382
      %v415 = vunpack.c.l.bf16 %v383
      %v416 = vunpack.c.l.bf16 %v384
      %v417 = vunpack.c.l.bf16 %v385
      %v418 = vunpack.c.l.bf16 %v386
      %v419 = vunpack.c.l.bf16 %v387
      %v420 = vunpack.c.l.bf16 %v388
      %v421 = vunpack.c.l.bf16 %v389
      %v422 = vunpack.c.l.bf16 %v390
      %v423 = vunpack.c.l.bf16 %v391
      %v424 = vunpack.c.l.bf16 %v392
      %v425 = vunpack.c.l.bf16 %v393
      %v426 = vunpack.c.l.bf16 %v394
      %v427 = vunpack.c.l.bf16 %v395
      %v428 = vunpack.c.l.bf16 %v396
      %v429 = vadd.f32 %v333, %v397
      %v430 = vadd.f32 %v334, %v398
      %v431 = vadd.f32 %v335, %v399
      %v432 = vadd.f32 %v336, %v400
      %v433 = vadd.f32 %v337, %v401
      %v434 = vadd.f32 %v338, %v402
      %v435 = vadd.f32 %v339, %v403
      %v436 = vadd.f32 %v340, %v404
      %v437 = vadd.f32 %v341, %v405
      %v438 = vadd.f32 %v342, %v406
      %v439 = vadd.f32 %v343, %v407
      %v440 = vadd.f32 %v344, %v408
      %v441 = vadd.f32 %v345, %v409
      %v442 = vadd.f32 %v346, %v410
      %v443 = vadd.f32 %v347, %v411
      %v444 = vadd.f32 %v348, %v412
      %v445 = vadd.f32 %v349, %v413
      %v446 = vadd.f32 %v350, %v414
      %v447 = vadd.f32 %v351, %v415
      %v448 = vadd.f32 %v352, %v416
      %v449 = vadd.f32 %v353, %v417
      %v450 = vadd.f32 %v354, %v418
      %v451 = vadd.f32 %v355, %v419
      %v452 = vadd.f32 %v356, %v420
      %v453 = vadd.f32 %v357, %v421
      %v454 = vadd.f32 %v358, %v422
      %v455 = vadd.f32 %v359, %v423
      %v456 = vadd.f32 %v360, %v424
      %v457 = vadd.f32 %v361, %v425
      %v458 = vadd.f32 %v362, %v426
      %v459 = vadd.f32 %v363, %v427
      %v460 = vadd.f32 %v364, %v428
      %v461 = vmax.f32 %v429, 0.0
      %v462 = vmax.f32 %v430, 0.0
      %v463 = vmax.f32 %v431, 0.0
      %v464 = vmax.f32 %v432, 0.0
      %v465 = vmax.f32 %v433, 0.0
      %v466 = vmax.f32 %v434, 0.0
      %v467 = vmax.f32 %v435, 0.0
      %v468 = vmax.f32 %v436, 0.0
      %v469 = vmax.f32 %v437, 0.0
      %v470 = vmax.f32 %v438, 0.0
      %v471 = vmax.f32 %v439, 0.0
      %v472 = vmax.f32 %v440, 0.0
      %v473 = vmax.f32 %v441, 0.0
      %v474 = vmax.f32 %v442, 0.0
      %v475 = vmax.f32 %v443, 0.0
      %v476 = vmax.f32 %v444, 0.0
      %v477 = vmax.f32 %v445, 0.0
      %v478 = vmax.f32 %v446, 0.0
      %v479 = vmax.f32 %v447, 0.0
      %v480 = vmax.f32 %v448, 0.0
      %v481 = vmax.f32 %v449, 0.0
      %v482 = vmax.f32 %v450, 0.0
      %v483 = vmax.f32 %v451, 0.0
      %v484 = vmax.f32 %v452, 0.0
      %v485 = vmax.f32 %v453, 0.0
      %v486 = vmax.f32 %v454, 0.0
      %v487 = vmax.f32 %v455, 0.0
      %v488 = vmax.f32 %v456, 0.0
      %v489 = vmax.f32 %v457, 0.0
      %v490 = vmax.f32 %v458, 0.0
      %v491 = vmax.f32 %v459, 0.0
      %v492 = vmax.f32 %v460, 0.0
      %v493 = vpack.c.bf16 %v462, %v461
      %v494 = vpack.c.bf16 %v464, %v463
      %v495 = vpack.c.bf16 %v466, %v465
      %v496 = vpack.c.bf16 %v468, %v467
      %v497 = vpack.c.bf16 %v470, %v469
      %v498 = vpack.c.bf16 %v472, %v471
      %v499 = vpack.c.bf16 %v474, %v473
      %v500 = vpack.c.bf16 %v476, %v475
      %v501 = vpack.c.bf16 %v478, %v477
      %v502 = vpack.c.bf16 %v480, %v479
      %v503 = vpack.c.bf16 %v482, %v481
      %v504 = vpack.c.bf16 %v484, %v483
      %v505 = vpack.c.bf16 %v486, %v485
      %v506 = vpack.c.bf16 %v488, %v487
      %v507 = vpack.c.bf16 %v490, %v489
      %v508 = vpack.c.bf16 %v492, %v491
      %v525 = vunpack.c.l.b16 %v493
      %v526 = vunpack.c.h.b16 %v493
      %v527 = vunpack.c.l.b16 %v494
      %v528 = vunpack.c.h.b16 %v494
      %v529 = vunpack.c.l.b16 %v495
      %v530 = vunpack.c.h.b16 %v495
      %v531 = vunpack.c.l.b16 %v496
      %v532 = vunpack.c.h.b16 %v496
      %v533 = vunpack.c.l.b16 %v497
      %v534 = vunpack.c.h.b16 %v497
      %v535 = vunpack.c.l.b16 %v498
      %v536 = vunpack.c.h.b16 %v498
      %v537 = vunpack.c.l.b16 %v499
      %v538 = vunpack.c.h.b16 %v499
      %v539 = vunpack.c.l.b16 %v500
      %v540 = vunpack.c.h.b16 %v500
      %v541 = vunpack.c.l.b16 %v501
      %v542 = vunpack.c.h.b16 %v501
      %v543 = vunpack.c.l.b16 %v502
      %v544 = vunpack.c.h.b16 %v502
      %v545 = vunpack.c.l.b16 %v503
      %v546 = vunpack.c.h.b16 %v503
      %v547 = vunpack.c.l.b16 %v504
      %v548 = vunpack.c.h.b16 %v504
      %v549 = vunpack.c.l.b16 %v505
      %v550 = vunpack.c.h.b16 %v505
      %v551 = vunpack.c.l.b16 %v506
      %v552 = vunpack.c.h.b16 %v506
      %v553 = vunpack.c.l.b16 %v507
      %v554 = vunpack.c.h.b16 %v507
      %v555 = vunpack.c.l.b16 %v508
      %v556 = vunpack.c.h.b16 %v508
      %v557 = vpack.c.b16 %v525, %v525
      %v558 = vpack.c.b16 %v526, %v526
      %v559 = vpack.c.b16 %v527, %v527
      %v560 = vpack.c.b16 %v528, %v528
      %v561 = vpack.c.b16 %v529, %v529
      %v562 = vpack.c.b16 %v530, %v530
      %v563 = vpack.c.b16 %v531, %v531
      %v564 = vpack.c.b16 %v532, %v532
      %v565 = vpack.c.b16 %v533, %v533
      %v566 = vpack.c.b16 %v534, %v534
      %v567 = vpack.c.b16 %v535, %v535
      %v568 = vpack.c.b16 %v536, %v536
      %v569 = vpack.c.b16 %v537, %v537
      %v570 = vpack.c.b16 %v538, %v538
      %v571 = vpack.c.b16 %v539, %v539
      %v572 = vpack.c.b16 %v540, %v540
      %v573 = vpack.c.b16 %v541, %v541
      %v574 = vpack.c.b16 %v542, %v542
      %v575 = vpack.c.b16 %v543, %v543
      %v576 = vpack.c.b16 %v544, %v544
      %v577 = vpack.c.b16 %v545, %v545
      %v578 = vpack.c.b16 %v546, %v546
      %v579 = vpack.c.b16 %v547, %v547
      %v580 = vpack.c.b16 %v548, %v548
      %v581 = vpack.c.b16 %v549, %v549
      %v582 = vpack.c.b16 %v550, %v550
      %v583 = vpack.c.b16 %v551, %v551
      %v584 = vpack.c.b16 %v552, %v552
      %v585 = vpack.c.b16 %v553, %v553
      %v586 = vpack.c.b16 %v554, %v554
      %v587 = vpack.c.b16 %v555, %v555
      %v588 = vpack.c.b16 %v556, %v556
      %621 = vst [vmem:[%s221] sm:$0xf] %v557
      %622 = vst [vmem:[%s221 + $0x4] sm:$0xf] %v558
      %623 = vst [vmem:[%s221 + $0x8] sm:$0xf] %v559
      %624 = vst [vmem:[%s221 + $0xc] sm:$0xf] %v560
      %625 = vst [vmem:[%s221 + $0x10] sm:$0xf] %v561
      %626 = vst [vmem:[%s221 + $0x14] sm:$0xf] %v562
      %627 = vst [vmem:[%s221 + $0x18] sm:$0xf] %v563
      %628 = vst [vmem:[%s221 + $0x1c] sm:$0xf] %v564
      %629 = vst [vmem:[%s221 + $0x20] sm:$0xf] %v565
      %630 = vst [vmem:[%s221 + $0x24] sm:$0xf] %v566
      %631 = vst [vmem:[%s221 + $0x28] sm:$0xf] %v567
      %632 = vst [vmem:[%s221 + $0x2c] sm:$0xf] %v568
      %633 = vst [vmem:[%s221 + $0x30] sm:$0xf] %v569
      %634 = vst [vmem:[%s221 + $0x34] sm:$0xf] %v570
      %635 = vst [vmem:[%s221 + $0x38] sm:$0xf] %v571
      %636 = vst [vmem:[%s221 + $0x3c] sm:$0xf] %v572
      %637 = vst [vmem:[%s221 + $0x40] sm:$0xf] %v573
      %638 = vst [vmem:[%s221 + $0x44] sm:$0xf] %v574
      %639 = vst [vmem:[%s221 + $0x48] sm:$0xf] %v575
      %640 = vst [vmem:[%s221 + $0x4c] sm:$0xf] %v576
      %641 = vst [vmem:[%s221 + $0x50] sm:$0xf] %v577
      %642 = vst [vmem:[%s221 + $0x54] sm:$0xf] %v578
      %643 = vst [vmem:[%s221 + $0x58] sm:$0xf] %v579
      %644 = vst [vmem:[%s221 + $0x5c] sm:$0xf] %v580
      %645 = vst [vmem:[%s221 + $0x60] sm:$0xf] %v581
      %646 = vst [vmem:[%s221 + $0x64] sm:$0xf] %v582
      %647 = vst [vmem:[%s221 + $0x68] sm:$0xf] %v583
      %648 = vst [vmem:[%s221 + $0x6c] sm:$0xf] %v584
      %649 = vst [vmem:[%s221 + $0x70] sm:$0xf] %v585
      %650 = vst [vmem:[%s221 + $0x74] sm:$0xf] %v586
      %651 = vst [vmem:[%s221 + $0x78] sm:$0xf] %v587
      %652 = vst [vmem:[%s221 + $0x7c] sm:$0xf] %v588
      %s653 = smul.u32 32, %s15
      %p654 = scmp.lt.s32.totalorder %s653, 63
      %s655 = scalar_select %p654, %s653, 63
      %s656 = smul.addr %s655, 4
      %s657 = scalar_lea.vmem %s4, %s656
      // Predicated region
      $region37: #{forward.24} parent=35 // pred_check
        %p658 = pneg %p127
      $region38: #{forward.24} parent=35 // pred_check_branch
        %660 = sbr.rel (%p658) target = $region40
      $region39: #{forward.24} parent=35 // pred_region
        %s661 = smul.u32 32, %s15
      $region40: #{forward.24} parent=35 // pred_fallthru
        _
    $region36: #{forward.24} parent=5 // pred_fallthru
      _
    %p662 = scmp.le.s32.totalorder 2, %s10
    // Predicated region
    $region41: #{forward.24} parent=5 // pred_check
      %p663 = pneg %p662
    $region42: #{forward.24} parent=5 // pred_check_branch
      %665 = sbr.rel (%p663) target = $region44
    $region43: #{forward.24} parent=5 // pred_region
      %s666 = ssub.s32 %s10, 2
      // Predicated region
      $region45: #{forward.24} parent=43 // pred_check
        %p667 = pneg %p133
      $region46: #{forward.24} parent=43 // pred_check_branch
        %669 = sbr.rel (%p667) target = $region48
      $region47: #{forward.24} parent=43 // pred_region
        %s670 = smul.u32 32, %s16
        %p671 = scmp.lt.s32.totalorder %s670, 63
        %s672 = scalar_select %p671, %s670, 63
        %s673 = smul.addr %s672, 4
        %s674 = scalar_lea.vmem %s4, %s673
      $region48: #{forward.24} parent=43 // pred_fallthru
        _
    $region44: #{forward.24} parent=5 // pred_fallthru
      _
  $region6: #{forward.24} parent=0 // loop_footer
    %s14 = sadd.s32 1, %s10
  $region7: #{forward.24} parent=0 // loop_footer_branch
    %9 = sbr.rel target = $region3
  $region8: #{forward.24} parent=0 // loop_exit
    _

// kernel: forward.27
$region0: #{forward.27}
  #allocation0 [shape = 'u32[]', space=smem, size = 0x4, offset = 0x4, fixed_abs, tag = 'smem constant byte address 0x4 - core index']
  #allocation1 [shape = 'u32[144,128]{1,0:T(1,128)}', space=vmem, size = 0x12000, scoped, tag = 'internal scratch']
  %s0 = inlined_call_operand.vmem [shape: bf16[128,128], index: 0, kind: input, shape index: {}]
  %s1 = inlined_call_operand.vmem [shape: bf16[128,128], index: 1, kind: input, shape index: {}]
  %s2 = inlined_call_operand.vmem [shape: bf16[128,128], index: 2, kind: output, shape index: {0}]
  %s3 = inlined_call_operand.vmem [shape: f32[2,2,128], index: 3, kind: output, shape index: {1}]
  %4 = xla_tuple %s2, %s3
  %s5 = sld [smem:[#allocation0]]
  $region49: #{forward.27} parent=0
    _
  %s7 = ssub.s32 1, %s5
  %s8 = scalar_select 0, %s7, %s5
  loop: start=0, step=1, limit=4
  $region2: #{forward.27} parent=0 // loop_pre_header
    _
  $region3: #{forward.27} parent=0 // loop_header
    %s10 = sphi 0, %s14
    %p11 = scmp.ge.s32.totalorder %s10, 4
    %s20 = sphi 0, %s22
    %s23 = sphi 0, %s20
    %s24 = sphi 0, %s23
    %s40 = sphi 0, %s24
    %s44 = sphi 0, %s44
    %s46 = sphi 0, %s44
    %s47 = sphi 0, %s46
    %s61 = sphi 0, %s47
    %s67 = sphi 0, %s69
    %s70 = sphi 0, %s67
    %s71 = sphi 0, %s70
    %s87 = sphi 0, %s71
    %s93 = sphi 0, %s95
    %s96 = sphi 0, %s93
    %s97 = sphi 0, %s96
    %s113 = sphi 0, %s97
  $region4: #{forward.27} parent=0 // loop_header_branch
    %13 = sbr.rel (%p11) target = $region8
  $region5: #{forward.27} parent=0 // loop_body
    %s15 = ssub.s32 %s10, 1
    %s16 = ssub.s32 %s10, 2
    %s17 = sadd.s32 %s10, 1
    %s18 = ssub.s32 %s10, %s17
    %p19 = scmp.eq.s32.totalorder %s18, 0
    %s21 = sadd.s32 %s20, 1
    %s22 = scalar_select %p19, %s20, %s21
    %p25 = pneg %p19
    %p26 = scmp.eq.s32.totalorder %s10, 1
    %p27 = por %p25, %p26
    %p28 = scmp.ne.s32.totalorder %s20, %s23
    %p29 = scmp.eq.s32.totalorder %s10, 0
    %p30 = por %p28, %p29
    %p31 = scmp.ne.s32.totalorder %s20, %s23
    %p32 = scmp.eq.s32.totalorder %s15, 1
    %p33 = por %p31, %p32
    %p34 = scmp.ne.s32.totalorder %s23, %s24
    %p35 = scmp.eq.s32.totalorder %s15, 0
    %p36 = por %p34, %p35
    %p37 = scmp.ne.s32.totalorder %s23, %s24
    %p38 = scmp.eq.s32.totalorder %s16, 1
    %p39 = por %p37, %p38
    %p41 = scmp.ne.s32.totalorder %s24, %s40
    %p42 = scmp.eq.s32.totalorder %s16, 0
    %p43 = por %p41, %p42
    %s45 = sadd.s32 %s44, 1
    %p48 = scmp.eq.s32.totalorder %s10, 1
    %p49 = scmp.ne.s32.totalorder %s44, %s46
    %p50 = scmp.eq.s32.totalorder %s10, 0
    %p51 = por %p49, %p50
    %p52 = scmp.ne.s32.totalorder %s44, %s46
    %p53 = scmp.eq.s32.totalorder %s15, 1
    %p54 = por %p52, %p53
    %p55 = scmp.ne.s32.totalorder %s46, %s47
    %p56 = scmp.eq.s32.totalorder %s15, 0
    %p57 = por %p55, %p56
    %p58 = scmp.ne.s32.totalorder %s46, %s47
    %p59 = scmp.eq.s32.totalorder %s16, 1
    %p60 = por %p58, %p59
    %p62 = scmp.ne.s32.totalorder %s47, %s61
    %p63 = scmp.eq.s32.totalorder %s16, 0
    %p64 = por %p62, %p63
    %s65 = ssub.s32 %s10, %s17
    %p66 = scmp.eq.s32.totalorder %s65, 0
    %s68 = sadd.s32 %s67, 1
    %s69 = scalar_select %p66, %s67, %s68
    %p72 = pneg %p66
    %p73 = scmp.eq.s32.totalorder %s10, 1
    %p74 = por %p72, %p73
    %p75 = scmp.ne.s32.totalorder %s67, %s70
    %p76 = scmp.eq.s32.totalorder %s10, 0
    %p77 = por %p75, %p76
    %p78 = scmp.ne.s32.totalorder %s67, %s70
    %p79 = scmp.eq.s32.totalorder %s15, 1
    %p80 = por %p78, %p79
    %p81 = scmp.ne.s32.totalorder %s70, %s71
    %p82 = scmp.eq.s32.totalorder %s15, 0
    %p83 = por %p81, %p82
    %p84 = scmp.ne.s32.totalorder %s70, %s71
    %p85 = scmp.eq.s32.totalorder %s16, 1
    %p86 = por %p84, %p85
    %p88 = scmp.ne.s32.totalorder %s71, %s87
    %p89 = scmp.eq.s32.totalorder %s16, 0
    %p90 = por %p88, %p89
    %s91 = ssub.s32 %s10, %s17
    %p92 = scmp.eq.s32.totalorder %s91, 0
    %s94 = sadd.s32 %s93, 1
    %s95 = scalar_select %p92, %s93, %s94
    %p98 = pneg %p92
    %p99 = scmp.eq.s32.totalorder %s10, 1
    %p100 = por %p98, %p99
    %p101 = scmp.ne.s32.totalorder %s93, %s96
    %p102 = scmp.eq.s32.totalorder %s10, 0
    %p103 = por %p101, %p102
    %p104 = scmp.ne.s32.totalorder %s93, %s96
    %p105 = scmp.eq.s32.totalorder %s15, 1
    %p106 = por %p104, %p105
    %p107 = scmp.ne.s32.totalorder %s96, %s97
    %p108 = scmp.eq.s32.totalorder %s15, 0
    %p109 = por %p107, %p108
    %p110 = scmp.ne.s32.totalorder %s96, %s97
    %p111 = scmp.eq.s32.totalorder %s16, 1
    %p112 = por %p110, %p111
    %p114 = scmp.ne.s32.totalorder %s97, %s113
    %p115 = scmp.eq.s32.totalorder %s16, 0
    %p116 = por %p114, %p115
    %p117 = scmp.le.s32.totalorder 1, %s10
    %p118 = scmp.lt.s32.totalorder %s10, 3
    %p119 = pnand %p117, %p118
    %p120 = pneg %p119
    // Predicated region
    $region9: #{forward.27} parent=5 // pred_check
      _
    $region10: #{forward.27} parent=5 // pred_check_branch
      %122 = sbr.rel (%p119) target = $region12
    $region11: #{forward.27} parent=5 // pred_region
      %s123 = ssub.s32 %s10, 1
      // Predicated region
      $region13: #{forward.27} parent=11 // pred_check
        %p124 = pneg %p57
      $region14: #{forward.27} parent=11 // pred_check_branch
        %126 = sbr.rel (%p124) target = $region16
      $region15: #{forward.27} parent=11 // pred_region
        _
      $region16: #{forward.27} parent=11 // pred_fallthru
        _
    $region12: #{forward.27} parent=5 // pred_fallthru
      _
    %p127 = scmp.lt.s32.totalorder %s10, 2
    // Predicated region
    $region17: #{forward.27} parent=5 // pred_check
      %p128 = pneg %p127
    $region18: #{forward.27} parent=5 // pred_check_branch
      %130 = sbr.rel (%p128) target = $region20
    $region19: #{forward.27} parent=5 // pred_region
      // Predicated region
      $region21: #{forward.27} parent=19 // pred_check
        %p131 = pneg %p30
      $region22: #{forward.27} parent=19 // pred_check_branch
        %133 = sbr.rel (%p131) target = $region24
      $region23: #{forward.27} parent=19 // pred_region
        %s134 = smul.u32 8, %s10
        %p135 = scmp.lt.s32.totalorder %s134, 15
        %s136 = scalar_select %p135, %s134, 15
        %s137 = smul.addr %s136, 4
        %s138 = scalar_lea.vmem %s0, %s137
        %s139 = smul.u32 8, %s10
      $region24: #{forward.27} parent=19 // pred_fallthru
        _
    $region20: #{forward.27} parent=5 // pred_fallthru
      _
    %p140 = scmp.le.s32.totalorder 1, %s10
    %p141 = scmp.lt.s32.totalorder %s10, 3
    %p142 = pnand %p140, %p141
    %p143 = pneg %p142
    // Predicated region
    $region25: #{forward.27} parent=5 // pred_check
      _
    $region26: #{forward.27} parent=5 // pred_check_branch
      %145 = sbr.rel (%p142) target = $region28
    $region27: #{forward.27} parent=5 // pred_region
      %s146 = ssub.s32 %s10, 1
      %s147 = smul.u32 8, %s15
      %p148 = scmp.lt.s32.totalorder %s147, 15
      %s149 = scalar_select %p148, %s147, 15
      %s150 = smul.addr %s149, 4
      %s151 = scalar_lea.vmem %s0, %s150
      %p152 = pneg %p36
      %p153 = pneg %p33
      %p154 = pneg %p57
      %p155 = pneg %p54
      %p156 = pneg %p83
      %p157 = pneg %p80
      %s158 = smul.u32 8, %s15
      %p159 = scmp.lt.s32.totalorder %s158, 15
      %s160 = scalar_select %p159, %s158, 15
      %s161 = smul.addr %s160, 4
      %s162 = scalar_lea.vmem %s2, %s161
      %p163 = pneg %p109
      %p164 = pneg %p106
      %p165 = scmp.lt.s32.totalorder %s15, 1
      %s166 = scalar_select %p165, %s15, 1
      %s167 = smul.addr %s166, 2
      %s168 = scalar_lea.vmem %s3, %s167
      %s169 = smul.u32 8, %s15
      %p170 = scmp.lt.s32.totalorder %s169, 15
      %s171 = scalar_select %p170, %s169, 15
      %s172 = smul.addr %s171, 4
      %s173 = scalar_lea.vmem %s0, %s172
      %s174 = smul.u32 8, %s15
      %s175 = smul.u32 8, %s15
      %p176 = scmp.lt.s32.totalorder %s175, 15
      %s177 = scalar_select %p176, %s175, 15
      %s178 = smul.addr %s177, 4
      %s179 = scalar_lea.vmem %s2, %s178
      %s180 = smul.u32 8, %s15
      %p181 = scmp.lt.s32.totalorder %s15, 1
      %s182 = scalar_select %p181, %s15, 1
      %s183 = smul.addr %s182, 2
      %s184 = scalar_lea.vmem %s3, %s183
      %v186 = vld [vmem:[%s173] sm:$0xf]
      %v187 = vld [vmem:[%s173 + $0x4] sm:$0xf]
      %v188 = vld [vmem:[%s173 + $0x8] sm:$0xf]
      %v189 = vld [vmem:[%s173 + $0xc] sm:$0xf]
      %v190 = vld [vmem:[%s173 + $0x10] sm:$0xf]
      %v191 = vld [vmem:[%s173 + $0x14] sm:$0xf]
      %v192 = vld [vmem:[%s173 + $0x18] sm:$0xf]
      %v193 = vld [vmem:[%s173 + $0x1c] sm:$0xf]
      %v194 = vld [vmem:[%s1] sm:$0xf]
      %v195 = vld [vmem:[%s1 + $0x4] sm:$0xf]
      %v196 = vld [vmem:[%s1 + $0x8] sm:$0xf]
      %v197 = vld [vmem:[%s1 + $0xc] sm:$0xf]
      %v198 = vld [vmem:[%s1 + $0x10] sm:$0xf]
      %v199 = vld [vmem:[%s1 + $0x14] sm:$0xf]
      %v200 = vld [vmem:[%s1 + $0x18] sm:$0xf]
      %v201 = vld [vmem:[%s1 + $0x1c] sm:$0xf]
      %v202 = vld [vmem:[%s1 + $0x20] sm:$0xf]
      %v203 = vld [vmem:[%s1 + $0x24] sm:$0xf]
      %v204 = vld [vmem:[%s1 + $0x28] sm:$0xf]
      %v205 = vld [vmem:[%s1 + $0x2c] sm:$0xf]
      %v206 = vld [vmem:[%s1 + $0x30] sm:$0xf]
      %v207 = vld [vmem:[%s1 + $0x34] sm:$0xf]
      %v208 = vld [vmem:[%s1 + $0x38] sm:$0xf]
      %v209 = vld [vmem:[%s1 + $0x3c] sm:$0xf]
      %v218 = vunpack.c.l.b16 %v186
      %v219 = vunpack.c.l.b16 %v187
      %v220 = vunpack.c.l.b16 %v188
      %v221 = vunpack.c.l.b16 %v189
      %v222 = vunpack.c.l.b16 %v190
      %v223 = vunpack.c.l.b16 %v191
      %v224 = vunpack.c.l.b16 %v192
      %v225 = vunpack.c.l.b16 %v193
      %v226 = vpack.c.b16 %v219, %v218
      %v227 = vpack.c.b16 %v221, %v220
      %v228 = vpack.c.b16 %v223, %v222
      %v229 = vpack.c.b16 %v225, %v224
      %v250 = vunpack.c.l.b16 %v194
      %v251 = vunpack.c.l.b16 %v195
      %v252 = vunpack.c.l.b16 %v196
      %v253 = vunpack.c.l.b16 %v197
      %v254 = vunpack.c.l.b16 %v198
      %v255 = vunpack.c.l.b16 %v199
      %v256 = vunpack.c.l.b16 %v200
      %v257 = vunpack.c.l.b16 %v201
      %v258 = vunpack.c.l.b16 %v202
      %v259 = vunpack.c.l.b16 %v203
      %v260 = vunpack.c.l.b16 %v204
      %v261 = vunpack.c.l.b16 %v205
      %v262 = vunpack.c.l.b16 %v206
      %v263 = vunpack.c.l.b16 %v207
      %v264 = vunpack.c.l.b16 %v208
      %v265 = vunpack.c.l.b16 %v209
      %v266 = vpack.c.b16 %v251, %v250
      %v267 = vpack.c.b16 %v253, %v252
      %v268 = vpack.c.b16 %v255, %v254
      %v269 = vpack.c.b16 %v257, %v256
      %v270 = vpack.c.b16 %v259, %v258
      %v271 = vpack.c.b16 %v261, %v260
      %v272 = vpack.c.b16 %v263, %v262
      %v273 = vpack.c.b16 %v265, %v264
      %282 = vmatprep.subr.bf16.mxu0 0
      %283 = vmatpush1.bf16.msra.mxu0 %v266
      %284 = vmatprep.subr.bf16.mxu0 0
      %285 = vmatpush1.bf16.msra.mxu0 %v267
      %286 = vmatprep.subr.bf16.mxu0 0
      %287 = vmatpush1.bf16.msra.mxu0 %v268
      %288 = vmatprep.subr.bf16.mxu0 0
      %289 = vmatpush1.bf16.msra.mxu0 %v269
      %290 = vmatprep.subr.bf16.mxu0 0
      %291 = vmatpush1.bf16.msra.mxu0 %v270
      %292 = vmatprep.subr.bf16.mxu0 0
      %293 = vmatpush1.bf16.msra.mxu0 %v271
      %294 = vmatprep.subr.bf16.mxu0 0
      %295 = vmatpush1.bf16.msra.mxu0 %v272
      %296 = vmatprep.subr.bf16.mxu0 0
      %297 = vmatpush1.bf16.msra.mxu0 %v273
      %298 = vmatprep.subr.bf16.mxu0 0
      %299 = vmatpush1.bf16.msra.mxu0 0
      %300 = vmatprep.subr.bf16.mxu0 0
      %301 = vmatpush1.bf16.msra.mxu0 0
      %302 = vmatprep.subr.bf16.mxu0 0
      %303 = vmatpush1.bf16.msra.mxu0 0
      %304 = vmatprep.subr.bf16.mxu0 0
      %305 = vmatpush1.bf16.msra.mxu0 0
      %306 = vmatprep.subr.bf16.mxu0 0
      %307 = vmatpush1.bf16.msra.mxu0 0
      %308 = vmatprep.subr.bf16.mxu0 0
      %309 = vmatpush1.bf16.msra.mxu0 0
      %310 = vmatprep.subr.bf16.mxu0 0
      %311 = vmatpush1.bf16.msra.mxu0 0
      %312 = vmatprep.subr.bf16.mxu0 0
      %313 = vmatpush1.bf16.msra.mxu0 0
      %314 = vmatprep.mubr.bf16.mxu0 0
      %315 = vmatmul.mubr.bf16.gmra.mrb[0].mxu0 %v226
      %v316 = vpop.f32.mrb[0].mxu0
      %v317 = vadd.f32 0.0, %v316
      %v318 = vpop.f32.mrb[0].mxu0
      %v319 = vpop.f32.mrb[0].mxu0
      %v320 = vadd.f32 0.0, %v319
      %v321 = vpop.f32.mrb[0].mxu0
      %322 = vmatprep.mubr.bf16.mxu0 0
      %323 = vmatmul.mubr.bf16.gmra.mrb[0].mxu0 %v227
      %v324 = vpop.f32.mrb[0].mxu0
      %v325 = vadd.f32 0.0, %v324
      %v326 = vpop.f32.mrb[0].mxu0
      %v327 = vpop.f32.mrb[0].mxu0
      %v328 = vadd.f32 0.0, %v327
      %v329 = vpop.f32.mrb[0].mxu0
      %330 = vmatprep.mubr.bf16.mxu0 0
      %331 = vmatmul.mubr.bf16.gmra.mrb[0].mxu0 %v228
      %v332 = vpop.f32.mrb[0].mxu0
      %v333 = vadd.f32 0.0, %v332
      %v334 = vpop.f32.mrb[0].mxu0
      %v335 = vpop.f32.mrb[0].mxu0
      %v336 = vadd.f32 0.0, %v335
      %v337 = vpop.f32.mrb[0].mxu0
      %338 = vmatprep.mubr.bf16.mxu0 0
      %339 = vmatmul.mubr.bf16.gmra.mrb[0].mxu0 %v229
      %v340 = vpop.f32.mrb[0].mxu0
      %v341 = vadd.f32 0.0, %v340
      %v342 = vpop.f32.mrb[0].mxu0
      %v343 = vpop.f32.mrb[0].mxu0
      %v344 = vadd.f32 0.0, %v343
      %v345 = vpop.f32.mrb[0].mxu0
      %346 = vdwg.mxu0
      %v347 = vpack.c.bf16 %v320, %v317
      %v348 = vpack.c.bf16 %v328, %v325
      %v349 = vpack.c.bf16 %v336, %v333
      %v350 = vpack.c.bf16 %v344, %v341
      %v355 = vunpack.c.l.b16 %v347
      %v356 = vunpack.c.h.b16 %v347
      %v357 = vunpack.c.l.b16 %v348
      %v358 = vunpack.c.h.b16 %v348
      %v359 = vunpack.c.l.b16 %v349
      %v360 = vunpack.c.h.b16 %v349
      %v361 = vunpack.c.l.b16 %v350
      %v362 = vunpack.c.h.b16 %v350
      %v363 = vpack.c.b16 %v355, %v355
      %v364 = vpack.c.b16 %v356, %v356
      %v365 = vpack.c.b16 %v357, %v357
      %v366 = vpack.c.b16 %v358, %v358
      %v367 = vpack.c.b16 %v359, %v359
      %v368 = vpack.c.b16 %v360, %v360
      %v369 = vpack.c.b16 %v361, %v361
      %v370 = vpack.c.b16 %v362, %v362
      %379 = vst [vmem:[%s179] sm:$0xf] %v363
      %380 = vst [vmem:[%s179 + $0x4] sm:$0xf] %v364
      %381 = vst [vmem:[%s179 + $0x8] sm:$0xf] %v365
      %382 = vst [vmem:[%s179 + $0xc] sm:$0xf] %v366
      %383 = vst [vmem:[%s179 + $0x10] sm:$0xf] %v367
      %384 = vst [vmem:[%s179 + $0x14] sm:$0xf] %v368
      %385 = vst [vmem:[%s179 + $0x18] sm:$0xf] %v369
      %386 = vst [vmem:[%s179 + $0x1c] sm:$0xf] %v370
      %v387 = vadd.f32 %v317, %v320
      %v388 = vadd.f32 %v387, %v325
      %v389 = vadd.f32 %v388, %v328
      %v390 = vadd.f32 %v389, %v333
      %v391 = vadd.f32 %v390, %v336
      %v392 = vadd.f32 %v391, %v341
      %v393 = vadd.f32 %v392, %v344
      %v394 = vrot.slane %v393, 4
      %v395 = vadd.f32 %v393, %v394
      %v396 = vrot.slane %v395, 2
      %v397 = vadd.f32 %v395, %v396
      %v398 = vrot.slane %v397, 1
      %v399 = vadd.f32 %v397, %v398
      %v400 = vmul.f32 %v317, %v317
      %v401 = vmul.f32 %v320, %v320
      %v402 = vmul.f32 %v325, %v325
      %v403 = vmul.f32 %v328, %v328
      %v404 = vmul.f32 %v333, %v333
      %v405 = vmul.f32 %v336, %v336
      %v406 = vmul.f32 %v341, %v341
      %v407 = vmul.f32 %v344, %v344
      %v408 = vadd.f32 %v400, %v401
      %v409 = vadd.f32 %v408, %v402
      %v410 = vadd.f32 %v409, %v403
      %v411 = vadd.f32 %v410, %v404
      %v412 = vadd.f32 %v411, %v405
      %v413 = vadd.f32 %v412, %v406
      %v414 = vadd.f32 %v413, %v407
      %v415 = vrot.slane %v414, 4
      %v416 = vadd.f32 %v414, %v415
      %v417 = vrot.slane %v416, 2
      %v418 = vadd.f32 %v416, %v417
      %v419 = vrot.slane %v418, 1
      %v420 = vadd.f32 %v418, %v419
      %vm421 = vcmask 1040384
      %v422 = vsel %vm421, %v399, %v420
      %423 = vst [vmem:[%s184] sm:$0x3] %v422
      %s424 = smul.u32 8, %s15
      %p425 = scmp.lt.s32.totalorder %s424, 15
      %s426 = scalar_select %p425, %s424, 15
      %s427 = smul.addr %s426, 4
      %s428 = scalar_lea.vmem %s2, %s427
      %p429 = scmp.lt.s32.totalorder %s15, 1
      %s430 = scalar_select %p429, %s15, 1
      %s431 = smul.addr %s430, 2
      %s432 = scalar_lea.vmem %s3, %s431
      // Predicated region
      $region29: #{forward.27} parent=27 // pred_check
        %p433 = pneg %p80
      $region30: #{forward.27} parent=27 // pred_check_branch
        %435 = sbr.rel (%p433) target = $region32
      $region31: #{forward.27} parent=27 // pred_region
        %s436 = smul.u32 8, %s15
      $region32: #{forward.27} parent=27 // pred_fallthru
        _
      // Predicated region
      $region33: #{forward.27} parent=27 // pred_check
        %p437 = pneg %p106
      $region34: #{forward.27} parent=27 // pred_check_branch
        %439 = sbr.rel (%p437) target = $region36
      $region35: #{forward.27} parent=27 // pred_region
        _
      $region36: #{forward.27} parent=27 // pred_fallthru
        _
    $region28: #{forward.27} parent=5 // pred_fallthru
      _
    %p440 = scmp.le.s32.totalorder 2, %s10
    // Predicated region
    $region37: #{forward.27} parent=5 // pred_check
      %p441 = pneg %p440
    $region38: #{forward.27} parent=5 // pred_check_branch
      %443 = sbr.rel (%p441) target = $region40
    $region39: #{forward.27} parent=5 // pred_region
      %s444 = ssub.s32 %s10, 2
      // Predicated region
      $region41: #{forward.27} parent=39 // pred_check
        %p445 = pneg %p86
      $region42: #{forward.27} parent=39 // pred_check_branch
        %447 = sbr.rel (%p445) target = $region44
      $region43: #{forward.27} parent=39 // pred_region
        %s448 = smul.u32 8, %s16
        %p449 = scmp.lt.s32.totalorder %s448, 15
        %s450 = scalar_select %p449, %s448, 15
        %s451 = smul.addr %s450, 4
        %s452 = scalar_lea.vmem %s2, %s451
      $region44: #{forward.27} parent=39 // pred_fallthru
        _
      // Predicated region
      $region45: #{forward.27} parent=39 // pred_check
        %p453 = pneg %p112
      $region46: #{forward.27} parent=39 // pred_check_branch
        %455 = sbr.rel (%p453) target = $region48
      $region47: #{forward.27} parent=39 // pred_region
        %p456 = scmp.lt.s32.totalorder %s16, 1
        %s457 = scalar_select %p456, %s16, 1
        %s458 = smul.addr %s457, 2
        %s459 = scalar_lea.vmem %s3, %s458
      $region48: #{forward.27} parent=39 // pred_fallthru
        _
    $region40: #{forward.27} parent=5 // pred_fallthru
      _
  $region6: #{forward.27} parent=0 // loop_footer
    %s14 = sadd.s32 1, %s10
  $region7: #{forward.27} parent=0 // loop_footer_branch
    %9 = sbr.rel target = $region3
  $region8: #{forward.27} parent=0 // loop_exit
    _

// kernel: forward.25
$region0: #{forward.25}
  #allocation0 [shape = 'u32[]', space=smem, size = 0x4, offset = 0x4, fixed_abs, tag = 'smem constant byte address 0x4 - core index']
  #allocation1 [shape = 'u32[144,128]{1,0:T(1,128)}', space=vmem, size = 0x12000, scoped, tag = 'internal scratch']
  %s0 = inlined_call_operand.vmem [shape: bf16[128,256], index: 0, kind: input, shape index: {}]
  %s1 = inlined_call_operand.vmem [shape: bf16[256,128], index: 1, kind: input, shape index: {}]
  %s2 = inlined_call_operand.vmem [shape: bf16[128,128], index: 2, kind: output, shape index: {0}]
  %s3 = inlined_call_operand.vmem [shape: f32[2,2,128], index: 3, kind: output, shape index: {1}]
  %4 = xla_tuple %s2, %s3
  %s5 = sld [smem:[#allocation0]]
  $region49: #{forward.25} parent=0
    _
  %s7 = ssub.s32 1, %s5
  %s8 = scalar_select 0, %s7, %s5
  loop: start=0, step=1, limit=4
  $region2: #{forward.25} parent=0 // loop_pre_header
    _
  $region3: #{forward.25} parent=0 // loop_header
    %s10 = sphi 0, %s14
    %p11 = scmp.ge.s32.totalorder %s10, 4
    %s20 = sphi 0, %s22
    %s23 = sphi 0, %s20
    %s24 = sphi 0, %s23
    %s40 = sphi 0, %s24
    %s44 = sphi 0, %s44
    %s46 = sphi 0, %s44
    %s47 = sphi 0, %s46
    %s61 = sphi 0, %s47
    %s67 = sphi 0, %s69
    %s70 = sphi 0, %s67
    %s71 = sphi 0, %s70
    %s87 = sphi 0, %s71
    %s93 = sphi 0, %s95
    %s96 = sphi 0, %s93
    %s97 = sphi 0, %s96
    %s113 = sphi 0, %s97
  $region4: #{forward.25} parent=0 // loop_header_branch
    %13 = sbr.rel (%p11) target = $region8
  $region5: #{forward.25} parent=0 // loop_body
    %s15 = ssub.s32 %s10, 1
    %s16 = ssub.s32 %s10, 2
    %s17 = sadd.s32 %s10, 1
    %s18 = ssub.s32 %s10, %s17
    %p19 = scmp.eq.s32.totalorder %s18, 0
    %s21 = sadd.s32 %s20, 1
    %s22 = scalar_select %p19, %s20, %s21
    %p25 = pneg %p19
    %p26 = scmp.eq.s32.totalorder %s10, 1
    %p27 = por %p25, %p26
    %p28 = scmp.ne.s32.totalorder %s20, %s23
    %p29 = scmp.eq.s32.totalorder %s10, 0
    %p30 = por %p28, %p29
    %p31 = scmp.ne.s32.totalorder %s20, %s23
    %p32 = scmp.eq.s32.totalorder %s15, 1
    %p33 = por %p31, %p32
    %p34 = scmp.ne.s32.totalorder %s23, %s24
    %p35 = scmp.eq.s32.totalorder %s15, 0
    %p36 = por %p34, %p35
    %p37 = scmp.ne.s32.totalorder %s23, %s24
    %p38 = scmp.eq.s32.totalorder %s16, 1
    %p39 = por %p37, %p38
    %p41 = scmp.ne.s32.totalorder %s24, %s40
    %p42 = scmp.eq.s32.totalorder %s16, 0
    %p43 = por %p41, %p42
    %s45 = sadd.s32 %s44, 1
    %p48 = scmp.eq.s32.totalorder %s10, 1
    %p49 = scmp.ne.s32.totalorder %s44, %s46
    %p50 = scmp.eq.s32.totalorder %s10, 0
    %p51 = por %p49, %p50
    %p52 = scmp.ne.s32.totalorder %s44, %s46
    %p53 = scmp.eq.s32.totalorder %s15, 1
    %p54 = por %p52, %p53
    %p55 = scmp.ne.s32.totalorder %s46, %s47
    %p56 = scmp.eq.s32.totalorder %s15, 0
    %p57 = por %p55, %p56
    %p58 = scmp.ne.s32.totalorder %s46, %s47
    %p59 = scmp.eq.s32.totalorder %s16, 1
    %p60 = por %p58, %p59
    %p62 = scmp.ne.s32.totalorder %s47, %s61
    %p63 = scmp.eq.s32.totalorder %s16, 0
    %p64 = por %p62, %p63
    %s65 = ssub.s32 %s10, %s17
    %p66 = scmp.eq.s32.totalorder %s65, 0
    %s68 = sadd.s32 %s67, 1
    %s69 = scalar_select %p66, %s67, %s68
    %p72 = pneg %p66
    %p73 = scmp.eq.s32.totalorder %s10, 1
    %p74 = por %p72, %p73
    %p75 = scmp.ne.s32.totalorder %s67, %s70
    %p76 = scmp.eq.s32.totalorder %s10, 0
    %p77 = por %p75, %p76
    %p78 = scmp.ne.s32.totalorder %s67, %s70
    %p79 = scmp.eq.s32.totalorder %s15, 1
    %p80 = por %p78, %p79
    %p81 = scmp.ne.s32.totalorder %s70, %s71
    %p82 = scmp.eq.s32.totalorder %s15, 0
    %p83 = por %p81, %p82
    %p84 = scmp.ne.s32.totalorder %s70, %s71
    %p85 = scmp.eq.s32.totalorder %s16, 1
    %p86 = por %p84, %p85
    %p88 = scmp.ne.s32.totalorder %s71, %s87
    %p89 = scmp.eq.s32.totalorder %s16, 0
    %p90 = por %p88, %p89
    %s91 = ssub.s32 %s10, %s17
    %p92 = scmp.eq.s32.totalorder %s91, 0
    %s94 = sadd.s32 %s93, 1
    %s95 = scalar_select %p92, %s93, %s94
    %p98 = pneg %p92
    %p99 = scmp.eq.s32.totalorder %s10, 1
    %p100 = por %p98, %p99
    %p101 = scmp.ne.s32.totalorder %s93, %s96
    %p102 = scmp.eq.s32.totalorder %s10, 0
    %p103 = por %p101, %p102
    %p104 = scmp.ne.s32.totalorder %s93, %s96
    %p105 = scmp.eq.s32.totalorder %s15, 1
    %p106 = por %p104, %p105
    %p107 = scmp.ne.s32.totalorder %s96, %s97
    %p108 = scmp.eq.s32.totalorder %s15, 0
    %p109 = por %p107, %p108
    %p110 = scmp.ne.s32.totalorder %s96, %s97
    %p111 = scmp.eq.s32.totalorder %s16, 1
    %p112 = por %p110, %p111
    %p114 = scmp.ne.s32.totalorder %s97, %s113
    %p115 = scmp.eq.s32.totalorder %s16, 0
    %p116 = por %p114, %p115
    %p117 = scmp.le.s32.totalorder 1, %s10
    %p118 = scmp.lt.s32.totalorder %s10, 3
    %p119 = pnand %p117, %p118
    %p120 = pneg %p119
    // Predicated region
    $region9: #{forward.25} parent=5 // pred_check
      _
    $region10: #{forward.25} parent=5 // pred_check_branch
      %122 = sbr.rel (%p119) target = $region12
    $region11: #{forward.25} parent=5 // pred_region
      %s123 = ssub.s32 %s10, 1
      // Predicated region
      $region13: #{forward.25} parent=11 // pred_check
        %p124 = pneg %p57
      $region14: #{forward.25} parent=11 // pred_check_branch
        %126 = sbr.rel (%p124) target = $region16
      $region15: #{forward.25} parent=11 // pred_region
        _
      $region16: #{forward.25} parent=11 // pred_fallthru
        _
    $region12: #{forward.25} parent=5 // pred_fallthru
      _
    %p127 = scmp.lt.s32.totalorder %s10, 2
    // Predicated region
    $region17: #{forward.25} parent=5 // pred_check
      %p128 = pneg %p127
    $region18: #{forward.25} parent=5 // pred_check_branch
      %130 = sbr.rel (%p128) target = $region20
    $region19: #{forward.25} parent=5 // pred_region
      // Predicated region
      $region21: #{forward.25} parent=19 // pred_check
        %p131 = pneg %p30
      $region22: #{forward.25} parent=19 // pred_check_branch
        %133 = sbr.rel (%p131) target = $region24
      $region23: #{forward.25} parent=19 // pred_region
        %s134 = smul.u32 8, %s10
        %p135 = scmp.lt.s32.totalorder %s134, 15
        %s136 = scalar_select %p135, %s134, 15
        %s137 = smul.addr %s136, 2
        %s138 = smul.addr %s137, 4
        %s139 = scalar_lea.vmem %s0, %s138
        %s140 = smul.u32 8, %s10
      $region24: #{forward.25} parent=19 // pred_fallthru
        _
    $region20: #{forward.25} parent=5 // pred_fallthru
      _
    %p141 = scmp.le.s32.totalorder 1, %s10
    %p142 = scmp.lt.s32.totalorder %s10, 3
    %p143 = pnand %p141, %p142
    %p144 = pneg %p143
    // Predicated region
    $region25: #{forward.25} parent=5 // pred_check
      _
    $region26: #{forward.25} parent=5 // pred_check_branch
      %146 = sbr.rel (%p143) target = $region28
    $region27: #{forward.25} parent=5 // pred_region
      %s147 = ssub.s32 %s10, 1
      %s148 = smul.u32 8, %s15
      %p149 = scmp.lt.s32.totalorder %s148, 15
      %s150 = scalar_select %p149, %s148, 15
      %s151 = smul.addr %s150, 2
      %s152 = smul.addr %s151, 4
      %s153 = scalar_lea.vmem %s0, %s152
      %p154 = pneg %p36
      %p155 = pneg %p33
      %p156 = pneg %p57
      %p157 = pneg %p54
      %p158 = pneg %p83
      %p159 = pneg %p80
      %s160 = smul.u32 8, %s15
      %p161 = scmp.lt.s32.totalorder %s160, 15
      %s162 = scalar_select %p161, %s160, 15
      %s163 = smul.addr %s162, 4
      %s164 = scalar_lea.vmem %s2, %s163
      %p165 = pneg %p109
      %p166 = pneg %p106
      %p167 = scmp.lt.s32.totalorder %s15, 1
      %s168 = scalar_select %p167, %s15, 1
      %s169 = smul.addr %s168, 2
      %s170 = scalar_lea.vmem %s3, %s169
      %s171 = smul.u32 8, %s15
      %p172 = scmp.lt.s32.totalorder %s171, 15
      %s173 = scalar_select %p172, %s171, 15
      %s174 = smul.addr %s173, 2
      %s175 = smul.addr %s174, 4
      %s176 = scalar_lea.vmem %s0, %s175
      %s177 = smul.u32 8, %s15
      %s178 = smul.u32 8, %s15
      %p179 = scmp.lt.s32.totalorder %s178, 15
      %s180 = scalar_select %p179, %s178, 15
      %s181 = smul.addr %s180, 4
      %s182 = scalar_lea.vmem %s2, %s181
      %s183 = smul.u32 8, %s15
      %p184 = scmp.lt.s32.totalorder %s15, 1
      %s185 = scalar_select %p184, %s15, 1
      %s186 = smul.addr %s185, 2
      %s187 = scalar_lea.vmem %s3, %s186
      %v189 = vld [vmem:[%s176] sm:$0xff]
      %v190 = vld [vmem:[%s176 + $0x8] sm:$0xff]
      %v191 = vld [vmem:[%s176 + $0x10] sm:$0xff]
      %v192 = vld [vmem:[%s176 + $0x18] sm:$0xff]
      %v193 = vld [vmem:[%s176 + $0x20] sm:$0xff]
      %v194 = vld [vmem:[%s176 + $0x28] sm:$0xff]
      %v195 = vld [vmem:[%s176 + $0x30] sm:$0xff]
      %v196 = vld [vmem:[%s176 + $0x38] sm:$0xff]
      %v197 = vld [vmem:[%s1] sm:$0xf]
      %v198 = vld [vmem:[%s1 + $0x4] sm:$0xf]
      %v199 = vld [vmem:[%s1 + $0x8] sm:$0xf]
      %v200 = vld [vmem:[%s1 + $0xc] sm:$0xf]
      %v201 = vld [vmem:[%s1 + $0x10] sm:$0xf]
      %v202 = vld [vmem:[%s1 + $0x14] sm:$0xf]
      %v203 = vld [vmem:[%s1 + $0x18] sm:$0xf]
      %v204 = vld [vmem:[%s1 + $0x1c] sm:$0xf]
      %v205 = vld [vmem:[%s1 + $0x20] sm:$0xf]
      %v206 = vld [vmem:[%s1 + $0x24] sm:$0xf]
      %v207 = vld [vmem:[%s1 + $0x28] sm:$0xf]
      %v208 = vld [vmem:[%s1 + $0x2c] sm:$0xf]
      %v209 = vld [vmem:[%s1 + $0x30] sm:$0xf]
      %v210 = vld [vmem:[%s1 + $0x34] sm:$0xf]
      %v211 = vld [vmem:[%s1 + $0x38] sm:$0xf]
      %v212 = vld [vmem:[%s1 + $0x3c] sm:$0xf]
      %v213 = vld [vmem:[%s1 + $0x40] sm:$0xf]
      %v214 = vld [vmem:[%s1 + $0x44] sm:$0xf]
      %v215 = vld [vmem:[%s1 + $0x48] sm:$0xf]
      %v216 = vld [vmem:[%s1 + $0x4c] sm:$0xf]
      %v217 = vld [vmem:[%s1 + $0x50] sm:$0xf]
      %v218 = vld [vmem:[%s1 + $0x54] sm:$0xf]
      %v219 = vld [vmem:[%s1 + $0x58] sm:$0xf]
      %v220 = vld [vmem:[%s1 + $0x5c] sm:$0xf]
      %v221 = vld [vmem:[%s1 + $0x60] sm:$0xf]
      %v222 = vld [vmem:[%s1 + $0x64] sm:$0xf]
      %v223 = vld [vmem:[%s1 + $0x68] sm:$0xf]
      %v224 = vld [vmem:[%s1 + $0x6c] sm:$0xf]
      %v225 = vld [vmem:[%s1 + $0x70] sm:$0xf]
      %v226 = vld [vmem:[%s1 + $0x74] sm:$0xf]
      %v227 = vld [vmem:[%s1 + $0x78] sm:$0xf]
      %v228 = vld [vmem:[%s1 + $0x7c] sm:$0xf]
      %v237 = vunpack.c.l.b16 %v189
      %v238 = vunpack.c.h.b16 %v189
      %v239 = vunpack.c.l.b16 %v190
      %v240 = vunpack.c.h.b16 %v190
      %v241 = vunpack.c.l.b16 %v191
      %v242 = vunpack.c.h.b16 %v191
      %v243 = vunpack.c.l.b16 %v192
      %v244 = vunpack.c.h.b16 %v192
      %v245 = vunpack.c.l.b16 %v193
      %v246 = vunpack.c.h.b16 %v193
      %v247 = vunpack.c.l.b16 %v194
      %v248 = vunpack.c.h.b16 %v194
      %v249 = vunpack.c.l.b16 %v195
      %v250 = vunpack.c.h.b16 %v195
      %v251 = vunpack.c.l.b16 %v196
      %v252 = vunpack.c.h.b16 %v196
      %v253 = vpack.c.b16 %v239, %v237
      %v254 = vpack.c.b16 %v240, %v238
      %v255 = vpack.c.b16 %v243, %v241
      %v256 = vpack.c.b16 %v244, %v242
      %v257 = vpack.c.b16 %v247, %v245
      %v258 = vpack.c.b16 %v248, %v246
      %v259 = vpack.c.b16 %v251, %v249
      %v260 = vpack.c.b16 %v252, %v250
      %v301 = vunpack.c.l.b16 %v197
      %v302 = vunpack.c.l.b16 %v198
      %v303 = vunpack.c.l.b16 %v199
      %v304 = vunpack.c.l.b16 %v200
      %v305 = vunpack.c.l.b16 %v201
      %v306 = vunpack.c.l.b16 %v202
      %v307 = vunpack.c.l.b16 %v203
      %v308 = vunpack.c.l.b16 %v204
      %v309 = vunpack.c.l.b16 %v205
      %v310 = vunpack.c.l.b16 %v206
      %v311 = vunpack.c.l.b16 %v207
      %v312 = vunpack.c.l.b16 %v208
      %v313 = vunpack.c.l.b16 %v209
      %v314 = vunpack.c.l.b16 %v210
      %v315 = vunpack.c.l.b16 %v211
      %v316 = vunpack.c.l.b16 %v212
      %v317 = vunpack.c.l.b16 %v213
      %v318 = vunpack.c.l.b16 %v214
      %v319 = vunpack.c.l.b16 %v215
      %v320 = vunpack.c.l.b16 %v216
      %v321 = vunpack.c.l.b16 %v217
      %v322 = vunpack.c.l.b16 %v218
      %v323 = vunpack.c.l.b16 %v219
      %v324 = vunpack.c.l.b16 %v220
      %v325 = vunpack.c.l.b16 %v221
      %v326 = vunpack.c.l.b16 %v222
      %v327 = vunpack.c.l.b16 %v223
      %v328 = vunpack.c.l.b16 %v224
      %v329 = vunpack.c.l.b16 %v225
      %v330 = vunpack.c.l.b16 %v226
      %v331 = vunpack.c.l.b16 %v227
      %v332 = vunpack.c.l.b16 %v228
      %v333 = vpack.c.b16 %v302, %v301
      %v334 = vpack.c.b16 %v304, %v303
      %v335 = vpack.c.b16 %v306, %v305
      %v336 = vpack.c.b16 %v308, %v307
      %v337 = vpack.c.b16 %v310, %v309
      %v338 = vpack.c.b16 %v312, %v311
      %v339 = vpack.c.b16 %v314, %v313
      %v340 = vpack.c.b16 %v316, %v315
      %v341 = vpack.c.b16 %v318, %v317
      %v342 = vpack.c.b16 %v320, %v319
      %v343 = vpack.c.b16 %v322, %v321
      %v344 = vpack.c.b16 %v324, %v323
      %v345 = vpack.c.b16 %v326, %v325
      %v346 = vpack.c.b16 %v328, %v327
      %v347 = vpack.c.b16 %v330, %v329
      %v348 = vpack.c.b16 %v332, %v331
      %365 = vmatprep.subr.bf16.mxu0 0
      %366 = vmatpush1.bf16.msra.mxu0 %v333
      %367 = vmatprep.subr.bf16.mxu0 0
      %368 = vmatpush1.bf16.msra.mxu0 %v334
      %369 = vmatprep.subr.bf16.mxu0 0
      %370 = vmatpush1.bf16.msra.mxu0 %v335
      %371 = vmatprep.subr.bf16.mxu0 0
      %372 = vmatpush1.bf16.msra.mxu0 %v336
      %373 = vmatprep.subr.bf16.mxu0 0
      %374 = vmatpush1.bf16.msra.mxu0 %v337
      %375 = vmatprep.subr.bf16.mxu0 0
      %376 = vmatpush1.bf16.msra.mxu0 %v338
      %377 = vmatprep.subr.bf16.mxu0 0
      %378 = vmatpush1.bf16.msra.mxu0 %v339
      %379 = vmatprep.subr.bf16.mxu0 0
      %380 = vmatpush1.bf16.msra.mxu0 %v340
      %381 = vmatprep.subr.bf16.mxu0 0
      %382 = vmatpush1.bf16.msra.mxu0 %v341
      %383 = vmatprep.subr.bf16.mxu0 0
      %384 = vmatpush1.bf16.msra.mxu0 %v342
      %385 = vmatprep.subr.bf16.mxu0 0
      %386 = vmatpush1.bf16.msra.mxu0 %v343
      %387 = vmatprep.subr.bf16.mxu0 0
      %388 = vmatpush1.bf16.msra.mxu0 %v344
      %389 = vmatprep.subr.bf16.mxu0 0
      %390 = vmatpush1.bf16.msra.mxu0 %v345
      %391 = vmatprep.subr.bf16.mxu0 0
      %392 = vmatpush1.bf16.msra.mxu0 %v346
      %393 = vmatprep.subr.bf16.mxu0 0
      %394 = vmatpush1.bf16.msra.mxu0 %v347
      %395 = vmatprep.subr.bf16.mxu0 0
      %396 = vmatpush1.bf16.msra.mxu0 %v348
      %397 = vmatprep.mubr.bf16.mxu0 %v254
      %398 = vmatmul.mubr.bf16.gmra.mrb[0].mxu0 %v253
      %v399 = vpop.f32.mrb[0].mxu0
      %v400 = vadd.f32 0.0, %v399
      %v401 = vpop.f32.mrb[0].mxu0
      %v402 = vpop.f32.mrb[0].mxu0
      %v403 = vadd.f32 0.0, %v402
      %v404 = vpop.f32.mrb[0].mxu0
      %405 = vmatprep.mubr.bf16.mxu0 %v256
      %406 = vmatmul.mubr.bf16.gmra.mrb[0].mxu0 %v255
      %v407 = vpop.f32.mrb[0].mxu0
      %v408 = vadd.f32 0.0, %v407
      %v409 = vpop.f32.mrb[0].mxu0
      %v410 = vpop.f32.mrb[0].mxu0
      %v411 = vadd.f32 0.0, %v410
      %v412 = vpop.f32.mrb[0].mxu0
      %413 = vmatprep.mubr.bf16.mxu0 %v258
      %414 = vmatmul.mubr.bf16.gmra.mrb[0].mxu0 %v257
      %v415 = vpop.f32.mrb[0].mxu0
      %v416 = vadd.f32 0.0, %v415
      %v417 = vpop.f32.mrb[0].mxu0
      %v418 = vpop.f32.mrb[0].mxu0
      %v419 = vadd.f32 0.0, %v418
      %v420 = vpop.f32.mrb[0].mxu0
      %421 = vmatprep.mubr.bf16.mxu0 %v260
      %422 = vmatmul.mubr.bf16.gmra.mrb[0].mxu0 %v259
      %v423 = vpop.f32.mrb[0].mxu0
      %v424 = vadd.f32 0.0, %v423
      %v425 = vpop.f32.mrb[0].mxu0
      %v426 = vpop.f32.mrb[0].mxu0
      %v427 = vadd.f32 0.0, %v426
      %v428 = vpop.f32.mrb[0].mxu0
      %429 = vdwg.mxu0
      %v430 = vpack.c.bf16 %v403, %v400
      %v431 = vpack.c.bf16 %v411, %v408
      %v432 = vpack.c.bf16 %v419, %v416
      %v433 = vpack.c.bf16 %v427, %v424
      %v438 = vunpack.c.l.b16 %v430
      %v439 = vunpack.c.h.b16 %v430
      %v440 = vunpack.c.l.b16 %v431
      %v441 = vunpack.c.h.b16 %v431
      %v442 = vunpack.c.l.b16 %v432
      %v443 = vunpack.c.h.b16 %v432
      %v444 = vunpack.c.l.b16 %v433
      %v445 = vunpack.c.h.b16 %v433
      %v446 = vpack.c.b16 %v438, %v438
      %v447 = vpack.c.b16 %v439, %v439
      %v448 = vpack.c.b16 %v440, %v440
      %v449 = vpack.c.b16 %v441, %v441
      %v450 = vpack.c.b16 %v442, %v442
      %v451 = vpack.c.b16 %v443, %v443
      %v452 = vpack.c.b16 %v444, %v444
      %v453 = vpack.c.b16 %v445, %v445
      %462 = vst [vmem:[%s182] sm:$0xf] %v446
      %463 = vst [vmem:[%s182 + $0x4] sm:$0xf] %v447
      %464 = vst [vmem:[%s182 + $0x8] sm:$0xf] %v448
      %465 = vst [vmem:[%s182 + $0xc] sm:$0xf] %v449
      %466 = vst [vmem:[%s182 + $0x10] sm:$0xf] %v450
      %467 = vst [vmem:[%s182 + $0x14] sm:$0xf] %v451
      %468 = vst [vmem:[%s182 + $0x18] sm:$0xf] %v452
      %469 = vst [vmem:[%s182 + $0x1c] sm:$0xf] %v453
      %v470 = vadd.f32 %v400, %v403
      %v471 = vadd.f32 %v470, %v408
      %v472 = vadd.f32 %v471, %v411
      %v473 = vadd.f32 %v472, %v416
      %v474 = vadd.f32 %v473, %v419
      %v475 = vadd.f32 %v474, %v424
      %v476 = vadd.f32 %v475, %v427
      %v477 = vrot.slane %v476, 4
      %v478 = vadd.f32 %v476, %v477
      %v479 = vrot.slane %v478, 2
      %v480 = vadd.f32 %v478, %v479
      %v481 = vrot.slane %v480, 1
      %v482 = vadd.f32 %v480, %v481
      %v483 = vmul.f32 %v400, %v400
      %v484 = vmul.f32 %v403, %v403
      %v485 = vmul.f32 %v408, %v408
      %v486 = vmul.f32 %v411, %v411
      %v487 = vmul.f32 %v416, %v416
      %v488 = vmul.f32 %v419, %v419
      %v489 = vmul.f32 %v424, %v424
      %v490 = vmul.f32 %v427, %v427
      %v491 = vadd.f32 %v483, %v484
      %v492 = vadd.f32 %v491, %v485
      %v493 = vadd.f32 %v492, %v486
      %v494 = vadd.f32 %v493, %v487
      %v495 = vadd.f32 %v494, %v488
      %v496 = vadd.f32 %v495, %v489
      %v497 = vadd.f32 %v496, %v490
      %v498 = vrot.slane %v497, 4
      %v499 = vadd.f32 %v497, %v498
      %v500 = vrot.slane %v499, 2
      %v501 = vadd.f32 %v499, %v500
      %v502 = vrot.slane %v501, 1
      %v503 = vadd.f32 %v501, %v502
      %vm504 = vcmask 1040384
      %v505 = vsel %vm504, %v482, %v503
      %506 = vst [vmem:[%s187] sm:$0x3] %v505
      %s507 = smul.u32 8, %s15
      %p508 = scmp.lt.s32.totalorder %s507, 15
      %s509 = scalar_select %p508, %s507, 15
      %s510 = smul.addr %s509, 4
      %s511 = scalar_lea.vmem %s2, %s510
      %p512 = scmp.lt.s32.totalorder %s15, 1
      %s513 = scalar_select %p512, %s15, 1
      %s514 = smul.addr %s513, 2
      %s515 = scalar_lea.vmem %s3, %s514
      // Predicated region
      $region29: #{forward.25} parent=27 // pred_check
        %p516 = pneg %p80
      $region30: #{forward.25} parent=27 // pred_check_branch
        %518 = sbr.rel (%p516) target = $region32
      $region31: #{forward.25} parent=27 // pred_region
        %s519 = smul.u32 8, %s15
      $region32: #{forward.25} parent=27 // pred_fallthru
        _
      // Predicated region
      $region33: #{forward.25} parent=27 // pred_check
        %p520 = pneg %p106
      $region34: #{forward.25} parent=27 // pred_check_branch
        %522 = sbr.rel (%p520) target = $region36
      $region35: #{forward.25} parent=27 // pred_region
        _
      $region36: #{forward.25} parent=27 // pred_fallthru
        _
    $region28: #{forward.25} parent=5 // pred_fallthru
      _
    %p523 = scmp.le.s32.totalorder 2, %s10
    // Predicated region
    $region37: #{forward.25} parent=5 // pred_check
      %p524 = pneg %p523
    $region38: #{forward.25} parent=5 // pred_check_branch
      %526 = sbr.rel (%p524) target = $region40
    $region39: #{forward.25} parent=5 // pred_region
      %s527 = ssub.s32 %s10, 2
      // Predicated region
      $region41: #{forward.25} parent=39 // pred_check
        %p528 = pneg %p86
      $region42: #{forward.25} parent=39 // pred_check_branch
        %530 = sbr.rel (%p528) target = $region44
      $region43: #{forward.25} parent=39 // pred_region
        %s531 = smul.u32 8, %s16
        %p532 = scmp.lt.s32.totalorder %s531, 15
        %s533 = scalar_select %p532, %s531, 15
        %s534 = smul.addr %s533, 4
        %s535 = scalar_lea.vmem %s2, %s534
      $region44: #{forward.25} parent=39 // pred_fallthru
        _
      // Predicated region
      $region45: #{forward.25} parent=39 // pred_check
        %p536 = pneg %p112
      $region46: #{forward.25} parent=39 // pred_check_branch
        %538 = sbr.rel (%p536) target = $region48
      $region47: #{forward.25} parent=39 // pred_region
        %p539 = scmp.lt.s32.totalorder %s16, 1
        %s540 = scalar_select %p539, %s16, 1
        %s541 = smul.addr %s540, 2
        %s542 = scalar_lea.vmem %s3, %s541
      $region48: #{forward.25} parent=39 // pred_fallthru
        _
    $region40: #{forward.25} parent=5 // pred_fallthru
      _
  $region6: #{forward.25} parent=0 // loop_footer
    %s14 = sadd.s32 1, %s10
  $region7: #{forward.25} parent=0 // loop_footer_branch
    %9 = sbr.rel target = $region3
  $region8: #{forward.25} parent=0 // loop_exit
    _

// kernel: forward.26
$region0: #{forward.26}
  #allocation0 [shape = 'u32[]', space=smem, size = 0x4, offset = 0x4, fixed_abs, tag = 'smem constant byte address 0x4 - core index']
  #allocation1 [shape = 'u32[144,128]{1,0:T(1,128)}', space=vmem, size = 0x12000, scoped, tag = 'internal scratch']
  %s0 = inlined_call_operand.vmem [shape: bf16[128,128], index: 0, kind: input, shape index: {}]
  %s1 = inlined_call_operand.vmem [shape: f32[1,128], index: 1, kind: input, shape index: {}]
  %s2 = inlined_call_operand.vmem [shape: f32[1,128], index: 2, kind: input, shape index: {}]
  %s3 = inlined_call_operand.vmem [shape: bf16[128,128], index: 3, kind: output, shape index: {}]
  %s4 = sld [smem:[#allocation0]]
  $region45: #{forward.26} parent=0
    _
  %s6 = ssub.s32 1, %s4
  %s7 = scalar_select 0, %s6, %s4
  loop: start=0, step=1, limit=4
  $region2: #{forward.26} parent=0 // loop_pre_header
    _
  $region3: #{forward.26} parent=0 // loop_header
    %s9 = sphi 0, %s13
    %p10 = scmp.ge.s32.totalorder %s9, 4
    %s19 = sphi 0, %s21
    %s22 = sphi 0, %s19
    %s23 = sphi 0, %s22
    %s39 = sphi 0, %s23
    %s43 = sphi 0, %s43
    %s45 = sphi 0, %s43
    %s46 = sphi 0, %s45
    %s60 = sphi 0, %s46
    %s64 = sphi 0, %s64
    %s66 = sphi 0, %s64
    %s67 = sphi 0, %s66
    %s81 = sphi 0, %s67
    %s87 = sphi 0, %s89
    %s90 = sphi 0, %s87
    %s91 = sphi 0, %s90
    %s107 = sphi 0, %s91
  $region4: #{forward.26} parent=0 // loop_header_branch
    %12 = sbr.rel (%p10) target = $region8
  $region5: #{forward.26} parent=0 // loop_body
    %s14 = ssub.s32 %s9, 1
    %s15 = ssub.s32 %s9, 2
    %s16 = sadd.s32 %s9, 1
    %s17 = ssub.s32 %s9, %s16
    %p18 = scmp.eq.s32.totalorder %s17, 0
    %s20 = sadd.s32 %s19, 1
    %s21 = scalar_select %p18, %s19, %s20
    %p24 = pneg %p18
    %p25 = scmp.eq.s32.totalorder %s9, 1
    %p26 = por %p24, %p25
    %p27 = scmp.ne.s32.totalorder %s19, %s22
    %p28 = scmp.eq.s32.totalorder %s9, 0
    %p29 = por %p27, %p28
    %p30 = scmp.ne.s32.totalorder %s19, %s22
    %p31 = scmp.eq.s32.totalorder %s14, 1
    %p32 = por %p30, %p31
    %p33 = scmp.ne.s32.totalorder %s22, %s23
    %p34 = scmp.eq.s32.totalorder %s14, 0
    %p35 = por %p33, %p34
    %p36 = scmp.ne.s32.totalorder %s22, %s23
    %p37 = scmp.eq.s32.totalorder %s15, 1
    %p38 = por %p36, %p37
    %p40 = scmp.ne.s32.totalorder %s23, %s39
    %p41 = scmp.eq.s32.totalorder %s15, 0
    %p42 = por %p40, %p41
    %s44 = sadd.s32 %s43, 1
    %p47 = scmp.eq.s32.totalorder %s9, 1
    %p48 = scmp.ne.s32.totalorder %s43, %s45
    %p49 = scmp.eq.s32.totalorder %s9, 0
    %p50 = por %p48, %p49
    %p51 = scmp.ne.s32.totalorder %s43, %s45
    %p52 = scmp.eq.s32.totalorder %s14, 1
    %p53 = por %p51, %p52
    %p54 = scmp.ne.s32.totalorder %s45, %s46
    %p55 = scmp.eq.s32.totalorder %s14, 0
    %p56 = por %p54, %p55
    %p57 = scmp.ne.s32.totalorder %s45, %s46
    %p58 = scmp.eq.s32.totalorder %s15, 1
    %p59 = por %p57, %p58
    %p61 = scmp.ne.s32.totalorder %s46, %s60
    %p62 = scmp.eq.s32.totalorder %s15, 0
    %p63 = por %p61, %p62
    %s65 = sadd.s32 %s64, 1
    %p68 = scmp.eq.s32.totalorder %s9, 1
    %p69 = scmp.ne.s32.totalorder %s64, %s66
    %p70 = scmp.eq.s32.totalorder %s9, 0
    %p71 = por %p69, %p70
    %p72 = scmp.ne.s32.totalorder %s64, %s66
    %p73 = scmp.eq.s32.totalorder %s14, 1
    %p74 = por %p72, %p73
    %p75 = scmp.ne.s32.totalorder %s66, %s67
    %p76 = scmp.eq.s32.totalorder %s14, 0
    %p77 = por %p75, %p76
    %p78 = scmp.ne.s32.totalorder %s66, %s67
    %p79 = scmp.eq.s32.totalorder %s15, 1
    %p80 = por %p78, %p79
    %p82 = scmp.ne.s32.totalorder %s67, %s81
    %p83 = scmp.eq.s32.totalorder %s15, 0
    %p84 = por %p82, %p83
    %s85 = ssub.s32 %s9, %s16
    %p86 = scmp.eq.s32.totalorder %s85, 0
    %s88 = sadd.s32 %s87, 1
    %s89 = scalar_select %p86, %s87, %s88
    %p92 = pneg %p86
    %p93 = scmp.eq.s32.totalorder %s9, 1
    %p94 = por %p92, %p93
    %p95 = scmp.ne.s32.totalorder %s87, %s90
    %p96 = scmp.eq.s32.totalorder %s9, 0
    %p97 = por %p95, %p96
    %p98 = scmp.ne.s32.totalorder %s87, %s90
    %p99 = scmp.eq.s32.totalorder %s14, 1
    %p100 = por %p98, %p99
    %p101 = scmp.ne.s32.totalorder %s90, %s91
    %p102 = scmp.eq.s32.totalorder %s14, 0
    %p103 = por %p101, %p102
    %p104 = scmp.ne.s32.totalorder %s90, %s91
    %p105 = scmp.eq.s32.totalorder %s15, 1
    %p106 = por %p104, %p105
    %p108 = scmp.ne.s32.totalorder %s91, %s107
    %p109 = scmp.eq.s32.totalorder %s15, 0
    %p110 = por %p108, %p109
    %p111 = scmp.le.s32.totalorder 1, %s9
    %p112 = scmp.lt.s32.totalorder %s9, 3
    %p113 = pnand %p111, %p112
    %p114 = pneg %p113
    // Predicated region
    $region9: #{forward.26} parent=5 // pred_check
      _
    $region10: #{forward.26} parent=5 // pred_check_branch
      %116 = sbr.rel (%p113) target = $region12
    $region11: #{forward.26} parent=5 // pred_region
      %s117 = ssub.s32 %s9, 1
      // Predicated region
      $region13: #{forward.26} parent=11 // pred_check
        %p118 = pneg %p56
      $region14: #{forward.26} parent=11 // pred_check_branch
        %120 = sbr.rel (%p118) target = $region16
      $region15: #{forward.26} parent=11 // pred_region
        _
      $region16: #{forward.26} parent=11 // pred_fallthru
        _
      // Predicated region
      $region17: #{forward.26} parent=11 // pred_check
        %p121 = pneg %p77
      $region18: #{forward.26} parent=11 // pred_check_branch
        %123 = sbr.rel (%p121) target = $region20
      $region19: #{forward.26} parent=11 // pred_region
        _
      $region20: #{forward.26} parent=11 // pred_fallthru
        _
    $region12: #{forward.26} parent=5 // pred_fallthru
      _
    %p124 = scmp.lt.s32.totalorder %s9, 2
    // Predicated region
    $region21: #{forward.26} parent=5 // pred_check
      %p125 = pneg %p124
    $region22: #{forward.26} parent=5 // pred_check_branch
      %127 = sbr.rel (%p125) target = $region24
    $region23: #{forward.26} parent=5 // pred_region
      // Predicated region
      $region25: #{forward.26} parent=23 // pred_check
        %p128 = pneg %p29
      $region26: #{forward.26} parent=23 // pred_check_branch
        %130 = sbr.rel (%p128) target = $region28
      $region27: #{forward.26} parent=23 // pred_region
        %s131 = smul.u32 8, %s9
        %p132 = scmp.lt.s32.totalorder %s131, 15
        %s133 = scalar_select %p132, %s131, 15
        %s134 = smul.addr %s133, 4
        %s135 = scalar_lea.vmem %s0, %s134
        %s136 = smul.u32 8, %s9
      $region28: #{forward.26} parent=23 // pred_fallthru
        _
    $region24: #{forward.26} parent=5 // pred_fallthru
      _
    %p137 = scmp.le.s32.totalorder 1, %s9
    %p138 = scmp.lt.s32.totalorder %s9, 3
    %p139 = pnand %p137, %p138
    %p140 = pneg %p139
    // Predicated region
    $region29: #{forward.26} parent=5 // pred_check
      _
    $region30: #{forward.26} parent=5 // pred_check_branch
      %142 = sbr.rel (%p139) target = $region32
    $region31: #{forward.26} parent=5 // pred_region
      %s143 = ssub.s32 %s9, 1
      %s144 = smul.u32 8, %s14
      %p145 = scmp.lt.s32.totalorder %s144, 15
      %s146 = scalar_select %p145, %s144, 15
      %s147 = smul.addr %s146, 4
      %s148 = scalar_lea.vmem %s0, %s147
      %p149 = pneg %p35
      %p150 = pneg %p32
      %p151 = pneg %p56
      %p152 = pneg %p53
      %p153 = pneg %p77
      %p154 = pneg %p74
      %p155 = pneg %p103
      %p156 = pneg %p100
      %s157 = smul.u32 8, %s14
      %p158 = scmp.lt.s32.totalorder %s157, 15
      %s159 = scalar_select %p158, %s157, 15
      %s160 = smul.addr %s159, 4
      %s161 = scalar_lea.vmem %s3, %s160
      %s162 = smul.u32 8, %s14
      %p163 = scmp.lt.s32.totalorder %s162, 15
      %s164 = scalar_select %p163, %s162, 15
      %s165 = smul.addr %s164, 4
      %s166 = scalar_lea.vmem %s0, %s165
      %s167 = smul.u32 8, %s14
      %s168 = smul.u32 8, %s14
      %p169 = scmp.lt.s32.totalorder %s168, 15
      %s170 = scalar_select %p169, %s168, 15
      %s171 = smul.addr %s170, 4
      %s172 = scalar_lea.vmem %s3, %s171
      %s173 = smul.u32 8, %s14
      %v174 = vld [vmem:[%s166] sm:$0xf]
      %v175 = vld [vmem:[%s166 + $0x4] sm:$0xf]
      %v176 = vld [vmem:[%s166 + $0x8] sm:$0xf]
      %v177 = vld [vmem:[%s166 + $0xc] sm:$0xf]
      %v178 = vld [vmem:[%s166 + $0x10] sm:$0xf]
      %v179 = vld [vmem:[%s166 + $0x14] sm:$0xf]
      %v180 = vld [vmem:[%s166 + $0x18] sm:$0xf]
      %v181 = vld [vmem:[%s166 + $0x1c] sm:$0xf]
      %v182 = vunpack.c.l.bf16 %v174
      %v183 = vunpack.c.l.bf16 %v175
      %v184 = vunpack.c.l.bf16 %v176
      %v185 = vunpack.c.l.bf16 %v177
      %v186 = vunpack.c.l.bf16 %v178
      %v187 = vunpack.c.l.bf16 %v179
      %v188 = vunpack.c.l.bf16 %v180
      %v189 = vunpack.c.l.bf16 %v181
      %v190 = vld [vmem:[%s1] sm:$0x1]
      %v192 = vlaneseq
      %v193 = vshrl.u32 %v192, 7
      %v194 = vsub.s32 0, %v193
      %v195 = vrot.slane %v190, %v194
      %v197 = vmul.f32 %v182, %v195
      %v198 = vmul.f32 %v183, %v195
      %v199 = vmul.f32 %v184, %v195
      %v200 = vmul.f32 %v185, %v195
      %v201 = vmul.f32 %v186, %v195
      %v202 = vmul.f32 %v187, %v195
      %v203 = vmul.f32 %v188, %v195
      %v204 = vmul.f32 %v189, %v195
      %v205 = vld [vmem:[%s2] sm:$0x1]
      %v207 = vlaneseq
      %v208 = vshrl.u32 %v207, 7
      %v209 = vsub.s32 0, %v208
      %v210 = vrot.slane %v205, %v209
      %v212 = vadd.f32 %v197, %v210
      %v213 = vadd.f32 %v198, %v210
      %v214 = vadd.f32 %v199, %v210
      %v215 = vadd.f32 %v200, %v210
      %v216 = vadd.f32 %v201, %v210
      %v217 = vadd.f32 %v202, %v210
      %v218 = vadd.f32 %v203, %v210
      %v219 = vadd.f32 %v204, %v210
      %v220 = vmax.f32 %v212, 0.0
      %v221 = vmax.f32 %v213, 0.0
      %v222 = vmax.f32 %v214, 0.0
      %v223 = vmax.f32 %v215, 0.0
      %v224 = vmax.f32 %v216, 0.0
      %v225 = vmax.f32 %v217, 0.0
      %v226 = vmax.f32 %v218, 0.0
      %v227 = vmax.f32 %v219, 0.0
      %v228 = vpack.c.bf16 %v221, %v220
      %v229 = vpack.c.bf16 %v223, %v222
      %v230 = vpack.c.bf16 %v225, %v224
      %v231 = vpack.c.bf16 %v227, %v226
      %v236 = vunpack.c.l.b16 %v228
      %v237 = vunpack.c.h.b16 %v228
      %v238 = vunpack.c.l.b16 %v229
      %v239 = vunpack.c.h.b16 %v229
      %v240 = vunpack.c.l.b16 %v230
      %v241 = vunpack.c.h.b16 %v230
      %v242 = vunpack.c.l.b16 %v231
      %v243 = vunpack.c.h.b16 %v231
      %v244 = vpack.c.b16 %v236, %v236
      %v245 = vpack.c.b16 %v237, %v237
      %v246 = vpack.c.b16 %v238, %v238
      %v247 = vpack.c.b16 %v239, %v239
      %v248 = vpack.c.b16 %v240, %v240
      %v249 = vpack.c.b16 %v241, %v241
      %v250 = vpack.c.b16 %v242, %v242
      %v251 = vpack.c.b16 %v243, %v243
      %260 = vst [vmem:[%s172] sm:$0xf] %v244
      %261 = vst [vmem:[%s172 + $0x4] sm:$0xf] %v245
      %262 = vst [vmem:[%s172 + $0x8] sm:$0xf] %v246
      %263 = vst [vmem:[%s172 + $0xc] sm:$0xf] %v247
      %264 = vst [vmem:[%s172 + $0x10] sm:$0xf] %v248
      %265 = vst [vmem:[%s172 + $0x14] sm:$0xf] %v249
      %266 = vst [vmem:[%s172 + $0x18] sm:$0xf] %v250
      %267 = vst [vmem:[%s172 + $0x1c] sm:$0xf] %v251
      %s268 = smul.u32 8, %s14
      %p269 = scmp.lt.s32.totalorder %s268, 15
      %s270 = scalar_select %p269, %s268, 15
      %s271 = smul.addr %s270, 4
      %s272 = scalar_lea.vmem %s3, %s271
      // Predicated region
      $region33: #{forward.26} parent=31 // pred_check
        %p273 = pneg %p100
      $region34: #{forward.26} parent=31 // pred_check_branch
        %275 = sbr.rel (%p273) target = $region36
      $region35: #{forward.26} parent=31 // pred_region
        %s276 = smul.u32 8, %s14
      $region36: #{forward.26} parent=31 // pred_fallthru
        _
    $region32: #{forward.26} parent=5 // pred_fallthru
      _
    %p277 = scmp.le.s32.totalorder 2, %s9
    // Predicated region
    $region37: #{forward.26} parent=5 // pred_check
      %p278 = pneg %p277
    $region38: #{forward.26} parent=5 // pred_check_branch
      %280 = sbr.rel (%p278) target = $region40
    $region39: #{forward.26} parent=5 // pred_region
      %s281 = ssub.s32 %s9, 2
      // Predicated region
      $region41: #{forward.26} parent=39 // pred_check
        %p282 = pneg %p106
      $region42: #{forward.26} parent=39 // pred_check_branch
        %284 = sbr.rel (%p282) target = $region44
      $region43: #{forward.26} parent=39 // pred_region
        %s285 = smul.u32 8, %s15
        %p286 = scmp.lt.s32.totalorder %s285, 15
        %s287 = scalar_select %p286, %s285, 15
        %s288 = smul.addr %s287, 4
        %s289 = scalar_lea.vmem %s3, %s288
      $region44: #{forward.26} parent=39 // pred_fallthru
        _
    $region40: #{forward.26} parent=5 // pred_fallthru
      _
  $region6: #{forward.26} parent=0 // loop_footer
    %s13 = sadd.s32 1, %s9
  $region7: #{forward.26} parent=0 // loop_footer_branch
    %8 = sbr.rel target = $region3
  $region8: #{forward.26} parent=0 // loop_exit
    _

// kernel: forward.29
$region0: #{forward.29}
  #allocation0 [shape = 'u32[]', space=smem, size = 0x4, offset = 0x4, fixed_abs, tag = 'smem constant byte address 0x4 - core index']
  #allocation1 [shape = 'u32[144,128]{1,0:T(1,128)}', space=vmem, size = 0x12000, scoped, tag = 'internal scratch']
  %s0 = inlined_call_operand.vmem [shape: bf16[128,384], index: 0, kind: input, shape index: {}]
  %s1 = inlined_call_operand.vmem [shape: bf16[384,128], index: 1, kind: input, shape index: {}]
  %s2 = inlined_call_operand.vmem [shape: bf16[128,128], index: 2, kind: output, shape index: {0}]
  %s3 = inlined_call_operand.vmem [shape: f32[2,2,128], index: 3, kind: output, shape index: {1}]
  %4 = xla_tuple %s2, %s3
  %s5 = sld [smem:[#allocation0]]
  $region49: #{forward.29} parent=0
    _
  %s7 = ssub.s32 1, %s5
  %s8 = scalar_select 0, %s7, %s5
  loop: start=0, step=1, limit=4
  $region2: #{forward.29} parent=0 // loop_pre_header
    _
  $region3: #{forward.29} parent=0 // loop_header
    %s10 = sphi 0, %s14
    %p11 = scmp.ge.s32.totalorder %s10, 4
    %s20 = sphi 0, %s22
    %s23 = sphi 0, %s20
    %s24 = sphi 0, %s23
    %s40 = sphi 0, %s24
    %s44 = sphi 0, %s44
    %s46 = sphi 0, %s44
    %s47 = sphi 0, %s46
    %s61 = sphi 0, %s47
    %s67 = sphi 0, %s69
    %s70 = sphi 0, %s67
    %s71 = sphi 0, %s70
    %s87 = sphi 0, %s71
    %s93 = sphi 0, %s95
    %s96 = sphi 0, %s93
    %s97 = sphi 0, %s96
    %s113 = sphi 0, %s97
  $region4: #{forward.29} parent=0 // loop_header_branch
    %13 = sbr.rel (%p11) target = $region8
  $region5: #{forward.29} parent=0 // loop_body
    %s15 = ssub.s32 %s10, 1
    %s16 = ssub.s32 %s10, 2
    %s17 = sadd.s32 %s10, 1
    %s18 = ssub.s32 %s10, %s17
    %p19 = scmp.eq.s32.totalorder %s18, 0
    %s21 = sadd.s32 %s20, 1
    %s22 = scalar_select %p19, %s20, %s21
    %p25 = pneg %p19
    %p26 = scmp.eq.s32.totalorder %s10, 1
    %p27 = por %p25, %p26
    %p28 = scmp.ne.s32.totalorder %s20, %s23
    %p29 = scmp.eq.s32.totalorder %s10, 0
    %p30 = por %p28, %p29
    %p31 = scmp.ne.s32.totalorder %s20, %s23
    %p32 = scmp.eq.s32.totalorder %s15, 1
    %p33 = por %p31, %p32
    %p34 = scmp.ne.s32.totalorder %s23, %s24
    %p35 = scmp.eq.s32.totalorder %s15, 0
    %p36 = por %p34, %p35
    %p37 = scmp.ne.s32.totalorder %s23, %s24
    %p38 = scmp.eq.s32.totalorder %s16, 1
    %p39 = por %p37, %p38
    %p41 = scmp.ne.s32.totalorder %s24, %s40
    %p42 = scmp.eq.s32.totalorder %s16, 0
    %p43 = por %p41, %p42
    %s45 = sadd.s32 %s44, 1
    %p48 = scmp.eq.s32.totalorder %s10, 1
    %p49 = scmp.ne.s32.totalorder %s44, %s46
    %p50 = scmp.eq.s32.totalorder %s10, 0
    %p51 = por %p49, %p50
    %p52 = scmp.ne.s32.totalorder %s44, %s46
    %p53 = scmp.eq.s32.totalorder %s15, 1
    %p54 = por %p52, %p53
    %p55 = scmp.ne.s32.totalorder %s46, %s47
    %p56 = scmp.eq.s32.totalorder %s15, 0
    %p57 = por %p55, %p56
    %p58 = scmp.ne.s32.totalorder %s46, %s47
    %p59 = scmp.eq.s32.totalorder %s16, 1
    %p60 = por %p58, %p59
    %p62 = scmp.ne.s32.totalorder %s47, %s61
    %p63 = scmp.eq.s32.totalorder %s16, 0
    %p64 = por %p62, %p63
    %s65 = ssub.s32 %s10, %s17
    %p66 = scmp.eq.s32.totalorder %s65, 0
    %s68 = sadd.s32 %s67, 1
    %s69 = scalar_select %p66, %s67, %s68
    %p72 = pneg %p66
    %p73 = scmp.eq.s32.totalorder %s10, 1
    %p74 = por %p72, %p73
    %p75 = scmp.ne.s32.totalorder %s67, %s70
    %p76 = scmp.eq.s32.totalorder %s10, 0
    %p77 = por %p75, %p76
    %p78 = scmp.ne.s32.totalorder %s67, %s70
    %p79 = scmp.eq.s32.totalorder %s15, 1
    %p80 = por %p78, %p79
    %p81 = scmp.ne.s32.totalorder %s70, %s71
    %p82 = scmp.eq.s32.totalorder %s15, 0
    %p83 = por %p81, %p82
    %p84 = scmp.ne.s32.totalorder %s70, %s71
    %p85 = scmp.eq.s32.totalorder %s16, 1
    %p86 = por %p84, %p85
    %p88 = scmp.ne.s32.totalorder %s71, %s87
    %p89 = scmp.eq.s32.totalorder %s16, 0
    %p90 = por %p88, %p89
    %s91 = ssub.s32 %s10, %s17
    %p92 = scmp.eq.s32.totalorder %s91, 0
    %s94 = sadd.s32 %s93, 1
    %s95 = scalar_select %p92, %s93, %s94
    %p98 = pneg %p92
    %p99 = scmp.eq.s32.totalorder %s10, 1
    %p100 = por %p98, %p99
    %p101 = scmp.ne.s32.totalorder %s93, %s96
    %p102 = scmp.eq.s32.totalorder %s10, 0
    %p103 = por %p101, %p102
    %p104 = scmp.ne.s32.totalorder %s93, %s96
    %p105 = scmp.eq.s32.totalorder %s15, 1
    %p106 = por %p104, %p105
    %p107 = scmp.ne.s32.totalorder %s96, %s97
    %p108 = scmp.eq.s32.totalorder %s15, 0
    %p109 = por %p107, %p108
    %p110 = scmp.ne.s32.totalorder %s96, %s97
    %p111 = scmp.eq.s32.totalorder %s16, 1
    %p112 = por %p110, %p111
    %p114 = scmp.ne.s32.totalorder %s97, %s113
    %p115 = scmp.eq.s32.totalorder %s16, 0
    %p116 = por %p114, %p115
    %p117 = scmp.le.s32.totalorder 1, %s10
    %p118 = scmp.lt.s32.totalorder %s10, 3
    %p119 = pnand %p117, %p118
    %p120 = pneg %p119
    // Predicated region
    $region9: #{forward.29} parent=5 // pred_check
      _
    $region10: #{forward.29} parent=5 // pred_check_branch
      %122 = sbr.rel (%p119) target = $region12
    $region11: #{forward.29} parent=5 // pred_region
      %s123 = ssub.s32 %s10, 1
      // Predicated region
      $region13: #{forward.29} parent=11 // pred_check
        %p124 = pneg %p57
      $region14: #{forward.29} parent=11 // pred_check_branch
        %126 = sbr.rel (%p124) target = $region16
      $region15: #{forward.29} parent=11 // pred_region
        _
      $region16: #{forward.29} parent=11 // pred_fallthru
        _
    $region12: #{forward.29} parent=5 // pred_fallthru
      _
    %p127 = scmp.lt.s32.totalorder %s10, 2
    // Predicated region
    $region17: #{forward.29} parent=5 // pred_check
      %p128 = pneg %p127
    $region18: #{forward.29} parent=5 // pred_check_branch
      %130 = sbr.rel (%p128) target = $region20
    $region19: #{forward.29} parent=5 // pred_region
      // Predicated region
      $region21: #{forward.29} parent=19 // pred_check
        %p131 = pneg %p30
      $region22: #{forward.29} parent=19 // pred_check_branch
        %133 = sbr.rel (%p131) target = $region24
      $region23: #{forward.29} parent=19 // pred_region
        %s134 = smul.u32 8, %s10
        %p135 = scmp.lt.s32.totalorder %s134, 15
        %s136 = scalar_select %p135, %s134, 15
        %s137 = smul.addr %s136, 3
        %s138 = smul.addr %s137, 4
        %s139 = scalar_lea.vmem %s0, %s138
        %s140 = smul.u32 8, %s10
      $region24: #{forward.29} parent=19 // pred_fallthru
        _
    $region20: #{forward.29} parent=5 // pred_fallthru
      _
    %p141 = scmp.le.s32.totalorder 1, %s10
    %p142 = scmp.lt.s32.totalorder %s10, 3
    %p143 = pnand %p141, %p142
    %p144 = pneg %p143
    // Predicated region
    $region25: #{forward.29} parent=5 // pred_check
      _
    $region26: #{forward.29} parent=5 // pred_check_branch
      %146 = sbr.rel (%p143) target = $region28
    $region27: #{forward.29} parent=5 // pred_region
      %s147 = ssub.s32 %s10, 1
      %s148 = smul.u32 8, %s15
      %p149 = scmp.lt.s32.totalorder %s148, 15
      %s150 = scalar_select %p149, %s148, 15
      %s151 = smul.addr %s150, 3
      %s152 = smul.addr %s151, 4
      %s153 = scalar_lea.vmem %s0, %s152
      %p154 = pneg %p36
      %p155 = pneg %p33
      %p156 = pneg %p57
      %p157 = pneg %p54
      %p158 = pneg %p83
      %p159 = pneg %p80
      %s160 = smul.u32 8, %s15
      %p161 = scmp.lt.s32.totalorder %s160, 15
      %s162 = scalar_select %p161, %s160, 15
      %s163 = smul.addr %s162, 4
      %s164 = scalar_lea.vmem %s2, %s163
      %p165 = pneg %p109
      %p166 = pneg %p106
      %p167 = scmp.lt.s32.totalorder %s15, 1
      %s168 = scalar_select %p167, %s15, 1
      %s169 = smul.addr %s168, 2
      %s170 = scalar_lea.vmem %s3, %s169
      %s171 = smul.u32 8, %s15
      %p172 = scmp.lt.s32.totalorder %s171, 15
      %s173 = scalar_select %p172, %s171, 15
      %s174 = smul.addr %s173, 3
      %s175 = smul.addr %s174, 4
      %s176 = scalar_lea.vmem %s0, %s175
      %s177 = smul.u32 8, %s15
      %s178 = smul.u32 8, %s15
      %p179 = scmp.lt.s32.totalorder %s178, 15
      %s180 = scalar_select %p179, %s178, 15
      %s181 = smul.addr %s180, 4
      %s182 = scalar_lea.vmem %s2, %s181
      %s183 = smul.u32 8, %s15
      %p184 = scmp.lt.s32.totalorder %s15, 1
      %s185 = scalar_select %p184, %s15, 1
      %s186 = smul.addr %s185, 2
      %s187 = scalar_lea.vmem %s3, %s186
      %v189 = vld [vmem:[%s176] sm:$0xff]
      %v190 = vld [vmem:[%s176 + $0x8] sm:$0xf]
      %v191 = vld [vmem:[%s176 + $0xc] sm:$0xff]
      %v192 = vld [vmem:[%s176 + $0x14] sm:$0xf]
      %v193 = vld [vmem:[%s176 + $0x18] sm:$0xff]
      %v194 = vld [vmem:[%s176 + $0x20] sm:$0xf]
      %v195 = vld [vmem:[%s176 + $0x24] sm:$0xff]
      %v196 = vld [vmem:[%s176 + $0x2c] sm:$0xf]
      %v197 = vld [vmem:[%s176 + $0x30] sm:$0xff]
      %v198 = vld [vmem:[%s176 + $0x38] sm:$0xf]
      %v199 = vld [vmem:[%s176 + $0x3c] sm:$0xff]
      %v200 = vld [vmem:[%s176 + $0x44] sm:$0xf]
      %v201 = vld [vmem:[%s176 + $0x48] sm:$0xff]
      %v202 = vld [vmem:[%s176 + $0x50] sm:$0xf]
      %v203 = vld [vmem:[%s176 + $0x54] sm:$0xff]
      %v204 = vld [vmem:[%s176 + $0x5c] sm:$0xf]
      %v205 = vld [vmem:[%s1] sm:$0xf]
      %v206 = vld [vmem:[%s1 + $0x4] sm:$0xf]
      %v207 = vld [vmem:[%s1 + $0x8] sm:$0xf]
      %v208 = vld [vmem:[%s1 + $0xc] sm:$0xf]
      %v209 = vld [vmem:[%s1 + $0x10] sm:$0xf]
      %v210 = vld [vmem:[%s1 + $0x14] sm:$0xf]
      %v211 = vld [vmem:[%s1 + $0x18] sm:$0xf]
      %v212 = vld [vmem:[%s1 + $0x1c] sm:$0xf]
      %v213 = vld [vmem:[%s1 + $0x20] sm:$0xf]
      %v214 = vld [vmem:[%s1 + $0x24] sm:$0xf]
      %v215 = vld [vmem:[%s1 + $0x28] sm:$0xf]
      %v216 = vld [vmem:[%s1 + $0x2c] sm:$0xf]
      %v217 = vld [vmem:[%s1 + $0x30] sm:$0xf]
      %v218 = vld [vmem:[%s1 + $0x34] sm:$0xf]
      %v219 = vld [vmem:[%s1 + $0x38] sm:$0xf]
      %v220 = vld [vmem:[%s1 + $0x3c] sm:$0xf]
      %v221 = vld [vmem:[%s1 + $0x40] sm:$0xf]
      %v222 = vld [vmem:[%s1 + $0x44] sm:$0xf]
      %v223 = vld [vmem:[%s1 + $0x48] sm:$0xf]
      %v224 = vld [vmem:[%s1 + $0x4c] sm:$0xf]
      %v225 = vld [vmem:[%s1 + $0x50] sm:$0xf]
      %v226 = vld [vmem:[%s1 + $0x54] sm:$0xf]
      %v227 = vld [vmem:[%s1 + $0x58] sm:$0xf]
      %v228 = vld [vmem:[%s1 + $0x5c] sm:$0xf]
      %v229 = vld [vmem:[%s1 + $0x60] sm:$0xf]
      %v230 = vld [vmem:[%s1 + $0x64] sm:$0xf]
      %v231 = vld [vmem:[%s1 + $0x68] sm:$0xf]
      %v232 = vld [vmem:[%s1 + $0x6c] sm:$0xf]
      %v233 = vld [vmem:[%s1 + $0x70] sm:$0xf]
      %v234 = vld [vmem:[%s1 + $0x74] sm:$0xf]
      %v235 = vld [vmem:[%s1 + $0x78] sm:$0xf]
      %v236 = vld [vmem:[%s1 + $0x7c] sm:$0xf]
      %v237 = vld [vmem:[%s1 + $0x80] sm:$0xf]
      %v238 = vld [vmem:[%s1 + $0x84] sm:$0xf]
      %v239 = vld [vmem:[%s1 + $0x88] sm:$0xf]
      %v240 = vld [vmem:[%s1 + $0x8c] sm:$0xf]
      %v241 = vld [vmem:[%s1 + $0x90] sm:$0xf]
      %v242 = vld [vmem:[%s1 + $0x94] sm:$0xf]
      %v243 = vld [vmem:[%s1 + $0x98] sm:$0xf]
      %v244 = vld [vmem:[%s1 + $0x9c] sm:$0xf]
      %v245 = vld [vmem:[%s1 + $0xa0] sm:$0xf]
      %v246 = vld [vmem:[%s1 + $0xa4] sm:$0xf]
      %v247 = vld [vmem:[%s1 + $0xa8] sm:$0xf]
      %v248 = vld [vmem:[%s1 + $0xac] sm:$0xf]
      %v249 = vld [vmem:[%s1 + $0xb0] sm:$0xf]
      %v250 = vld [vmem:[%s1 + $0xb4] sm:$0xf]
      %v251 = vld [vmem:[%s1 + $0xb8] sm:$0xf]
      %v252 = vld [vmem:[%s1 + $0xbc] sm:$0xf]
      %v269 = vunpack.c.l.b16 %v189
      %v270 = vunpack.c.h.b16 %v189
      %v271 = vunpack.c.l.b16 %v190
      %v272 = vunpack.c.l.b16 %v191
      %v273 = vunpack.c.h.b16 %v191
      %v274 = vunpack.c.l.b16 %v192
      %v275 = vunpack.c.l.b16 %v193
      %v276 = vunpack.c.h.b16 %v193
      %v277 = vunpack.c.l.b16 %v194
      %v278 = vunpack.c.l.b16 %v195
      %v279 = vunpack.c.h.b16 %v195
      %v280 = vunpack.c.l.b16 %v196
      %v281 = vunpack.c.l.b16 %v197
      %v282 = vunpack.c.h.b16 %v197
      %v283 = vunpack.c.l.b16 %v198
      %v284 = vunpack.c.l.b16 %v199
      %v285 = vunpack.c.h.b16 %v199
      %v286 = vunpack.c.l.b16 %v200
      %v287 = vunpack.c.l.b16 %v201
      %v288 = vunpack.c.h.b16 %v201
      %v289 = vunpack.c.l.b16 %v202
      %v290 = vunpack.c.l.b16 %v203
      %v291 = vunpack.c.h.b16 %v203
      %v292 = vunpack.c.l.b16 %v204
      %v293 = vpack.c.b16 %v272, %v269
      %v294 = vpack.c.b16 %v273, %v270
      %v295 = vpack.c.b16 %v274, %v271
      %v296 = vpack.c.b16 %v278, %v275
      %v297 = vpack.c.b16 %v279, %v276
      %v298 = vpack.c.b16 %v280, %v277
      %v299 = vpack.c.b16 %v284, %v281
      %v300 = vpack.c.b16 %v285, %v282
      %v301 = vpack.c.b16 %v286, %v283
      %v302 = vpack.c.b16 %v290, %v287
      %v303 = vpack.c.b16 %v291, %v288
      %v304 = vpack.c.b16 %v292, %v289
      %v365 = vunpack.c.l.b16 %v205
      %v366 = vunpack.c.l.b16 %v206
      %v367 = vunpack.c.l.b16 %v207
      %v368 = vunpack.c.l.b16 %v208
      %v369 = vunpack.c.l.b16 %v209
      %v370 = vunpack.c.l.b16 %v210
      %v371 = vunpack.c.l.b16 %v211
      %v372 = vunpack.c.l.b16 %v212
      %v373 = vunpack.c.l.b16 %v213
      %v374 = vunpack.c.l.b16 %v214
      %v375 = vunpack.c.l.b16 %v215
      %v376 = vunpack.c.l.b16 %v216
      %v377 = vunpack.c.l.b16 %v217
      %v378 = vunpack.c.l.b16 %v218
      %v379 = vunpack.c.l.b16 %v219
      %v380 = vunpack.c.l.b16 %v220
      %v381 = vunpack.c.l.b16 %v221
      %v382 = vunpack.c.l.b16 %v222
      %v383 = vunpack.c.l.b16 %v223
      %v384 = vunpack.c.l.b16 %v224
      %v385 = vunpack.c.l.b16 %v225
      %v386 = vunpack.c.l.b16 %v226
      %v387 = vunpack.c.l.b16 %v227
      %v388 = vunpack.c.l.b16 %v228
      %v389 = vunpack.c.l.b16 %v229
      %v390 = vunpack.c.l.b16 %v230
      %v391 = vunpack.c.l.b16 %v231
      %v392 = vunpack.c.l.b16 %v232
      %v393 = vunpack.c.l.b16 %v233
      %v394 = vunpack.c.l.b16 %v234
      %v395 = vunpack.c.l.b16 %v235
      %v396 = vunpack.c.l.b16 %v236
      %v397 = vunpack.c.l.b16 %v237
      %v398 = vunpack.c.l.b16 %v238
      %v399 = vunpack.c.l.b16 %v239
      %v400 = vunpack.c.l.b16 %v240
      %v401 = vunpack.c.l.b16 %v241
      %v402 = vunpack.c.l.b16 %v242
      %v403 = vunpack.c.l.b16 %v243
      %v404 = vunpack.c.l.b16 %v244
      %v405 = vunpack.c.l.b16 %v245
      %v406 = vunpack.c.l.b16 %v246
      %v407 = vunpack.c.l.b16 %v247
      %v408 = vunpack.c.l.b16 %v248
      %v409 = vunpack.c.l.b16 %v249
      %v410 = vunpack.c.l.b16 %v250
      %v411 = vunpack.c.l.b16 %v251
      %v412 = vunpack.c.l.b16 %v252
      %v413 = vpack.c.b16 %v366, %v365
      %v414 = vpack.c.b16 %v368, %v367
      %v415 = vpack.c.b16 %v370, %v369
      %v416 = vpack.c.b16 %v372, %v371
      %v417 = vpack.c.b16 %v374, %v373
      %v418 = vpack.c.b16 %v376, %v375
      %v419 = vpack.c.b16 %v378, %v377
      %v420 = vpack.c.b16 %v380, %v379
      %v421 = vpack.c.b16 %v382, %v381
      %v422 = vpack.c.b16 %v384, %v383
      %v423 = vpack.c.b16 %v386, %v385
      %v424 = vpack.c.b16 %v388, %v387
      %v425 = vpack.c.b16 %v390, %v389
      %v426 = vpack.c.b16 %v392, %v391
      %v427 = vpack.c.b16 %v394, %v393
      %v428 = vpack.c.b16 %v396, %v395
      %v429 = vpack.c.b16 %v398, %v397
      %v430 = vpack.c.b16 %v400, %v399
      %v431 = vpack.c.b16 %v402, %v401
      %v432 = vpack.c.b16 %v404, %v403
      %v433 = vpack.c.b16 %v406, %v405
      %v434 = vpack.c.b16 %v408, %v407
      %v435 = vpack.c.b16 %v410, %v409
      %v436 = vpack.c.b16 %v412, %v411
      %461 = vmatprep.subr.bf16.mxu0 0
      %462 = vmatpush1.bf16.msra.mxu0 %v413
      %463 = vmatprep.subr.bf16.mxu0 0
      %464 = vmatpush1.bf16.msra.mxu0 %v414
      %465 = vmatprep.subr.bf16.mxu0 0
      %466 = vmatpush1.bf16.msra.mxu0 %v415
      %467 = vmatprep.subr.bf16.mxu0 0
      %468 = vmatpush1.bf16.msra.mxu0 %v416
      %469 = vmatprep.subr.bf16.mxu0 0
      %470 = vmatpush1.bf16.msra.mxu0 %v417
      %471 = vmatprep.subr.bf16.mxu0 0
      %472 = vmatpush1.bf16.msra.mxu0 %v418
      %473 = vmatprep.subr.bf16.mxu0 0
      %474 = vmatpush1.bf16.msra.mxu0 %v419
      %475 = vmatprep.subr.bf16.mxu0 0
      %476 = vmatpush1.bf16.msra.mxu0 %v420
      %477 = vmatprep.subr.bf16.mxu0 0
      %478 = vmatpush1.bf16.msra.mxu0 %v421
      %479 = vmatprep.subr.bf16.mxu0 0
      %480 = vmatpush1.bf16.msra.mxu0 %v422
      %481 = vmatprep.subr.bf16.mxu0 0
      %482 = vmatpush1.bf16.msra.mxu0 %v423
      %483 = vmatprep.subr.bf16.mxu0 0
      %484 = vmatpush1.bf16.msra.mxu0 %v424
      %485 = vmatprep.subr.bf16.mxu0 0
      %486 = vmatpush1.bf16.msra.mxu0 %v425
      %487 = vmatprep.subr.bf16.mxu0 0
      %488 = vmatpush1.bf16.msra.mxu0 %v426
      %489 = vmatprep.subr.bf16.mxu0 0
      %490 = vmatpush1.bf16.msra.mxu0 %v427
      %491 = vmatprep.subr.bf16.mxu0 0
      %492 = vmatpush1.bf16.msra.mxu0 %v428
      %493 = vmatprep.mubr.bf16.mxu0 %v294
      %494 = vmatmul.mubr.bf16.gmra.mrb[0].mxu0 %v293
      %v495 = vpop.f32.mrb[0].mxu0
      %v496 = vadd.f32 0.0, %v495
      %v497 = vpop.f32.mrb[0].mxu0
      %v498 = vpop.f32.mrb[0].mxu0
      %v499 = vadd.f32 0.0, %v498
      %v500 = vpop.f32.mrb[0].mxu0
      %501 = vmatprep.mubr.bf16.mxu0 %v297
      %502 = vmatmul.mubr.bf16.gmra.mrb[0].mxu0 %v296
      %v503 = vpop.f32.mrb[0].mxu0
      %v504 = vadd.f32 0.0, %v503
      %v505 = vpop.f32.mrb[0].mxu0
      %v506 = vpop.f32.mrb[0].mxu0
      %v507 = vadd.f32 0.0, %v506
      %v508 = vpop.f32.mrb[0].mxu0
      %509 = vmatprep.mubr.bf16.mxu0 %v300
      %510 = vmatmul.mubr.bf16.gmra.mrb[0].mxu0 %v299
      %v511 = vpop.f32.mrb[0].mxu0
      %v512 = vadd.f32 0.0, %v511
      %v513 = vpop.f32.mrb[0].mxu0
      %v514 = vpop.f32.mrb[0].mxu0
      %v515 = vadd.f32 0.0, %v514
      %v516 = vpop.f32.mrb[0].mxu0
      %517 = vmatprep.mubr.bf16.mxu0 %v303
      %518 = vmatmul.mubr.bf16.gmra.mrb[0].mxu0 %v302
      %v519 = vpop.f32.mrb[0].mxu0
      %v520 = vadd.f32 0.0, %v519
      %v521 = vpop.f32.mrb[0].mxu0
      %v522 = vpop.f32.mrb[0].mxu0
      %v523 = vadd.f32 0.0, %v522
      %v524 = vpop.f32.mrb[0].mxu0
      %525 = vdwg.mxu0
      %526 = vmatprep.subr.bf16.mxu0 0
      %527 = vmatpush1.bf16.msra.mxu0 %v429
      %528 = vmatprep.subr.bf16.mxu0 0
      %529 = vmatpush1.bf16.msra.mxu0 %v430
      %530 = vmatprep.subr.bf16.mxu0 0
      %531 = vmatpush1.bf16.msra.mxu0 %v431
      %532 = vmatprep.subr.bf16.mxu0 0
      %533 = vmatpush1.bf16.msra.mxu0 %v432
      %534 = vmatprep.subr.bf16.mxu0 0
      %535 = vmatpush1.bf16.msra.mxu0 %v433
      %536 = vmatprep.subr.bf16.mxu0 0
      %537 = vmatpush1.bf16.msra.mxu0 %v434
      %538 = vmatprep.subr.bf16.mxu0 0
      %539 = vmatpush1.bf16.msra.mxu0 %v435
      %540 = vmatprep.subr.bf16.mxu0 0
      %541 = vmatpush1.bf16.msra.mxu0 %v436
      %542 = vmatprep.subr.bf16.mxu0 0
      %543 = vmatpush1.bf16.msra.mxu0 0
      %544 = vmatprep.subr.bf16.mxu0 0
      %545 = vmatpush1.bf16.msra.mxu0 0
      %546 = vmatprep.subr.bf16.mxu0 0
      %547 = vmatpush1.bf16.msra.mxu0 0
      %548 = vmatprep.subr.bf16.mxu0 0
      %549 = vmatpush1.bf16.msra.mxu0 0
      %550 = vmatprep.subr.bf16.mxu0 0
      %551 = vmatpush1.bf16.msra.mxu0 0
      %552 = vmatprep.subr.bf16.mxu0 0
      %553 = vmatpush1.bf16.msra.mxu0 0
      %554 = vmatprep.subr.bf16.mxu0 0
      %555 = vmatpush1.bf16.msra.mxu0 0
      %556 = vmatprep.subr.bf16.mxu0 0
      %557 = vmatpush1.bf16.msra.mxu0 0
      %558 = vmatprep.mubr.bf16.mxu0 0
      %559 = vmatmul.mubr.bf16.gmra.mrb[0].mxu0 %v295
      %v560 = vpop.f32.mrb[0].mxu0
      %v561 = vadd.f32 %v496, %v560
      %v562 = vpop.f32.mrb[0].mxu0
      %v563 = vpop.f32.mrb[0].mxu0
      %v564 = vadd.f32 %v499, %v563
      %v565 = vpop.f32.mrb[0].mxu0
      %566 = vmatprep.mubr.bf16.mxu0 0
      %567 = vmatmul.mubr.bf16.gmra.mrb[0].mxu0 %v298
      %v568 = vpop.f32.mrb[0].mxu0
      %v569 = vadd.f32 %v504, %v568
      %v570 = vpop.f32.mrb[0].mxu0
      %v571 = vpop.f32.mrb[0].mxu0
      %v572 = vadd.f32 %v507, %v571
      %v573 = vpop.f32.mrb[0].mxu0
      %574 = vmatprep.mubr.bf16.mxu0 0
      %575 = vmatmul.mubr.bf16.gmra.mrb[0].mxu0 %v301
      %v576 = vpop.f32.mrb[0].mxu0
      %v577 = vadd.f32 %v512, %v576
      %v578 = vpop.f32.mrb[0].mxu0
      %v579 = vpop.f32.mrb[0].mxu0
      %v580 = vadd.f32 %v515, %v579
      %v581 = vpop.f32.mrb[0].mxu0
      %582 = vmatprep.mubr.bf16.mxu0 0
      %583 = vmatmul.mubr.bf16.gmra.mrb[0].mxu0 %v304
      %v584 = vpop.f32.mrb[0].mxu0
      %v585 = vadd.f32 %v520, %v584
      %v586 = vpop.f32.mrb[0].mxu0
      %v587 = vpop.f32.mrb[0].mxu0
      %v588 = vadd.f32 %v523, %v587
      %v589 = vpop.f32.mrb[0].mxu0
      %590 = vdwg.mxu0
      %v591 = vpack.c.bf16 %v564, %v561
      %v592 = vpack.c.bf16 %v572, %v569
      %v593 = vpack.c.bf16 %v580, %v577
      %v594 = vpack.c.bf16 %v588, %v585
      %v599 = vunpack.c.l.b16 %v591
      %v600 = vunpack.c.h.b16 %v591
      %v601 = vunpack.c.l.b16 %v592
      %v602 = vunpack.c.h.b16 %v592
      %v603 = vunpack.c.l.b16 %v593
      %v604 = vunpack.c.h.b16 %v593
      %v605 = vunpack.c.l.b16 %v594
      %v606 = vunpack.c.h.b16 %v594
      %v607 = vpack.c.b16 %v599, %v599
      %v608 = vpack.c.b16 %v600, %v600
      %v609 = vpack.c.b16 %v601, %v601
      %v610 = vpack.c.b16 %v602, %v602
      %v611 = vpack.c.b16 %v603, %v603
      %v612 = vpack.c.b16 %v604, %v604
      %v613 = vpack.c.b16 %v605, %v605
      %v614 = vpack.c.b16 %v606, %v606
      %623 = vst [vmem:[%s182] sm:$0xf] %v607
      %624 = vst [vmem:[%s182 + $0x4] sm:$0xf] %v608
      %625 = vst [vmem:[%s182 + $0x8] sm:$0xf] %v609
      %626 = vst [vmem:[%s182 + $0xc] sm:$0xf] %v610
      %627 = vst [vmem:[%s182 + $0x10] sm:$0xf] %v611
      %628 = vst [vmem:[%s182 + $0x14] sm:$0xf] %v612
      %629 = vst [vmem:[%s182 + $0x18] sm:$0xf] %v613
      %630 = vst [vmem:[%s182 + $0x1c] sm:$0xf] %v614
      %v631 = vadd.f32 %v561, %v564
      %v632 = vadd.f32 %v631, %v569
      %v633 = vadd.f32 %v632, %v572
      %v634 = vadd.f32 %v633, %v577
      %v635 = vadd.f32 %v634, %v580
      %v636 = vadd.f32 %v635, %v585
      %v637 = vadd.f32 %v636, %v588
      %v638 = vrot.slane %v637, 4
      %v639 = vadd.f32 %v637, %v638
      %v640 = vrot.slane %v639, 2
      %v641 = vadd.f32 %v639, %v640
      %v642 = vrot.slane %v641, 1
      %v643 = vadd.f32 %v641, %v642
      %v644 = vmul.f32 %v561, %v561
      %v645 = vmul.f32 %v564, %v564
      %v646 = vmul.f32 %v569, %v569
      %v647 = vmul.f32 %v572, %v572
      %v648 = vmul.f32 %v577, %v577
      %v649 = vmul.f32 %v580, %v580
      %v650 = vmul.f32 %v585, %v585
      %v651 = vmul.f32 %v588, %v588
      %v652 = vadd.f32 %v644, %v645
      %v653 = vadd.f32 %v652, %v646
      %v654 = vadd.f32 %v653, %v647
      %v655 = vadd.f32 %v654, %v648
      %v656 = vadd.f32 %v655, %v649
      %v657 = vadd.f32 %v656, %v650
      %v658 = vadd.f32 %v657, %v651
      %v659 = vrot.slane %v658, 4
      %v660 = vadd.f32 %v658, %v659
      %v661 = vrot.slane %v660, 2
      %v662 = vadd.f32 %v660, %v661
      %v663 = vrot.slane %v662, 1
      %v664 = vadd.f32 %v662, %v663
      %vm665 = vcmask 1040384
      %v666 = vsel %vm665, %v643, %v664
      %667 = vst [vmem:[%s187] sm:$0x3] %v666
      %s668 = smul.u32 8, %s15
      %p669 = scmp.lt.s32.totalorder %s668, 15
      %s670 = scalar_select %p669, %s668, 15
      %s671 = smul.addr %s670, 4
      %s672 = scalar_lea.vmem %s2, %s671
      %p673 = scmp.lt.s32.totalorder %s15, 1
      %s674 = scalar_select %p673, %s15, 1
      %s675 = smul.addr %s674, 2
      %s676 = scalar_lea.vmem %s3, %s675
      // Predicated region
      $region29: #{forward.29} parent=27 // pred_check
        %p677 = pneg %p80
      $region30: #{forward.29} parent=27 // pred_check_branch
        %679 = sbr.rel (%p677) target = $region32
      $region31: #{forward.29} parent=27 // pred_region
        %s680 = smul.u32 8, %s15
      $region32: #{forward.29} parent=27 // pred_fallthru
        _
      // Predicated region
      $region33: #{forward.29} parent=27 // pred_check
        %p681 = pneg %p106
      $region34: #{forward.29} parent=27 // pred_check_branch
        %683 = sbr.rel (%p681) target = $region36
      $region35: #{forward.29} parent=27 // pred_region
        _
      $region36: #{forward.29} parent=27 // pred_fallthru
        _
    $region28: #{forward.29} parent=5 // pred_fallthru
      _
    %p684 = scmp.le.s32.totalorder 2, %s10
    // Predicated region
    $region37: #{forward.29} parent=5 // pred_check
      %p685 = pneg %p684
    $region38: #{forward.29} parent=5 // pred_check_branch
      %687 = sbr.rel (%p685) target = $region40
    $region39: #{forward.29} parent=5 // pred_region
      %s688 = ssub.s32 %s10, 2
      // Predicated region
      $region41: #{forward.29} parent=39 // pred_check
        %p689 = pneg %p86
      $region42: #{forward.29} parent=39 // pred_check_branch
        %691 = sbr.rel (%p689) target = $region44
      $region43: #{forward.29} parent=39 // pred_region
        %s692 = smul.u32 8, %s16
        %p693 = scmp.lt.s32.totalorder %s692, 15
        %s694 = scalar_select %p693, %s692, 15
        %s695 = smul.addr %s694, 4
        %s696 = scalar_lea.vmem %s2, %s695
      $region44: #{forward.29} parent=39 // pred_fallthru
        _
      // Predicated region
      $region45: #{forward.29} parent=39 // pred_check
        %p697 = pneg %p112
      $region46: #{forward.29} parent=39 // pred_check_branch
        %699 = sbr.rel (%p697) target = $region48
      $region47: #{forward.29} parent=39 // pred_region
        %p700 = scmp.lt.s32.totalorder %s16, 1
        %s701 = scalar_select %p700, %s16, 1
        %s702 = smul.addr %s701, 2
        %s703 = scalar_lea.vmem %s3, %s702
      $region48: #{forward.29} parent=39 // pred_fallthru
        _
    $region40: #{forward.29} parent=5 // pred_fallthru
      _
  $region6: #{forward.29} parent=0 // loop_footer
    %s14 = sadd.s32 1, %s10
  $region7: #{forward.29} parent=0 // loop_footer_branch
    %9 = sbr.rel target = $region3
  $region8: #{forward.29} parent=0 // loop_exit
    _

// kernel: forward.30
$region0: #{forward.30}
  #allocation0 [shape = 'u32[]', space=smem, size = 0x4, offset = 0x4, fixed_abs, tag = 'smem constant byte address 0x4 - core index']
  #allocation1 [shape = 'u32[144,128]{1,0:T(1,128)}', space=vmem, size = 0x12000, scoped, tag = 'internal scratch']
  %s0 = inlined_call_operand.vmem [shape: bf16[128,128], index: 0, kind: input, shape index: {}]
  %s1 = inlined_call_operand.vmem [shape: f32[1,128], index: 1, kind: input, shape index: {}]
  %s2 = inlined_call_operand.vmem [shape: f32[1,128], index: 2, kind: input, shape index: {}]
  %s3 = inlined_call_operand.vmem [shape: bf16[128,128], index: 3, kind: input, shape index: {}]
  %s4 = inlined_call_operand.vmem [shape: bf16[128,128], index: 4, kind: output, shape index: {}]
  %s5 = sld [smem:[#allocation0]]
  $region49: #{forward.30} parent=0
    _
  %s7 = ssub.s32 1, %s5
  %s8 = scalar_select 0, %s7, %s5
  loop: start=0, step=1, limit=4
  $region2: #{forward.30} parent=0 // loop_pre_header
    _
  $region3: #{forward.30} parent=0 // loop_header
    %s10 = sphi 0, %s14
    %p11 = scmp.ge.s32.totalorder %s10, 4
    %s20 = sphi 0, %s22
    %s23 = sphi 0, %s20
    %s24 = sphi 0, %s23
    %s40 = sphi 0, %s24
    %s44 = sphi 0, %s44
    %s46 = sphi 0, %s44
    %s47 = sphi 0, %s46
    %s61 = sphi 0, %s47
    %s65 = sphi 0, %s65
    %s67 = sphi 0, %s65
    %s68 = sphi 0, %s67
    %s82 = sphi 0, %s68
    %s88 = sphi 0, %s90
    %s91 = sphi 0, %s88
    %s92 = sphi 0, %s91
    %s108 = sphi 0, %s92
    %s114 = sphi 0, %s116
    %s117 = sphi 0, %s114
    %s118 = sphi 0, %s117
    %s134 = sphi 0, %s118
  $region4: #{forward.30} parent=0 // loop_header_branch
    %13 = sbr.rel (%p11) target = $region8
  $region5: #{forward.30} parent=0 // loop_body
    %s15 = ssub.s32 %s10, 1
    %s16 = ssub.s32 %s10, 2
    %s17 = sadd.s32 %s10, 1
    %s18 = ssub.s32 %s10, %s17
    %p19 = scmp.eq.s32.totalorder %s18, 0
    %s21 = sadd.s32 %s20, 1
    %s22 = scalar_select %p19, %s20, %s21
    %p25 = pneg %p19
    %p26 = scmp.eq.s32.totalorder %s10, 1
    %p27 = por %p25, %p26
    %p28 = scmp.ne.s32.totalorder %s20, %s23
    %p29 = scmp.eq.s32.totalorder %s10, 0
    %p30 = por %p28, %p29
    %p31 = scmp.ne.s32.totalorder %s20, %s23
    %p32 = scmp.eq.s32.totalorder %s15, 1
    %p33 = por %p31, %p32
    %p34 = scmp.ne.s32.totalorder %s23, %s24
    %p35 = scmp.eq.s32.totalorder %s15, 0
    %p36 = por %p34, %p35
    %p37 = scmp.ne.s32.totalorder %s23, %s24
    %p38 = scmp.eq.s32.totalorder %s16, 1
    %p39 = por %p37, %p38
    %p41 = scmp.ne.s32.totalorder %s24, %s40
    %p42 = scmp.eq.s32.totalorder %s16, 0
    %p43 = por %p41, %p42
    %s45 = sadd.s32 %s44, 1
    %p48 = scmp.eq.s32.totalorder %s10, 1
    %p49 = scmp.ne.s32.totalorder %s44, %s46
    %p50 = scmp.eq.s32.totalorder %s10, 0
    %p51 = por %p49, %p50
    %p52 = scmp.ne.s32.totalorder %s44, %s46
    %p53 = scmp.eq.s32.totalorder %s15, 1
    %p54 = por %p52, %p53
    %p55 = scmp.ne.s32.totalorder %s46, %s47
    %p56 = scmp.eq.s32.totalorder %s15, 0
    %p57 = por %p55, %p56
    %p58 = scmp.ne.s32.totalorder %s46, %s47
    %p59 = scmp.eq.s32.totalorder %s16, 1
    %p60 = por %p58, %p59
    %p62 = scmp.ne.s32.totalorder %s47, %s61
    %p63 = scmp.eq.s32.totalorder %s16, 0
    %p64 = por %p62, %p63
    %s66 = sadd.s32 %s65, 1
    %p69 = scmp.eq.s32.totalorder %s10, 1
    %p70 = scmp.ne.s32.totalorder %s65, %s67
    %p71 = scmp.eq.s32.totalorder %s10, 0
    %p72 = por %p70, %p71
    %p73 = scmp.ne.s32.totalorder %s65, %s67
    %p74 = scmp.eq.s32.totalorder %s15, 1
    %p75 = por %p73, %p74
    %p76 = scmp.ne.s32.totalorder %s67, %s68
    %p77 = scmp.eq.s32.totalorder %s15, 0
    %p78 = por %p76, %p77
    %p79 = scmp.ne.s32.totalorder %s67, %s68
    %p80 = scmp.eq.s32.totalorder %s16, 1
    %p81 = por %p79, %p80
    %p83 = scmp.ne.s32.totalorder %s68, %s82
    %p84 = scmp.eq.s32.totalorder %s16, 0
    %p85 = por %p83, %p84
    %s86 = ssub.s32 %s10, %s17
    %p87 = scmp.eq.s32.totalorder %s86, 0
    %s89 = sadd.s32 %s88, 1
    %s90 = scalar_select %p87, %s88, %s89
    %p93 = pneg %p87
    %p94 = scmp.eq.s32.totalorder %s10, 1
    %p95 = por %p93, %p94
    %p96 = scmp.ne.s32.totalorder %s88, %s91
    %p97 = scmp.eq.s32.totalorder %s10, 0
    %p98 = por %p96, %p97
    %p99 = scmp.ne.s32.totalorder %s88, %s91
    %p100 = scmp.eq.s32.totalorder %s15, 1
    %p101 = por %p99, %p100
    %p102 = scmp.ne.s32.totalorder %s91, %s92
    %p103 = scmp.eq.s32.totalorder %s15, 0
    %p104 = por %p102, %p103
    %p105 = scmp.ne.s32.totalorder %s91, %s92
    %p106 = scmp.eq.s32.totalorder %s16, 1
    %p107 = por %p105, %p106
    %p109 = scmp.ne.s32.totalorder %s92, %s108
    %p110 = scmp.eq.s32.totalorder %s16, 0
    %p111 = por %p109, %p110
    %s112 = ssub.s32 %s10, %s17
    %p113 = scmp.eq.s32.totalorder %s112, 0
    %s115 = sadd.s32 %s114, 1
    %s116 = scalar_select %p113, %s114, %s115
    %p119 = pneg %p113
    %p120 = scmp.eq.s32.totalorder %s10, 1
    %p121 = por %p119, %p120
    %p122 = scmp.ne.s32.totalorder %s114, %s117
    %p123 = scmp.eq.s32.totalorder %s10, 0
    %p124 = por %p122, %p123
    %p125 = scmp.ne.s32.totalorder %s114, %s117
    %p126 = scmp.eq.s32.totalorder %s15, 1
    %p127 = por %p125, %p126
    %p128 = scmp.ne.s32.totalorder %s117, %s118
    %p129 = scmp.eq.s32.totalorder %s15, 0
    %p130 = por %p128, %p129
    %p131 = scmp.ne.s32.totalorder %s117, %s118
    %p132 = scmp.eq.s32.totalorder %s16, 1
    %p133 = por %p131, %p132
    %p135 = scmp.ne.s32.totalorder %s118, %s134
    %p136 = scmp.eq.s32.totalorder %s16, 0
    %p137 = por %p135, %p136
    %p138 = scmp.le.s32.totalorder 1, %s10
    %p139 = scmp.lt.s32.totalorder %s10, 3
    %p140 = pnand %p138, %p139
    %p141 = pneg %p140
    // Predicated region
    $region9: #{forward.30} parent=5 // pred_check
      _
    $region10: #{forward.30} parent=5 // pred_check_branch
      %143 = sbr.rel (%p140) target = $region12
    $region11: #{forward.30} parent=5 // pred_region
      %s144 = ssub.s32 %s10, 1
      // Predicated region
      $region13: #{forward.30} parent=11 // pred_check
        %p145 = pneg %p57
      $region14: #{forward.30} parent=11 // pred_check_branch
        %147 = sbr.rel (%p145) target = $region16
      $region15: #{forward.30} parent=11 // pred_region
        _
      $region16: #{forward.30} parent=11 // pred_fallthru
        _
      // Predicated region
      $region17: #{forward.30} parent=11 // pred_check
        %p148 = pneg %p78
      $region18: #{forward.30} parent=11 // pred_check_branch
        %150 = sbr.rel (%p148) target = $region20
      $region19: #{forward.30} parent=11 // pred_region
        _
      $region20: #{forward.30} parent=11 // pred_fallthru
        _
    $region12: #{forward.30} parent=5 // pred_fallthru
      _
    %p151 = scmp.lt.s32.totalorder %s10, 2
    // Predicated region
    $region21: #{forward.30} parent=5 // pred_check
      %p152 = pneg %p151
    $region22: #{forward.30} parent=5 // pred_check_branch
      %154 = sbr.rel (%p152) target = $region24
    $region23: #{forward.30} parent=5 // pred_region
      // Predicated region
      $region25: #{forward.30} parent=23 // pred_check
        %p155 = pneg %p30
      $region26: #{forward.30} parent=23 // pred_check_branch
        %157 = sbr.rel (%p155) target = $region28
      $region27: #{forward.30} parent=23 // pred_region
        %s158 = smul.u32 8, %s10
        %p159 = scmp.lt.s32.totalorder %s158, 15
        %s160 = scalar_select %p159, %s158, 15
        %s161 = smul.addr %s160, 4
        %s162 = scalar_lea.vmem %s0, %s161
        %s163 = smul.u32 8, %s10
      $region28: #{forward.30} parent=23 // pred_fallthru
        _
      // Predicated region
      $region29: #{forward.30} parent=23 // pred_check
        %p164 = pneg %p98
      $region30: #{forward.30} parent=23 // pred_check_branch
        %166 = sbr.rel (%p164) target = $region32
      $region31: #{forward.30} parent=23 // pred_region
        %s167 = smul.u32 8, %s10
        %p168 = scmp.lt.s32.totalorder %s167, 15
        %s169 = scalar_select %p168, %s167, 15
        %s170 = smul.addr %s169, 4
        %s171 = scalar_lea.vmem %s3, %s170
        %s172 = smul.u32 8, %s10
      $region32: #{forward.30} parent=23 // pred_fallthru
        _
    $region24: #{forward.30} parent=5 // pred_fallthru
      _
    %p173 = scmp.le.s32.totalorder 1, %s10
    %p174 = scmp.lt.s32.totalorder %s10, 3
    %p175 = pnand %p173, %p174
    %p176 = pneg %p175
    // Predicated region
    $region33: #{forward.30} parent=5 // pred_check
      _
    $region34: #{forward.30} parent=5 // pred_check_branch
      %178 = sbr.rel (%p175) target = $region36
    $region35: #{forward.30} parent=5 // pred_region
      %s179 = ssub.s32 %s10, 1
      %s180 = smul.u32 8, %s15
      %p181 = scmp.lt.s32.totalorder %s180, 15
      %s182 = scalar_select %p181, %s180, 15
      %s183 = smul.addr %s182, 4
      %s184 = scalar_lea.vmem %s0, %s183
      %p185 = pneg %p36
      %p186 = pneg %p33
      %p187 = pneg %p57
      %p188 = pneg %p54
      %p189 = pneg %p78
      %p190 = pneg %p75
      %s191 = smul.u32 8, %s15
      %p192 = scmp.lt.s32.totalorder %s191, 15
      %s193 = scalar_select %p192, %s191, 15
      %s194 = smul.addr %s193, 4
      %s195 = scalar_lea.vmem %s3, %s194
      %p196 = pneg %p104
      %p197 = pneg %p101
      %p198 = pneg %p130
      %p199 = pneg %p127
      %s200 = smul.u32 8, %s15
      %p201 = scmp.lt.s32.totalorder %s200, 15
      %s202 = scalar_select %p201, %s200, 15
      %s203 = smul.addr %s202, 4
      %s204 = scalar_lea.vmem %s4, %s203
      %s205 = smul.u32 8, %s15
      %p206 = scmp.lt.s32.totalorder %s205, 15
      %s207 = scalar_select %p206, %s205, 15
      %s208 = smul.addr %s207, 4
      %s209 = scalar_lea.vmem %s0, %s208
      %s210 = smul.u32 8, %s15
      %s211 = smul.u32 8, %s15
      %p212 = scmp.lt.s32.totalorder %s211, 15
      %s213 = scalar_select %p212, %s211, 15
      %s214 = smul.addr %s213, 4
      %s215 = scalar_lea.vmem %s3, %s214
      %s216 = smul.u32 8, %s15
      %s217 = smul.u32 8, %s15
      %p218 = scmp.lt.s32.totalorder %s217, 15
      %s219 = scalar_select %p218, %s217, 15
      %s220 = smul.addr %s219, 4
      %s221 = scalar_lea.vmem %s4, %s220
      %s222 = smul.u32 8, %s15
      %v223 = vld [vmem:[%s209] sm:$0xf]
      %v224 = vld [vmem:[%s209 + $0x4] sm:$0xf]
      %v225 = vld [vmem:[%s209 + $0x8] sm:$0xf]
      %v226 = vld [vmem:[%s209 + $0xc] sm:$0xf]
      %v227 = vld [vmem:[%s209 + $0x10] sm:$0xf]
      %v228 = vld [vmem:[%s209 + $0x14] sm:$0xf]
      %v229 = vld [vmem:[%s209 + $0x18] sm:$0xf]
      %v230 = vld [vmem:[%s209 + $0x1c] sm:$0xf]
      %v231 = vunpack.c.l.bf16 %v223
      %v232 = vunpack.c.l.bf16 %v224
      %v233 = vunpack.c.l.bf16 %v225
      %v234 = vunpack.c.l.bf16 %v226
      %v235 = vunpack.c.l.bf16 %v227
      %v236 = vunpack.c.l.bf16 %v228
      %v237 = vunpack.c.l.bf16 %v229
      %v238 = vunpack.c.l.bf16 %v230
      %v239 = vld [vmem:[%s1] sm:$0x1]
      %v241 = vlaneseq
      %v242 = vshrl.u32 %v241, 7
      %v243 = vsub.s32 0, %v242
      %v244 = vrot.slane %v239, %v243
      %v246 = vmul.f32 %v231, %v244
      %v247 = vmul.f32 %v232, %v244
      %v248 = vmul.f32 %v233, %v244
      %v249 = vmul.f32 %v234, %v244
      %v250 = vmul.f32 %v235, %v244
      %v251 = vmul.f32 %v236, %v244
      %v252 = vmul.f32 %v237, %v244
      %v253 = vmul.f32 %v238, %v244
      %v254 = vld [vmem:[%s2] sm:$0x1]
      %v256 = vlaneseq
      %v257 = vshrl.u32 %v256, 7
      %v258 = vsub.s32 0, %v257
      %v259 = vrot.slane %v254, %v258
      %v261 = vadd.f32 %v246, %v259
      %v262 = vadd.f32 %v247, %v259
      %v263 = vadd.f32 %v248, %v259
      %v264 = vadd.f32 %v249, %v259
      %v265 = vadd.f32 %v250, %v259
      %v266 = vadd.f32 %v251, %v259
      %v267 = vadd.f32 %v252, %v259
      %v268 = vadd.f32 %v253, %v259
      %v269 = vld [vmem:[%s215] sm:$0xf]
      %v270 = vld [vmem:[%s215 + $0x4] sm:$0xf]
      %v271 = vld [vmem:[%s215 + $0x8] sm:$0xf]
      %v272 = vld [vmem:[%s215 + $0xc] sm:$0xf]
      %v273 = vld [vmem:[%s215 + $0x10] sm:$0xf]
      %v274 = vld [vmem:[%s215 + $0x14] sm:$0xf]
      %v275 = vld [vmem:[%s215 + $0x18] sm:$0xf]
      %v276 = vld [vmem:[%s215 + $0x1c] sm:$0xf]
      %v277 = vunpack.c.l.bf16 %v269
      %v278 = vunpack.c.l.bf16 %v270
      %v279 = vunpack.c.l.bf16 %v271
      %v280 = vunpack.c.l.bf16 %v272
      %v281 = vunpack.c.l.bf16 %v273
      %v282 = vunpack.c.l.bf16 %v274
      %v283 = vunpack.c.l.bf16 %v275
      %v284 = vunpack.c.l.bf16 %v276
      %v285 = vadd.f32 %v261, %v277
      %v286 = vadd.f32 %v262, %v278
      %v287 = vadd.f32 %v263, %v279
      %v288 = vadd.f32 %v264, %v280
      %v289 = vadd.f32 %v265, %v281
      %v290 = vadd.f32 %v266, %v282
      %v291 = vadd.f32 %v267, %v283
      %v292 = vadd.f32 %v268, %v284
      %v293 = vmax.f32 %v285, 0.0
      %v294 = vmax.f32 %v286, 0.0
      %v295 = vmax.f32 %v287, 0.0
      %v296 = vmax.f32 %v288, 0.0
      %v297 = vmax.f32 %v289, 0.0
      %v298 = vmax.f32 %v290, 0.0
      %v299 = vmax.f32 %v291, 0.0
      %v300 = vmax.f32 %v292, 0.0
      %v301 = vpack.c.bf16 %v294, %v293
      %v302 = vpack.c.bf16 %v296, %v295
      %v303 = vpack.c.bf16 %v298, %v297
      %v304 = vpack.c.bf16 %v300, %v299
      %v309 = vunpack.c.l.b16 %v301
      %v310 = vunpack.c.h.b16 %v301
      %v311 = vunpack.c.l.b16 %v302
      %v312 = vunpack.c.h.b16 %v302
      %v313 = vunpack.c.l.b16 %v303
      %v314 = vunpack.c.h.b16 %v303
      %v315 = vunpack.c.l.b16 %v304
      %v316 = vunpack.c.h.b16 %v304
      %v317 = vpack.c.b16 %v309, %v309
      %v318 = vpack.c.b16 %v310, %v310
      %v319 = vpack.c.b16 %v311, %v311
      %v320 = vpack.c.b16 %v312, %v312
      %v321 = vpack.c.b16 %v313, %v313
      %v322 = vpack.c.b16 %v314, %v314
      %v323 = vpack.c.b16 %v315, %v315
      %v324 = vpack.c.b16 %v316, %v316
      %333 = vst [vmem:[%s221] sm:$0xf] %v317
      %334 = vst [vmem:[%s221 + $0x4] sm:$0xf] %v318
      %335 = vst [vmem:[%s221 + $0x8] sm:$0xf] %v319
      %336 = vst [vmem:[%s221 + $0xc] sm:$0xf] %v320
      %337 = vst [vmem:[%s221 + $0x10] sm:$0xf] %v321
      %338 = vst [vmem:[%s221 + $0x14] sm:$0xf] %v322
      %339 = vst [vmem:[%s221 + $0x18] sm:$0xf] %v323
      %340 = vst [vmem:[%s221 + $0x1c] sm:$0xf] %v324
      %s341 = smul.u32 8, %s15
      %p342 = scmp.lt.s32.totalorder %s341, 15
      %s343 = scalar_select %p342, %s341, 15
      %s344 = smul.addr %s343, 4
      %s345 = scalar_lea.vmem %s4, %s344
      // Predicated region
      $region37: #{forward.30} parent=35 // pred_check
        %p346 = pneg %p127
      $region38: #{forward.30} parent=35 // pred_check_branch
        %348 = sbr.rel (%p346) target = $region40
      $region39: #{forward.30} parent=35 // pred_region
        %s349 = smul.u32 8, %s15
      $region40: #{forward.30} parent=35 // pred_fallthru
        _
    $region36: #{forward.30} parent=5 // pred_fallthru
      _
    %p350 = scmp.le.s32.totalorder 2, %s10
    // Predicated region
    $region41: #{forward.30} parent=5 // pred_check
      %p351 = pneg %p350
    $region42: #{forward.30} parent=5 // pred_check_branch
      %353 = sbr.rel (%p351) target = $region44
    $region43: #{forward.30} parent=5 // pred_region
      %s354 = ssub.s32 %s10, 2
      // Predicated region
      $region45: #{forward.30} parent=43 // pred_check
        %p355 = pneg %p133
      $region46: #{forward.30} parent=43 // pred_check_branch
        %357 = sbr.rel (%p355) target = $region48
      $region47: #{forward.30} parent=43 // pred_region
        %s358 = smul.u32 8, %s16
        %p359 = scmp.lt.s32.totalorder %s358, 15
        %s360 = scalar_select %p359, %s358, 15
        %s361 = smul.addr %s360, 4
        %s362 = scalar_lea.vmem %s4, %s361
      $region48: #{forward.30} parent=43 // pred_fallthru
        _
    $region44: #{forward.30} parent=5 // pred_fallthru
      _
  $region6: #{forward.30} parent=0 // loop_footer
    %s14 = sadd.s32 1, %s10
  $region7: #{forward.30} parent=0 // loop_footer_branch
    %9 = sbr.rel target = $region3
  $region8: #{forward.30} parent=0 // loop_exit
    _

// kernel: forward.28
$region0: #{forward.28}
  #allocation0 [shape = 'u32[]', space=smem, size = 0x4, offset = 0x4, fixed_abs, tag = 'smem constant byte address 0x4 - core index']
  #allocation1 [shape = 'u32[144,128]{1,0:T(1,128)}', space=vmem, size = 0x12000, scoped, tag = 'internal scratch']
  %s0 = inlined_call_operand.vmem [shape: bf16[128,128], index: 0, kind: input, shape index: {}]
  %s1 = inlined_call_operand.vmem [shape: f32[1,128], index: 1, kind: input, shape index: {}]
  %s2 = inlined_call_operand.vmem [shape: f32[1,128], index: 2, kind: input, shape index: {}]
  %s3 = inlined_call_operand.vmem [shape: bf16[128,128], index: 3, kind: output, shape index: {}]
  %s4 = sld [smem:[#allocation0]]
  $region45: #{forward.28} parent=0
    _
  %s6 = ssub.s32 1, %s4
  %s7 = scalar_select 0, %s6, %s4
  loop: start=0, step=1, limit=4
  $region2: #{forward.28} parent=0 // loop_pre_header
    _
  $region3: #{forward.28} parent=0 // loop_header
    %s9 = sphi 0, %s13
    %p10 = scmp.ge.s32.totalorder %s9, 4
    %s19 = sphi 0, %s21
    %s22 = sphi 0, %s19
    %s23 = sphi 0, %s22
    %s39 = sphi 0, %s23
    %s43 = sphi 0, %s43
    %s45 = sphi 0, %s43
    %s46 = sphi 0, %s45
    %s60 = sphi 0, %s46
    %s64 = sphi 0, %s64
    %s66 = sphi 0, %s64
    %s67 = sphi 0, %s66
    %s81 = sphi 0, %s67
    %s87 = sphi 0, %s89
    %s90 = sphi 0, %s87
    %s91 = sphi 0, %s90
    %s107 = sphi 0, %s91
  $region4: #{forward.28} parent=0 // loop_header_branch
    %12 = sbr.rel (%p10) target = $region8
  $region5: #{forward.28} parent=0 // loop_body
    %s14 = ssub.s32 %s9, 1
    %s15 = ssub.s32 %s9, 2
    %s16 = sadd.s32 %s9, 1
    %s17 = ssub.s32 %s9, %s16
    %p18 = scmp.eq.s32.totalorder %s17, 0
    %s20 = sadd.s32 %s19, 1
    %s21 = scalar_select %p18, %s19, %s20
    %p24 = pneg %p18
    %p25 = scmp.eq.s32.totalorder %s9, 1
    %p26 = por %p24, %p25
    %p27 = scmp.ne.s32.totalorder %s19, %s22
    %p28 = scmp.eq.s32.totalorder %s9, 0
    %p29 = por %p27, %p28
    %p30 = scmp.ne.s32.totalorder %s19, %s22
    %p31 = scmp.eq.s32.totalorder %s14, 1
    %p32 = por %p30, %p31
    %p33 = scmp.ne.s32.totalorder %s22, %s23
    %p34 = scmp.eq.s32.totalorder %s14, 0
    %p35 = por %p33, %p34
    %p36 = scmp.ne.s32.totalorder %s22, %s23
    %p37 = scmp.eq.s32.totalorder %s15, 1
    %p38 = por %p36, %p37
    %p40 = scmp.ne.s32.totalorder %s23, %s39
    %p41 = scmp.eq.s32.totalorder %s15, 0
    %p42 = por %p40, %p41
    %s44 = sadd.s32 %s43, 1
    %p47 = scmp.eq.s32.totalorder %s9, 1
    %p48 = scmp.ne.s32.totalorder %s43, %s45
    %p49 = scmp.eq.s32.totalorder %s9, 0
    %p50 = por %p48, %p49
    %p51 = scmp.ne.s32.totalorder %s43, %s45
    %p52 = scmp.eq.s32.totalorder %s14, 1
    %p53 = por %p51, %p52
    %p54 = scmp.ne.s32.totalorder %s45, %s46
    %p55 = scmp.eq.s32.totalorder %s14, 0
    %p56 = por %p54, %p55
    %p57 = scmp.ne.s32.totalorder %s45, %s46
    %p58 = scmp.eq.s32.totalorder %s15, 1
    %p59 = por %p57, %p58
    %p61 = scmp.ne.s32.totalorder %s46, %s60
    %p62 = scmp.eq.s32.totalorder %s15, 0
    %p63 = por %p61, %p62
    %s65 = sadd.s32 %s64, 1
    %p68 = scmp.eq.s32.totalorder %s9, 1
    %p69 = scmp.ne.s32.totalorder %s64, %s66
    %p70 = scmp.eq.s32.totalorder %s9, 0
    %p71 = por %p69, %p70
    %p72 = scmp.ne.s32.totalorder %s64, %s66
    %p73 = scmp.eq.s32.totalorder %s14, 1
    %p74 = por %p72, %p73
    %p75 = scmp.ne.s32.totalorder %s66, %s67
    %p76 = scmp.eq.s32.totalorder %s14, 0
    %p77 = por %p75, %p76
    %p78 = scmp.ne.s32.totalorder %s66, %s67
    %p79 = scmp.eq.s32.totalorder %s15, 1
    %p80 = por %p78, %p79
    %p82 = scmp.ne.s32.totalorder %s67, %s81
    %p83 = scmp.eq.s32.totalorder %s15, 0
    %p84 = por %p82, %p83
    %s85 = ssub.s32 %s9, %s16
    %p86 = scmp.eq.s32.totalorder %s85, 0
    %s88 = sadd.s32 %s87, 1
    %s89 = scalar_select %p86, %s87, %s88
    %p92 = pneg %p86
    %p93 = scmp.eq.s32.totalorder %s9, 1
    %p94 = por %p92, %p93
    %p95 = scmp.ne.s32.totalorder %s87, %s90
    %p96 = scmp.eq.s32.totalorder %s9, 0
    %p97 = por %p95, %p96
    %p98 = scmp.ne.s32.totalorder %s87, %s90
    %p99 = scmp.eq.s32.totalorder %s14, 1
    %p100 = por %p98, %p99
    %p101 = scmp.ne.s32.totalorder %s90, %s91
    %p102 = scmp.eq.s32.totalorder %s14, 0
    %p103 = por %p101, %p102
    %p104 = scmp.ne.s32.totalorder %s90, %s91
    %p105 = scmp.eq.s32.totalorder %s15, 1
    %p106 = por %p104, %p105
    %p108 = scmp.ne.s32.totalorder %s91, %s107
    %p109 = scmp.eq.s32.totalorder %s15, 0
    %p110 = por %p108, %p109
    %p111 = scmp.le.s32.totalorder 1, %s9
    %p112 = scmp.lt.s32.totalorder %s9, 3
    %p113 = pnand %p111, %p112
    %p114 = pneg %p113
    // Predicated region
    $region9: #{forward.28} parent=5 // pred_check
      _
    $region10: #{forward.28} parent=5 // pred_check_branch
      %116 = sbr.rel (%p113) target = $region12
    $region11: #{forward.28} parent=5 // pred_region
      %s117 = ssub.s32 %s9, 1
      // Predicated region
      $region13: #{forward.28} parent=11 // pred_check
        %p118 = pneg %p56
      $region14: #{forward.28} parent=11 // pred_check_branch
        %120 = sbr.rel (%p118) target = $region16
      $region15: #{forward.28} parent=11 // pred_region
        _
      $region16: #{forward.28} parent=11 // pred_fallthru
        _
      // Predicated region
      $region17: #{forward.28} parent=11 // pred_check
        %p121 = pneg %p77
      $region18: #{forward.28} parent=11 // pred_check_branch
        %123 = sbr.rel (%p121) target = $region20
      $region19: #{forward.28} parent=11 // pred_region
        _
      $region20: #{forward.28} parent=11 // pred_fallthru
        _
    $region12: #{forward.28} parent=5 // pred_fallthru
      _
    %p124 = scmp.lt.s32.totalorder %s9, 2
    // Predicated region
    $region21: #{forward.28} parent=5 // pred_check
      %p125 = pneg %p124
    $region22: #{forward.28} parent=5 // pred_check_branch
      %127 = sbr.rel (%p125) target = $region24
    $region23: #{forward.28} parent=5 // pred_region
      // Predicated region
      $region25: #{forward.28} parent=23 // pred_check
        %p128 = pneg %p29
      $region26: #{forward.28} parent=23 // pred_check_branch
        %130 = sbr.rel (%p128) target = $region28
      $region27: #{forward.28} parent=23 // pred_region
        %s131 = smul.u32 8, %s9
        %p132 = scmp.lt.s32.totalorder %s131, 15
        %s133 = scalar_select %p132, %s131, 15
        %s134 = smul.addr %s133, 4
        %s135 = scalar_lea.vmem %s0, %s134
        %s136 = smul.u32 8, %s9
      $region28: #{forward.28} parent=23 // pred_fallthru
        _
    $region24: #{forward.28} parent=5 // pred_fallthru
      _
    %p137 = scmp.le.s32.totalorder 1, %s9
    %p138 = scmp.lt.s32.totalorder %s9, 3
    %p139 = pnand %p137, %p138
    %p140 = pneg %p139
    // Predicated region
    $region29: #{forward.28} parent=5 // pred_check
      _
    $region30: #{forward.28} parent=5 // pred_check_branch
      %142 = sbr.rel (%p139) target = $region32
    $region31: #{forward.28} parent=5 // pred_region
      %s143 = ssub.s32 %s9, 1
      %s144 = smul.u32 8, %s14
      %p145 = scmp.lt.s32.totalorder %s144, 15
      %s146 = scalar_select %p145, %s144, 15
      %s147 = smul.addr %s146, 4
      %s148 = scalar_lea.vmem %s0, %s147
      %p149 = pneg %p35
      %p150 = pneg %p32
      %p151 = pneg %p56
      %p152 = pneg %p53
      %p153 = pneg %p77
      %p154 = pneg %p74
      %p155 = pneg %p103
      %p156 = pneg %p100
      %s157 = smul.u32 8, %s14
      %p158 = scmp.lt.s32.totalorder %s157, 15
      %s159 = scalar_select %p158, %s157, 15
      %s160 = smul.addr %s159, 4
      %s161 = scalar_lea.vmem %s3, %s160
      %s162 = smul.u32 8, %s14
      %p163 = scmp.lt.s32.totalorder %s162, 15
      %s164 = scalar_select %p163, %s162, 15
      %s165 = smul.addr %s164, 4
      %s166 = scalar_lea.vmem %s0, %s165
      %s167 = smul.u32 8, %s14
      %s168 = smul.u32 8, %s14
      %p169 = scmp.lt.s32.totalorder %s168, 15
      %s170 = scalar_select %p169, %s168, 15
      %s171 = smul.addr %s170, 4
      %s172 = scalar_lea.vmem %s3, %s171
      %s173 = smul.u32 8, %s14
      %v174 = vld [vmem:[%s166] sm:$0xf]
      %v175 = vld [vmem:[%s166 + $0x4] sm:$0xf]
      %v176 = vld [vmem:[%s166 + $0x8] sm:$0xf]
      %v177 = vld [vmem:[%s166 + $0xc] sm:$0xf]
      %v178 = vld [vmem:[%s166 + $0x10] sm:$0xf]
      %v179 = vld [vmem:[%s166 + $0x14] sm:$0xf]
      %v180 = vld [vmem:[%s166 + $0x18] sm:$0xf]
      %v181 = vld [vmem:[%s166 + $0x1c] sm:$0xf]
      %v182 = vunpack.c.l.bf16 %v174
      %v183 = vunpack.c.l.bf16 %v175
      %v184 = vunpack.c.l.bf16 %v176
      %v185 = vunpack.c.l.bf16 %v177
      %v186 = vunpack.c.l.bf16 %v178
      %v187 = vunpack.c.l.bf16 %v179
      %v188 = vunpack.c.l.bf16 %v180
      %v189 = vunpack.c.l.bf16 %v181
      %v190 = vld [vmem:[%s1] sm:$0x1]
      %v192 = vlaneseq
      %v193 = vshrl.u32 %v192, 7
      %v194 = vsub.s32 0, %v193
      %v195 = vrot.slane %v190, %v194
      %v197 = vmul.f32 %v182, %v195
      %v198 = vmul.f32 %v183, %v195
      %v199 = vmul.f32 %v184, %v195
      %v200 = vmul.f32 %v185, %v195
      %v201 = vmul.f32 %v186, %v195
      %v202 = vmul.f32 %v187, %v195
      %v203 = vmul.f32 %v188, %v195
      %v204 = vmul.f32 %v189, %v195
      %v205 = vld [vmem:[%s2] sm:$0x1]
      %v207 = vlaneseq
      %v208 = vshrl.u32 %v207, 7
      %v209 = vsub.s32 0, %v208
      %v210 = vrot.slane %v205, %v209
      %v212 = vadd.f32 %v197, %v210
      %v213 = vadd.f32 %v198, %v210
      %v214 = vadd.f32 %v199, %v210
      %v215 = vadd.f32 %v200, %v210
      %v216 = vadd.f32 %v201, %v210
      %v217 = vadd.f32 %v202, %v210
      %v218 = vadd.f32 %v203, %v210
      %v219 = vadd.f32 %v204, %v210
      %v220 = vpack.c.bf16 %v213, %v212
      %v221 = vpack.c.bf16 %v215, %v214
      %v222 = vpack.c.bf16 %v217, %v216
      %v223 = vpack.c.bf16 %v219, %v218
      %v228 = vunpack.c.l.b16 %v220
      %v229 = vunpack.c.h.b16 %v220
      %v230 = vunpack.c.l.b16 %v221
      %v231 = vunpack.c.h.b16 %v221
      %v232 = vunpack.c.l.b16 %v222
      %v233 = vunpack.c.h.b16 %v222
      %v234 = vunpack.c.l.b16 %v223
      %v235 = vunpack.c.h.b16 %v223
      %v236 = vpack.c.b16 %v228, %v228
      %v237 = vpack.c.b16 %v229, %v229
      %v238 = vpack.c.b16 %v230, %v230
      %v239 = vpack.c.b16 %v231, %v231
      %v240 = vpack.c.b16 %v232, %v232
      %v241 = vpack.c.b16 %v233, %v233
      %v242 = vpack.c.b16 %v234, %v234
      %v243 = vpack.c.b16 %v235, %v235
      %252 = vst [vmem:[%s172] sm:$0xf] %v236
      %253 = vst [vmem:[%s172 + $0x4] sm:$0xf] %v237
      %254 = vst [vmem:[%s172 + $0x8] sm:$0xf] %v238
      %255 = vst [vmem:[%s172 + $0xc] sm:$0xf] %v239
      %256 = vst [vmem:[%s172 + $0x10] sm:$0xf] %v240
      %257 = vst [vmem:[%s172 + $0x14] sm:$0xf] %v241
      %258 = vst [vmem:[%s172 + $0x18] sm:$0xf] %v242
      %259 = vst [vmem:[%s172 + $0x1c] sm:$0xf] %v243
      %s260 = smul.u32 8, %s14
      %p261 = scmp.lt.s32.totalorder %s260, 15
      %s262 = scalar_select %p261, %s260, 15
      %s263 = smul.addr %s262, 4
      %s264 = scalar_lea.vmem %s3, %s263
      // Predicated region
      $region33: #{forward.28} parent=31 // pred_check
        %p265 = pneg %p100
      $region34: #{forward.28} parent=31 // pred_check_branch
        %267 = sbr.rel (%p265) target = $region36
      $region35: #{forward.28} parent=31 // pred_region
        %s268 = smul.u32 8, %s14
      $region36: #{forward.28} parent=31 // pred_fallthru
        _
    $region32: #{forward.28} parent=5 // pred_fallthru
      _
    %p269 = scmp.le.s32.totalorder 2, %s9
    // Predicated region
    $region37: #{forward.28} parent=5 // pred_check
      %p270 = pneg %p269
    $region38: #{forward.28} parent=5 // pred_check_branch
      %272 = sbr.rel (%p270) target = $region40
    $region39: #{forward.28} parent=5 // pred_region
      %s273 = ssub.s32 %s9, 2
      // Predicated region
      $region41: #{forward.28} parent=39 // pred_check
        %p274 = pneg %p106
      $region42: #{forward.28} parent=39 // pred_check_branch
        %276 = sbr.rel (%p274) target = $region44
      $region43: #{forward.28} parent=39 // pred_region
        %s277 = smul.u32 8, %s15
        %p278 = scmp.lt.s32.totalorder %s277, 15
        %s279 = scalar_select %p278, %s277, 15
        %s280 = smul.addr %s279, 4
        %s281 = scalar_lea.vmem %s3, %s280
      $region44: #{forward.28} parent=39 // pred_fallthru
        _
    $region40: #{forward.28} parent=5 // pred_fallthru
      _
  $region6: #{forward.28} parent=0 // loop_footer
    %s13 = sadd.s32 1, %s9
  $region7: #{forward.28} parent=0 // loop_footer_branch
    %8 = sbr.rel target = $region3
  $region8: #{forward.28} parent=0 // loop_exit
    _

// kernel: forward.33
$region0: #{forward.33}
  #allocation0 [shape = 'u32[]', space=smem, size = 0x4, offset = 0x4, fixed_abs, tag = 'smem constant byte address 0x4 - core index']
  #allocation1 [shape = 'u32[144,128]{1,0:T(1,128)}', space=vmem, size = 0x12000, scoped, tag = 'internal scratch']
  %s0 = inlined_call_operand.vmem [shape: bf16[32,128], index: 0, kind: input, shape index: {}]
  %s1 = inlined_call_operand.vmem [shape: bf16[128,128], index: 1, kind: input, shape index: {}]
  %s2 = inlined_call_operand.vmem [shape: bf16[32,128], index: 2, kind: output, shape index: {0}]
  %s3 = inlined_call_operand.vmem [shape: f32[2,2,128], index: 3, kind: output, shape index: {1}]
  %4 = xla_tuple %s2, %s3
  %s5 = sld [smem:[#allocation0]]
  $region49: #{forward.33} parent=0
    _
  %s7 = ssub.s32 1, %s5
  %s8 = scalar_select 0, %s7, %s5
  loop: start=0, step=1, limit=4
  $region2: #{forward.33} parent=0 // loop_pre_header
    _
  $region3: #{forward.33} parent=0 // loop_header
    %s10 = sphi 0, %s14
    %p11 = scmp.ge.s32.totalorder %s10, 4
    %s20 = sphi 0, %s22
    %s23 = sphi 0, %s20
    %s24 = sphi 0, %s23
    %s40 = sphi 0, %s24
    %s44 = sphi 0, %s44
    %s46 = sphi 0, %s44
    %s47 = sphi 0, %s46
    %s61 = sphi 0, %s47
    %s67 = sphi 0, %s69
    %s70 = sphi 0, %s67
    %s71 = sphi 0, %s70
    %s87 = sphi 0, %s71
    %s93 = sphi 0, %s95
    %s96 = sphi 0, %s93
    %s97 = sphi 0, %s96
    %s113 = sphi 0, %s97
  $region4: #{forward.33} parent=0 // loop_header_branch
    %13 = sbr.rel (%p11) target = $region8
  $region5: #{forward.33} parent=0 // loop_body
    %s15 = ssub.s32 %s10, 1
    %s16 = ssub.s32 %s10, 2
    %s17 = sadd.s32 %s10, 1
    %s18 = ssub.s32 %s10, %s17
    %p19 = scmp.eq.s32.totalorder %s18, 0
    %s21 = sadd.s32 %s20, 1
    %s22 = scalar_select %p19, %s20, %s21
    %p25 = pneg %p19
    %p26 = scmp.eq.s32.totalorder %s10, 1
    %p27 = por %p25, %p26
    %p28 = scmp.ne.s32.totalorder %s20, %s23
    %p29 = scmp.eq.s32.totalorder %s10, 0
    %p30 = por %p28, %p29
    %p31 = scmp.ne.s32.totalorder %s20, %s23
    %p32 = scmp.eq.s32.totalorder %s15, 1
    %p33 = por %p31, %p32
    %p34 = scmp.ne.s32.totalorder %s23, %s24
    %p35 = scmp.eq.s32.totalorder %s15, 0
    %p36 = por %p34, %p35
    %p37 = scmp.ne.s32.totalorder %s23, %s24
    %p38 = scmp.eq.s32.totalorder %s16, 1
    %p39 = por %p37, %p38
    %p41 = scmp.ne.s32.totalorder %s24, %s40
    %p42 = scmp.eq.s32.totalorder %s16, 0
    %p43 = por %p41, %p42
    %s45 = sadd.s32 %s44, 1
    %p48 = scmp.eq.s32.totalorder %s10, 1
    %p49 = scmp.ne.s32.totalorder %s44, %s46
    %p50 = scmp.eq.s32.totalorder %s10, 0
    %p51 = por %p49, %p50
    %p52 = scmp.ne.s32.totalorder %s44, %s46
    %p53 = scmp.eq.s32.totalorder %s15, 1
    %p54 = por %p52, %p53
    %p55 = scmp.ne.s32.totalorder %s46, %s47
    %p56 = scmp.eq.s32.totalorder %s15, 0
    %p57 = por %p55, %p56
    %p58 = scmp.ne.s32.totalorder %s46, %s47
    %p59 = scmp.eq.s32.totalorder %s16, 1
    %p60 = por %p58, %p59
    %p62 = scmp.ne.s32.totalorder %s47, %s61
    %p63 = scmp.eq.s32.totalorder %s16, 0
    %p64 = por %p62, %p63
    %s65 = ssub.s32 %s10, %s17
    %p66 = scmp.eq.s32.totalorder %s65, 0
    %s68 = sadd.s32 %s67, 1
    %s69 = scalar_select %p66, %s67, %s68
    %p72 = pneg %p66
    %p73 = scmp.eq.s32.totalorder %s10, 1
    %p74 = por %p72, %p73
    %p75 = scmp.ne.s32.totalorder %s67, %s70
    %p76 = scmp.eq.s32.totalorder %s10, 0
    %p77 = por %p75, %p76
    %p78 = scmp.ne.s32.totalorder %s67, %s70
    %p79 = scmp.eq.s32.totalorder %s15, 1
    %p80 = por %p78, %p79
    %p81 = scmp.ne.s32.totalorder %s70, %s71
    %p82 = scmp.eq.s32.totalorder %s15, 0
    %p83 = por %p81, %p82
    %p84 = scmp.ne.s32.totalorder %s70, %s71
    %p85 = scmp.eq.s32.totalorder %s16, 1
    %p86 = por %p84, %p85
    %p88 = scmp.ne.s32.totalorder %s71, %s87
    %p89 = scmp.eq.s32.totalorder %s16, 0
    %p90 = por %p88, %p89
    %s91 = ssub.s32 %s10, %s17
    %p92 = scmp.eq.s32.totalorder %s91, 0
    %s94 = sadd.s32 %s93, 1
    %s95 = scalar_select %p92, %s93, %s94
    %p98 = pneg %p92
    %p99 = scmp.eq.s32.totalorder %s10, 1
    %p100 = por %p98, %p99
    %p101 = scmp.ne.s32.totalorder %s93, %s96
    %p102 = scmp.eq.s32.totalorder %s10, 0
    %p103 = por %p101, %p102
    %p104 = scmp.ne.s32.totalorder %s93, %s96
    %p105 = scmp.eq.s32.totalorder %s15, 1
    %p106 = por %p104, %p105
    %p107 = scmp.ne.s32.totalorder %s96, %s97
    %p108 = scmp.eq.s32.totalorder %s15, 0
    %p109 = por %p107, %p108
    %p110 = scmp.ne.s32.totalorder %s96, %s97
    %p111 = scmp.eq.s32.totalorder %s16, 1
    %p112 = por %p110, %p111
    %p114 = scmp.ne.s32.totalorder %s97, %s113
    %p115 = scmp.eq.s32.totalorder %s16, 0
    %p116 = por %p114, %p115
    %p117 = scmp.le.s32.totalorder 1, %s10
    %p118 = scmp.lt.s32.totalorder %s10, 3
    %p119 = pnand %p117, %p118
    %p120 = pneg %p119
    // Predicated region
    $region9: #{forward.33} parent=5 // pred_check
      _
    $region10: #{forward.33} parent=5 // pred_check_branch
      %122 = sbr.rel (%p119) target = $region12
    $region11: #{forward.33} parent=5 // pred_region
      %s123 = ssub.s32 %s10, 1
      // Predicated region
      $region13: #{forward.33} parent=11 // pred_check
        %p124 = pneg %p57
      $region14: #{forward.33} parent=11 // pred_check_branch
        %126 = sbr.rel (%p124) target = $region16
      $region15: #{forward.33} parent=11 // pred_region
        _
      $region16: #{forward.33} parent=11 // pred_fallthru
        _
    $region12: #{forward.33} parent=5 // pred_fallthru
      _
    %p127 = scmp.lt.s32.totalorder %s10, 2
    // Predicated region
    $region17: #{forward.33} parent=5 // pred_check
      %p128 = pneg %p127
    $region18: #{forward.33} parent=5 // pred_check_branch
      %130 = sbr.rel (%p128) target = $region20
    $region19: #{forward.33} parent=5 // pred_region
      // Predicated region
      $region21: #{forward.33} parent=19 // pred_check
        %p131 = pneg %p30
      $region22: #{forward.33} parent=19 // pred_check_branch
        %133 = sbr.rel (%p131) target = $region24
      $region23: #{forward.33} parent=19 // pred_region
        %s134 = smul.u32 2, %s10
        %p135 = scmp.lt.s32.totalorder %s134, 3
        %s136 = scalar_select %p135, %s134, 3
        %s137 = smul.addr %s136, 4
        %s138 = scalar_lea.vmem %s0, %s137
        %s139 = smul.u32 2, %s10
      $region24: #{forward.33} parent=19 // pred_fallthru
        _
    $region20: #{forward.33} parent=5 // pred_fallthru
      _
    %p140 = scmp.le.s32.totalorder 1, %s10
    %p141 = scmp.lt.s32.totalorder %s10, 3
    %p142 = pnand %p140, %p141
    %p143 = pneg %p142
    // Predicated region
    $region25: #{forward.33} parent=5 // pred_check
      _
    $region26: #{forward.33} parent=5 // pred_check_branch
      %145 = sbr.rel (%p142) target = $region28
    $region27: #{forward.33} parent=5 // pred_region
      %s146 = ssub.s32 %s10, 1
      %s147 = smul.u32 2, %s15
      %p148 = scmp.lt.s32.totalorder %s147, 3
      %s149 = scalar_select %p148, %s147, 3
      %s150 = smul.addr %s149, 4
      %s151 = scalar_lea.vmem %s0, %s150
      %p152 = pneg %p36
      %p153 = pneg %p33
      %p154 = pneg %p57
      %p155 = pneg %p54
      %p156 = pneg %p83
      %p157 = pneg %p80
      %s158 = smul.u32 2, %s15
      %p159 = scmp.lt.s32.totalorder %s158, 3
      %s160 = scalar_select %p159, %s158, 3
      %s161 = smul.addr %s160, 4
      %s162 = scalar_lea.vmem %s2, %s161
      %p163 = pneg %p109
      %p164 = pneg %p106
      %p165 = scmp.lt.s32.totalorder %s15, 1
      %s166 = scalar_select %p165, %s15, 1
      %s167 = smul.addr %s166, 2
      %s168 = scalar_lea.vmem %s3, %s167
      %s169 = smul.u32 2, %s15
      %p170 = scmp.lt.s32.totalorder %s169, 3
      %s171 = scalar_select %p170, %s169, 3
      %s172 = smul.addr %s171, 4
      %s173 = scalar_lea.vmem %s0, %s172
      %s174 = smul.u32 2, %s15
      %s175 = smul.u32 2, %s15
      %p176 = scmp.lt.s32.totalorder %s175, 3
      %s177 = scalar_select %p176, %s175, 3
      %s178 = smul.addr %s177, 4
      %s179 = scalar_lea.vmem %s2, %s178
      %s180 = smul.u32 2, %s15
      %p181 = scmp.lt.s32.totalorder %s15, 1
      %s182 = scalar_select %p181, %s15, 1
      %s183 = smul.addr %s182, 2
      %s184 = scalar_lea.vmem %s3, %s183
      %v186 = vld [vmem:[%s173] sm:$0xf]
      %v187 = vld [vmem:[%s173 + $0x4] sm:$0xf]
      %v188 = vld [vmem:[%s1] sm:$0xf]
      %v189 = vld [vmem:[%s1 + $0x4] sm:$0xf]
      %v190 = vld [vmem:[%s1 + $0x8] sm:$0xf]
      %v191 = vld [vmem:[%s1 + $0xc] sm:$0xf]
      %v192 = vld [vmem:[%s1 + $0x10] sm:$0xf]
      %v193 = vld [vmem:[%s1 + $0x14] sm:$0xf]
      %v194 = vld [vmem:[%s1 + $0x18] sm:$0xf]
      %v195 = vld [vmem:[%s1 + $0x1c] sm:$0xf]
      %v196 = vld [vmem:[%s1 + $0x20] sm:$0xf]
      %v197 = vld [vmem:[%s1 + $0x24] sm:$0xf]
      %v198 = vld [vmem:[%s1 + $0x28] sm:$0xf]
      %v199 = vld [vmem:[%s1 + $0x2c] sm:$0xf]
      %v200 = vld [vmem:[%s1 + $0x30] sm:$0xf]
      %v201 = vld [vmem:[%s1 + $0x34] sm:$0xf]
      %v202 = vld [vmem:[%s1 + $0x38] sm:$0xf]
      %v203 = vld [vmem:[%s1 + $0x3c] sm:$0xf]
      %v206 = vunpack.c.l.b16 %v186
      %v207 = vunpack.c.l.b16 %v187
      %v208 = vpack.c.b16 %v207, %v206
      %v226 = vunpack.c.l.b16 %v188
      %v227 = vunpack.c.l.b16 %v189
      %v228 = vunpack.c.l.b16 %v190
      %v229 = vunpack.c.l.b16 %v191
      %v230 = vunpack.c.l.b16 %v192
      %v231 = vunpack.c.l.b16 %v193
      %v232 = vunpack.c.l.b16 %v194
      %v233 = vunpack.c.l.b16 %v195
      %v234 = vunpack.c.l.b16 %v196
      %v235 = vunpack.c.l.b16 %v197
      %v236 = vunpack.c.l.b16 %v198
      %v237 = vunpack.c.l.b16 %v199
      %v238 = vunpack.c.l.b16 %v200
      %v239 = vunpack.c.l.b16 %v201
      %v240 = vunpack.c.l.b16 %v202
      %v241 = vunpack.c.l.b16 %v203
      %v242 = vpack.c.b16 %v227, %v226
      %v243 = vpack.c.b16 %v229, %v228
      %v244 = vpack.c.b16 %v231, %v230
      %v245 = vpack.c.b16 %v233, %v232
      %v246 = vpack.c.b16 %v235, %v234
      %v247 = vpack.c.b16 %v237, %v236
      %v248 = vpack.c.b16 %v239, %v238
      %v249 = vpack.c.b16 %v241, %v240
      %258 = vmatprep.subr.bf16.mxu0 0
      %259 = vmatpush1.bf16.msra.mxu0 %v242
      %260 = vmatprep.subr.bf16.mxu0 0
      %261 = vmatpush1.bf16.msra.mxu0 %v243
      %262 = vmatprep.subr.bf16.mxu0 0
      %263 = vmatpush1.bf16.msra.mxu0 %v244
      %264 = vmatprep.subr.bf16.mxu0 0
      %265 = vmatpush1.bf16.msra.mxu0 %v245
      %266 = vmatprep.subr.bf16.mxu0 0
      %267 = vmatpush1.bf16.msra.mxu0 %v246
      %268 = vmatprep.subr.bf16.mxu0 0
      %269 = vmatpush1.bf16.msra.mxu0 %v247
      %270 = vmatprep.subr.bf16.mxu0 0
      %271 = vmatpush1.bf16.msra.mxu0 %v248
      %272 = vmatprep.subr.bf16.mxu0 0
      %273 = vmatpush1.bf16.msra.mxu0 %v249
      %274 = vmatprep.subr.bf16.mxu0 0
      %275 = vmatpush1.bf16.msra.mxu0 0
      %276 = vmatprep.subr.bf16.mxu0 0
      %277 = vmatpush1.bf16.msra.mxu0 0
      %278 = vmatprep.subr.bf16.mxu0 0
      %279 = vmatpush1.bf16.msra.mxu0 0
      %280 = vmatprep.subr.bf16.mxu0 0
      %281 = vmatpush1.bf16.msra.mxu0 0
      %282 = vmatprep.subr.bf16.mxu0 0
      %283 = vmatpush1.bf16.msra.mxu0 0
      %284 = vmatprep.subr.bf16.mxu0 0
      %285 = vmatpush1.bf16.msra.mxu0 0
      %286 = vmatprep.subr.bf16.mxu0 0
      %287 = vmatpush1.bf16.msra.mxu0 0
      %288 = vmatprep.subr.bf16.mxu0 0
      %289 = vmatpush1.bf16.msra.mxu0 0
      %290 = vmatprep.mubr.bf16.mxu0 0
      %291 = vmatmul.mubr.bf16.gmra.mrb[0].mxu0 %v208
      %v292 = vpop.f32.mrb[0].mxu0
      %v293 = vadd.f32 0.0, %v292
      %v294 = vpop.f32.mrb[0].mxu0
      %v295 = vpop.f32.mrb[0].mxu0
      %v296 = vadd.f32 0.0, %v295
      %v297 = vpop.f32.mrb[0].mxu0
      %298 = vdwg.mxu0
      %v299 = vpack.c.bf16 %v296, %v293
      %v301 = vunpack.c.l.b16 %v299
      %v302 = vunpack.c.h.b16 %v299
      %v303 = vpack.c.b16 %v301, %v301
      %v304 = vpack.c.b16 %v302, %v302
      %307 = vst [vmem:[%s179] sm:$0xf] %v303
      %308 = vst [vmem:[%s179 + $0x4] sm:$0xf] %v304
      %v309 = vadd.f32 %v293, %v296
      %v310 = vrot.slane %v309, 4
      %v311 = vadd.f32 %v309, %v310
      %v312 = vrot.slane %v311, 2
      %v313 = vadd.f32 %v311, %v312
      %v314 = vrot.slane %v313, 1
      %v315 = vadd.f32 %v313, %v314
      %v316 = vmul.f32 %v293, %v293
      %v317 = vmul.f32 %v296, %v296
      %v318 = vadd.f32 %v316, %v317
      %v319 = vrot.slane %v318, 4
      %v320 = vadd.f32 %v318, %v319
      %v321 = vrot.slane %v320, 2
      %v322 = vadd.f32 %v320, %v321
      %v323 = vrot.slane %v322, 1
      %v324 = vadd.f32 %v322, %v323
      %vm325 = vcmask 1040384
      %v326 = vsel %vm325, %v315, %v324
      %327 = vst [vmem:[%s184] sm:$0x3] %v326
      %s328 = smul.u32 2, %s15
      %p329 = scmp.lt.s32.totalorder %s328, 3
      %s330 = scalar_select %p329, %s328, 3
      %s331 = smul.addr %s330, 4
      %s332 = scalar_lea.vmem %s2, %s331
      %p333 = scmp.lt.s32.totalorder %s15, 1
      %s334 = scalar_select %p333, %s15, 1
      %s335 = smul.addr %s334, 2
      %s336 = scalar_lea.vmem %s3, %s335
      // Predicated region
      $region29: #{forward.33} parent=27 // pred_check
        %p337 = pneg %p80
      $region30: #{forward.33} parent=27 // pred_check_branch
        %339 = sbr.rel (%p337) target = $region32
      $region31: #{forward.33} parent=27 // pred_region
        %s340 = smul.u32 2, %s15
      $region32: #{forward.33} parent=27 // pred_fallthru
        _
      // Predicated region
      $region33: #{forward.33} parent=27 // pred_check
        %p341 = pneg %p106
      $region34: #{forward.33} parent=27 // pred_check_branch
        %343 = sbr.rel (%p341) target = $region36
      $region35: #{forward.33} parent=27 // pred_region
        _
      $region36: #{forward.33} parent=27 // pred_fallthru
        _
    $region28: #{forward.33} parent=5 // pred_fallthru
      _
    %p344 = scmp.le.s32.totalorder 2, %s10
    // Predicated region
    $region37: #{forward.33} parent=5 // pred_check
      %p345 = pneg %p344
    $region38: #{forward.33} parent=5 // pred_check_branch
      %347 = sbr.rel (%p345) target = $region40
    $region39: #{forward.33} parent=5 // pred_region
      %s348 = ssub.s32 %s10, 2
      // Predicated region
      $region41: #{forward.33} parent=39 // pred_check
        %p349 = pneg %p86
      $region42: #{forward.33} parent=39 // pred_check_branch
        %351 = sbr.rel (%p349) target = $region44
      $region43: #{forward.33} parent=39 // pred_region
        %s352 = smul.u32 2, %s16
        %p353 = scmp.lt.s32.totalorder %s352, 3
        %s354 = scalar_select %p353, %s352, 3
        %s355 = smul.addr %s354, 4
        %s356 = scalar_lea.vmem %s2, %s355
      $region44: #{forward.33} parent=39 // pred_fallthru
        _
      // Predicated region
      $region45: #{forward.33} parent=39 // pred_check
        %p357 = pneg %p112
      $region46: #{forward.33} parent=39 // pred_check_branch
        %359 = sbr.rel (%p357) target = $region48
      $region47: #{forward.33} parent=39 // pred_region
        %p360 = scmp.lt.s32.totalorder %s16, 1
        %s361 = scalar_select %p360, %s16, 1
        %s362 = smul.addr %s361, 2
        %s363 = scalar_lea.vmem %s3, %s362
      $region48: #{forward.33} parent=39 // pred_fallthru
        _
    $region40: #{forward.33} parent=5 // pred_fallthru
      _
  $region6: #{forward.33} parent=0 // loop_footer
    %s14 = sadd.s32 1, %s10
  $region7: #{forward.33} parent=0 // loop_footer_branch
    %9 = sbr.rel target = $region3
  $region8: #{forward.33} parent=0 // loop_exit
    _

// kernel: forward.31
$region0: #{forward.31}
  #allocation0 [shape = 'u32[]', space=smem, size = 0x4, offset = 0x4, fixed_abs, tag = 'smem constant byte address 0x4 - core index']
  #allocation1 [shape = 'u32[144,128]{1,0:T(1,128)}', space=vmem, size = 0x12000, scoped, tag = 'internal scratch']
  %s0 = inlined_call_operand.vmem [shape: bf16[32,384], index: 0, kind: input, shape index: {}]
  %s1 = inlined_call_operand.vmem [shape: bf16[384,128], index: 1, kind: input, shape index: {}]
  %s2 = inlined_call_operand.vmem [shape: bf16[32,128], index: 2, kind: output, shape index: {0}]
  %s3 = inlined_call_operand.vmem [shape: f32[2,2,128], index: 3, kind: output, shape index: {1}]
  %4 = xla_tuple %s2, %s3
  %s5 = sld [smem:[#allocation0]]
  $region49: #{forward.31} parent=0
    _
  %s7 = ssub.s32 1, %s5
  %s8 = scalar_select 0, %s7, %s5
  loop: start=0, step=1, limit=4
  $region2: #{forward.31} parent=0 // loop_pre_header
    _
  $region3: #{forward.31} parent=0 // loop_header
    %s10 = sphi 0, %s14
    %p11 = scmp.ge.s32.totalorder %s10, 4
    %s20 = sphi 0, %s22
    %s23 = sphi 0, %s20
    %s24 = sphi 0, %s23
    %s40 = sphi 0, %s24
    %s44 = sphi 0, %s44
    %s46 = sphi 0, %s44
    %s47 = sphi 0, %s46
    %s61 = sphi 0, %s47
    %s67 = sphi 0, %s69
    %s70 = sphi 0, %s67
    %s71 = sphi 0, %s70
    %s87 = sphi 0, %s71
    %s93 = sphi 0, %s95
    %s96 = sphi 0, %s93
    %s97 = sphi 0, %s96
    %s113 = sphi 0, %s97
  $region4: #{forward.31} parent=0 // loop_header_branch
    %13 = sbr.rel (%p11) target = $region8
  $region5: #{forward.31} parent=0 // loop_body
    %s15 = ssub.s32 %s10, 1
    %s16 = ssub.s32 %s10, 2
    %s17 = sadd.s32 %s10, 1
    %s18 = ssub.s32 %s10, %s17
    %p19 = scmp.eq.s32.totalorder %s18, 0
    %s21 = sadd.s32 %s20, 1
    %s22 = scalar_select %p19, %s20, %s21
    %p25 = pneg %p19
    %p26 = scmp.eq.s32.totalorder %s10, 1
    %p27 = por %p25, %p26
    %p28 = scmp.ne.s32.totalorder %s20, %s23
    %p29 = scmp.eq.s32.totalorder %s10, 0
    %p30 = por %p28, %p29
    %p31 = scmp.ne.s32.totalorder %s20, %s23
    %p32 = scmp.eq.s32.totalorder %s15, 1
    %p33 = por %p31, %p32
    %p34 = scmp.ne.s32.totalorder %s23, %s24
    %p35 = scmp.eq.s32.totalorder %s15, 0
    %p36 = por %p34, %p35
    %p37 = scmp.ne.s32.totalorder %s23, %s24
    %p38 = scmp.eq.s32.totalorder %s16, 1
    %p39 = por %p37, %p38
    %p41 = scmp.ne.s32.totalorder %s24, %s40
    %p42 = scmp.eq.s32.totalorder %s16, 0
    %p43 = por %p41, %p42
    %s45 = sadd.s32 %s44, 1
    %p48 = scmp.eq.s32.totalorder %s10, 1
    %p49 = scmp.ne.s32.totalorder %s44, %s46
    %p50 = scmp.eq.s32.totalorder %s10, 0
    %p51 = por %p49, %p50
    %p52 = scmp.ne.s32.totalorder %s44, %s46
    %p53 = scmp.eq.s32.totalorder %s15, 1
    %p54 = por %p52, %p53
    %p55 = scmp.ne.s32.totalorder %s46, %s47
    %p56 = scmp.eq.s32.totalorder %s15, 0
    %p57 = por %p55, %p56
    %p58 = scmp.ne.s32.totalorder %s46, %s47
    %p59 = scmp.eq.s32.totalorder %s16, 1
    %p60 = por %p58, %p59
    %p62 = scmp.ne.s32.totalorder %s47, %s61
    %p63 = scmp.eq.s32.totalorder %s16, 0
    %p64 = por %p62, %p63
    %s65 = ssub.s32 %s10, %s17
    %p66 = scmp.eq.s32.totalorder %s65, 0
    %s68 = sadd.s32 %s67, 1
    %s69 = scalar_select %p66, %s67, %s68
    %p72 = pneg %p66
    %p73 = scmp.eq.s32.totalorder %s10, 1
    %p74 = por %p72, %p73
    %p75 = scmp.ne.s32.totalorder %s67, %s70
    %p76 = scmp.eq.s32.totalorder %s10, 0
    %p77 = por %p75, %p76
    %p78 = scmp.ne.s32.totalorder %s67, %s70
    %p79 = scmp.eq.s32.totalorder %s15, 1
    %p80 = por %p78, %p79
    %p81 = scmp.ne.s32.totalorder %s70, %s71
    %p82 = scmp.eq.s32.totalorder %s15, 0
    %p83 = por %p81, %p82
    %p84 = scmp.ne.s32.totalorder %s70, %s71
    %p85 = scmp.eq.s32.totalorder %s16, 1
    %p86 = por %p84, %p85
    %p88 = scmp.ne.s32.totalorder %s71, %s87
    %p89 = scmp.eq.s32.totalorder %s16, 0
    %p90 = por %p88, %p89
    %s91 = ssub.s32 %s10, %s17
    %p92 = scmp.eq.s32.totalorder %s91, 0
    %s94 = sadd.s32 %s93, 1
    %s95 = scalar_select %p92, %s93, %s94
    %p98 = pneg %p92
    %p99 = scmp.eq.s32.totalorder %s10, 1
    %p100 = por %p98, %p99
    %p101 = scmp.ne.s32.totalorder %s93, %s96
    %p102 = scmp.eq.s32.totalorder %s10, 0
    %p103 = por %p101, %p102
    %p104 = scmp.ne.s32.totalorder %s93, %s96
    %p105 = scmp.eq.s32.totalorder %s15, 1
    %p106 = por %p104, %p105
    %p107 = scmp.ne.s32.totalorder %s96, %s97
    %p108 = scmp.eq.s32.totalorder %s15, 0
    %p109 = por %p107, %p108
    %p110 = scmp.ne.s32.totalorder %s96, %s97
    %p111 = scmp.eq.s32.totalorder %s16, 1
    %p112 = por %p110, %p111
    %p114 = scmp.ne.s32.totalorder %s97, %s113
    %p115 = scmp.eq.s32.totalorder %s16, 0
    %p116 = por %p114, %p115
    %p117 = scmp.le.s32.totalorder 1, %s10
    %p118 = scmp.lt.s32.totalorder %s10, 3
    %p119 = pnand %p117, %p118
    %p120 = pneg %p119
    // Predicated region
    $region9: #{forward.31} parent=5 // pred_check
      _
    $region10: #{forward.31} parent=5 // pred_check_branch
      %122 = sbr.rel (%p119) target = $region12
    $region11: #{forward.31} parent=5 // pred_region
      %s123 = ssub.s32 %s10, 1
      // Predicated region
      $region13: #{forward.31} parent=11 // pred_check
        %p124 = pneg %p57
      $region14: #{forward.31} parent=11 // pred_check_branch
        %126 = sbr.rel (%p124) target = $region16
      $region15: #{forward.31} parent=11 // pred_region
        _
      $region16: #{forward.31} parent=11 // pred_fallthru
        _
    $region12: #{forward.31} parent=5 // pred_fallthru
      _
    %p127 = scmp.lt.s32.totalorder %s10, 2
    // Predicated region
    $region17: #{forward.31} parent=5 // pred_check
      %p128 = pneg %p127
    $region18: #{forward.31} parent=5 // pred_check_branch
      %130 = sbr.rel (%p128) target = $region20
    $region19: #{forward.31} parent=5 // pred_region
      // Predicated region
      $region21: #{forward.31} parent=19 // pred_check
        %p131 = pneg %p30
      $region22: #{forward.31} parent=19 // pred_check_branch
        %133 = sbr.rel (%p131) target = $region24
      $region23: #{forward.31} parent=19 // pred_region
        %s134 = smul.u32 2, %s10
        %p135 = scmp.lt.s32.totalorder %s134, 3
        %s136 = scalar_select %p135, %s134, 3
        %s137 = smul.addr %s136, 3
        %s138 = smul.addr %s137, 4
        %s139 = scalar_lea.vmem %s0, %s138
        %s140 = smul.u32 2, %s10
      $region24: #{forward.31} parent=19 // pred_fallthru
        _
    $region20: #{forward.31} parent=5 // pred_fallthru
      _
    %p141 = scmp.le.s32.totalorder 1, %s10
    %p142 = scmp.lt.s32.totalorder %s10, 3
    %p143 = pnand %p141, %p142
    %p144 = pneg %p143
    // Predicated region
    $region25: #{forward.31} parent=5 // pred_check
      _
    $region26: #{forward.31} parent=5 // pred_check_branch
      %146 = sbr.rel (%p143) target = $region28
    $region27: #{forward.31} parent=5 // pred_region
      %s147 = ssub.s32 %s10, 1
      %s148 = smul.u32 2, %s15
      %p149 = scmp.lt.s32.totalorder %s148, 3
      %s150 = scalar_select %p149, %s148, 3
      %s151 = smul.addr %s150, 3
      %s152 = smul.addr %s151, 4
      %s153 = scalar_lea.vmem %s0, %s152
      %p154 = pneg %p36
      %p155 = pneg %p33
      %p156 = pneg %p57
      %p157 = pneg %p54
      %p158 = pneg %p83
      %p159 = pneg %p80
      %s160 = smul.u32 2, %s15
      %p161 = scmp.lt.s32.totalorder %s160, 3
      %s162 = scalar_select %p161, %s160, 3
      %s163 = smul.addr %s162, 4
      %s164 = scalar_lea.vmem %s2, %s163
      %p165 = pneg %p109
      %p166 = pneg %p106
      %p167 = scmp.lt.s32.totalorder %s15, 1
      %s168 = scalar_select %p167, %s15, 1
      %s169 = smul.addr %s168, 2
      %s170 = scalar_lea.vmem %s3, %s169
      %s171 = smul.u32 2, %s15
      %p172 = scmp.lt.s32.totalorder %s171, 3
      %s173 = scalar_select %p172, %s171, 3
      %s174 = smul.addr %s173, 3
      %s175 = smul.addr %s174, 4
      %s176 = scalar_lea.vmem %s0, %s175
      %s177 = smul.u32 2, %s15
      %s178 = smul.u32 2, %s15
      %p179 = scmp.lt.s32.totalorder %s178, 3
      %s180 = scalar_select %p179, %s178, 3
      %s181 = smul.addr %s180, 4
      %s182 = scalar_lea.vmem %s2, %s181
      %s183 = smul.u32 2, %s15
      %p184 = scmp.lt.s32.totalorder %s15, 1
      %s185 = scalar_select %p184, %s15, 1
      %s186 = smul.addr %s185, 2
      %s187 = scalar_lea.vmem %s3, %s186
      %v189 = vld [vmem:[%s176] sm:$0xff]
      %v190 = vld [vmem:[%s176 + $0x8] sm:$0xf]
      %v191 = vld [vmem:[%s176 + $0xc] sm:$0xff]
      %v192 = vld [vmem:[%s176 + $0x14] sm:$0xf]
      %v193 = vld [vmem:[%s1] sm:$0xf]
      %v194 = vld [vmem:[%s1 + $0x4] sm:$0xf]
      %v195 = vld [vmem:[%s1 + $0x8] sm:$0xf]
      %v196 = vld [vmem:[%s1 + $0xc] sm:$0xf]
      %v197 = vld [vmem:[%s1 + $0x10] sm:$0xf]
      %v198 = vld [vmem:[%s1 + $0x14] sm:$0xf]
      %v199 = vld [vmem:[%s1 + $0x18] sm:$0xf]
      %v200 = vld [vmem:[%s1 + $0x1c] sm:$0xf]
      %v201 = vld [vmem:[%s1 + $0x20] sm:$0xf]
      %v202 = vld [vmem:[%s1 + $0x24] sm:$0xf]
      %v203 = vld [vmem:[%s1 + $0x28] sm:$0xf]
      %v204 = vld [vmem:[%s1 + $0x2c] sm:$0xf]
      %v205 = vld [vmem:[%s1 + $0x30] sm:$0xf]
      %v206 = vld [vmem:[%s1 + $0x34] sm:$0xf]
      %v207 = vld [vmem:[%s1 + $0x38] sm:$0xf]
      %v208 = vld [vmem:[%s1 + $0x3c] sm:$0xf]
      %v209 = vld [vmem:[%s1 + $0x40] sm:$0xf]
      %v210 = vld [vmem:[%s1 + $0x44] sm:$0xf]
      %v211 = vld [vmem:[%s1 + $0x48] sm:$0xf]
      %v212 = vld [vmem:[%s1 + $0x4c] sm:$0xf]
      %v213 = vld [vmem:[%s1 + $0x50] sm:$0xf]
      %v214 = vld [vmem:[%s1 + $0x54] sm:$0xf]
      %v215 = vld [vmem:[%s1 + $0x58] sm:$0xf]
      %v216 = vld [vmem:[%s1 + $0x5c] sm:$0xf]
      %v217 = vld [vmem:[%s1 + $0x60] sm:$0xf]
      %v218 = vld [vmem:[%s1 + $0x64] sm:$0xf]
      %v219 = vld [vmem:[%s1 + $0x68] sm:$0xf]
      %v220 = vld [vmem:[%s1 + $0x6c] sm:$0xf]
      %v221 = vld [vmem:[%s1 + $0x70] sm:$0xf]
      %v222 = vld [vmem:[%s1 + $0x74] sm:$0xf]
      %v223 = vld [vmem:[%s1 + $0x78] sm:$0xf]
      %v224 = vld [vmem:[%s1 + $0x7c] sm:$0xf]
      %v225 = vld [vmem:[%s1 + $0x80] sm:$0xf]
      %v226 = vld [vmem:[%s1 + $0x84] sm:$0xf]
      %v227 = vld [vmem:[%s1 + $0x88] sm:$0xf]
      %v228 = vld [vmem:[%s1 + $0x8c] sm:$0xf]
      %v229 = vld [vmem:[%s1 + $0x90] sm:$0xf]
      %v230 = vld [vmem:[%s1 + $0x94] sm:$0xf]
      %v231 = vld [vmem:[%s1 + $0x98] sm:$0xf]
      %v232 = vld [vmem:[%s1 + $0x9c] sm:$0xf]
      %v233 = vld [vmem:[%s1 + $0xa0] sm:$0xf]
      %v234 = vld [vmem:[%s1 + $0xa4] sm:$0xf]
      %v235 = vld [vmem:[%s1 + $0xa8] sm:$0xf]
      %v236 = vld [vmem:[%s1 + $0xac] sm:$0xf]
      %v237 = vld [vmem:[%s1 + $0xb0] sm:$0xf]
      %v238 = vld [vmem:[%s1 + $0xb4] sm:$0xf]
      %v239 = vld [vmem:[%s1 + $0xb8] sm:$0xf]
      %v240 = vld [vmem:[%s1 + $0xbc] sm:$0xf]
      %v245 = vunpack.c.l.b16 %v189
      %v246 = vunpack.c.h.b16 %v189
      %v247 = vunpack.c.l.b16 %v190
      %v248 = vunpack.c.l.b16 %v191
      %v249 = vunpack.c.h.b16 %v191
      %v250 = vunpack.c.l.b16 %v192
      %v251 = vpack.c.b16 %v248, %v245
      %v252 = vpack.c.b16 %v249, %v246
      %v253 = vpack.c.b16 %v250, %v247
      %v305 = vunpack.c.l.b16 %v193
      %v306 = vunpack.c.l.b16 %v194
      %v307 = vunpack.c.l.b16 %v195
      %v308 = vunpack.c.l.b16 %v196
      %v309 = vunpack.c.l.b16 %v197
      %v310 = vunpack.c.l.b16 %v198
      %v311 = vunpack.c.l.b16 %v199
      %v312 = vunpack.c.l.b16 %v200
      %v313 = vunpack.c.l.b16 %v201
      %v314 = vunpack.c.l.b16 %v202
      %v315 = vunpack.c.l.b16 %v203
      %v316 = vunpack.c.l.b16 %v204
      %v317 = vunpack.c.l.b16 %v205
      %v318 = vunpack.c.l.b16 %v206
      %v319 = vunpack.c.l.b16 %v207
      %v320 = vunpack.c.l.b16 %v208
      %v321 = vunpack.c.l.b16 %v209
      %v322 = vunpack.c.l.b16 %v210
      %v323 = vunpack.c.l.b16 %v211
      %v324 = vunpack.c.l.b16 %v212
      %v325 = vunpack.c.l.b16 %v213
      %v326 = vunpack.c.l.b16 %v214
      %v327 = vunpack.c.l.b16 %v215
      %v328 = vunpack.c.l.b16 %v216
      %v329 = vunpack.c.l.b16 %v217
      %v330 = vunpack.c.l.b16 %v218
      %v331 = vunpack.c.l.b16 %v219
      %v332 = vunpack.c.l.b16 %v220
      %v333 = vunpack.c.l.b16 %v221
      %v334 = vunpack.c.l.b16 %v222
      %v335 = vunpack.c.l.b16 %v223
      %v336 = vunpack.c.l.b16 %v224
      %v337 = vunpack.c.l.b16 %v225
      %v338 = vunpack.c.l.b16 %v226
      %v339 = vunpack.c.l.b16 %v227
      %v340 = vunpack.c.l.b16 %v228
      %v341 = vunpack.c.l.b16 %v229
      %v342 = vunpack.c.l.b16 %v230
      %v343 = vunpack.c.l.b16 %v231
      %v344 = vunpack.c.l.b16 %v232
      %v345 = vunpack.c.l.b16 %v233
      %v346 = vunpack.c.l.b16 %v234
      %v347 = vunpack.c.l.b16 %v235
      %v348 = vunpack.c.l.b16 %v236
      %v349 = vunpack.c.l.b16 %v237
      %v350 = vunpack.c.l.b16 %v238
      %v351 = vunpack.c.l.b16 %v239
      %v352 = vunpack.c.l.b16 %v240
      %v353 = vpack.c.b16 %v306, %v305
      %v354 = vpack.c.b16 %v308, %v307
      %v355 = vpack.c.b16 %v310, %v309
      %v356 = vpack.c.b16 %v312, %v311
      %v357 = vpack.c.b16 %v314, %v313
      %v358 = vpack.c.b16 %v316, %v315
      %v359 = vpack.c.b16 %v318, %v317
      %v360 = vpack.c.b16 %v320, %v319
      %v361 = vpack.c.b16 %v322, %v321
      %v362 = vpack.c.b16 %v324, %v323
      %v363 = vpack.c.b16 %v326, %v325
      %v364 = vpack.c.b16 %v328, %v327
      %v365 = vpack.c.b16 %v330, %v329
      %v366 = vpack.c.b16 %v332, %v331
      %v367 = vpack.c.b16 %v334, %v333
      %v368 = vpack.c.b16 %v336, %v335
      %v369 = vpack.c.b16 %v338, %v337
      %v370 = vpack.c.b16 %v340, %v339
      %v371 = vpack.c.b16 %v342, %v341
      %v372 = vpack.c.b16 %v344, %v343
      %v373 = vpack.c.b16 %v346, %v345
      %v374 = vpack.c.b16 %v348, %v347
      %v375 = vpack.c.b16 %v350, %v349
      %v376 = vpack.c.b16 %v352, %v351
      %401 = vmatprep.subr.bf16.mxu0 0
      %402 = vmatpush1.bf16.msra.mxu0 %v353
      %403 = vmatprep.subr.bf16.mxu0 0
      %404 = vmatpush1.bf16.msra.mxu0 %v354
      %405 = vmatprep.subr.bf16.mxu0 0
      %406 = vmatpush1.bf16.msra.mxu0 %v355
      %407 = vmatprep.subr.bf16.mxu0 0
      %408 = vmatpush1.bf16.msra.mxu0 %v356
      %409 = vmatprep.subr.bf16.mxu0 0
      %410 = vmatpush1.bf16.msra.mxu0 %v357
      %411 = vmatprep.subr.bf16.mxu0 0
      %412 = vmatpush1.bf16.msra.mxu0 %v358
      %413 = vmatprep.subr.bf16.mxu0 0
      %414 = vmatpush1.bf16.msra.mxu0 %v359
      %415 = vmatprep.subr.bf16.mxu0 0
      %416 = vmatpush1.bf16.msra.mxu0 %v360
      %417 = vmatprep.subr.bf16.mxu0 0
      %418 = vmatpush1.bf16.msra.mxu0 %v361
      %419 = vmatprep.subr.bf16.mxu0 0
      %420 = vmatpush1.bf16.msra.mxu0 %v362
      %421 = vmatprep.subr.bf16.mxu0 0
      %422 = vmatpush1.bf16.msra.mxu0 %v363
      %423 = vmatprep.subr.bf16.mxu0 0
      %424 = vmatpush1.bf16.msra.mxu0 %v364
      %425 = vmatprep.subr.bf16.mxu0 0
      %426 = vmatpush1.bf16.msra.mxu0 %v365
      %427 = vmatprep.subr.bf16.mxu0 0
      %428 = vmatpush1.bf16.msra.mxu0 %v366
      %429 = vmatprep.subr.bf16.mxu0 0
      %430 = vmatpush1.bf16.msra.mxu0 %v367
      %431 = vmatprep.subr.bf16.mxu0 0
      %432 = vmatpush1.bf16.msra.mxu0 %v368
      %433 = vmatprep.mubr.bf16.mxu0 %v252
      %434 = vmatmul.mubr.bf16.gmra.mrb[0].mxu0 %v251
      %v435 = vpop.f32.mrb[0].mxu0
      %v436 = vadd.f32 0.0, %v435
      %v437 = vpop.f32.mrb[0].mxu0
      %v438 = vpop.f32.mrb[0].mxu0
      %v439 = vadd.f32 0.0, %v438
      %v440 = vpop.f32.mrb[0].mxu0
      %441 = vdwg.mxu0
      %442 = vmatprep.subr.bf16.mxu0 0
      %443 = vmatpush1.bf16.msra.mxu0 %v369
      %444 = vmatprep.subr.bf16.mxu0 0
      %445 = vmatpush1.bf16.msra.mxu0 %v370
      %446 = vmatprep.subr.bf16.mxu0 0
      %447 = vmatpush1.bf16.msra.mxu0 %v371
      %448 = vmatprep.subr.bf16.mxu0 0
      %449 = vmatpush1.bf16.msra.mxu0 %v372
      %450 = vmatprep.subr.bf16.mxu0 0
      %451 = vmatpush1.bf16.msra.mxu0 %v373
      %452 = vmatprep.subr.bf16.mxu0 0
      %453 = vmatpush1.bf16.msra.mxu0 %v374
      %454 = vmatprep.subr.bf16.mxu0 0
      %455 = vmatpush1.bf16.msra.mxu0 %v375
      %456 = vmatprep.subr.bf16.mxu0 0
      %457 = vmatpush1.bf16.msra.mxu0 %v376
      %458 = vmatprep.subr.bf16.mxu0 0
      %459 = vmatpush1.bf16.msra.mxu0 0
      %460 = vmatprep.subr.bf16.mxu0 0
      %461 = vmatpush1.bf16.msra.mxu0 0
      %462 = vmatprep.subr.bf16.mxu0 0
      %463 = vmatpush1.bf16.msra.mxu0 0
      %464 = vmatprep.subr.bf16.mxu0 0
      %465 = vmatpush1.bf16.msra.mxu0 0
      %466 = vmatprep.subr.bf16.mxu0 0
      %467 = vmatpush1.bf16.msra.mxu0 0
      %468 = vmatprep.subr.bf16.mxu0 0
      %469 = vmatpush1.bf16.msra.mxu0 0
      %470 = vmatprep.subr.bf16.mxu0 0
      %471 = vmatpush1.bf16.msra.mxu0 0
      %472 = vmatprep.subr.bf16.mxu0 0
      %473 = vmatpush1.bf16.msra.mxu0 0
      %474 = vmatprep.mubr.bf16.mxu0 0
      %475 = vmatmul.mubr.bf16.gmra.mrb[0].mxu0 %v253
      %v476 = vpop.f32.mrb[0].mxu0
      %v477 = vadd.f32 %v436, %v476
      %v478 = vpop.f32.mrb[0].mxu0
      %v479 = vpop.f32.mrb[0].mxu0
      %v480 = vadd.f32 %v439, %v479
      %v481 = vpop.f32.mrb[0].mxu0
      %482 = vdwg.mxu0
      %v483 = vpack.c.bf16 %v480, %v477
      %v485 = vunpack.c.l.b16 %v483
      %v486 = vunpack.c.h.b16 %v483
      %v487 = vpack.c.b16 %v485, %v485
      %v488 = vpack.c.b16 %v486, %v486
      %491 = vst [vmem:[%s182] sm:$0xf] %v487
      %492 = vst [vmem:[%s182 + $0x4] sm:$0xf] %v488
      %v493 = vadd.f32 %v477, %v480
      %v494 = vrot.slane %v493, 4
      %v495 = vadd.f32 %v493, %v494
      %v496 = vrot.slane %v495, 2
      %v497 = vadd.f32 %v495, %v496
      %v498 = vrot.slane %v497, 1
      %v499 = vadd.f32 %v497, %v498
      %v500 = vmul.f32 %v477, %v477
      %v501 = vmul.f32 %v480, %v480
      %v502 = vadd.f32 %v500, %v501
      %v503 = vrot.slane %v502, 4
      %v504 = vadd.f32 %v502, %v503
      %v505 = vrot.slane %v504, 2
      %v506 = vadd.f32 %v504, %v505
      %v507 = vrot.slane %v506, 1
      %v508 = vadd.f32 %v506, %v507
      %vm509 = vcmask 1040384
      %v510 = vsel %vm509, %v499, %v508
      %511 = vst [vmem:[%s187] sm:$0x3] %v510
      %s512 = smul.u32 2, %s15
      %p513 = scmp.lt.s32.totalorder %s512, 3
      %s514 = scalar_select %p513, %s512, 3
      %s515 = smul.addr %s514, 4
      %s516 = scalar_lea.vmem %s2, %s515
      %p517 = scmp.lt.s32.totalorder %s15, 1
      %s518 = scalar_select %p517, %s15, 1
      %s519 = smul.addr %s518, 2
      %s520 = scalar_lea.vmem %s3, %s519
      // Predicated region
      $region29: #{forward.31} parent=27 // pred_check
        %p521 = pneg %p80
      $region30: #{forward.31} parent=27 // pred_check_branch
        %523 = sbr.rel (%p521) target = $region32
      $region31: #{forward.31} parent=27 // pred_region
        %s524 = smul.u32 2, %s15
      $region32: #{forward.31} parent=27 // pred_fallthru
        _
      // Predicated region
      $region33: #{forward.31} parent=27 // pred_check
        %p525 = pneg %p106
      $region34: #{forward.31} parent=27 // pred_check_branch
        %527 = sbr.rel (%p525) target = $region36
      $region35: #{forward.31} parent=27 // pred_region
        _
      $region36: #{forward.31} parent=27 // pred_fallthru
        _
    $region28: #{forward.31} parent=5 // pred_fallthru
      _
    %p528 = scmp.le.s32.totalorder 2, %s10
    // Predicated region
    $region37: #{forward.31} parent=5 // pred_check
      %p529 = pneg %p528
    $region38: #{forward.31} parent=5 // pred_check_branch
      %531 = sbr.rel (%p529) target = $region40
    $region39: #{forward.31} parent=5 // pred_region
      %s532 = ssub.s32 %s10, 2
      // Predicated region
      $region41: #{forward.31} parent=39 // pred_check
        %p533 = pneg %p86
      $region42: #{forward.31} parent=39 // pred_check_branch
        %535 = sbr.rel (%p533) target = $region44
      $region43: #{forward.31} parent=39 // pred_region
        %s536 = smul.u32 2, %s16
        %p537 = scmp.lt.s32.totalorder %s536, 3
        %s538 = scalar_select %p537, %s536, 3
        %s539 = smul.addr %s538, 4
        %s540 = scalar_lea.vmem %s2, %s539
      $region44: #{forward.31} parent=39 // pred_fallthru
        _
      // Predicated region
      $region45: #{forward.31} parent=39 // pred_check
        %p541 = pneg %p112
      $region46: #{forward.31} parent=39 // pred_check_branch
        %543 = sbr.rel (%p541) target = $region48
      $region47: #{forward.31} parent=39 // pred_region
        %p544 = scmp.lt.s32.totalorder %s16, 1
        %s545 = scalar_select %p544, %s16, 1
        %s546 = smul.addr %s545, 2
        %s547 = scalar_lea.vmem %s3, %s546
      $region48: #{forward.31} parent=39 // pred_fallthru
        _
    $region40: #{forward.31} parent=5 // pred_fallthru
      _
  $region6: #{forward.31} parent=0 // loop_footer
    %s14 = sadd.s32 1, %s10
  $region7: #{forward.31} parent=0 // loop_footer_branch
    %9 = sbr.rel target = $region3
  $region8: #{forward.31} parent=0 // loop_exit
    _

// kernel: forward.32
$region0: #{forward.32}
  #allocation0 [shape = 'u32[]', space=smem, size = 0x4, offset = 0x4, fixed_abs, tag = 'smem constant byte address 0x4 - core index']
  #allocation1 [shape = 'u32[144,128]{1,0:T(1,128)}', space=vmem, size = 0x12000, scoped, tag = 'internal scratch']
  %s0 = inlined_call_operand.vmem [shape: bf16[32,128], index: 0, kind: input, shape index: {}]
  %s1 = inlined_call_operand.vmem [shape: f32[1,128], index: 1, kind: input, shape index: {}]
  %s2 = inlined_call_operand.vmem [shape: f32[1,128], index: 2, kind: input, shape index: {}]
  %s3 = inlined_call_operand.vmem [shape: bf16[32,128], index: 3, kind: output, shape index: {}]
  %s4 = sld [smem:[#allocation0]]
  $region45: #{forward.32} parent=0
    _
  %s6 = ssub.s32 1, %s4
  %s7 = scalar_select 0, %s6, %s4
  loop: start=0, step=1, limit=4
  $region2: #{forward.32} parent=0 // loop_pre_header
    _
  $region3: #{forward.32} parent=0 // loop_header
    %s9 = sphi 0, %s13
    %p10 = scmp.ge.s32.totalorder %s9, 4
    %s19 = sphi 0, %s21
    %s22 = sphi 0, %s19
    %s23 = sphi 0, %s22
    %s39 = sphi 0, %s23
    %s43 = sphi 0, %s43
    %s45 = sphi 0, %s43
    %s46 = sphi 0, %s45
    %s60 = sphi 0, %s46
    %s64 = sphi 0, %s64
    %s66 = sphi 0, %s64
    %s67 = sphi 0, %s66
    %s81 = sphi 0, %s67
    %s87 = sphi 0, %s89
    %s90 = sphi 0, %s87
    %s91 = sphi 0, %s90
    %s107 = sphi 0, %s91
  $region4: #{forward.32} parent=0 // loop_header_branch
    %12 = sbr.rel (%p10) target = $region8
  $region5: #{forward.32} parent=0 // loop_body
    %s14 = ssub.s32 %s9, 1
    %s15 = ssub.s32 %s9, 2
    %s16 = sadd.s32 %s9, 1
    %s17 = ssub.s32 %s9, %s16
    %p18 = scmp.eq.s32.totalorder %s17, 0
    %s20 = sadd.s32 %s19, 1
    %s21 = scalar_select %p18, %s19, %s20
    %p24 = pneg %p18
    %p25 = scmp.eq.s32.totalorder %s9, 1
    %p26 = por %p24, %p25
    %p27 = scmp.ne.s32.totalorder %s19, %s22
    %p28 = scmp.eq.s32.totalorder %s9, 0
    %p29 = por %p27, %p28
    %p30 = scmp.ne.s32.totalorder %s19, %s22
    %p31 = scmp.eq.s32.totalorder %s14, 1
    %p32 = por %p30, %p31
    %p33 = scmp.ne.s32.totalorder %s22, %s23
    %p34 = scmp.eq.s32.totalorder %s14, 0
    %p35 = por %p33, %p34
    %p36 = scmp.ne.s32.totalorder %s22, %s23
    %p37 = scmp.eq.s32.totalorder %s15, 1
    %p38 = por %p36, %p37
    %p40 = scmp.ne.s32.totalorder %s23, %s39
    %p41 = scmp.eq.s32.totalorder %s15, 0
    %p42 = por %p40, %p41
    %s44 = sadd.s32 %s43, 1
    %p47 = scmp.eq.s32.totalorder %s9, 1
    %p48 = scmp.ne.s32.totalorder %s43, %s45
    %p49 = scmp.eq.s32.totalorder %s9, 0
    %p50 = por %p48, %p49
    %p51 = scmp.ne.s32.totalorder %s43, %s45
    %p52 = scmp.eq.s32.totalorder %s14, 1
    %p53 = por %p51, %p52
    %p54 = scmp.ne.s32.totalorder %s45, %s46
    %p55 = scmp.eq.s32.totalorder %s14, 0
    %p56 = por %p54, %p55
    %p57 = scmp.ne.s32.totalorder %s45, %s46
    %p58 = scmp.eq.s32.totalorder %s15, 1
    %p59 = por %p57, %p58
    %p61 = scmp.ne.s32.totalorder %s46, %s60
    %p62 = scmp.eq.s32.totalorder %s15, 0
    %p63 = por %p61, %p62
    %s65 = sadd.s32 %s64, 1
    %p68 = scmp.eq.s32.totalorder %s9, 1
    %p69 = scmp.ne.s32.totalorder %s64, %s66
    %p70 = scmp.eq.s32.totalorder %s9, 0
    %p71 = por %p69, %p70
    %p72 = scmp.ne.s32.totalorder %s64, %s66
    %p73 = scmp.eq.s32.totalorder %s14, 1
    %p74 = por %p72, %p73
    %p75 = scmp.ne.s32.totalorder %s66, %s67
    %p76 = scmp.eq.s32.totalorder %s14, 0
    %p77 = por %p75, %p76
    %p78 = scmp.ne.s32.totalorder %s66, %s67
    %p79 = scmp.eq.s32.totalorder %s15, 1
    %p80 = por %p78, %p79
    %p82 = scmp.ne.s32.totalorder %s67, %s81
    %p83 = scmp.eq.s32.totalorder %s15, 0
    %p84 = por %p82, %p83
    %s85 = ssub.s32 %s9, %s16
    %p86 = scmp.eq.s32.totalorder %s85, 0
    %s88 = sadd.s32 %s87, 1
    %s89 = scalar_select %p86, %s87, %s88
    %p92 = pneg %p86
    %p93 = scmp.eq.s32.totalorder %s9, 1
    %p94 = por %p92, %p93
    %p95 = scmp.ne.s32.totalorder %s87, %s90
    %p96 = scmp.eq.s32.totalorder %s9, 0
    %p97 = por %p95, %p96
    %p98 = scmp.ne.s32.totalorder %s87, %s90
    %p99 = scmp.eq.s32.totalorder %s14, 1
    %p100 = por %p98, %p99
    %p101 = scmp.ne.s32.totalorder %s90, %s91
    %p102 = scmp.eq.s32.totalorder %s14, 0
    %p103 = por %p101, %p102
    %p104 = scmp.ne.s32.totalorder %s90, %s91
    %p105 = scmp.eq.s32.totalorder %s15, 1
    %p106 = por %p104, %p105
    %p108 = scmp.ne.s32.totalorder %s91, %s107
    %p109 = scmp.eq.s32.totalorder %s15, 0
    %p110 = por %p108, %p109
    %p111 = scmp.le.s32.totalorder 1, %s9
    %p112 = scmp.lt.s32.totalorder %s9, 3
    %p113 = pnand %p111, %p112
    %p114 = pneg %p113
    // Predicated region
    $region9: #{forward.32} parent=5 // pred_check
      _
    $region10: #{forward.32} parent=5 // pred_check_branch
      %116 = sbr.rel (%p113) target = $region12
    $region11: #{forward.32} parent=5 // pred_region
      %s117 = ssub.s32 %s9, 1
      // Predicated region
      $region13: #{forward.32} parent=11 // pred_check
        %p118 = pneg %p56
      $region14: #{forward.32} parent=11 // pred_check_branch
        %120 = sbr.rel (%p118) target = $region16
      $region15: #{forward.32} parent=11 // pred_region
        _
      $region16: #{forward.32} parent=11 // pred_fallthru
        _
      // Predicated region
      $region17: #{forward.32} parent=11 // pred_check
        %p121 = pneg %p77
      $region18: #{forward.32} parent=11 // pred_check_branch
        %123 = sbr.rel (%p121) target = $region20
      $region19: #{forward.32} parent=11 // pred_region
        _
      $region20: #{forward.32} parent=11 // pred_fallthru
        _
    $region12: #{forward.32} parent=5 // pred_fallthru
      _
    %p124 = scmp.lt.s32.totalorder %s9, 2
    // Predicated region
    $region21: #{forward.32} parent=5 // pred_check
      %p125 = pneg %p124
    $region22: #{forward.32} parent=5 // pred_check_branch
      %127 = sbr.rel (%p125) target = $region24
    $region23: #{forward.32} parent=5 // pred_region
      // Predicated region
      $region25: #{forward.32} parent=23 // pred_check
        %p128 = pneg %p29
      $region26: #{forward.32} parent=23 // pred_check_branch
        %130 = sbr.rel (%p128) target = $region28
      $region27: #{forward.32} parent=23 // pred_region
        %s131 = smul.u32 2, %s9
        %p132 = scmp.lt.s32.totalorder %s131, 3
        %s133 = scalar_select %p132, %s131, 3
        %s134 = smul.addr %s133, 4
        %s135 = scalar_lea.vmem %s0, %s134
        %s136 = smul.u32 2, %s9
      $region28: #{forward.32} parent=23 // pred_fallthru
        _
    $region24: #{forward.32} parent=5 // pred_fallthru
      _
    %p137 = scmp.le.s32.totalorder 1, %s9
    %p138 = scmp.lt.s32.totalorder %s9, 3
    %p139 = pnand %p137, %p138
    %p140 = pneg %p139
    // Predicated region
    $region29: #{forward.32} parent=5 // pred_check
      _
    $region30: #{forward.32} parent=5 // pred_check_branch
      %142 = sbr.rel (%p139) target = $region32
    $region31: #{forward.32} parent=5 // pred_region
      %s143 = ssub.s32 %s9, 1
      %s144 = smul.u32 2, %s14
      %p145 = scmp.lt.s32.totalorder %s144, 3
      %s146 = scalar_select %p145, %s144, 3
      %s147 = smul.addr %s146, 4
      %s148 = scalar_lea.vmem %s0, %s147
      %p149 = pneg %p35
      %p150 = pneg %p32
      %p151 = pneg %p56
      %p152 = pneg %p53
      %p153 = pneg %p77
      %p154 = pneg %p74
      %p155 = pneg %p103
      %p156 = pneg %p100
      %s157 = smul.u32 2, %s14
      %p158 = scmp.lt.s32.totalorder %s157, 3
      %s159 = scalar_select %p158, %s157, 3
      %s160 = smul.addr %s159, 4
      %s161 = scalar_lea.vmem %s3, %s160
      %s162 = smul.u32 2, %s14
      %p163 = scmp.lt.s32.totalorder %s162, 3
      %s164 = scalar_select %p163, %s162, 3
      %s165 = smul.addr %s164, 4
      %s166 = scalar_lea.vmem %s0, %s165
      %s167 = smul.u32 2, %s14
      %s168 = smul.u32 2, %s14
      %p169 = scmp.lt.s32.totalorder %s168, 3
      %s170 = scalar_select %p169, %s168, 3
      %s171 = smul.addr %s170, 4
      %s172 = scalar_lea.vmem %s3, %s171
      %s173 = smul.u32 2, %s14
      %v174 = vld [vmem:[%s166] sm:$0xf]
      %v175 = vld [vmem:[%s166 + $0x4] sm:$0xf]
      %v176 = vunpack.c.l.bf16 %v174
      %v177 = vunpack.c.l.bf16 %v175
      %v178 = vld [vmem:[%s1] sm:$0x1]
      %v180 = vlaneseq
      %v181 = vshrl.u32 %v180, 7
      %v182 = vsub.s32 0, %v181
      %v183 = vrot.slane %v178, %v182
      %v185 = vmul.f32 %v176, %v183
      %v186 = vmul.f32 %v177, %v183
      %v187 = vld [vmem:[%s2] sm:$0x1]
      %v189 = vlaneseq
      %v190 = vshrl.u32 %v189, 7
      %v191 = vsub.s32 0, %v190
      %v192 = vrot.slane %v187, %v191
      %v194 = vadd.f32 %v185, %v192
      %v195 = vadd.f32 %v186, %v192
      %v196 = vmax.f32 %v194, 0.0
      %v197 = vmax.f32 %v195, 0.0
      %v198 = vpack.c.bf16 %v197, %v196
      %v200 = vunpack.c.l.b16 %v198
      %v201 = vunpack.c.h.b16 %v198
      %v202 = vpack.c.b16 %v200, %v200
      %v203 = vpack.c.b16 %v201, %v201
      %206 = vst [vmem:[%s172] sm:$0xf] %v202
      %207 = vst [vmem:[%s172 + $0x4] sm:$0xf] %v203
      %s208 = smul.u32 2, %s14
      %p209 = scmp.lt.s32.totalorder %s208, 3
      %s210 = scalar_select %p209, %s208, 3
      %s211 = smul.addr %s210, 4
      %s212 = scalar_lea.vmem %s3, %s211
      // Predicated region
      $region33: #{forward.32} parent=31 // pred_check
        %p213 = pneg %p100
      $region34: #{forward.32} parent=31 // pred_check_branch
        %215 = sbr.rel (%p213) target = $region36
      $region35: #{forward.32} parent=31 // pred_region
        %s216 = smul.u32 2, %s14
      $region36: #{forward.32} parent=31 // pred_fallthru
        _
    $region32: #{forward.32} parent=5 // pred_fallthru
      _
    %p217 = scmp.le.s32.totalorder 2, %s9
    // Predicated region
    $region37: #{forward.32} parent=5 // pred_check
      %p218 = pneg %p217
    $region38: #{forward.32} parent=5 // pred_check_branch
      %220 = sbr.rel (%p218) target = $region40
    $region39: #{forward.32} parent=5 // pred_region
      %s221 = ssub.s32 %s9, 2
      // Predicated region
      $region41: #{forward.32} parent=39 // pred_check
        %p222 = pneg %p106
      $region42: #{forward.32} parent=39 // pred_check_branch
        %224 = sbr.rel (%p222) target = $region44
      $region43: #{forward.32} parent=39 // pred_region
        %s225 = smul.u32 2, %s15
        %p226 = scmp.lt.s32.totalorder %s225, 3
        %s227 = scalar_select %p226, %s225, 3
        %s228 = smul.addr %s227, 4
        %s229 = scalar_lea.vmem %s3, %s228
      $region44: #{forward.32} parent=39 // pred_fallthru
        _
    $region40: #{forward.32} parent=5 // pred_fallthru
      _
  $region6: #{forward.32} parent=0 // loop_footer
    %s13 = sadd.s32 1, %s9
  $region7: #{forward.32} parent=0 // loop_footer_branch
    %8 = sbr.rel target = $region3
  $region8: #{forward.32} parent=0 // loop_exit
    _

// kernel: forward.34
$region0: #{forward.34}
  #allocation0 [shape = 'u32[]', space=smem, size = 0x4, offset = 0x4, fixed_abs, tag = 'smem constant byte address 0x4 - core index']
  #allocation1 [shape = 'u32[144,128]{1,0:T(1,128)}', space=vmem, size = 0x12000, scoped, tag = 'internal scratch']
  %s0 = inlined_call_operand.vmem [shape: bf16[32,128], index: 0, kind: input, shape index: {}]
  %s1 = inlined_call_operand.vmem [shape: f32[1,128], index: 1, kind: input, shape index: {}]
  %s2 = inlined_call_operand.vmem [shape: f32[1,128], index: 2, kind: input, shape index: {}]
  %s3 = inlined_call_operand.vmem [shape: bf16[32,128], index: 3, kind: output, shape index: {}]
  %s4 = sld [smem:[#allocation0]]
  $region45: #{forward.34} parent=0
    _
  %s6 = ssub.s32 1, %s4
  %s7 = scalar_select 0, %s6, %s4
  loop: start=0, step=1, limit=4
  $region2: #{forward.34} parent=0 // loop_pre_header
    _
  $region3: #{forward.34} parent=0 // loop_header
    %s9 = sphi 0, %s13
    %p10 = scmp.ge.s32.totalorder %s9, 4
    %s19 = sphi 0, %s21
    %s22 = sphi 0, %s19
    %s23 = sphi 0, %s22
    %s39 = sphi 0, %s23
    %s43 = sphi 0, %s43
    %s45 = sphi 0, %s43
    %s46 = sphi 0, %s45
    %s60 = sphi 0, %s46
    %s64 = sphi 0, %s64
    %s66 = sphi 0, %s64
    %s67 = sphi 0, %s66
    %s81 = sphi 0, %s67
    %s87 = sphi 0, %s89
    %s90 = sphi 0, %s87
    %s91 = sphi 0, %s90
    %s107 = sphi 0, %s91
  $region4: #{forward.34} parent=0 // loop_header_branch
    %12 = sbr.rel (%p10) target = $region8
  $region5: #{forward.34} parent=0 // loop_body
    %s14 = ssub.s32 %s9, 1
    %s15 = ssub.s32 %s9, 2
    %s16 = sadd.s32 %s9, 1
    %s17 = ssub.s32 %s9, %s16
    %p18 = scmp.eq.s32.totalorder %s17, 0
    %s20 = sadd.s32 %s19, 1
    %s21 = scalar_select %p18, %s19, %s20
    %p24 = pneg %p18
    %p25 = scmp.eq.s32.totalorder %s9, 1
    %p26 = por %p24, %p25
    %p27 = scmp.ne.s32.totalorder %s19, %s22
    %p28 = scmp.eq.s32.totalorder %s9, 0
    %p29 = por %p27, %p28
    %p30 = scmp.ne.s32.totalorder %s19, %s22
    %p31 = scmp.eq.s32.totalorder %s14, 1
    %p32 = por %p30, %p31
    %p33 = scmp.ne.s32.totalorder %s22, %s23
    %p34 = scmp.eq.s32.totalorder %s14, 0
    %p35 = por %p33, %p34
    %p36 = scmp.ne.s32.totalorder %s22, %s23
    %p37 = scmp.eq.s32.totalorder %s15, 1
    %p38 = por %p36, %p37
    %p40 = scmp.ne.s32.totalorder %s23, %s39
    %p41 = scmp.eq.s32.totalorder %s15, 0
    %p42 = por %p40, %p41
    %s44 = sadd.s32 %s43, 1
    %p47 = scmp.eq.s32.totalorder %s9, 1
    %p48 = scmp.ne.s32.totalorder %s43, %s45
    %p49 = scmp.eq.s32.totalorder %s9, 0
    %p50 = por %p48, %p49
    %p51 = scmp.ne.s32.totalorder %s43, %s45
    %p52 = scmp.eq.s32.totalorder %s14, 1
    %p53 = por %p51, %p52
    %p54 = scmp.ne.s32.totalorder %s45, %s46
    %p55 = scmp.eq.s32.totalorder %s14, 0
    %p56 = por %p54, %p55
    %p57 = scmp.ne.s32.totalorder %s45, %s46
    %p58 = scmp.eq.s32.totalorder %s15, 1
    %p59 = por %p57, %p58
    %p61 = scmp.ne.s32.totalorder %s46, %s60
    %p62 = scmp.eq.s32.totalorder %s15, 0
    %p63 = por %p61, %p62
    %s65 = sadd.s32 %s64, 1
    %p68 = scmp.eq.s32.totalorder %s9, 1
    %p69 = scmp.ne.s32.totalorder %s64, %s66
    %p70 = scmp.eq.s32.totalorder %s9, 0
    %p71 = por %p69, %p70
    %p72 = scmp.ne.s32.totalorder %s64, %s66
    %p73 = scmp.eq.s32.totalorder %s14, 1
    %p74 = por %p72, %p73
    %p75 = scmp.ne.s32.totalorder %s66, %s67
    %p76 = scmp.eq.s32.totalorder %s14, 0
    %p77 = por %p75, %p76
    %p78 = scmp.ne.s32.totalorder %s66, %s67
    %p79 = scmp.eq.s32.totalorder %s15, 1
    %p80 = por %p78, %p79
    %p82 = scmp.ne.s32.totalorder %s67, %s81
    %p83 = scmp.eq.s32.totalorder %s15, 0
    %p84 = por %p82, %p83
    %s85 = ssub.s32 %s9, %s16
    %p86 = scmp.eq.s32.totalorder %s85, 0
    %s88 = sadd.s32 %s87, 1
    %s89 = scalar_select %p86, %s87, %s88
    %p92 = pneg %p86
    %p93 = scmp.eq.s32.totalorder %s9, 1
    %p94 = por %p92, %p93
    %p95 = scmp.ne.s32.totalorder %s87, %s90
    %p96 = scmp.eq.s32.totalorder %s9, 0
    %p97 = por %p95, %p96
    %p98 = scmp.ne.s32.totalorder %s87, %s90
    %p99 = scmp.eq.s32.totalorder %s14, 1
    %p100 = por %p98, %p99
    %p101 = scmp.ne.s32.totalorder %s90, %s91
    %p102 = scmp.eq.s32.totalorder %s14, 0
    %p103 = por %p101, %p102
    %p104 = scmp.ne.s32.totalorder %s90, %s91
    %p105 = scmp.eq.s32.totalorder %s15, 1
    %p106 = por %p104, %p105
    %p108 = scmp.ne.s32.totalorder %s91, %s107
    %p109 = scmp.eq.s32.totalorder %s15, 0
    %p110 = por %p108, %p109
    %p111 = scmp.le.s32.totalorder 1, %s9
    %p112 = scmp.lt.s32.totalorder %s9, 3
    %p113 = pnand %p111, %p112
    %p114 = pneg %p113
    // Predicated region
    $region9: #{forward.34} parent=5 // pred_check
      _
    $region10: #{forward.34} parent=5 // pred_check_branch
      %116 = sbr.rel (%p113) target = $region12
    $region11: #{forward.34} parent=5 // pred_region
      %s117 = ssub.s32 %s9, 1
      // Predicated region
      $region13: #{forward.34} parent=11 // pred_check
        %p118 = pneg %p56
      $region14: #{forward.34} parent=11 // pred_check_branch
        %120 = sbr.rel (%p118) target = $region16
      $region15: #{forward.34} parent=11 // pred_region
        _
      $region16: #{forward.34} parent=11 // pred_fallthru
        _
      // Predicated region
      $region17: #{forward.34} parent=11 // pred_check
        %p121 = pneg %p77
      $region18: #{forward.34} parent=11 // pred_check_branch
        %123 = sbr.rel (%p121) target = $region20
      $region19: #{forward.34} parent=11 // pred_region
        _
      $region20: #{forward.34} parent=11 // pred_fallthru
        _
    $region12: #{forward.34} parent=5 // pred_fallthru
      _
    %p124 = scmp.lt.s32.totalorder %s9, 2
    // Predicated region
    $region21: #{forward.34} parent=5 // pred_check
      %p125 = pneg %p124
    $region22: #{forward.34} parent=5 // pred_check_branch
      %127 = sbr.rel (%p125) target = $region24
    $region23: #{forward.34} parent=5 // pred_region
      // Predicated region
      $region25: #{forward.34} parent=23 // pred_check
        %p128 = pneg %p29
      $region26: #{forward.34} parent=23 // pred_check_branch
        %130 = sbr.rel (%p128) target = $region28
      $region27: #{forward.34} parent=23 // pred_region
        %s131 = smul.u32 2, %s9
        %p132 = scmp.lt.s32.totalorder %s131, 3
        %s133 = scalar_select %p132, %s131, 3
        %s134 = smul.addr %s133, 4
        %s135 = scalar_lea.vmem %s0, %s134
        %s136 = smul.u32 2, %s9
      $region28: #{forward.34} parent=23 // pred_fallthru
        _
    $region24: #{forward.34} parent=5 // pred_fallthru
      _
    %p137 = scmp.le.s32.totalorder 1, %s9
    %p138 = scmp.lt.s32.totalorder %s9, 3
    %p139 = pnand %p137, %p138
    %p140 = pneg %p139
    // Predicated region
    $region29: #{forward.34} parent=5 // pred_check
      _
    $region30: #{forward.34} parent=5 // pred_check_branch
      %142 = sbr.rel (%p139) target = $region32
    $region31: #{forward.34} parent=5 // pred_region
      %s143 = ssub.s32 %s9, 1
      %s144 = smul.u32 2, %s14
      %p145 = scmp.lt.s32.totalorder %s144, 3
      %s146 = scalar_select %p145, %s144, 3
      %s147 = smul.addr %s146, 4
      %s148 = scalar_lea.vmem %s0, %s147
      %p149 = pneg %p35
      %p150 = pneg %p32
      %p151 = pneg %p56
      %p152 = pneg %p53
      %p153 = pneg %p77
      %p154 = pneg %p74
      %p155 = pneg %p103
      %p156 = pneg %p100
      %s157 = smul.u32 2, %s14
      %p158 = scmp.lt.s32.totalorder %s157, 3
      %s159 = scalar_select %p158, %s157, 3
      %s160 = smul.addr %s159, 4
      %s161 = scalar_lea.vmem %s3, %s160
      %s162 = smul.u32 2, %s14
      %p163 = scmp.lt.s32.totalorder %s162, 3
      %s164 = scalar_select %p163, %s162, 3
      %s165 = smul.addr %s164, 4
      %s166 = scalar_lea.vmem %s0, %s165
      %s167 = smul.u32 2, %s14
      %s168 = smul.u32 2, %s14
      %p169 = scmp.lt.s32.totalorder %s168, 3
      %s170 = scalar_select %p169, %s168, 3
      %s171 = smul.addr %s170, 4
      %s172 = scalar_lea.vmem %s3, %s171
      %s173 = smul.u32 2, %s14
      %v174 = vld [vmem:[%s166] sm:$0xf]
      %v175 = vld [vmem:[%s166 + $0x4] sm:$0xf]
      %v176 = vunpack.c.l.bf16 %v174
      %v177 = vunpack.c.l.bf16 %v175
      %v178 = vld [vmem:[%s1] sm:$0x1]
      %v180 = vlaneseq
      %v181 = vshrl.u32 %v180, 7
      %v182 = vsub.s32 0, %v181
      %v183 = vrot.slane %v178, %v182
      %v185 = vmul.f32 %v176, %v183
      %v186 = vmul.f32 %v177, %v183
      %v187 = vld [vmem:[%s2] sm:$0x1]
      %v189 = vlaneseq
      %v190 = vshrl.u32 %v189, 7
      %v191 = vsub.s32 0, %v190
      %v192 = vrot.slane %v187, %v191
      %v194 = vadd.f32 %v185, %v192
      %v195 = vadd.f32 %v186, %v192
      %v196 = vpack.c.bf16 %v195, %v194
      %v198 = vunpack.c.l.b16 %v196
      %v199 = vunpack.c.h.b16 %v196
      %v200 = vpack.c.b16 %v198, %v198
      %v201 = vpack.c.b16 %v199, %v199
      %204 = vst [vmem:[%s172] sm:$0xf] %v200
      %205 = vst [vmem:[%s172 + $0x4] sm:$0xf] %v201
      %s206 = smul.u32 2, %s14
      %p207 = scmp.lt.s32.totalorder %s206, 3
      %s208 = scalar_select %p207, %s206, 3
      %s209 = smul.addr %s208, 4
      %s210 = scalar_lea.vmem %s3, %s209
      // Predicated region
      $region33: #{forward.34} parent=31 // pred_check
        %p211 = pneg %p100
      $region34: #{forward.34} parent=31 // pred_check_branch
        %213 = sbr.rel (%p211) target = $region36
      $region35: #{forward.34} parent=31 // pred_region
        %s214 = smul.u32 2, %s14
      $region36: #{forward.34} parent=31 // pred_fallthru
        _
    $region32: #{forward.34} parent=5 // pred_fallthru
      _
    %p215 = scmp.le.s32.totalorder 2, %s9
    // Predicated region
    $region37: #{forward.34} parent=5 // pred_check
      %p216 = pneg %p215
    $region38: #{forward.34} parent=5 // pred_check_branch
      %218 = sbr.rel (%p216) target = $region40
    $region39: #{forward.34} parent=5 // pred_region
      %s219 = ssub.s32 %s9, 2
      // Predicated region
      $region41: #{forward.34} parent=39 // pred_check
        %p220 = pneg %p106
      $region42: #{forward.34} parent=39 // pred_check_branch
        %222 = sbr.rel (%p220) target = $region44
      $region43: #{forward.34} parent=39 // pred_region
        %s223 = smul.u32 2, %s15
        %p224 = scmp.lt.s32.totalorder %s223, 3
        %s225 = scalar_select %p224, %s223, 3
        %s226 = smul.addr %s225, 4
        %s227 = scalar_lea.vmem %s3, %s226
      $region44: #{forward.34} parent=39 // pred_fallthru
        _
    $region40: #{forward.34} parent=5 // pred_fallthru
      _
  $region6: #{forward.34} parent=0 // loop_footer
    %s13 = sadd.s32 1, %s9
  $region7: #{forward.34} parent=0 // loop_footer_branch
    %8 = sbr.rel target = $region3
  $region8: #{forward.34} parent=0 // loop_exit
    _

// kernel: forward.36
$region0: #{forward.36}
  #allocation0 [shape = 'u32[]', space=smem, size = 0x4, offset = 0x4, fixed_abs, tag = 'smem constant byte address 0x4 - core index']
  #allocation1 [shape = 'u32[144,128]{1,0:T(1,128)}', space=vmem, size = 0x12000, scoped, tag = 'internal scratch']
  %s0 = inlined_call_operand.vmem [shape: bf16[32,128], index: 0, kind: input, shape index: {}]
  %s1 = inlined_call_operand.vmem [shape: f32[1,128], index: 1, kind: input, shape index: {}]
  %s2 = inlined_call_operand.vmem [shape: f32[1,128], index: 2, kind: input, shape index: {}]
  %s3 = inlined_call_operand.vmem [shape: bf16[32,128], index: 3, kind: input, shape index: {}]
  %s4 = inlined_call_operand.vmem [shape: bf16[32,128], index: 4, kind: output, shape index: {}]
  %s5 = sld [smem:[#allocation0]]
  $region49: #{forward.36} parent=0
    _
  %s7 = ssub.s32 1, %s5
  %s8 = scalar_select 0, %s7, %s5
  loop: start=0, step=1, limit=4
  $region2: #{forward.36} parent=0 // loop_pre_header
    _
  $region3: #{forward.36} parent=0 // loop_header
    %s10 = sphi 0, %s14
    %p11 = scmp.ge.s32.totalorder %s10, 4
    %s20 = sphi 0, %s22
    %s23 = sphi 0, %s20
    %s24 = sphi 0, %s23
    %s40 = sphi 0, %s24
    %s44 = sphi 0, %s44
    %s46 = sphi 0, %s44
    %s47 = sphi 0, %s46
    %s61 = sphi 0, %s47
    %s65 = sphi 0, %s65
    %s67 = sphi 0, %s65
    %s68 = sphi 0, %s67
    %s82 = sphi 0, %s68
    %s88 = sphi 0, %s90
    %s91 = sphi 0, %s88
    %s92 = sphi 0, %s91
    %s108 = sphi 0, %s92
    %s114 = sphi 0, %s116
    %s117 = sphi 0, %s114
    %s118 = sphi 0, %s117
    %s134 = sphi 0, %s118
  $region4: #{forward.36} parent=0 // loop_header_branch
    %13 = sbr.rel (%p11) target = $region8
  $region5: #{forward.36} parent=0 // loop_body
    %s15 = ssub.s32 %s10, 1
    %s16 = ssub.s32 %s10, 2
    %s17 = sadd.s32 %s10, 1
    %s18 = ssub.s32 %s10, %s17
    %p19 = scmp.eq.s32.totalorder %s18, 0
    %s21 = sadd.s32 %s20, 1
    %s22 = scalar_select %p19, %s20, %s21
    %p25 = pneg %p19
    %p26 = scmp.eq.s32.totalorder %s10, 1
    %p27 = por %p25, %p26
    %p28 = scmp.ne.s32.totalorder %s20, %s23
    %p29 = scmp.eq.s32.totalorder %s10, 0
    %p30 = por %p28, %p29
    %p31 = scmp.ne.s32.totalorder %s20, %s23
    %p32 = scmp.eq.s32.totalorder %s15, 1
    %p33 = por %p31, %p32
    %p34 = scmp.ne.s32.totalorder %s23, %s24
    %p35 = scmp.eq.s32.totalorder %s15, 0
    %p36 = por %p34, %p35
    %p37 = scmp.ne.s32.totalorder %s23, %s24
    %p38 = scmp.eq.s32.totalorder %s16, 1
    %p39 = por %p37, %p38
    %p41 = scmp.ne.s32.totalorder %s24, %s40
    %p42 = scmp.eq.s32.totalorder %s16, 0
    %p43 = por %p41, %p42
    %s45 = sadd.s32 %s44, 1
    %p48 = scmp.eq.s32.totalorder %s10, 1
    %p49 = scmp.ne.s32.totalorder %s44, %s46
    %p50 = scmp.eq.s32.totalorder %s10, 0
    %p51 = por %p49, %p50
    %p52 = scmp.ne.s32.totalorder %s44, %s46
    %p53 = scmp.eq.s32.totalorder %s15, 1
    %p54 = por %p52, %p53
    %p55 = scmp.ne.s32.totalorder %s46, %s47
    %p56 = scmp.eq.s32.totalorder %s15, 0
    %p57 = por %p55, %p56
    %p58 = scmp.ne.s32.totalorder %s46, %s47
    %p59 = scmp.eq.s32.totalorder %s16, 1
    %p60 = por %p58, %p59
    %p62 = scmp.ne.s32.totalorder %s47, %s61
    %p63 = scmp.eq.s32.totalorder %s16, 0
    %p64 = por %p62, %p63
    %s66 = sadd.s32 %s65, 1
    %p69 = scmp.eq.s32.totalorder %s10, 1
    %p70 = scmp.ne.s32.totalorder %s65, %s67
    %p71 = scmp.eq.s32.totalorder %s10, 0
    %p72 = por %p70, %p71
    %p73 = scmp.ne.s32.totalorder %s65, %s67
    %p74 = scmp.eq.s32.totalorder %s15, 1
    %p75 = por %p73, %p74
    %p76 = scmp.ne.s32.totalorder %s67, %s68
    %p77 = scmp.eq.s32.totalorder %s15, 0
    %p78 = por %p76, %p77
    %p79 = scmp.ne.s32.totalorder %s67, %s68
    %p80 = scmp.eq.s32.totalorder %s16, 1
    %p81 = por %p79, %p80
    %p83 = scmp.ne.s32.totalorder %s68, %s82
    %p84 = scmp.eq.s32.totalorder %s16, 0
    %p85 = por %p83, %p84
    %s86 = ssub.s32 %s10, %s17
    %p87 = scmp.eq.s32.totalorder %s86, 0
    %s89 = sadd.s32 %s88, 1
    %s90 = scalar_select %p87, %s88, %s89
    %p93 = pneg %p87
    %p94 = scmp.eq.s32.totalorder %s10, 1
    %p95 = por %p93, %p94
    %p96 = scmp.ne.s32.totalorder %s88, %s91
    %p97 = scmp.eq.s32.totalorder %s10, 0
    %p98 = por %p96, %p97
    %p99 = scmp.ne.s32.totalorder %s88, %s91
    %p100 = scmp.eq.s32.totalorder %s15, 1
    %p101 = por %p99, %p100
    %p102 = scmp.ne.s32.totalorder %s91, %s92
    %p103 = scmp.eq.s32.totalorder %s15, 0
    %p104 = por %p102, %p103
    %p105 = scmp.ne.s32.totalorder %s91, %s92
    %p106 = scmp.eq.s32.totalorder %s16, 1
    %p107 = por %p105, %p106
    %p109 = scmp.ne.s32.totalorder %s92, %s108
    %p110 = scmp.eq.s32.totalorder %s16, 0
    %p111 = por %p109, %p110
    %s112 = ssub.s32 %s10, %s17
    %p113 = scmp.eq.s32.totalorder %s112, 0
    %s115 = sadd.s32 %s114, 1
    %s116 = scalar_select %p113, %s114, %s115
    %p119 = pneg %p113
    %p120 = scmp.eq.s32.totalorder %s10, 1
    %p121 = por %p119, %p120
    %p122 = scmp.ne.s32.totalorder %s114, %s117
    %p123 = scmp.eq.s32.totalorder %s10, 0
    %p124 = por %p122, %p123
    %p125 = scmp.ne.s32.totalorder %s114, %s117
    %p126 = scmp.eq.s32.totalorder %s15, 1
    %p127 = por %p125, %p126
    %p128 = scmp.ne.s32.totalorder %s117, %s118
    %p129 = scmp.eq.s32.totalorder %s15, 0
    %p130 = por %p128, %p129
    %p131 = scmp.ne.s32.totalorder %s117, %s118
    %p132 = scmp.eq.s32.totalorder %s16, 1
    %p133 = por %p131, %p132
    %p135 = scmp.ne.s32.totalorder %s118, %s134
    %p136 = scmp.eq.s32.totalorder %s16, 0
    %p137 = por %p135, %p136
    %p138 = scmp.le.s32.totalorder 1, %s10
    %p139 = scmp.lt.s32.totalorder %s10, 3
    %p140 = pnand %p138, %p139
    %p141 = pneg %p140
    // Predicated region
    $region9: #{forward.36} parent=5 // pred_check
      _
    $region10: #{forward.36} parent=5 // pred_check_branch
      %143 = sbr.rel (%p140) target = $region12
    $region11: #{forward.36} parent=5 // pred_region
      %s144 = ssub.s32 %s10, 1
      // Predicated region
      $region13: #{forward.36} parent=11 // pred_check
        %p145 = pneg %p57
      $region14: #{forward.36} parent=11 // pred_check_branch
        %147 = sbr.rel (%p145) target = $region16
      $region15: #{forward.36} parent=11 // pred_region
        _
      $region16: #{forward.36} parent=11 // pred_fallthru
        _
      // Predicated region
      $region17: #{forward.36} parent=11 // pred_check
        %p148 = pneg %p78
      $region18: #{forward.36} parent=11 // pred_check_branch
        %150 = sbr.rel (%p148) target = $region20
      $region19: #{forward.36} parent=11 // pred_region
        _
      $region20: #{forward.36} parent=11 // pred_fallthru
        _
    $region12: #{forward.36} parent=5 // pred_fallthru
      _
    %p151 = scmp.lt.s32.totalorder %s10, 2
    // Predicated region
    $region21: #{forward.36} parent=5 // pred_check
      %p152 = pneg %p151
    $region22: #{forward.36} parent=5 // pred_check_branch
      %154 = sbr.rel (%p152) target = $region24
    $region23: #{forward.36} parent=5 // pred_region
      // Predicated region
      $region25: #{forward.36} parent=23 // pred_check
        %p155 = pneg %p30
      $region26: #{forward.36} parent=23 // pred_check_branch
        %157 = sbr.rel (%p155) target = $region28
      $region27: #{forward.36} parent=23 // pred_region
        %s158 = smul.u32 2, %s10
        %p159 = scmp.lt.s32.totalorder %s158, 3
        %s160 = scalar_select %p159, %s158, 3
        %s161 = smul.addr %s160, 4
        %s162 = scalar_lea.vmem %s0, %s161
        %s163 = smul.u32 2, %s10
      $region28: #{forward.36} parent=23 // pred_fallthru
        _
      // Predicated region
      $region29: #{forward.36} parent=23 // pred_check
        %p164 = pneg %p98
      $region30: #{forward.36} parent=23 // pred_check_branch
        %166 = sbr.rel (%p164) target = $region32
      $region31: #{forward.36} parent=23 // pred_region
        %s167 = smul.u32 2, %s10
        %p168 = scmp.lt.s32.totalorder %s167, 3
        %s169 = scalar_select %p168, %s167, 3
        %s170 = smul.addr %s169, 4
        %s171 = scalar_lea.vmem %s3, %s170
        %s172 = smul.u32 2, %s10
      $region32: #{forward.36} parent=23 // pred_fallthru
        _
    $region24: #{forward.36} parent=5 // pred_fallthru
      _
    %p173 = scmp.le.s32.totalorder 1, %s10
    %p174 = scmp.lt.s32.totalorder %s10, 3
    %p175 = pnand %p173, %p174
    %p176 = pneg %p175
    // Predicated region
    $region33: #{forward.36} parent=5 // pred_check
      _
    $region34: #{forward.36} parent=5 // pred_check_branch
      %178 = sbr.rel (%p175) target = $region36
    $region35: #{forward.36} parent=5 // pred_region
      %s179 = ssub.s32 %s10, 1
      %s180 = smul.u32 2, %s15
      %p181 = scmp.lt.s32.totalorder %s180, 3
      %s182 = scalar_select %p181, %s180, 3
      %s183 = smul.addr %s182, 4
      %s184 = scalar_lea.vmem %s0, %s183
      %p185 = pneg %p36
      %p186 = pneg %p33
      %p187 = pneg %p57
      %p188 = pneg %p54
      %p189 = pneg %p78
      %p190 = pneg %p75
      %s191 = smul.u32 2, %s15
      %p192 = scmp.lt.s32.totalorder %s191, 3
      %s193 = scalar_select %p192, %s191, 3
      %s194 = smul.addr %s193, 4
      %s195 = scalar_lea.vmem %s3, %s194
      %p196 = pneg %p104
      %p197 = pneg %p101
      %p198 = pneg %p130
      %p199 = pneg %p127
      %s200 = smul.u32 2, %s15
      %p201 = scmp.lt.s32.totalorder %s200, 3
      %s202 = scalar_select %p201, %s200, 3
      %s203 = smul.addr %s202, 4
      %s204 = scalar_lea.vmem %s4, %s203
      %s205 = smul.u32 2, %s15
      %p206 = scmp.lt.s32.totalorder %s205, 3
      %s207 = scalar_select %p206, %s205, 3
      %s208 = smul.addr %s207, 4
      %s209 = scalar_lea.vmem %s0, %s208
      %s210 = smul.u32 2, %s15
      %s211 = smul.u32 2, %s15
      %p212 = scmp.lt.s32.totalorder %s211, 3
      %s213 = scalar_select %p212, %s211, 3
      %s214 = smul.addr %s213, 4
      %s215 = scalar_lea.vmem %s3, %s214
      %s216 = smul.u32 2, %s15
      %s217 = smul.u32 2, %s15
      %p218 = scmp.lt.s32.totalorder %s217, 3
      %s219 = scalar_select %p218, %s217, 3
      %s220 = smul.addr %s219, 4
      %s221 = scalar_lea.vmem %s4, %s220
      %s222 = smul.u32 2, %s15
      %v223 = vld [vmem:[%s209] sm:$0xf]
      %v224 = vld [vmem:[%s209 + $0x4] sm:$0xf]
      %v225 = vunpack.c.l.bf16 %v223
      %v226 = vunpack.c.l.bf16 %v224
      %v227 = vld [vmem:[%s1] sm:$0x1]
      %v229 = vlaneseq
      %v230 = vshrl.u32 %v229, 7
      %v231 = vsub.s32 0, %v230
      %v232 = vrot.slane %v227, %v231
      %v234 = vmul.f32 %v225, %v232
      %v235 = vmul.f32 %v226, %v232
      %v236 = vld [vmem:[%s2] sm:$0x1]
      %v238 = vlaneseq
      %v239 = vshrl.u32 %v238, 7
      %v240 = vsub.s32 0, %v239
      %v241 = vrot.slane %v236, %v240
      %v243 = vadd.f32 %v234, %v241
      %v244 = vadd.f32 %v235, %v241
      %v245 = vld [vmem:[%s215] sm:$0xf]
      %v246 = vld [vmem:[%s215 + $0x4] sm:$0xf]
      %v247 = vunpack.c.l.bf16 %v245
      %v248 = vunpack.c.l.bf16 %v246
      %v249 = vadd.f32 %v243, %v247
      %v250 = vadd.f32 %v244, %v248
      %v251 = vmax.f32 %v249, 0.0
      %v252 = vmax.f32 %v250, 0.0
      %v253 = vpack.c.bf16 %v252, %v251
      %v255 = vunpack.c.l.b16 %v253
      %v256 = vunpack.c.h.b16 %v253
      %v257 = vpack.c.b16 %v255, %v255
      %v258 = vpack.c.b16 %v256, %v256
      %261 = vst [vmem:[%s221] sm:$0xf] %v257
      %262 = vst [vmem:[%s221 + $0x4] sm:$0xf] %v258
      %s263 = smul.u32 2, %s15
      %p264 = scmp.lt.s32.totalorder %s263, 3
      %s265 = scalar_select %p264, %s263, 3
      %s266 = smul.addr %s265, 4
      %s267 = scalar_lea.vmem %s4, %s266
      // Predicated region
      $region37: #{forward.36} parent=35 // pred_check
        %p268 = pneg %p127
      $region38: #{forward.36} parent=35 // pred_check_branch
        %270 = sbr.rel (%p268) target = $region40
      $region39: #{forward.36} parent=35 // pred_region
        %s271 = smul.u32 2, %s15
      $region40: #{forward.36} parent=35 // pred_fallthru
        _
    $region36: #{forward.36} parent=5 // pred_fallthru
      _
    %p272 = scmp.le.s32.totalorder 2, %s10
    // Predicated region
    $region41: #{forward.36} parent=5 // pred_check
      %p273 = pneg %p272
    $region42: #{forward.36} parent=5 // pred_check_branch
      %275 = sbr.rel (%p273) target = $region44
    $region43: #{forward.36} parent=5 // pred_region
      %s276 = ssub.s32 %s10, 2
      // Predicated region
      $region45: #{forward.36} parent=43 // pred_check
        %p277 = pneg %p133
      $region46: #{forward.36} parent=43 // pred_check_branch
        %279 = sbr.rel (%p277) target = $region48
      $region47: #{forward.36} parent=43 // pred_region
        %s280 = smul.u32 2, %s16
        %p281 = scmp.lt.s32.totalorder %s280, 3
        %s282 = scalar_select %p281, %s280, 3
        %s283 = smul.addr %s282, 4
        %s284 = scalar_lea.vmem %s4, %s283
      $region48: #{forward.36} parent=43 // pred_fallthru
        _
    $region44: #{forward.36} parent=5 // pred_fallthru
      _
  $region6: #{forward.36} parent=0 // loop_footer
    %s14 = sadd.s32 1, %s10
  $region7: #{forward.36} parent=0 // loop_footer_branch
    %9 = sbr.rel target = $region3
  $region8: #{forward.36} parent=0 // loop_exit
    _

// kernel: forward.35
$region0: #{forward.35}
  #allocation0 [shape = 'u32[]', space=smem, size = 0x4, offset = 0x4, fixed_abs, tag = 'smem constant byte address 0x4 - core index']
  #allocation1 [shape = 'u32[144,128]{1,0:T(1,128)}', space=vmem, size = 0x12000, scoped, tag = 'internal scratch']
  %s0 = inlined_call_operand.vmem [shape: bf16[32,640], index: 0, kind: input, shape index: {}]
  %s1 = inlined_call_operand.vmem [shape: bf16[640,128], index: 1, kind: input, shape index: {}]
  %s2 = inlined_call_operand.vmem [shape: bf16[32,128], index: 2, kind: output, shape index: {0}]
  %s3 = inlined_call_operand.vmem [shape: f32[2,2,128], index: 3, kind: output, shape index: {1}]
  %4 = xla_tuple %s2, %s3
  %s5 = sld [smem:[#allocation0]]
  $region49: #{forward.35} parent=0
    _
  %s7 = ssub.s32 1, %s5
  %s8 = scalar_select 0, %s7, %s5
  loop: start=0, step=1, limit=4
  $region2: #{forward.35} parent=0 // loop_pre_header
    _
  $region3: #{forward.35} parent=0 // loop_header
    %s10 = sphi 0, %s14
    %p11 = scmp.ge.s32.totalorder %s10, 4
    %s20 = sphi 0, %s22
    %s23 = sphi 0, %s20
    %s24 = sphi 0, %s23
    %s40 = sphi 0, %s24
    %s44 = sphi 0, %s44
    %s46 = sphi 0, %s44
    %s47 = sphi 0, %s46
    %s61 = sphi 0, %s47
    %s67 = sphi 0, %s69
    %s70 = sphi 0, %s67
    %s71 = sphi 0, %s70
    %s87 = sphi 0, %s71
    %s93 = sphi 0, %s95
    %s96 = sphi 0, %s93
    %s97 = sphi 0, %s96
    %s113 = sphi 0, %s97
  $region4: #{forward.35} parent=0 // loop_header_branch
    %13 = sbr.rel (%p11) target = $region8
  $region5: #{forward.35} parent=0 // loop_body
    %s15 = ssub.s32 %s10, 1
    %s16 = ssub.s32 %s10, 2
    %s17 = sadd.s32 %s10, 1
    %s18 = ssub.s32 %s10, %s17
    %p19 = scmp.eq.s32.totalorder %s18, 0
    %s21 = sadd.s32 %s20, 1
    %s22 = scalar_select %p19, %s20, %s21
    %p25 = pneg %p19
    %p26 = scmp.eq.s32.totalorder %s10, 1
    %p27 = por %p25, %p26
    %p28 = scmp.ne.s32.totalorder %s20, %s23
    %p29 = scmp.eq.s32.totalorder %s10, 0
    %p30 = por %p28, %p29
    %p31 = scmp.ne.s32.totalorder %s20, %s23
    %p32 = scmp.eq.s32.totalorder %s15, 1
    %p33 = por %p31, %p32
    %p34 = scmp.ne.s32.totalorder %s23, %s24
    %p35 = scmp.eq.s32.totalorder %s15, 0
    %p36 = por %p34, %p35
    %p37 = scmp.ne.s32.totalorder %s23, %s24
    %p38 = scmp.eq.s32.totalorder %s16, 1
    %p39 = por %p37, %p38
    %p41 = scmp.ne.s32.totalorder %s24, %s40
    %p42 = scmp.eq.s32.totalorder %s16, 0
    %p43 = por %p41, %p42
    %s45 = sadd.s32 %s44, 1
    %p48 = scmp.eq.s32.totalorder %s10, 1
    %p49 = scmp.ne.s32.totalorder %s44, %s46
    %p50 = scmp.eq.s32.totalorder %s10, 0
    %p51 = por %p49, %p50
    %p52 = scmp.ne.s32.totalorder %s44, %s46
    %p53 = scmp.eq.s32.totalorder %s15, 1
    %p54 = por %p52, %p53
    %p55 = scmp.ne.s32.totalorder %s46, %s47
    %p56 = scmp.eq.s32.totalorder %s15, 0
    %p57 = por %p55, %p56
    %p58 = scmp.ne.s32.totalorder %s46, %s47
    %p59 = scmp.eq.s32.totalorder %s16, 1
    %p60 = por %p58, %p59
    %p62 = scmp.ne.s32.totalorder %s47, %s61
    %p63 = scmp.eq.s32.totalorder %s16, 0
    %p64 = por %p62, %p63
    %s65 = ssub.s32 %s10, %s17
    %p66 = scmp.eq.s32.totalorder %s65, 0
    %s68 = sadd.s32 %s67, 1
    %s69 = scalar_select %p66, %s67, %s68
    %p72 = pneg %p66
    %p73 = scmp.eq.s32.totalorder %s10, 1
    %p74 = por %p72, %p73
    %p75 = scmp.ne.s32.totalorder %s67, %s70
    %p76 = scmp.eq.s32.totalorder %s10, 0
    %p77 = por %p75, %p76
    %p78 = scmp.ne.s32.totalorder %s67, %s70
    %p79 = scmp.eq.s32.totalorder %s15, 1
    %p80 = por %p78, %p79
    %p81 = scmp.ne.s32.totalorder %s70, %s71
    %p82 = scmp.eq.s32.totalorder %s15, 0
    %p83 = por %p81, %p82
    %p84 = scmp.ne.s32.totalorder %s70, %s71
    %p85 = scmp.eq.s32.totalorder %s16, 1
    %p86 = por %p84, %p85
    %p88 = scmp.ne.s32.totalorder %s71, %s87
    %p89 = scmp.eq.s32.totalorder %s16, 0
    %p90 = por %p88, %p89
    %s91 = ssub.s32 %s10, %s17
    %p92 = scmp.eq.s32.totalorder %s91, 0
    %s94 = sadd.s32 %s93, 1
    %s95 = scalar_select %p92, %s93, %s94
    %p98 = pneg %p92
    %p99 = scmp.eq.s32.totalorder %s10, 1
    %p100 = por %p98, %p99
    %p101 = scmp.ne.s32.totalorder %s93, %s96
    %p102 = scmp.eq.s32.totalorder %s10, 0
    %p103 = por %p101, %p102
    %p104 = scmp.ne.s32.totalorder %s93, %s96
    %p105 = scmp.eq.s32.totalorder %s15, 1
    %p106 = por %p104, %p105
    %p107 = scmp.ne.s32.totalorder %s96, %s97
    %p108 = scmp.eq.s32.totalorder %s15, 0
    %p109 = por %p107, %p108
    %p110 = scmp.ne.s32.totalorder %s96, %s97
    %p111 = scmp.eq.s32.totalorder %s16, 1
    %p112 = por %p110, %p111
    %p114 = scmp.ne.s32.totalorder %s97, %s113
    %p115 = scmp.eq.s32.totalorder %s16, 0
    %p116 = por %p114, %p115
    %p117 = scmp.le.s32.totalorder 1, %s10
    %p118 = scmp.lt.s32.totalorder %s10, 3
    %p119 = pnand %p117, %p118
    %p120 = pneg %p119
    // Predicated region
    $region9: #{forward.35} parent=5 // pred_check
      _
    $region10: #{forward.35} parent=5 // pred_check_branch
      %122 = sbr.rel (%p119) target = $region12
    $region11: #{forward.35} parent=5 // pred_region
      %s123 = ssub.s32 %s10, 1
      // Predicated region
      $region13: #{forward.35} parent=11 // pred_check
        %p124 = pneg %p57
      $region14: #{forward.35} parent=11 // pred_check_branch
        %126 = sbr.rel (%p124) target = $region16
      $region15: #{forward.35} parent=11 // pred_region
        _
      $region16: #{forward.35} parent=11 // pred_fallthru
        _
    $region12: #{forward.35} parent=5 // pred_fallthru
      _
    %p127 = scmp.lt.s32.totalorder %s10, 2
    // Predicated region
    $region17: #{forward.35} parent=5 // pred_check
      %p128 = pneg %p127
    $region18: #{forward.35} parent=5 // pred_check_branch
      %130 = sbr.rel (%p128) target = $region20
    $region19: #{forward.35} parent=5 // pred_region
      // Predicated region
      $region21: #{forward.35} parent=19 // pred_check
        %p131 = pneg %p30
      $region22: #{forward.35} parent=19 // pred_check_branch
        %133 = sbr.rel (%p131) target = $region24
      $region23: #{forward.35} parent=19 // pred_region
        %s134 = smul.u32 2, %s10
        %p135 = scmp.lt.s32.totalorder %s134, 3
        %s136 = scalar_select %p135, %s134, 3
        %s137 = smul.addr %s136, 5
        %s138 = smul.addr %s137, 4
        %s139 = scalar_lea.vmem %s0, %s138
        %s140 = smul.u32 2, %s10
      $region24: #{forward.35} parent=19 // pred_fallthru
        _
    $region20: #{forward.35} parent=5 // pred_fallthru
      _
    %p141 = scmp.le.s32.totalorder 1, %s10
    %p142 = scmp.lt.s32.totalorder %s10, 3
    %p143 = pnand %p141, %p142
    %p144 = pneg %p143
    // Predicated region
    $region25: #{forward.35} parent=5 // pred_check
      _
    $region26: #{forward.35} parent=5 // pred_check_branch
      %146 = sbr.rel (%p143) target = $region28
    $region27: #{forward.35} parent=5 // pred_region
      %s147 = ssub.s32 %s10, 1
      %s148 = smul.u32 2, %s15
      %p149 = scmp.lt.s32.totalorder %s148, 3
      %s150 = scalar_select %p149, %s148, 3
      %s151 = smul.addr %s150, 5
      %s152 = smul.addr %s151, 4
      %s153 = scalar_lea.vmem %s0, %s152
      %p154 = pneg %p36
      %p155 = pneg %p33
      %p156 = pneg %p57
      %p157 = pneg %p54
      %p158 = pneg %p83
      %p159 = pneg %p80
      %s160 = smul.u32 2, %s15
      %p161 = scmp.lt.s32.totalorder %s160, 3
      %s162 = scalar_select %p161, %s160, 3
      %s163 = smul.addr %s162, 4
      %s164 = scalar_lea.vmem %s2, %s163
      %p165 = pneg %p109
      %p166 = pneg %p106
      %p167 = scmp.lt.s32.totalorder %s15, 1
      %s168 = scalar_select %p167, %s15, 1
      %s169 = smul.addr %s168, 2
      %s170 = scalar_lea.vmem %s3, %s169
      %s171 = smul.u32 2, %s15
      %p172 = scmp.lt.s32.totalorder %s171, 3
      %s173 = scalar_select %p172, %s171, 3
      %s174 = smul.addr %s173, 5
      %s175 = smul.addr %s174, 4
      %s176 = scalar_lea.vmem %s0, %s175
      %s177 = smul.u32 2, %s15
      %s178 = smul.u32 2, %s15
      %p179 = scmp.lt.s32.totalorder %s178, 3
      %s180 = scalar_select %p179, %s178, 3
      %s181 = smul.addr %s180, 4
      %s182 = scalar_lea.vmem %s2, %s181
      %s183 = smul.u32 2, %s15
      %p184 = scmp.lt.s32.totalorder %s15, 1
      %s185 = scalar_select %p184, %s15, 1
      %s186 = smul.addr %s185, 2
      %s187 = scalar_lea.vmem %s3, %s186
      %v189 = vld [vmem:[%s176] sm:$0xff]
      %v190 = vld [vmem:[%s176 + $0x8] sm:$0xff]
      %v191 = vld [vmem:[%s176 + $0x10] sm:$0xf]
      %v192 = vld [vmem:[%s176 + $0x14] sm:$0xff]
      %v193 = vld [vmem:[%s176 + $0x1c] sm:$0xff]
      %v194 = vld [vmem:[%s176 + $0x24] sm:$0xf]
      %v195 = vld [vmem:[%s1] sm:$0xf]
      %v196 = vld [vmem:[%s1 + $0x4] sm:$0xf]
      %v197 = vld [vmem:[%s1 + $0x8] sm:$0xf]
      %v198 = vld [vmem:[%s1 + $0xc] sm:$0xf]
      %v199 = vld [vmem:[%s1 + $0x10] sm:$0xf]
      %v200 = vld [vmem:[%s1 + $0x14] sm:$0xf]
      %v201 = vld [vmem:[%s1 + $0x18] sm:$0xf]
      %v202 = vld [vmem:[%s1 + $0x1c] sm:$0xf]
      %v203 = vld [vmem:[%s1 + $0x20] sm:$0xf]
      %v204 = vld [vmem:[%s1 + $0x24] sm:$0xf]
      %v205 = vld [vmem:[%s1 + $0x28] sm:$0xf]
      %v206 = vld [vmem:[%s1 + $0x2c] sm:$0xf]
      %v207 = vld [vmem:[%s1 + $0x30] sm:$0xf]
      %v208 = vld [vmem:[%s1 + $0x34] sm:$0xf]
      %v209 = vld [vmem:[%s1 + $0x38] sm:$0xf]
      %v210 = vld [vmem:[%s1 + $0x3c] sm:$0xf]
      %v211 = vld [vmem:[%s1 + $0x40] sm:$0xf]
      %v212 = vld [vmem:[%s1 + $0x44] sm:$0xf]
      %v213 = vld [vmem:[%s1 + $0x48] sm:$0xf]
      %v214 = vld [vmem:[%s1 + $0x4c] sm:$0xf]
      %v215 = vld [vmem:[%s1 + $0x50] sm:$0xf]
      %v216 = vld [vmem:[%s1 + $0x54] sm:$0xf]
      %v217 = vld [vmem:[%s1 + $0x58] sm:$0xf]
      %v218 = vld [vmem:[%s1 + $0x5c] sm:$0xf]
      %v219 = vld [vmem:[%s1 + $0x60] sm:$0xf]
      %v220 = vld [vmem:[%s1 + $0x64] sm:$0xf]
      %v221 = vld [vmem:[%s1 + $0x68] sm:$0xf]
      %v222 = vld [vmem:[%s1 + $0x6c] sm:$0xf]
      %v223 = vld [vmem:[%s1 + $0x70] sm:$0xf]
      %v224 = vld [vmem:[%s1 + $0x74] sm:$0xf]
      %v225 = vld [vmem:[%s1 + $0x78] sm:$0xf]
      %v226 = vld [vmem:[%s1 + $0x7c] sm:$0xf]
      %v227 = vld [vmem:[%s1 + $0x80] sm:$0xf]
      %v228 = vld [vmem:[%s1 + $0x84] sm:$0xf]
      %v229 = vld [vmem:[%s1 + $0x88] sm:$0xf]
      %v230 = vld [vmem:[%s1 + $0x8c] sm:$0xf]
      %v231 = vld [vmem:[%s1 + $0x90] sm:$0xf]
      %v232 = vld [vmem:[%s1 + $0x94] sm:$0xf]
      %v233 = vld [vmem:[%s1 + $0x98] sm:$0xf]
      %v234 = vld [vmem:[%s1 + $0x9c] sm:$0xf]
      %v235 = vld [vmem:[%s1 + $0xa0] sm:$0xf]
      %v236 = vld [vmem:[%s1 + $0xa4] sm:$0xf]
      %v237 = vld [vmem:[%s1 + $0xa8] sm:$0xf]
      %v238 = vld [vmem:[%s1 + $0xac] sm:$0xf]
      %v239 = vld [vmem:[%s1 + $0xb0] sm:$0xf]
      %v240 = vld [vmem:[%s1 + $0xb4] sm:$0xf]
      %v241 = vld [vmem:[%s1 + $0xb8] sm:$0xf]
      %v242 = vld [vmem:[%s1 + $0xbc] sm:$0xf]
      %v243 = vld [vmem:[%s1 + $0xc0] sm:$0xf]
      %v244 = vld [vmem:[%s1 + $0xc4] sm:$0xf]
      %v245 = vld [vmem:[%s1 + $0xc8] sm:$0xf]
      %v246 = vld [vmem:[%s1 + $0xcc] sm:$0xf]
      %v247 = vld [vmem:[%s1 + $0xd0] sm:$0xf]
      %v248 = vld [vmem:[%s1 + $0xd4] sm:$0xf]
      %v249 = vld [vmem:[%s1 + $0xd8] sm:$0xf]
      %v250 = vld [vmem:[%s1 + $0xdc] sm:$0xf]
      %v251 = vld [vmem:[%s1 + $0xe0] sm:$0xf]
      %v252 = vld [vmem:[%s1 + $0xe4] sm:$0xf]
      %v253 = vld [vmem:[%s1 + $0xe8] sm:$0xf]
      %v254 = vld [vmem:[%s1 + $0xec] sm:$0xf]
      %v255 = vld [vmem:[%s1 + $0xf0] sm:$0xf]
      %v256 = vld [vmem:[%s1 + $0xf4] sm:$0xf]
      %v257 = vld [vmem:[%s1 + $0xf8] sm:$0xf]
      %v258 = vld [vmem:[%s1 + $0xfc] sm:$0xf]
      %v259 = vld [vmem:[%s1 + $0x100] sm:$0xf]
      %v260 = vld [vmem:[%s1 + $0x104] sm:$0xf]
      %v261 = vld [vmem:[%s1 + $0x108] sm:$0xf]
      %v262 = vld [vmem:[%s1 + $0x10c] sm:$0xf]
      %v263 = vld [vmem:[%s1 + $0x110] sm:$0xf]
      %v264 = vld [vmem:[%s1 + $0x114] sm:$0xf]
      %v265 = vld [vmem:[%s1 + $0x118] sm:$0xf]
      %v266 = vld [vmem:[%s1 + $0x11c] sm:$0xf]
      %v267 = vld [vmem:[%s1 + $0x120] sm:$0xf]
      %v268 = vld [vmem:[%s1 + $0x124] sm:$0xf]
      %v269 = vld [vmem:[%s1 + $0x128] sm:$0xf]
      %v270 = vld [vmem:[%s1 + $0x12c] sm:$0xf]
      %v271 = vld [vmem:[%s1 + $0x130] sm:$0xf]
      %v272 = vld [vmem:[%s1 + $0x134] sm:$0xf]
      %v273 = vld [vmem:[%s1 + $0x138] sm:$0xf]
      %v274 = vld [vmem:[%s1 + $0x13c] sm:$0xf]
      %v281 = vunpack.c.l.b16 %v189
      %v282 = vunpack.c.h.b16 %v189
      %v283 = vunpack.c.l.b16 %v190
      %v284 = vunpack.c.h.b16 %v190
      %v285 = vunpack.c.l.b16 %v191
      %v286 = vunpack.c.l.b16 %v192
      %v287 = vunpack.c.h.b16 %v192
      %v288 = vunpack.c.l.b16 %v193
      %v289 = vunpack.c.h.b16 %v193
      %v290 = vunpack.c.l.b16 %v194
      %v291 = vpack.c.b16 %v286, %v281
      %v292 = vpack.c.b16 %v287, %v282
      %v293 = vpack.c.b16 %v288, %v283
      %v294 = vpack.c.b16 %v289, %v284
      %v295 = vpack.c.b16 %v290, %v285
      %v381 = vunpack.c.l.b16 %v195
      %v382 = vunpack.c.l.b16 %v196
      %v383 = vunpack.c.l.b16 %v197
      %v384 = vunpack.c.l.b16 %v198
      %v385 = vunpack.c.l.b16 %v199
      %v386 = vunpack.c.l.b16 %v200
      %v387 = vunpack.c.l.b16 %v201
      %v388 = vunpack.c.l.b16 %v202
      %v389 = vunpack.c.l.b16 %v203
      %v390 = vunpack.c.l.b16 %v204
      %v391 = vunpack.c.l.b16 %v205
      %v392 = vunpack.c.l.b16 %v206
      %v393 = vunpack.c.l.b16 %v207
      %v394 = vunpack.c.l.b16 %v208
      %v395 = vunpack.c.l.b16 %v209
      %v396 = vunpack.c.l.b16 %v210
      %v397 = vunpack.c.l.b16 %v211
      %v398 = vunpack.c.l.b16 %v212
      %v399 = vunpack.c.l.b16 %v213
      %v400 = vunpack.c.l.b16 %v214
      %v401 = vunpack.c.l.b16 %v215
      %v402 = vunpack.c.l.b16 %v216
      %v403 = vunpack.c.l.b16 %v217
      %v404 = vunpack.c.l.b16 %v218
      %v405 = vunpack.c.l.b16 %v219
      %v406 = vunpack.c.l.b16 %v220
      %v407 = vunpack.c.l.b16 %v221
      %v408 = vunpack.c.l.b16 %v222
      %v409 = vunpack.c.l.b16 %v223
      %v410 = vunpack.c.l.b16 %v224
      %v411 = vunpack.c.l.b16 %v225
      %v412 = vunpack.c.l.b16 %v226
      %v413 = vunpack.c.l.b16 %v227
      %v414 = vunpack.c.l.b16 %v228
      %v415 = vunpack.c.l.b16 %v229
      %v416 = vunpack.c.l.b16 %v230
      %v417 = vunpack.c.l.b16 %v231
      %v418 = vunpack.c.l.b16 %v232
      %v419 = vunpack.c.l.b16 %v233
      %v420 = vunpack.c.l.b16 %v234
      %v421 = vunpack.c.l.b16 %v235
      %v422 = vunpack.c.l.b16 %v236
      %v423 = vunpack.c.l.b16 %v237
      %v424 = vunpack.c.l.b16 %v238
      %v425 = vunpack.c.l.b16 %v239
      %v426 = vunpack.c.l.b16 %v240
      %v427 = vunpack.c.l.b16 %v241
      %v428 = vunpack.c.l.b16 %v242
      %v429 = vunpack.c.l.b16 %v243
      %v430 = vunpack.c.l.b16 %v244
      %v431 = vunpack.c.l.b16 %v245
      %v432 = vunpack.c.l.b16 %v246
      %v433 = vunpack.c.l.b16 %v247
      %v434 = vunpack.c.l.b16 %v248
      %v435 = vunpack.c.l.b16 %v249
      %v436 = vunpack.c.l.b16 %v250
      %v437 = vunpack.c.l.b16 %v251
      %v438 = vunpack.c.l.b16 %v252
      %v439 = vunpack.c.l.b16 %v253
      %v440 = vunpack.c.l.b16 %v254
      %v441 = vunpack.c.l.b16 %v255
      %v442 = vunpack.c.l.b16 %v256
      %v443 = vunpack.c.l.b16 %v257
      %v444 = vunpack.c.l.b16 %v258
      %v445 = vunpack.c.l.b16 %v259
      %v446 = vunpack.c.l.b16 %v260
      %v447 = vunpack.c.l.b16 %v261
      %v448 = vunpack.c.l.b16 %v262
      %v449 = vunpack.c.l.b16 %v263
      %v450 = vunpack.c.l.b16 %v264
      %v451 = vunpack.c.l.b16 %v265
      %v452 = vunpack.c.l.b16 %v266
      %v453 = vunpack.c.l.b16 %v267
      %v454 = vunpack.c.l.b16 %v268
      %v455 = vunpack.c.l.b16 %v269
      %v456 = vunpack.c.l.b16 %v270
      %v457 = vunpack.c.l.b16 %v271
      %v458 = vunpack.c.l.b16 %v272
      %v459 = vunpack.c.l.b16 %v273
      %v460 = vunpack.c.l.b16 %v274
      %v461 = vpack.c.b16 %v382, %v381
      %v462 = vpack.c.b16 %v384, %v383
      %v463 = vpack.c.b16 %v386, %v385
      %v464 = vpack.c.b16 %v388, %v387
      %v465 = vpack.c.b16 %v390, %v389
      %v466 = vpack.c.b16 %v392, %v391
      %v467 = vpack.c.b16 %v394, %v393
      %v468 = vpack.c.b16 %v396, %v395
      %v469 = vpack.c.b16 %v398, %v397
      %v470 = vpack.c.b16 %v400, %v399
      %v471 = vpack.c.b16 %v402, %v401
      %v472 = vpack.c.b16 %v404, %v403
      %v473 = vpack.c.b16 %v406, %v405
      %v474 = vpack.c.b16 %v408, %v407
      %v475 = vpack.c.b16 %v410, %v409
      %v476 = vpack.c.b16 %v412, %v411
      %v477 = vpack.c.b16 %v414, %v413
      %v478 = vpack.c.b16 %v416, %v415
      %v479 = vpack.c.b16 %v418, %v417
      %v480 = vpack.c.b16 %v420, %v419
      %v481 = vpack.c.b16 %v422, %v421
      %v482 = vpack.c.b16 %v424, %v423
      %v483 = vpack.c.b16 %v426, %v425
      %v484 = vpack.c.b16 %v428, %v427
      %v485 = vpack.c.b16 %v430, %v429
      %v486 = vpack.c.b16 %v432, %v431
      %v487 = vpack.c.b16 %v434, %v433
      %v488 = vpack.c.b16 %v436, %v435
      %v489 = vpack.c.b16 %v438, %v437
      %v490 = vpack.c.b16 %v440, %v439
      %v491 = vpack.c.b16 %v442, %v441
      %v492 = vpack.c.b16 %v444, %v443
      %v493 = vpack.c.b16 %v446, %v445
      %v494 = vpack.c.b16 %v448, %v447
      %v495 = vpack.c.b16 %v450, %v449
      %v496 = vpack.c.b16 %v452, %v451
      %v497 = vpack.c.b16 %v454, %v453
      %v498 = vpack.c.b16 %v456, %v455
      %v499 = vpack.c.b16 %v458, %v457
      %v500 = vpack.c.b16 %v460, %v459
      %541 = vmatprep.subr.bf16.mxu0 0
      %542 = vmatpush1.bf16.msra.mxu0 %v461
      %543 = vmatprep.subr.bf16.mxu0 0
      %544 = vmatpush1.bf16.msra.mxu0 %v462
      %545 = vmatprep.subr.bf16.mxu0 0
      %546 = vmatpush1.bf16.msra.mxu0 %v463
      %547 = vmatprep.subr.bf16.mxu0 0
      %548 = vmatpush1.bf16.msra.mxu0 %v464
      %549 = vmatprep.subr.bf16.mxu0 0
      %550 = vmatpush1.bf16.msra.mxu0 %v465
      %551 = vmatprep.subr.bf16.mxu0 0
      %552 = vmatpush1.bf16.msra.mxu0 %v466
      %553 = vmatprep.subr.bf16.mxu0 0
      %554 = vmatpush1.bf16.msra.mxu0 %v467
      %555 = vmatprep.subr.bf16.mxu0 0
      %556 = vmatpush1.bf16.msra.mxu0 %v468
      %557 = vmatprep.subr.bf16.mxu0 0
      %558 = vmatpush1.bf16.msra.mxu0 %v469
      %559 = vmatprep.subr.bf16.mxu0 0
      %560 = vmatpush1.bf16.msra.mxu0 %v470
      %561 = vmatprep.subr.bf16.mxu0 0
      %562 = vmatpush1.bf16.msra.mxu0 %v471
      %563 = vmatprep.subr.bf16.mxu0 0
      %564 = vmatpush1.bf16.msra.mxu0 %v472
      %565 = vmatprep.subr.bf16.mxu0 0
      %566 = vmatpush1.bf16.msra.mxu0 %v473
      %567 = vmatprep.subr.bf16.mxu0 0
      %568 = vmatpush1.bf16.msra.mxu0 %v474
      %569 = vmatprep.subr.bf16.mxu0 0
      %570 = vmatpush1.bf16.msra.mxu0 %v475
      %571 = vmatprep.subr.bf16.mxu0 0
      %572 = vmatpush1.bf16.msra.mxu0 %v476
      %573 = vmatprep.mubr.bf16.mxu0 %v292
      %574 = vmatmul.mubr.bf16.gmra.mrb[0].mxu0 %v291
      %v575 = vpop.f32.mrb[0].mxu0
      %v576 = vadd.f32 0.0, %v575
      %v577 = vpop.f32.mrb[0].mxu0
      %v578 = vpop.f32.mrb[0].mxu0
      %v579 = vadd.f32 0.0, %v578
      %v580 = vpop.f32.mrb[0].mxu0
      %581 = vdwg.mxu0
      %582 = vmatprep.subr.bf16.mxu0 0
      %583 = vmatpush1.bf16.msra.mxu0 %v477
      %584 = vmatprep.subr.bf16.mxu0 0
      %585 = vmatpush1.bf16.msra.mxu0 %v478
      %586 = vmatprep.subr.bf16.mxu0 0
      %587 = vmatpush1.bf16.msra.mxu0 %v479
      %588 = vmatprep.subr.bf16.mxu0 0
      %589 = vmatpush1.bf16.msra.mxu0 %v480
      %590 = vmatprep.subr.bf16.mxu0 0
      %591 = vmatpush1.bf16.msra.mxu0 %v481
      %592 = vmatprep.subr.bf16.mxu0 0
      %593 = vmatpush1.bf16.msra.mxu0 %v482
      %594 = vmatprep.subr.bf16.mxu0 0
      %595 = vmatpush1.bf16.msra.mxu0 %v483
      %596 = vmatprep.subr.bf16.mxu0 0
      %597 = vmatpush1.bf16.msra.mxu0 %v484
      %598 = vmatprep.subr.bf16.mxu0 0
      %599 = vmatpush1.bf16.msra.mxu0 %v485
      %600 = vmatprep.subr.bf16.mxu0 0
      %601 = vmatpush1.bf16.msra.mxu0 %v486
      %602 = vmatprep.subr.bf16.mxu0 0
      %603 = vmatpush1.bf16.msra.mxu0 %v487
      %604 = vmatprep.subr.bf16.mxu0 0
      %605 = vmatpush1.bf16.msra.mxu0 %v488
      %606 = vmatprep.subr.bf16.mxu0 0
      %607 = vmatpush1.bf16.msra.mxu0 %v489
      %608 = vmatprep.subr.bf16.mxu0 0
      %609 = vmatpush1.bf16.msra.mxu0 %v490
      %610 = vmatprep.subr.bf16.mxu0 0
      %611 = vmatpush1.bf16.msra.mxu0 %v491
      %612 = vmatprep.subr.bf16.mxu0 0
      %613 = vmatpush1.bf16.msra.mxu0 %v492
      %614 = vmatprep.mubr.bf16.mxu0 %v294
      %615 = vmatmul.mubr.bf16.gmra.mrb[0].mxu0 %v293
      %v616 = vpop.f32.mrb[0].mxu0
      %v617 = vadd.f32 %v576, %v616
      %v618 = vpop.f32.mrb[0].mxu0
      %v619 = vpop.f32.mrb[0].mxu0
      %v620 = vadd.f32 %v579, %v619
      %v621 = vpop.f32.mrb[0].mxu0
      %622 = vdwg.mxu0
      %623 = vmatprep.subr.bf16.mxu0 0
      %624 = vmatpush1.bf16.msra.mxu0 %v493
      %625 = vmatprep.subr.bf16.mxu0 0
      %626 = vmatpush1.bf16.msra.mxu0 %v494
      %627 = vmatprep.subr.bf16.mxu0 0
      %628 = vmatpush1.bf16.msra.mxu0 %v495
      %629 = vmatprep.subr.bf16.mxu0 0
      %630 = vmatpush1.bf16.msra.mxu0 %v496
      %631 = vmatprep.subr.bf16.mxu0 0
      %632 = vmatpush1.bf16.msra.mxu0 %v497
      %633 = vmatprep.subr.bf16.mxu0 0
      %634 = vmatpush1.bf16.msra.mxu0 %v498
      %635 = vmatprep.subr.bf16.mxu0 0
      %636 = vmatpush1.bf16.msra.mxu0 %v499
      %637 = vmatprep.subr.bf16.mxu0 0
      %638 = vmatpush1.bf16.msra.mxu0 %v500
      %639 = vmatprep.subr.bf16.mxu0 0
      %640 = vmatpush1.bf16.msra.mxu0 0
      %641 = vmatprep.subr.bf16.mxu0 0
      %642 = vmatpush1.bf16.msra.mxu0 0
      %643 = vmatprep.subr.bf16.mxu0 0
      %644 = vmatpush1.bf16.msra.mxu0 0
      %645 = vmatprep.subr.bf16.mxu0 0
      %646 = vmatpush1.bf16.msra.mxu0 0
      %647 = vmatprep.subr.bf16.mxu0 0
      %648 = vmatpush1.bf16.msra.mxu0 0
      %649 = vmatprep.subr.bf16.mxu0 0
      %650 = vmatpush1.bf16.msra.mxu0 0
      %651 = vmatprep.subr.bf16.mxu0 0
      %652 = vmatpush1.bf16.msra.mxu0 0
      %653 = vmatprep.subr.bf16.mxu0 0
      %654 = vmatpush1.bf16.msra.mxu0 0
      %655 = vmatprep.mubr.bf16.mxu0 0
      %656 = vmatmul.mubr.bf16.gmra.mrb[0].mxu0 %v295
      %v657 = vpop.f32.mrb[0].mxu0
      %v658 = vadd.f32 %v617, %v657
      %v659 = vpop.f32.mrb[0].mxu0
      %v660 = vpop.f32.mrb[0].mxu0
      %v661 = vadd.f32 %v620, %v660
      %v662 = vpop.f32.mrb[0].mxu0
      %663 = vdwg.mxu0
      %v664 = vpack.c.bf16 %v661, %v658
      %v666 = vunpack.c.l.b16 %v664
      %v667 = vunpack.c.h.b16 %v664
      %v668 = vpack.c.b16 %v666, %v666
      %v669 = vpack.c.b16 %v667, %v667
      %672 = vst [vmem:[%s182] sm:$0xf] %v668
      %673 = vst [vmem:[%s182 + $0x4] sm:$0xf] %v669
      %v674 = vadd.f32 %v658, %v661
      %v675 = vrot.slane %v674, 4
      %v676 = vadd.f32 %v674, %v675
      %v677 = vrot.slane %v676, 2
      %v678 = vadd.f32 %v676, %v677
      %v679 = vrot.slane %v678, 1
      %v680 = vadd.f32 %v678, %v679
      %v681 = vmul.f32 %v658, %v658
      %v682 = vmul.f32 %v661, %v661
      %v683 = vadd.f32 %v681, %v682
      %v684 = vrot.slane %v683, 4
      %v685 = vadd.f32 %v683, %v684
      %v686 = vrot.slane %v685, 2
      %v687 = vadd.f32 %v685, %v686
      %v688 = vrot.slane %v687, 1
      %v689 = vadd.f32 %v687, %v688
      %vm690 = vcmask 1040384
      %v691 = vsel %vm690, %v680, %v689
      %692 = vst [vmem:[%s187] sm:$0x3] %v691
      %s693 = smul.u32 2, %s15
      %p694 = scmp.lt.s32.totalorder %s693, 3
      %s695 = scalar_select %p694, %s693, 3
      %s696 = smul.addr %s695, 4
      %s697 = scalar_lea.vmem %s2, %s696
      %p698 = scmp.lt.s32.totalorder %s15, 1
      %s699 = scalar_select %p698, %s15, 1
      %s700 = smul.addr %s699, 2
      %s701 = scalar_lea.vmem %s3, %s700
      // Predicated region
      $region29: #{forward.35} parent=27 // pred_check
        %p702 = pneg %p80
      $region30: #{forward.35} parent=27 // pred_check_branch
        %704 = sbr.rel (%p702) target = $region32
      $region31: #{forward.35} parent=27 // pred_region
        %s705 = smul.u32 2, %s15
      $region32: #{forward.35} parent=27 // pred_fallthru
        _
      // Predicated region
      $region33: #{forward.35} parent=27 // pred_check
        %p706 = pneg %p106
      $region34: #{forward.35} parent=27 // pred_check_branch
        %708 = sbr.rel (%p706) target = $region36
      $region35: #{forward.35} parent=27 // pred_region
        _
      $region36: #{forward.35} parent=27 // pred_fallthru
        _
    $region28: #{forward.35} parent=5 // pred_fallthru
      _
    %p709 = scmp.le.s32.totalorder 2, %s10
    // Predicated region
    $region37: #{forward.35} parent=5 // pred_check
      %p710 = pneg %p709
    $region38: #{forward.35} parent=5 // pred_check_branch
      %712 = sbr.rel (%p710) target = $region40
    $region39: #{forward.35} parent=5 // pred_region
      %s713 = ssub.s32 %s10, 2
      // Predicated region
      $region41: #{forward.35} parent=39 // pred_check
        %p714 = pneg %p86
      $region42: #{forward.35} parent=39 // pred_check_branch
        %716 = sbr.rel (%p714) target = $region44
      $region43: #{forward.35} parent=39 // pred_region
        %s717 = smul.u32 2, %s16
        %p718 = scmp.lt.s32.totalorder %s717, 3
        %s719 = scalar_select %p718, %s717, 3
        %s720 = smul.addr %s719, 4
        %s721 = scalar_lea.vmem %s2, %s720
      $region44: #{forward.35} parent=39 // pred_fallthru
        _
      // Predicated region
      $region45: #{forward.35} parent=39 // pred_check
        %p722 = pneg %p112
      $region46: #{forward.35} parent=39 // pred_check_branch
        %724 = sbr.rel (%p722) target = $region48
      $region47: #{forward.35} parent=39 // pred_region
        %p725 = scmp.lt.s32.totalorder %s16, 1
        %s726 = scalar_select %p725, %s16, 1
        %s727 = smul.addr %s726, 2
        %s728 = scalar_lea.vmem %s3, %s727
      $region48: #{forward.35} parent=39 // pred_fallthru
        _
    $region40: #{forward.35} parent=5 // pred_fallthru
      _
  $region6: #{forward.35} parent=0 // loop_footer
    %s14 = sadd.s32 1, %s10
  $region7: #{forward.35} parent=0 // loop_footer_branch
    %9 = sbr.rel target = $region3
  $region8: #{forward.35} parent=0 // loop_exit
    _

// kernel: forward.37
$region0: #{forward.37}
  #allocation0 [shape = 'u32[]', space=smem, size = 0x4, offset = 0x4, fixed_abs, tag = 'smem constant byte address 0x4 - core index']
  #allocation1 [shape = 'u32[144,128]{1,0:T(1,128)}', space=vmem, size = 0x12000, scoped, tag = 'internal scratch']
  %s0 = inlined_call_operand.vmem [shape: bf16[2,16,128], index: 0, kind: input, shape index: {}]
  %s1 = inlined_call_operand.vmem [shape: f32[128,128], index: 1, kind: input, shape index: {}]
  %s2 = inlined_call_operand.vmem [shape: f32[1,128], index: 2, kind: input, shape index: {}]
  %s3 = inlined_call_operand.hbm [shape: f32[2,1,128], index: 3, kind: output, shape index: {}]
  %s4 = sld [smem:[#allocation0]]
  $region45: #{forward.37} parent=0
    _
  %s6 = ssub.s32 1, %s4
  %s7 = scalar_select 0, %s6, %s4
  $region1: #{forward.37} parent=0
    #allocation2 [shape = 'u8[1024]{0}', space=vmem, size = 0x400, scoped, tag = 'output window, operand 0']
    #allocation3 [shape = 's32[2]{0}', space=sflag, size = 0x8, scoped, tag = 'scoped memory for forward.37']
    %8 = vsyncpa [#allocation3], 0
    %s9 = scalar_lea.sflag [#allocation3], 1
    %10 = vsyncpa %s9, 0
    loop: start=0, step=1, limit=4
    $region2: #{forward.37} parent=1 // loop_pre_header
      _
    $region3: #{forward.37} parent=1 // loop_header
      %s12 = sphi 0, %s16
      %p13 = scmp.ge.s32.totalorder %s12, 4
      %s22 = sphi 0, %s24
      %s25 = sphi 0, %s22
      %s26 = sphi 0, %s25
      %s42 = sphi 0, %s26
      %s46 = sphi 0, %s46
      %s48 = sphi 0, %s46
      %s49 = sphi 0, %s48
      %s63 = sphi 0, %s49
      %s67 = sphi 0, %s67
      %s69 = sphi 0, %s67
      %s70 = sphi 0, %s69
      %s84 = sphi 0, %s70
      %s90 = sphi 0, %s92
      %s93 = sphi 0, %s90
      %s94 = sphi 0, %s93
      %s110 = sphi 0, %s94
    $region4: #{forward.37} parent=1 // loop_header_branch
      %15 = sbr.rel (%p13) target = $region8
    $region5: #{forward.37} parent=1 // loop_body
      %s17 = ssub.s32 %s12, 1
      %s18 = ssub.s32 %s12, 2
      %s19 = sadd.s32 %s12, 1
      %s20 = ssub.s32 %s12, %s19
      %p21 = scmp.eq.s32.totalorder %s20, 0
      %s23 = sadd.s32 %s22, 1
      %s24 = scalar_select %p21, %s22, %s23
      %p27 = pneg %p21
      %p28 = scmp.eq.s32.totalorder %s12, 1
      %p29 = por %p27, %p28
      %p30 = scmp.ne.s32.totalorder %s22, %s25
      %p31 = scmp.eq.s32.totalorder %s12, 0
      %p32 = por %p30, %p31
      %p33 = scmp.ne.s32.totalorder %s22, %s25
      %p34 = scmp.eq.s32.totalorder %s17, 1
      %p35 = por %p33, %p34
      %p36 = scmp.ne.s32.totalorder %s25, %s26
      %p37 = scmp.eq.s32.totalorder %s17, 0
      %p38 = por %p36, %p37
      %p39 = scmp.ne.s32.totalorder %s25, %s26
      %p40 = scmp.eq.s32.totalorder %s18, 1
      %p41 = por %p39, %p40
      %p43 = scmp.ne.s32.totalorder %s26, %s42
      %p44 = scmp.eq.s32.totalorder %s18, 0
      %p45 = por %p43, %p44
      %s47 = sadd.s32 %s46, 1
      %p50 = scmp.eq.s32.totalorder %s12, 1
      %p51 = scmp.ne.s32.totalorder %s46, %s48
      %p52 = scmp.eq.s32.totalorder %s12, 0
      %p53 = por %p51, %p52
      %p54 = scmp.ne.s32.totalorder %s46, %s48
      %p55 = scmp.eq.s32.totalorder %s17, 1
      %p56 = por %p54, %p55
      %p57 = scmp.ne.s32.totalorder %s48, %s49
      %p58 = scmp.eq.s32.totalorder %s17, 0
      %p59 = por %p57, %p58
      %p60 = scmp.ne.s32.totalorder %s48, %s49
      %p61 = scmp.eq.s32.totalorder %s18, 1
      %p62 = por %p60, %p61
      %p64 = scmp.ne.s32.totalorder %s49, %s63
      %p65 = scmp.eq.s32.totalorder %s18, 0
      %p66 = por %p64, %p65
      %s68 = sadd.s32 %s67, 1
      %p71 = scmp.eq.s32.totalorder %s12, 1
      %p72 = scmp.ne.s32.totalorder %s67, %s69
      %p73 = scmp.eq.s32.totalorder %s12, 0
      %p74 = por %p72, %p73
      %p75 = scmp.ne.s32.totalorder %s67, %s69
      %p76 = scmp.eq.s32.totalorder %s17, 1
      %p77 = por %p75, %p76
      %p78 = scmp.ne.s32.totalorder %s69, %s70
      %p79 = scmp.eq.s32.totalorder %s17, 0
      %p80 = por %p78, %p79
      %p81 = scmp.ne.s32.totalorder %s69, %s70
      %p82 = scmp.eq.s32.totalorder %s18, 1
      %p83 = por %p81, %p82
      %p85 = scmp.ne.s32.totalorder %s70, %s84
      %p86 = scmp.eq.s32.totalorder %s18, 0
      %p87 = por %p85, %p86
      %s88 = ssub.s32 %s12, %s19
      %p89 = scmp.eq.s32.totalorder %s88, 0
      %s91 = sadd.s32 %s90, 1
      %s92 = scalar_select %p89, %s90, %s91
      %p95 = pneg %p89
      %p96 = scmp.eq.s32.totalorder %s12, 1
      %p97 = por %p95, %p96
      %p98 = scmp.ne.s32.totalorder %s90, %s93
      %p99 = scmp.eq.s32.totalorder %s12, 0
      %p100 = por %p98, %p99
      %p101 = scmp.ne.s32.totalorder %s90, %s93
      %p102 = scmp.eq.s32.totalorder %s17, 1
      %p103 = por %p101, %p102
      %p104 = scmp.ne.s32.totalorder %s93, %s94
      %p105 = scmp.eq.s32.totalorder %s17, 0
      %p106 = por %p104, %p105
      %p107 = scmp.ne.s32.totalorder %s93, %s94
      %p108 = scmp.eq.s32.totalorder %s18, 1
      %p109 = por %p107, %p108
      %p111 = scmp.ne.s32.totalorder %s94, %s110
      %p112 = scmp.eq.s32.totalorder %s18, 0
      %p113 = por %p111, %p112
      %p114 = scmp.le.s32.totalorder 1, %s12
      %p115 = scmp.lt.s32.totalorder %s12, 3
      %p116 = pnand %p114, %p115
      %p117 = pneg %p116
      // Predicated region
      $region9: #{forward.37} parent=5 // pred_check
        _
      $region10: #{forward.37} parent=5 // pred_check_branch
        %119 = sbr.rel (%p116) target = $region12
      $region11: #{forward.37} parent=5 // pred_region
        %s120 = ssub.s32 %s12, 1
        // Predicated region
        $region13: #{forward.37} parent=11 // pred_check
          %p121 = pneg %p59
        $region14: #{forward.37} parent=11 // pred_check_branch
          %123 = sbr.rel (%p121) target = $region16
        $region15: #{forward.37} parent=11 // pred_region
          _
        $region16: #{forward.37} parent=11 // pred_fallthru
          _
        // Predicated region
        $region17: #{forward.37} parent=11 // pred_check
          %p124 = pneg %p80
        $region18: #{forward.37} parent=11 // pred_check_branch
          %126 = sbr.rel (%p124) target = $region20
        $region19: #{forward.37} parent=11 // pred_region
          _
        $region20: #{forward.37} parent=11 // pred_fallthru
          _
      $region12: #{forward.37} parent=5 // pred_fallthru
        _
      %p127 = scmp.lt.s32.totalorder %s12, 2
      // Predicated region
      $region21: #{forward.37} parent=5 // pred_check
        %p128 = pneg %p127
      $region22: #{forward.37} parent=5 // pred_check_branch
        %130 = sbr.rel (%p128) target = $region24
      $region23: #{forward.37} parent=5 // pred_region
        // Predicated region
        $region25: #{forward.37} parent=23 // pred_check
          %p131 = pneg %p32
        $region26: #{forward.37} parent=23 // pred_check_branch
          %133 = sbr.rel (%p131) target = $region28
        $region27: #{forward.37} parent=23 // pred_region
          %p134 = scmp.lt.s32.totalorder %s12, 1
          %s135 = scalar_select %p134, %s12, 1
          %s136 = smul.addr %s135, 2
          %s137 = smul.addr %s136, 4
          %s138 = scalar_lea.vmem %s0, %s137
        $region28: #{forward.37} parent=23 // pred_fallthru
          _
      $region24: #{forward.37} parent=5 // pred_fallthru
        _
      %p139 = scmp.le.s32.totalorder 1, %s12
      %p140 = scmp.lt.s32.totalorder %s12, 3
      %p141 = pnand %p139, %p140
      %p142 = pneg %p141
      // Predicated region
      $region29: #{forward.37} parent=5 // pred_check
        _
      $region30: #{forward.37} parent=5 // pred_check_branch
        %144 = sbr.rel (%p141) target = $region32
      $region31: #{forward.37} parent=5 // pred_region
        %s145 = ssub.s32 %s12, 1
        %p146 = scmp.lt.s32.totalorder %s17, 1
        %s147 = scalar_select %p146, %s17, 1
        %s148 = smul.addr %s147, 2
        %s149 = smul.addr %s148, 4
        %s150 = scalar_lea.vmem %s0, %s149
        %p151 = pneg %p38
        %p152 = pneg %p35
        %p153 = pneg %p59
        %p154 = pneg %p56
        %p155 = pneg %p80
        %p156 = pneg %p77
        %p157 = pneg %p106
        %p158 = pneg %p103
        %s159 = sand.u32 %s93, 1
        %s160 = scalar_lea.sflag [#allocation3], %s159
        %s161 = sand.u32 %s93, 1
        %s162 = scalar_lea.vmem [#allocation2], %s161
        %p163 = scmp.lt.s32.totalorder %s17, 1
        %s164 = scalar_select %p163, %s17, 1
        %s165 = smul.addr %s164, 2
        %s166 = smul.addr %s165, 4
        %s167 = scalar_lea.vmem %s0, %s166
        %v168 = vld [vmem:[%s167] sm:$0xf]
        %v169 = vld [vmem:[%s167 + $0x4] sm:$0xf]
        %v170 = vunpack.c.l.bf16 %v168
        %v171 = vunpack.c.l.bf16 %v169
        %v172 = vadd.f32 %v170, %v171
        %v173 = vrot.slane %v172, 4
        %v174 = vadd.f32 %v172, %v173
        %v175 = vrot.slane %v174, 2
        %v176 = vadd.f32 %v174, %v175
        %v177 = vrot.slane %v176, 1
        %v178 = vadd.f32 %v176, %v177
        %v179 = vrcp.pop 16.0
        %v180 = vmul.f32 %v178, %v179
        %v181 = vld [vmem:[%s1] sm:$0xff]
        %v182 = vld [vmem:[%s1 + $0x8] sm:$0xff]
        %v183 = vld [vmem:[%s1 + $0x10] sm:$0xff]
        %v184 = vld [vmem:[%s1 + $0x18] sm:$0xff]
        %v185 = vld [vmem:[%s1 + $0x20] sm:$0xff]
        %v186 = vld [vmem:[%s1 + $0x28] sm:$0xff]
        %v187 = vld [vmem:[%s1 + $0x30] sm:$0xff]
        %v188 = vld [vmem:[%s1 + $0x38] sm:$0xff]
        %v189 = vld [vmem:[%s1 + $0x40] sm:$0xff]
        %v190 = vld [vmem:[%s1 + $0x48] sm:$0xff]
        %v191 = vld [vmem:[%s1 + $0x50] sm:$0xff]
        %v192 = vld [vmem:[%s1 + $0x58] sm:$0xff]
        %v193 = vld [vmem:[%s1 + $0x60] sm:$0xff]
        %v194 = vld [vmem:[%s1 + $0x68] sm:$0xff]
        %v195 = vld [vmem:[%s1 + $0x70] sm:$0xff]
        %v196 = vld [vmem:[%s1 + $0x78] sm:$0xff]
        %v197 = vld [vmem:[%s2] sm:$0x1]
        %198 = vmatprep.subr.mxu0 0.0
        %199 = vmatpush1.msra.mxu0 %v181
        %200 = vmatprep.subr.mxu0 0.0
        %201 = vmatpush1.msra.mxu0 %v182
        %202 = vmatprep.subr.mxu0 0.0
        %203 = vmatpush1.msra.mxu0 %v183
        %204 = vmatprep.subr.mxu0 0.0
        %205 = vmatpush1.msra.mxu0 %v184
        %206 = vmatprep.subr.mxu0 0.0
        %207 = vmatpush1.msra.mxu0 %v185
        %208 = vmatprep.subr.mxu0 0.0
        %209 = vmatpush1.msra.mxu0 %v186
        %210 = vmatprep.subr.mxu0 0.0
        %211 = vmatpush1.msra.mxu0 %v187
        %212 = vmatprep.subr.mxu0 0.0
        %213 = vmatpush1.msra.mxu0 %v188
        %214 = vmatprep.subr.mxu0 0.0
        %215 = vmatpush1.msra.mxu0 %v189
        %216 = vmatprep.subr.mxu0 0.0
        %217 = vmatpush1.msra.mxu0 %v190
        %218 = vmatprep.subr.mxu0 0.0
        %219 = vmatpush1.msra.mxu0 %v191
        %220 = vmatprep.subr.mxu0 0.0
        %221 = vmatpush1.msra.mxu0 %v192
        %222 = vmatprep.subr.mxu0 0.0
        %223 = vmatpush1.msra.mxu0 %v193
        %224 = vmatprep.subr.mxu0 0.0
        %225 = vmatpush1.msra.mxu0 %v194
        %226 = vmatprep.subr.mxu0 0.0
        %227 = vmatpush1.msra.mxu0 %v195
        %228 = vmatprep.subr.mxu0 0.0
        %229 = vmatpush1.msra.mxu0 %v196
        %230 = vmatprep.subr.mxu0 0.0
        %231 = vmatpush1.msra.mxu0 0.0
        %232 = vmatprep.subr.mxu0 0.0
        %233 = vmatpush1.msra.mxu0 0.0
        %234 = vmatprep.subr.mxu0 0.0
        %235 = vmatpush1.msra.mxu0 0.0
        %236 = vmatprep.subr.mxu0 0.0
        %237 = vmatpush1.msra.mxu0 0.0
        %238 = vmatprep.subr.mxu0 0.0
        %239 = vmatpush1.msra.mxu0 0.0
        %240 = vmatprep.subr.mxu0 0.0
        %241 = vmatpush1.msra.mxu0 0.0
        %242 = vmatprep.subr.mxu0 0.0
        %243 = vmatpush1.msra.mxu0 0.0
        %244 = vmatprep.subr.mxu0 0.0
        %245 = vmatpush1.msra.mxu0 0.0
        %246 = vmatprep.subr.mxu0 0.0
        %247 = vmatpush1.msra.mxu0 0.0
        %248 = vmatprep.subr.mxu0 0.0
        %249 = vmatpush1.msra.mxu0 0.0
        %250 = vmatprep.subr.mxu0 0.0
        %251 = vmatpush1.msra.mxu0 0.0
        %252 = vmatprep.subr.mxu0 0.0
        %253 = vmatpush1.msra.mxu0 0.0
        %254 = vmatprep.subr.mxu0 0.0
        %255 = vmatpush1.msra.mxu0 0.0
        %256 = vmatprep.subr.mxu0 0.0
        %257 = vmatpush1.msra.mxu0 0.0
        %258 = vmatprep.subr.mxu0 0.0
        %259 = vmatpush1.msra.mxu0 0.0
        %260 = vmatprep.subr.mxu0 0.0
        %261 = vmatpush1.msra.mxu0 0.0
        %262 = vmatprep.mubr.f32.mxu0 0.0
        %263 = vmatmul.mubr.f32.gmra.mrb[0].mxu0 %v180
        %v264 = vpop.f32.mrb[0].mxu0
        %v265 = vadd.f32 %v197, %v264
        %v266 = vpop.f32.mrb[0].mxu0
        %267 = vdwg.mxu0
        %268 = vst [vmem:[%s162] sm:$0x1] %v265
        %s269 = sand.u32 %s93, 1
        %s270 = scalar_lea.sflag [#allocation3], %s269
        %s271 = sand.u32 %s93, 1
        %s272 = scalar_lea.vmem [#allocation2], %s271
        // Predicated region
        $region33: #{forward.37} parent=31 // pred_check
          %p273 = pneg %p103
        $region34: #{forward.37} parent=31 // pred_check_branch
          %275 = sbr.rel (%p273) target = $region36
        $region35: #{forward.37} parent=31 // pred_region
          %s277 = ssub.s32 16, 16
          %278 = vsyncadd %s270, %s277
          %s279 = smul.addr %s17, 16
          %s280 = scalar_lea.hbm %s3, %s279
          %s282 = sshll.u32 %s272, 4
          %s283 = int_to_ptr.vmem [resolvable:$true] %s282
          %285 = dma.vmem_to_hbm [thread:$0]  %s283, 16, %s280, %s270
        $region36: #{forward.37} parent=31 // pred_fallthru
          _
      $region32: #{forward.37} parent=5 // pred_fallthru
        _
      %p286 = scmp.le.s32.totalorder 2, %s12
      // Predicated region
      $region37: #{forward.37} parent=5 // pred_check
        %p287 = pneg %p286
      $region38: #{forward.37} parent=5 // pred_check_branch
        %289 = sbr.rel (%p287) target = $region40
      $region39: #{forward.37} parent=5 // pred_region
        %s290 = ssub.s32 %s12, 2
        // Predicated region
        $region41: #{forward.37} parent=39 // pred_check
          %p291 = pneg %p109
        $region42: #{forward.37} parent=39 // pred_check_branch
          %293 = sbr.rel (%p291) target = $region44
        $region43: #{forward.37} parent=39 // pred_region
          %s294 = sand.u32 %s94, 1
          %s295 = scalar_lea.sflag [#allocation3], %s294
          %s296 = sand.u32 %s94, 1
          %s297 = scalar_lea.vmem [#allocation2], %s296
          %298 = dma.done %s295, 16
        $region44: #{forward.37} parent=39 // pred_fallthru
          _
      $region40: #{forward.37} parent=5 // pred_fallthru
        _
    $region6: #{forward.37} parent=1 // loop_footer
      %s16 = sadd.s32 1, %s12
    $region7: #{forward.37} parent=1 // loop_footer_branch
      %11 = sbr.rel target = $region3
    $region8: #{forward.37} parent=1 // loop_exit
      _
    %299 = vsyncpa [#allocation3], 1
    %s300 = scalar_lea.sflag [#allocation3], 1
    %301 = vsyncpa %s300, 1

</llo_original>
